<compile_context>
chip_gen: v6e
topology: v6e:2x2x1
jax: 0.10.0
libtpu: 0.0.40
codegen_flags: <defaults>
</compile_context>

<pallas_src>
import functools

import numpy as np
import jax
import jax.numpy as jnp
from jax.experimental import pallas as pl
from jax.experimental.pallas import tpu as pltpu

_BF16 = jnp.bfloat16


def _round_up(x, m):
    return (x + m - 1) // m * m


# Scoped VMEM: ~half of physical (v5e/v6e -> 64 MiB, v7x -> 32 MiB), default 32 MiB.
try:
    _VMEM_LIMIT = int(min(96 * 1024 * 1024,
                          max(32 * 1024 * 1024,
                              pltpu.get_tpu_info().vmem_capacity_bytes // 2)))
except Exception:  # pragma: no cover - info query unavailable
    _VMEM_LIMIT = 32 * 1024 * 1024


def _cparams(*sems):
    return pltpu.CompilerParams(dimension_semantics=sems, vmem_limit_bytes=_VMEM_LIMIT)


def _pick_chunks(Lo, cap):
    """Split Lo flat output rows into balanced chunks of <= cap rows (mult of 8)."""
    cap = max(256, cap)
    if Lo <= cap:
        return _round_up(Lo, 8), 1
    n = -(-Lo // cap)
    tmi = _round_up(-(-Lo // n), 8)
    n = -(-Lo // tmi)
    return tmi, n


# ----------------------------------------------------------------------------
# Tiled matmul + bias + ReLU (1x1 convs, fused sibling 1x1s, im2col'd s2 convs)
# ----------------------------------------------------------------------------

@functools.lru_cache(maxsize=None)
def _build_matmul(Mp, K, N, TM):
    def kernel(a_ref, w_ref, b_ref, o_ref):
        acc = jnp.dot(a_ref[...], w_ref[...], preferred_element_type=jnp.float32)
        o_ref[...] = jnp.maximum(acc + b_ref[...], 0.0).astype(o_ref.dtype)

    return pl.pallas_call(
        kernel,
        out_shape=jax.ShapeDtypeStruct((Mp, N), _BF16),
        grid_spec=pltpu.PrefetchScalarGridSpec(
            num_scalar_prefetch=0,
            grid=(Mp // TM,),
            in_specs=[
                pl.BlockSpec((TM, K), lambda i: (i, 0)),
                pl.BlockSpec((K, N), lambda i: (0, 0)),
                pl.BlockSpec((1, N), lambda i: (0, 0)),
            ],
            out_specs=pl.BlockSpec((TM, N), lambda i: (i, 0)),
        ),
        compiler_params=_cparams("parallel"),
    )


def matmul_bias_relu(a, w, bias):
    """relu(a @ w + bias); a:(M,K) bf16, w:(K,N) bf16, bias:(N,) f32 -> (M,N) bf16."""
    M, K = a.shape
    N = w.shape[1]
    a = a.astype(_BF16)
    # Adaptive TM: ~3 MiB A tile, <=2 MiB f32 accumulator, clamped to [256, 4096].
    tm_k = (3 * 1024 * 1024) // max(1, 2 * K)
    tm_n = (2 * 1024 * 1024) // max(1, 4 * N)
    TM = max(256, min(4096, tm_k, tm_n))
    if M <= TM:
        TM = Mp = _round_up(M, 8)
    else:
        nb = -(-M // TM)
        TM = _round_up(-(-M // nb), 8)
        Mp = _round_up(M, TM)
    if Mp != M:
        a = jnp.pad(a, ((0, Mp - M), (0, 0)))
    out = _build_matmul(Mp, K, N, TM)(
        a, w.astype(_BF16), bias.reshape(1, N).astype(jnp.float32))
    return out[:M] if Mp != M else out


# ----------------------------------------------------------------------------
# Direct KxK stride-1 conv kernel: in-kernel tap grouping (no im2col)
# ----------------------------------------------------------------------------

@functools.lru_cache(maxsize=None)
def _build_conv_taps(B, Lp, Cin, Cout, nchunks, TMI, shifts, groups):
    T = len(shifts)
    Lo_pad = nchunks * TMI

    def kernel(x_ref, w_ref, b_ref, o_ref):
        base = pl.multiple_of(pl.program_id(1) * TMI, 8)
        acc = jnp.zeros((TMI, Cout), jnp.float32)
        off = 0
        for g in groups:
            if g == 1:
                a = x_ref[pl.ds(base + shifts[off], TMI), :]
            else:
                # Concatenate g tap-shifted windows along channels -> wide MXU
                # contraction (K = g*Cin instead of K = Cin per matmul).
                a = jnp.concatenate(
                    [x_ref[pl.ds(base + shifts[off + t], TMI), :] for t in range(g)],
                    axis=-1)
            acc = acc + jnp.dot(a, w_ref[off * Cin:(off + g) * Cin, :],
                                preferred_element_type=jnp.float32)
            off += g
        o_ref[...] = jnp.maximum(acc + b_ref[...], 0.0).astype(o_ref.dtype)

    return pl.pallas_call(
        kernel,
        out_shape=jax.ShapeDtypeStruct((B, Lo_pad, Cout), _BF16),
        grid_spec=pltpu.PrefetchScalarGridSpec(
            num_scalar_prefetch=0,
            grid=(B, nchunks),
            in_specs=[
                pl.BlockSpec((None, Lp, Cin), lambda b, c: (b, 0, 0)),     # resident
                pl.BlockSpec((T * Cin, Cout), lambda b, c: (0, 0)),        # resident
                pl.BlockSpec((1, Cout), lambda b, c: (0, 0)),
            ],
            out_specs=pl.BlockSpec((None, TMI, Cout), lambda b, c: (b, c, 0)),
        ),
        compiler_params=_cparams("parallel", "parallel"),
    )


_CONV_GROUPS = {}  # per-shape record of the tap grouping that lowers cleanly


def _tap_groups(T, g):
    out, r = [], T
    while r > 0:
        take = min(g, r)
        out.append(take)
        r -= take
    return tuple(out)


def _conv_taps(x, w4, bias, ph, pw):
    """KxK stride-1 conv via tap-shifted windows of the flat padded activation."""
    B, H, W, Cin = x.shape
    KH, KW, _, Cout = w4.shape
    T = KH * KW
    Wv = W + 2 * pw                       # true padded width
    Wq = _round_up(Wv, 8)                 # sublane-aligned row stride
    OHv = H + 2 * ph - KH + 1             # valid output rows
    OWv = Wv - KW + 1                     # valid output cols
    Lo = OHv * Wq                         # "wide" flat output (garbage cols sliced off)

    # Tap grouping so each MXU matmul contracts ~256-512 elements.
    G = 1 if Cin >= 256 else max(1, min(T, 512 // Cin))
    Kgrp = G * Cin
    per_row = 2 * Kgrp + 6 * Cout         # bf16 staging + f32 acc + bf16 out
    TMI, nchunks = _pick_chunks(Lo, min(4096, (2 * 1024 * 1024) // per_row))
    Lo_pad = nchunks * TMI

    max_shift = (KH - 1) * Wq + (KW - 1)
    Hext = -(-(Lo_pad + max_shift) // Wq)  # rows so every in-kernel read is in-bounds
    xp = jnp.pad(x, ((0, 0), (ph, Hext - H - ph), (pw, Wq - W - pw), (0, 0)))
    xf = xp.reshape(B, Hext * Wq, Cin)
    shifts = tuple(dy * Wq + dx for dy in range(KH) for dx in range(KW))
    w2 = w4.reshape(T * Cin, Cout).astype(_BF16)
    b2 = bias.reshape(1, Cout).astype(jnp.float32)

    cfg = (B, Hext * Wq, Cin, Cout, nchunks, TMI, shifts)
    groups = _CONV_GROUPS.get(cfg, _tap_groups(T, G))
    try:
        yf = _build_conv_taps(*cfg, groups)(xf, w2, b2)
    except Exception:
        if groups == _tap_groups(T, 1):
            raise
        groups = _tap_groups(T, 1)        # per-shape fallback: tap-by-tap matmuls
        yf = _build_conv_taps(*cfg, groups)(xf, w2, b2)
    _CONV_GROUPS[cfg] = groups
    return yf[:, :Lo, :].reshape(B, OHv, Wq, Cout)[:, :, :OWv, :]


def _conv_im2col(x, w4, bias, stride, padding):
    """im2col + matmul path (only the 5 stride-2 convs)."""
    B, H, W, Cin = x.shape
    KH, KW, _, Cout = w4.shape
    sh, sw = stride
    ph, pw = padding
    if ph or pw:
        x = jnp.pad(x, ((0, 0), (ph, ph), (pw, pw), (0, 0)))
    Hp, Wp = H + 2 * ph, W + 2 * pw
    OH = (Hp - KH) // sh + 1
    OW = (Wp - KW) // sw + 1
    cols = [
        jax.lax.slice(x, (0, dy, dx, 0),
                      (B, dy + (OH - 1) * sh + 1, dx + (OW - 1) * sw + 1, Cin),
                      (1, sh, sw, 1))
        for dy in range(KH) for dx in range(KW)
    ]
    a = jnp.concatenate(cols, axis=-1).reshape(B * OH * OW, KH * KW * Cin)
    y = matmul_bias_relu(a, w4.reshape(KH * KW * Cin, Cout), bias)
    return y.reshape(B, OH, OW, Cout)


def conv_bn_relu(x, p, stride=(1, 1), padding=(0, 0)):
    """BasicConv2d: Conv2d(bias=False) + BatchNorm2d(eps=1e-3, eval, folded) + ReLU."""
    w4, bias = p["w"], p["b"]
    KH, KW, Cin, Cout = w4.shape
    B, H, W, _ = x.shape
    x = x.astype(_BF16)
    if KH == 1 and KW == 1 and stride == (1, 1):
        y = matmul_bias_relu(x.reshape(B * H * W, Cin), w4.reshape(Cin, Cout), bias)
        return y.reshape(B, H, W, Cout)
    if stride == (1, 1):
        return _conv_taps(x, w4, bias, padding[0], padding[1])
    return _conv_im2col(x, w4, bias, stride, padding)


def conv1x1_multi(x, plist):
    """Fused sibling 1x1 convs: one lane-dense matmul over the shared activation."""
    B, H, W, Cin = x.shape
    w = jnp.concatenate([q["w"].reshape(Cin, -1) for q in plist], axis=1)
    b = jnp.concatenate([q["b"] for q in plist], axis=0)
    y = matmul_bias_relu(x.reshape(B * H * W, Cin).astype(_BF16), w, b)
    outs, off = [], 0
    for q in plist:
        n = q["w"].shape[-1]
        outs.append(y[:, off:off + n].reshape(B, H, W, n))
        off += n
    return outs


# ----------------------------------------------------------------------------
# 3x3 pooling kernels (flat-window, per-chunk output blocks)
# ----------------------------------------------------------------------------

@functools.lru_cache(maxsize=None)
def _build_pool(B, P, Lp, C, nchunks, TMI, taps, mode):
    Lo_pad = nchunks * TMI

    if mode == "max":
        def kernel(x_ref, o_ref):
            base = pl.multiple_of(pl.program_id(1) * TMI, 8)
            p0, s0 = taps[0]
            r = x_ref[p0, pl.ds(base + s0, TMI), :]
            for p, s in taps[1:]:
                r = jnp.maximum(r, x_ref[p, pl.ds(base + s, TMI), :])
            o_ref[...] = r.astype(o_ref.dtype)

        in_specs = [pl.BlockSpec((None, P, Lp, C), lambda b, c: (b, 0, 0, 0))]
    else:  # avg: f32 window sum with fused count_include_pad=False reciprocal
        def kernel(x_ref, inv_ref, o_ref):
            base = pl.multiple_of(pl.program_id(1) * TMI, 8)
            p0, s0 = taps[0]
            acc = x_ref[p0, pl.ds(base + s0, TMI), :].astype(jnp.float32)
            for p, s in taps[1:]:
                acc = acc + x_ref[p, pl.ds(base + s, TMI), :].astype(jnp.float32)
            o_ref[...] = (acc * inv_ref[...]).astype(o_ref.dtype)

        in_specs = [pl.BlockSpec((None, P, Lp, C), lambda b, c: (b, 0, 0, 0)),
                    pl.BlockSpec((TMI, 1), lambda b, c: (c, 0))]

    return pl.pallas_call(
        kernel,
        out_shape=jax.ShapeDtypeStruct((B, Lo_pad, C), _BF16),
        grid_spec=pltpu.PrefetchScalarGridSpec(
            num_scalar_prefetch=0,
            grid=(B, nchunks),
            in_specs=in_specs,
            out_specs=pl.BlockSpec((None, TMI, C), lambda b, c: (b, c, 0)),
        ),
        compiler_params=_cparams("parallel", "parallel"),
    )


def _make_inv_counts(OHv, Wq, OWv, pad, Lo_pad):
    """Reciprocal of valid-tap counts (count_include_pad=False), wide flat layout."""
    ch = jnp.full((OHv,), 3.0, jnp.float32)
    cw = jnp.ones((Wq,), jnp.float32).at[:OWv].set(3.0)
    if pad:
        ch = ch.at[0].set(2.0).at[OHv - 1].set(2.0)
        cw = cw.at[0].set(2.0).at[OWv - 1].set(2.0)
    inv = (1.0 / (ch[:, None] * cw[None, :])).reshape(-1)
    inv = jnp.pad(inv, (0, Lo_pad - OHv * Wq), constant_values=1.0)
    return inv[:, None]


def _pool_s1(x, padding, mode):
    """Stride-1 3x3 pooling over the padded grid via the flat-window kernel."""
    B, H, W, C = x.shape
    Wv = W + 2 * padding
    Wq = _round_up(Wv, 8)
    OHv = H + 2 * padding - 2
    OWv = Wv - 2
    Lo = OHv * Wq
    TMI, nchunks = _pick_chunks(Lo, min(4096, (1024 * 1024) // (2 * C)))
    Lo_pad = nchunks * TMI
    max_shift = 2 * Wq + 2
    Hext = -(-(Lo_pad + max_shift) // Wq)
    pv = float("-inf") if mode == "max" else 0.0
    xp = jnp.pad(x, ((0, 0), (padding, Hext - H - padding),
                     (padding, Wq - W - padding), (0, 0)), constant_values=pv)
    xf = xp.reshape(B, 1, Hext * Wq, C)
    taps = tuple((0, dy * Wq + dx) for dy in range(3) for dx in range(3))
    fn = _build_pool(B, 1, Hext * Wq, C, nchunks, TMI, taps, mode)
    if mode == "max":
        yf = fn(xf)
    else:
        yf = fn(xf, _make_inv_counts(OHv, Wq, OWv, padding, Lo_pad))
    return yf[:, :Lo, :].reshape(B, OHv, Wq, C)[:, :, :OWv, :]


def _pool_s2_max(x):
    """3x3 stride-2 max pool (no padding) via even/odd row+column parity planes."""
    B, H, W, C = x.shape
    OH = (H - 3) // 2 + 1
    OW = (W - 3) // 2 + 1
    xe = x[:, 0:2 * OH + 1:2]             # even rows   (B, OH+1, W, C)
    xo = x[:, 1:2 * OH:2]                 # odd rows    (B, OH,   W, C)
    ee = xe[:, :, 0:2 * OW + 1:2]         # (B, OH+1, OW+1, C)
    eo = xe[:, :, 1:2 * OW:2]             # (B, OH+1, OW,   C)
    oe = xo[:, :, 0:2 * OW + 1:2]         # (B, OH,   OW+1, C)
    oo = xo[:, :, 1:2 * OW:2]             # (B, OH,   OW,   C)

    Wq = _round_up(OW + 1, 8)
    Lo = OH * Wq
    TMI, nchunks = _pick_chunks(Lo, min(4096, (1024 * 1024) // (2 * C)))
    Lo_pad = nchunks * TMI
    max_shift = Wq + 1
    Hext = -(-(Lo_pad + max_shift) // Wq)

    def prep(t):
        _, h, w, _ = t.shape
        t = jnp.pad(t, ((0, 0), (0, Hext - h), (0, Wq - w), (0, 0)),
                    constant_values=float("-inf"))
        return t.reshape(B, Hext * Wq, C)

    xs = jnp.stack([prep(ee), prep(eo), prep(oe), prep(oo)], axis=1)  # (B,4,L,C)
    # out[oh,ow] = max of the 9 original taps expressed as parity-plane shifts.
    taps = ((0, 0), (1, 0), (0, 1),
            (2, 0), (3, 0), (2, 1),
            (0, Wq), (1, Wq), (0, Wq + 1))
    fn = _build_pool(B, 4, Hext * Wq, C, nchunks, TMI, taps, "max")
    yf = fn(xs)
    return yf[:, :Lo, :].reshape(B, OH, Wq, C)[:, :, :OW, :]


def pool2d_3x3(x, stride, padding, mode):
    """3x3 pooling (NHWC). mode: 'max' or 'avg' (count_include_pad=False)."""
    x = x.astype(_BF16)
    if stride == 1:
        return _pool_s1(x, padding, mode)
    assert stride == 2 and padding == 0 and mode == "max"
    return _pool_s2_max(x)


# ----------------------------------------------------------------------------
# Global average pool (AdaptiveAvgPool2d((1,1)))
# ----------------------------------------------------------------------------

@functools.lru_cache(maxsize=None)
def _build_gap(B, L, C, TC):
    inv = 1.0 / float(L)

    def kernel(x_ref, o_ref):
        o_ref[...] = jnp.sum(x_ref[...].astype(jnp.float32), axis=1) * inv

    return pl.pallas_call(
        kernel,
        out_shape=jax.ShapeDtypeStruct((B, C), jnp.float32),
        grid_spec=pltpu.PrefetchScalarGridSpec(
            num_scalar_prefetch=0,
            grid=(C // TC,),
            in_specs=[pl.BlockSpec((B, L, TC), lambda i: (0, 0, i))],
            out_specs=pl.BlockSpec((B, TC), lambda i: (0, i)),
        ),
        compiler_params=_cparams("parallel"),
    )


def global_avg_pool(x):
    """(B,H,W,C) -> (B,C) float32."""
    B, H, W, C = x.shape
    TC = 256 if C % 256 == 0 else (128 if C % 128 == 0 else C)
    return _build_gap(B, H * W, C, TC)(x.reshape(B, H * W, C).astype(_BF16))


# ----------------------------------------------------------------------------
# Deterministic parameter initialization (synthetic, no checkpoint)
# ----------------------------------------------------------------------------

class _KeyGen:
    def __init__(self, seed):
        self._key = jax.random.PRNGKey(seed)

    def __call__(self):
        self._key, sub = jax.random.split(self._key)
        return sub


def _init_conv(kg, kh, kw, cin, cout):
    w = jax.random.normal(kg(), (kh, kw, cin, cout), jnp.float32) * np.sqrt(2.0 / (kh * kw * cin))
    # BatchNorm2d(eps=1e-3) folded at eval: gamma=1, beta=0, mean=0, var=1.
    scale = jnp.full((cout,), 1.0 / np.sqrt(1.0 + 1e-3), jnp.float32)
    bias = jnp.zeros((cout,), jnp.float32)
    return {"w": (w * scale[None, None, None, :]).astype(_BF16), "b": bias}


def _init_inception_a(kg, cin, pool_features):
    return {
        "b1x1": _init_conv(kg, 1, 1, cin, 64),
        "b5x5_1": _init_conv(kg, 1, 1, cin, 48),
        "b5x5_2": _init_conv(kg, 5, 5, 48, 64),
        "b3dbl_1": _init_conv(kg, 1, 1, cin, 64),
        "b3dbl_2": _init_conv(kg, 3, 3, 64, 96),
        "b3dbl_3": _init_conv(kg, 3, 3, 96, 96),
        "pool": _init_conv(kg, 1, 1, cin, pool_features),
    }


def _init_inception_b(kg, cin):
    return {
        "b3x3": _init_conv(kg, 3, 3, cin, 384),
        "b3dbl_1": _init_conv(kg, 1, 1, cin, 64),
        "b3dbl_2": _init_conv(kg, 3, 3, 64, 96),
        "b3dbl_3": _init_conv(kg, 3, 3, 96, 96),
    }


def _init_inception_c(kg, cin, c7):
    return {
        "b1x1": _init_conv(kg, 1, 1, cin, 192),
        "b7_1": _init_conv(kg, 1, 1, cin, c7),
        "b7_2": _init_conv(kg, 1, 7, c7, c7),
        "b7_3": _init_conv(kg, 7, 1, c7, 192),
        "b7d_1": _init_conv(kg, 1, 1, cin, c7),
        "b7d_2": _init_conv(kg, 7, 1, c7, c7),
        "b7d_3": _init_conv(kg, 1, 7, c7, c7),
        "b7d_4": _init_conv(kg, 7, 1, c7, c7),
        "b7d_5": _init_conv(kg, 1, 7, c7, 192),
        "pool": _init_conv(kg, 1, 1, cin, 192),
    }


def _init_inception_d(kg, cin):
    return {
        "b3_1": _init_conv(kg, 1, 1, cin, 192),
        "b3_2": _init_conv(kg, 3, 3, 192, 320),
        "b7_1": _init_conv(kg, 1, 1, cin, 192),
        "b7_2": _init_conv(kg, 1, 7, 192, 192),
        "b7_3": _init_conv(kg, 7, 1, 192, 192),
        "b7_4": _init_conv(kg, 3, 3, 192, 192),
    }


def _init_inception_e(kg, cin):
    return {
        "b1x1": _init_conv(kg, 1, 1, cin, 320),
        "b3_1": _init_conv(kg, 1, 1, cin, 384),
        "b3_2a": _init_conv(kg, 1, 3, 384, 384),
        "b3_2b": _init_conv(kg, 3, 1, 384, 384),
        "bd_1": _init_conv(kg, 1, 1, cin, 448),
        "bd_2": _init_conv(kg, 3, 3, 448, 384),
        "bd_3a": _init_conv(kg, 1, 3, 384, 384),
        "bd_3b": _init_conv(kg, 3, 1, 384, 384),
        "pool": _init_conv(kg, 1, 1, cin, 192),
    }


# ----------------------------------------------------------------------------
# Inception blocks (FID-patched forwards), sibling 1x1 convs fused
# ----------------------------------------------------------------------------

def _inception_a(x, p):  # FIDInceptionA
    b1, b5, b3 = conv1x1_multi(x, [p["b1x1"], p["b5x5_1"], p["b3dbl_1"]])
    b5 = conv_bn_relu(b5, p["b5x5_2"], padding=(2, 2))
    b3 = conv_bn_relu(b3, p["b3dbl_2"], padding=(1, 1))
    b3 = conv_bn_relu(b3, p["b3dbl_3"], padding=(1, 1))
    bp = pool2d_3x3(x, stride=1, padding=1, mode="avg")
    bp = conv_bn_relu(bp, p["pool"])
    return jnp.concatenate([b1, b5, b3, bp], axis=-1)


def _inception_b(x, p):  # torchvision InceptionB (Mixed_6a)
    b3 = conv_bn_relu(x, p["b3x3"], stride=(2, 2))
    bd = conv_bn_relu(x, p["b3dbl_1"])
    bd = conv_bn_relu(bd, p["b3dbl_2"], padding=(1, 1))
    bd = conv_bn_relu(bd, p["b3dbl_3"], stride=(2, 2))
    bp = pool2d_3x3(x, stride=2, padding=0, mode="max")
    return jnp.concatenate([b3, bd, bp], axis=-1)


def _inception_c(x, p):  # FIDInceptionC
    b1, b7, bd = conv1x1_multi(x, [p["b1x1"], p["b7_1"], p["b7d_1"]])
    b7 = conv_bn_relu(b7, p["b7_2"], padding=(0, 3))
    b7 = conv_bn_relu(b7, p["b7_3"], padding=(3, 0))
    bd = conv_bn_relu(bd, p["b7d_2"], padding=(3, 0))
    bd = conv_bn_relu(bd, p["b7d_3"], padding=(0, 3))
    bd = conv_bn_relu(bd, p["b7d_4"], padding=(3, 0))
    bd = conv_bn_relu(bd, p["b7d_5"], padding=(0, 3))
    bp = pool2d_3x3(x, stride=1, padding=1, mode="avg")
    bp = conv_bn_relu(bp, p["pool"])
    return jnp.concatenate([b1, b7, bd, bp], axis=-1)


def _inception_d(x, p):  # torchvision InceptionD (Mixed_7a)
    b3, b7 = conv1x1_multi(x, [p["b3_1"], p["b7_1"]])
    b3 = conv_bn_relu(b3, p["b3_2"], stride=(2, 2))
    b7 = conv_bn_relu(b7, p["b7_2"], padding=(0, 3))
    b7 = conv_bn_relu(b7, p["b7_3"], padding=(3, 0))
    b7 = conv_bn_relu(b7, p["b7_4"], stride=(2, 2))
    bp = pool2d_3x3(x, stride=2, padding=0, mode="max")
    return jnp.concatenate([b3, b7, bp], axis=-1)


def _inception_e(x, p, pool_mode):  # FIDInceptionE_1 ('avg') / FIDInceptionE_2 ('max')
    b1, b3, bd = conv1x1_multi(x, [p["b1x1"], p["b3_1"], p["bd_1"]])
    b3 = jnp.concatenate(
        [conv_bn_relu(b3, p["b3_2a"], padding=(0, 1)),
         conv_bn_relu(b3, p["b3_2b"], padding=(1, 0))], axis=-1)
    bd = conv_bn_relu(bd, p["bd_2"], padding=(1, 1))
    bd = jnp.concatenate(
        [conv_bn_relu(bd, p["bd_3a"], padding=(0, 1)),
         conv_bn_relu(bd, p["bd_3b"], padding=(1, 0))], axis=-1)
    bp = pool2d_3x3(x, stride=1, padding=1, mode=pool_mode)
    bp = conv_bn_relu(bp, p["pool"])
    return jnp.concatenate([b1, b3, bd, bp], axis=-1)


# ----------------------------------------------------------------------------
# InceptionV3 feature extractor (FID variant, synthetic weights)
# ----------------------------------------------------------------------------

class InceptionV3:
    """FID InceptionV3 returning feature maps. Input: NCHW in [0,1]; outputs NCHW."""
    DEFAULT_BLOCK_INDEX = 3
    BLOCK_INDEX_BY_DIM = {64: 0, 192: 1, 768: 2, 2048: 3}

    def __init__(self, output_blocks=(DEFAULT_BLOCK_INDEX,), resize_input=True,
                 normalize_input=True, seed=0):
        self.resize_input = resize_input
        self.normalize_input = normalize_input
        self.output_blocks = sorted(output_blocks)
        self.last_needed_block = max(output_blocks)
        assert self.last_needed_block <= 3, "Last possible output block index is 3"
        kg = _KeyGen(seed)
        p = {}
        # block 0
        p["c1a"] = _init_conv(kg, 3, 3, 3, 32)
        p["c2a"] = _init_conv(kg, 3, 3, 32, 32)
        p["c2b"] = _init_conv(kg, 3, 3, 32, 64)
        if self.last_needed_block >= 1:
            p["c3b"] = _init_conv(kg, 1, 1, 64, 80)
            p["c4a"] = _init_conv(kg, 3, 3, 80, 192)
        if self.last_needed_block >= 2:
            p["m5b"] = _init_inception_a(kg, 192, 32)
            p["m5c"] = _init_inception_a(kg, 256, 64)
            p["m5d"] = _init_inception_a(kg, 288, 64)
            p["m6a"] = _init_inception_b(kg, 288)
            p["m6b"] = _init_inception_c(kg, 768, 128)
            p["m6c"] = _init_inception_c(kg, 768, 160)
            p["m6d"] = _init_inception_c(kg, 768, 160)
            p["m6e"] = _init_inception_c(kg, 768, 192)
        if self.last_needed_block >= 3:
            p["m7a"] = _init_inception_d(kg, 768)
            p["m7b"] = _init_inception_e(kg, 1280)
            p["m7c"] = _init_inception_e(kg, 2048)
        self.params = p

    # --- blocks (NHWC in/out) ---
    def _block0(self, x):
        p = self.params
        x = conv_bn_relu(x, p["c1a"], stride=(2, 2))       # TODO(synk): space-to-depth stem
        x = conv_bn_relu(x, p["c2a"])
        x = conv_bn_relu(x, p["c2b"], padding=(1, 1))
        return pool2d_3x3(x, stride=2, padding=0, mode="max")

    def _block1(self, x):
        p = self.params
        x = conv_bn_relu(x, p["c3b"])
        x = conv_bn_relu(x, p["c4a"])
        return pool2d_3x3(x, stride=2, padding=0, mode="max")

    def _block2(self, x):
        p = self.params
        x = _inception_a(x, p["m5b"])
        x = _inception_a(x, p["m5c"])
        x = _inception_a(x, p["m5d"])
        x = _inception_b(x, p["m6a"])
        x = _inception_c(x, p["m6b"])
        x = _inception_c(x, p["m6c"])
        x = _inception_c(x, p["m6d"])
        x = _inception_c(x, p["m6e"])
        return x

    def _block3(self, x):
        p = self.params
        x = _inception_d(x, p["m7a"])
        x = _inception_e(x, p["m7b"], pool_mode="avg")
        x = _inception_e(x, p["m7c"], pool_mode="max")
        x = global_avg_pool(x)          # (B, 2048) float32
        return x[:, None, None, :]      # (B, 1, 1, 2048) NHWC

    def __call__(self, inp):
        """inp: (B, 3, H, W) NCHW in [0,1]. Returns list of NCHW feature maps."""
        outp = []
        x = inp.astype(jnp.float32)
        if self.resize_input:
            B = x.shape[0]
            # glue: bilinear resize to 299x299 (align_corners=False semantics)
            x = jax.image.resize(x, (B, 3, 299, 299), method="bilinear")
        if self.normalize_input:
            x = 2.0 * x - 1.0
        x = jnp.transpose(x, (0, 2, 3, 1)).astype(_BF16)  # NCHW -> NHWC for the kernels
        blocks = [self._block0, self._block1, self._block2, self._block3]
        for idx in range(self.last_needed_block + 1):
            x = blocks[idx](x)
            if idx in self.output_blocks:
                outp.append(jnp.transpose(x, (0, 3, 1, 2)).astype(jnp.float32))
            if idx == self.last_needed_block:
                break
        return outp


if __name__ == "__main__":
    key = jax.random.PRNGKey(0)
    x = jax.random.uniform(key, (2, 3, 16, 16), dtype=jnp.float32)  # B x 3 x H x W in [0,1]
    model = InceptionV3(output_blocks=[3])
    feats = model(x)
    feats = [jax.block_until_ready(f) for f in feats]
    assert len(feats) == 1
    assert feats[0].shape == (2, 2048, 1, 1), feats[0].shape
    assert bool(jnp.all(jnp.isfinite(feats[0])))
    print("KERNEL_OK")
</pallas_src>

<mosaic_0001>
module attributes {stable_mosaic.version = 11 : i64} {
  func.func @kernel(%arg0: i32, %arg1: memref<4040x27xbf16, #tpu.memory_space<vmem>>, %arg2: memref<27x32xbf16, #tpu.memory_space<vmem>>, %arg3: memref<1x32xf32, #tpu.memory_space<vmem>>, %arg4: memref<4040x32xbf16, #tpu.memory_space<vmem>>) attributes {dimension_semantics = [#tpu.dimension_semantics<parallel>], iteration_bounds = array<i64: 11>, scalar_prefetch = 0 : i64, scratch_operands = 0 : i64, tpu.core_type = #tpu.core_type<tc>, window_params = [{transform_indices = @transform_0, window_bounds = array<i64: 4040, 27>}, {pipeline_mode = #tpu.pipeline_mode<synchronous>, transform_indices = @transform_1, window_bounds = array<i64: 27, 32>}, {pipeline_mode = #tpu.pipeline_mode<synchronous>, transform_indices = @transform_2, window_bounds = array<i64: 1, 32>}, {transform_indices = @transform_3, window_bounds = array<i64: 4040, 32>}]} {
    %c0 = arith.constant 0 : index
    %c0_0 = arith.constant 0 : index
    %0 = vector.load %arg1[%c0, %c0_0] : memref<4040x27xbf16, #tpu.memory_space<vmem>>, vector<4040x27xbf16>
    %c0_1 = arith.constant 0 : index
    %c0_2 = arith.constant 0 : index
    %1 = vector.load %arg2[%c0_1, %c0_2] : memref<27x32xbf16, #tpu.memory_space<vmem>>, vector<27x32xbf16>
    %cst = arith.constant dense<0.000000e+00> : vector<4040x32xf32>
    %2 = tpu.matmul %0, %1, %cst {dimension_numbers = #tpu.dot_dimension_numbers<[1], [0], [0], [1], [0, 0, 1, 1], [], []>} : vector<4040x27xbf16>, vector<27x32xbf16>, vector<4040x32xf32> -> vector<4040x32xf32>
    %c0_3 = arith.constant 0 : index
    %c0_4 = arith.constant 0 : index
    %3 = vector.load %arg3[%c0_3, %c0_4] : memref<1x32xf32, #tpu.memory_space<vmem>>, vector<1x32xf32>
    %4 = vector.broadcast %3 : vector<1x32xf32> to vector<4040x32xf32>
    %5 = arith.addf %2, %4 : vector<4040x32xf32>
    %cst_5 = arith.constant 0.000000e+00 : f32
    %6 = vector.broadcast %cst_5 : f32 to vector<4040x32xf32>
    %7 = arith.maximumf %5, %6 : vector<4040x32xf32>
    %8 = arith.truncf %7 : vector<4040x32xf32> to vector<4040x32xbf16>
    %c0_6 = arith.constant 0 : index
    %c0_7 = arith.constant 0 : index
    %9 = vector.load %arg4[%c0_6, %c0_7] : memref<4040x32xbf16, #tpu.memory_space<vmem>>, vector<4040x32xbf16>
    tpu.vector_store %arg4[%c0_6, %c0_7], %8 {strides = array<i32>} : memref<4040x32xbf16, #tpu.memory_space<vmem>>, vector<4040x32xbf16>,
    return
  }
  func.func @transform_0(%arg0: i32) -> (i32, i32) {
    %c0_i32 = arith.constant 0 : i32
    %c0_i32_0 = arith.constant 0 : i32
    return %arg0, %c0_i32 : i32, i32
  }
  func.func @transform_1(%arg0: i32) -> (i32, i32) {
    %c0_i32 = arith.constant 0 : i32
    %c0_i32_0 = arith.constant 0 : i32
    %c0_i32_1 = arith.constant 0 : i32
    return %c0_i32, %c0_i32_0 : i32, i32
  }
  func.func @transform_2(%arg0: i32) -> (i32, i32) {
    %c0_i32 = arith.constant 0 : i32
    %c0_i32_0 = arith.constant 0 : i32
    %c0_i32_1 = arith.constant 0 : i32
    return %c0_i32, %c0_i32_0 : i32, i32
  }
  func.func @transform_3(%arg0: i32) -> (i32, i32) {
    %c0_i32 = arith.constant 0 : i32
    %c0_i32_0 = arith.constant 0 : i32
    return %arg0, %c0_i32 : i32, i32
  }
}

</mosaic_0001>

<llo_original>
// kernel: tpu_custom_call.1
$region0: #{tpu_custom_call.1}
  #allocation0 [shape = 'u32[]', space=smem, size = 0x4, offset = 0x4, fixed_abs, tag = 'smem constant byte address 0x4 - core index']
  #allocation1 [shape = 'u32[144,128]{1,0:T(1,128)}', space=vmem, size = 0x12000, scoped, tag = 'internal scratch']
  %s0 = inlined_call_operand.vmem [shape: bf16[44440,27], index: 0, kind: input, shape index: {}]
  %s1 = inlined_call_operand.vmem [shape: bf16[27,32], index: 1, kind: input, shape index: {}]
  %s2 = inlined_call_operand.vmem [shape: f32[1,32], index: 2, kind: input, shape index: {}]
  %s3 = inlined_call_operand.vmem [shape: bf16[44440,32], index: 3, kind: output, shape index: {}]
  %s4 = sld [smem:[#allocation0]]
  $region45: #{tpu_custom_call.1} parent=0
    _
  %s6 = ssub.s32 1, %s4
  %s7 = scalar_select 0, %s6, %s4
  loop: start=0, step=1, limit=13
  $region2: #{tpu_custom_call.1} parent=0 // loop_pre_header
    _
  $region3: #{tpu_custom_call.1} parent=0 // loop_header
    %s9 = sphi 0, %s13
    %p10 = scmp.ge.s32.totalorder %s9, 13
    %s19 = sphi 0, %s21
    %s22 = sphi 0, %s19
    %s23 = sphi 0, %s22
    %s39 = sphi 0, %s23
    %s43 = sphi 0, %s43
    %s45 = sphi 0, %s43
    %s46 = sphi 0, %s45
    %s60 = sphi 0, %s46
    %s64 = sphi 0, %s64
    %s66 = sphi 0, %s64
    %s67 = sphi 0, %s66
    %s81 = sphi 0, %s67
    %s87 = sphi 0, %s89
    %s90 = sphi 0, %s87
    %s91 = sphi 0, %s90
    %s107 = sphi 0, %s91
  $region4: #{tpu_custom_call.1} parent=0 // loop_header_branch
    %12 = sbr.rel (%p10) target = $region8
  $region5: #{tpu_custom_call.1} parent=0 // loop_body
    %s14 = ssub.s32 %s9, 1
    %s15 = ssub.s32 %s9, 2
    %s16 = sadd.s32 %s9, 1
    %s17 = ssub.s32 %s9, %s16
    %p18 = scmp.eq.s32.totalorder %s17, 0
    %s20 = sadd.s32 %s19, 1
    %s21 = scalar_select %p18, %s19, %s20
    %p24 = pneg %p18
    %p25 = scmp.eq.s32.totalorder %s9, 10
    %p26 = por %p24, %p25
    %p27 = scmp.ne.s32.totalorder %s19, %s22
    %p28 = scmp.eq.s32.totalorder %s9, 0
    %p29 = por %p27, %p28
    %p30 = scmp.ne.s32.totalorder %s19, %s22
    %p31 = scmp.eq.s32.totalorder %s14, 10
    %p32 = por %p30, %p31
    %p33 = scmp.ne.s32.totalorder %s22, %s23
    %p34 = scmp.eq.s32.totalorder %s14, 0
    %p35 = por %p33, %p34
    %p36 = scmp.ne.s32.totalorder %s22, %s23
    %p37 = scmp.eq.s32.totalorder %s15, 10
    %p38 = por %p36, %p37
    %p40 = scmp.ne.s32.totalorder %s23, %s39
    %p41 = scmp.eq.s32.totalorder %s15, 0
    %p42 = por %p40, %p41
    %s44 = sadd.s32 %s43, 1
    %p47 = scmp.eq.s32.totalorder %s9, 10
    %p48 = scmp.ne.s32.totalorder %s43, %s45
    %p49 = scmp.eq.s32.totalorder %s9, 0
    %p50 = por %p48, %p49
    %p51 = scmp.ne.s32.totalorder %s43, %s45
    %p52 = scmp.eq.s32.totalorder %s14, 10
    %p53 = por %p51, %p52
    %p54 = scmp.ne.s32.totalorder %s45, %s46
    %p55 = scmp.eq.s32.totalorder %s14, 0
    %p56 = por %p54, %p55
    %p57 = scmp.ne.s32.totalorder %s45, %s46
    %p58 = scmp.eq.s32.totalorder %s15, 10
    %p59 = por %p57, %p58
    %p61 = scmp.ne.s32.totalorder %s46, %s60
    %p62 = scmp.eq.s32.totalorder %s15, 0
    %p63 = por %p61, %p62
    %s65 = sadd.s32 %s64, 1
    %p68 = scmp.eq.s32.totalorder %s9, 10
    %p69 = scmp.ne.s32.totalorder %s64, %s66
    %p70 = scmp.eq.s32.totalorder %s9, 0
    %p71 = por %p69, %p70
    %p72 = scmp.ne.s32.totalorder %s64, %s66
    %p73 = scmp.eq.s32.totalorder %s14, 10
    %p74 = por %p72, %p73
    %p75 = scmp.ne.s32.totalorder %s66, %s67
    %p76 = scmp.eq.s32.totalorder %s14, 0
    %p77 = por %p75, %p76
    %p78 = scmp.ne.s32.totalorder %s66, %s67
    %p79 = scmp.eq.s32.totalorder %s15, 10
    %p80 = por %p78, %p79
    %p82 = scmp.ne.s32.totalorder %s67, %s81
    %p83 = scmp.eq.s32.totalorder %s15, 0
    %p84 = por %p82, %p83
    %s85 = ssub.s32 %s9, %s16
    %p86 = scmp.eq.s32.totalorder %s85, 0
    %s88 = sadd.s32 %s87, 1
    %s89 = scalar_select %p86, %s87, %s88
    %p92 = pneg %p86
    %p93 = scmp.eq.s32.totalorder %s9, 10
    %p94 = por %p92, %p93
    %p95 = scmp.ne.s32.totalorder %s87, %s90
    %p96 = scmp.eq.s32.totalorder %s9, 0
    %p97 = por %p95, %p96
    %p98 = scmp.ne.s32.totalorder %s87, %s90
    %p99 = scmp.eq.s32.totalorder %s14, 10
    %p100 = por %p98, %p99
    %p101 = scmp.ne.s32.totalorder %s90, %s91
    %p102 = scmp.eq.s32.totalorder %s14, 0
    %p103 = por %p101, %p102
    %p104 = scmp.ne.s32.totalorder %s90, %s91
    %p105 = scmp.eq.s32.totalorder %s15, 10
    %p106 = por %p104, %p105
    %p108 = scmp.ne.s32.totalorder %s91, %s107
    %p109 = scmp.eq.s32.totalorder %s15, 0
    %p110 = por %p108, %p109
    %p111 = scmp.le.s32.totalorder 1, %s9
    %p112 = scmp.lt.s32.totalorder %s9, 12
    %p113 = pnand %p111, %p112
    %p114 = pneg %p113
    // Predicated region
    $region9: #{tpu_custom_call.1} parent=5 // pred_check
      _
    $region10: #{tpu_custom_call.1} parent=5 // pred_check_branch
      %116 = sbr.rel (%p113) target = $region12
    $region11: #{tpu_custom_call.1} parent=5 // pred_region
      %s117 = ssub.s32 %s9, 1
      // Predicated region
      $region13: #{tpu_custom_call.1} parent=11 // pred_check
        %p118 = pneg %p56
      $region14: #{tpu_custom_call.1} parent=11 // pred_check_branch
        %120 = sbr.rel (%p118) target = $region16
      $region15: #{tpu_custom_call.1} parent=11 // pred_region
        _
      $region16: #{tpu_custom_call.1} parent=11 // pred_fallthru
        _
      // Predicated region
      $region17: #{tpu_custom_call.1} parent=11 // pred_check
        %p121 = pneg %p77
      $region18: #{tpu_custom_call.1} parent=11 // pred_check_branch
        %123 = sbr.rel (%p121) target = $region20
      $region19: #{tpu_custom_call.1} parent=11 // pred_region
        _
      $region20: #{tpu_custom_call.1} parent=11 // pred_fallthru
        _
    $region12: #{tpu_custom_call.1} parent=5 // pred_fallthru
      _
    %p124 = scmp.lt.s32.totalorder %s9, 11
    // Predicated region
    $region21: #{tpu_custom_call.1} parent=5 // pred_check
      %p125 = pneg %p124
    $region22: #{tpu_custom_call.1} parent=5 // pred_check_branch
      %127 = sbr.rel (%p125) target = $region24
    $region23: #{tpu_custom_call.1} parent=5 // pred_region
      // Predicated region
      $region25: #{tpu_custom_call.1} parent=23 // pred_check
        %p128 = pneg %p29
      $region26: #{tpu_custom_call.1} parent=23 // pred_check_branch
        %130 = sbr.rel (%p128) target = $region28
      $region27: #{tpu_custom_call.1} parent=23 // pred_region
        %s131 = smul.u32 505, %s9
        %p132 = scmp.lt.s32.totalorder %s131, 5554
        %s133 = scalar_select %p132, %s131, 5554
        %s134 = smul.addr %s133, 4
        %s135 = scalar_lea.vmem %s0, %s134
        %s136 = smul.u32 505, %s9
      $region28: #{tpu_custom_call.1} parent=23 // pred_fallthru
        _
    $region24: #{tpu_custom_call.1} parent=5 // pred_fallthru
      _
    %p137 = scmp.le.s32.totalorder 1, %s9
    %p138 = scmp.lt.s32.totalorder %s9, 12
    %p139 = pnand %p137, %p138
    %p140 = pneg %p139
    // Predicated region
    $region29: #{tpu_custom_call.1} parent=5 // pred_check
      _
    $region30: #{tpu_custom_call.1} parent=5 // pred_check_branch
      %142 = sbr.rel (%p139) target = $region32
    $region31: #{tpu_custom_call.1} parent=5 // pred_region
      %s143 = ssub.s32 %s9, 1
      %s144 = smul.u32 505, %s14
      %p145 = scmp.lt.s32.totalorder %s144, 5554
      %s146 = scalar_select %p145, %s144, 5554
      %s147 = smul.addr %s146, 4
      %s148 = scalar_lea.vmem %s0, %s147
      %p149 = pneg %p35
      %p150 = pneg %p32
      %p151 = pneg %p56
      %p152 = pneg %p53
      %p153 = pneg %p77
      %p154 = pneg %p74
      %p155 = pneg %p103
      %p156 = pneg %p100
      %s157 = smul.u32 505, %s14
      %p158 = scmp.lt.s32.totalorder %s157, 5554
      %s159 = scalar_select %p158, %s157, 5554
      %s160 = smul.addr %s159, 4
      %s161 = scalar_lea.vmem %s3, %s160
      %s162 = smul.u32 505, %s14
      %p163 = scmp.lt.s32.totalorder %s162, 5554
      %s164 = scalar_select %p163, %s162, 5554
      %s165 = smul.addr %s164, 4
      %s166 = scalar_lea.vmem %s0, %s165
      %s167 = smul.u32 505, %s14
      %s168 = smul.u32 505, %s14
      %p169 = scmp.lt.s32.totalorder %s168, 5554
      %s170 = scalar_select %p169, %s168, 5554
      %s171 = smul.addr %s170, 4
      %s172 = scalar_lea.vmem %s3, %s171
      %s173 = smul.u32 505, %s14
      %v175 = vld [vmem:[%s166] sm:$0xf]
      %v176 = vld [vmem:[%s166 + $0x4] sm:$0xf]
      %v177 = vld [vmem:[%s166 + $0x8] sm:$0xf]
      %v178 = vld [vmem:[%s166 + $0xc] sm:$0xf]
      %v179 = vld [vmem:[%s166 + $0x10] sm:$0xf]
      %v180 = vld [vmem:[%s166 + $0x14] sm:$0xf]
      %v181 = vld [vmem:[%s166 + $0x18] sm:$0xf]
      %v182 = vld [vmem:[%s166 + $0x1c] sm:$0xf]
      %v183 = vld [vmem:[%s166 + $0x20] sm:$0xf]
      %v184 = vld [vmem:[%s166 + $0x24] sm:$0xf]
      %v185 = vld [vmem:[%s166 + $0x28] sm:$0xf]
      %v186 = vld [vmem:[%s166 + $0x2c] sm:$0xf]
      %v187 = vld [vmem:[%s166 + $0x30] sm:$0xf]
      %v188 = vld [vmem:[%s166 + $0x34] sm:$0xf]
      %v189 = vld [vmem:[%s166 + $0x38] sm:$0xf]
      %v190 = vld [vmem:[%s166 + $0x3c] sm:$0xf]
      %v191 = vld [vmem:[%s166 + $0x40] sm:$0xf]
      %v192 = vld [vmem:[%s166 + $0x44] sm:$0xf]
      %v193 = vld [vmem:[%s166 + $0x48] sm:$0xf]
      %v194 = vld [vmem:[%s166 + $0x4c] sm:$0xf]
      %v195 = vld [vmem:[%s166 + $0x50] sm:$0xf]
      %v196 = vld [vmem:[%s166 + $0x54] sm:$0xf]
      %v197 = vld [vmem:[%s166 + $0x58] sm:$0xf]
      %v198 = vld [vmem:[%s166 + $0x5c] sm:$0xf]
      %v199 = vld [vmem:[%s166 + $0x60] sm:$0xf]
      %v200 = vld [vmem:[%s166 + $0x64] sm:$0xf]
      %v201 = vld [vmem:[%s166 + $0x68] sm:$0xf]
      %v202 = vld [vmem:[%s166 + $0x6c] sm:$0xf]
      %v203 = vld [vmem:[%s166 + $0x70] sm:$0xf]
      %v204 = vld [vmem:[%s166 + $0x74] sm:$0xf]
      %v205 = vld [vmem:[%s166 + $0x78] sm:$0xf]
      %v206 = vld [vmem:[%s166 + $0x7c] sm:$0xf]
      %v207 = vld [vmem:[%s166 + $0x80] sm:$0xf]
      %v208 = vld [vmem:[%s166 + $0x84] sm:$0xf]
      %v209 = vld [vmem:[%s166 + $0x88] sm:$0xf]
      %v210 = vld [vmem:[%s166 + $0x8c] sm:$0xf]
      %v211 = vld [vmem:[%s166 + $0x90] sm:$0xf]
      %v212 = vld [vmem:[%s166 + $0x94] sm:$0xf]
      %v213 = vld [vmem:[%s166 + $0x98] sm:$0xf]
      %v214 = vld [vmem:[%s166 + $0x9c] sm:$0xf]
      %v215 = vld [vmem:[%s166 + $0xa0] sm:$0xf]
      %v216 = vld [vmem:[%s166 + $0xa4] sm:$0xf]
      %v217 = vld [vmem:[%s166 + $0xa8] sm:$0xf]
      %v218 = vld [vmem:[%s166 + $0xac] sm:$0xf]
      %v219 = vld [vmem:[%s166 + $0xb0] sm:$0xf]
      %v220 = vld [vmem:[%s166 + $0xb4] sm:$0xf]
      %v221 = vld [vmem:[%s166 + $0xb8] sm:$0xf]
      %v222 = vld [vmem:[%s166 + $0xbc] sm:$0xf]
      %v223 = vld [vmem:[%s166 + $0xc0] sm:$0xf]
      %v224 = vld [vmem:[%s166 + $0xc4] sm:$0xf]
      %v225 = vld [vmem:[%s166 + $0xc8] sm:$0xf]
      %v226 = vld [vmem:[%s166 + $0xcc] sm:$0xf]
      %v227 = vld [vmem:[%s166 + $0xd0] sm:$0xf]
      %v228 = vld [vmem:[%s166 + $0xd4] sm:$0xf]
      %v229 = vld [vmem:[%s166 + $0xd8] sm:$0xf]
      %v230 = vld [vmem:[%s166 + $0xdc] sm:$0xf]
      %v231 = vld [vmem:[%s166 + $0xe0] sm:$0xf]
      %v232 = vld [vmem:[%s166 + $0xe4] sm:$0xf]
      %v233 = vld [vmem:[%s166 + $0xe8] sm:$0xf]
      %v234 = vld [vmem:[%s166 + $0xec] sm:$0xf]
      %v235 = vld [vmem:[%s166 + $0xf0] sm:$0xf]
      %v236 = vld [vmem:[%s166 + $0xf4] sm:$0xf]
      %v237 = vld [vmem:[%s166 + $0xf8] sm:$0xf]
      %v238 = vld [vmem:[%s166 + $0xfc] sm:$0xf]
      %v239 = vld [vmem:[%s166 + $0x100] sm:$0xf]
      %v240 = vld [vmem:[%s166 + $0x104] sm:$0xf]
      %v241 = vld [vmem:[%s166 + $0x108] sm:$0xf]
      %v242 = vld [vmem:[%s166 + $0x10c] sm:$0xf]
      %v243 = vld [vmem:[%s166 + $0x110] sm:$0xf]
      %v244 = vld [vmem:[%s166 + $0x114] sm:$0xf]
      %v245 = vld [vmem:[%s166 + $0x118] sm:$0xf]
      %v246 = vld [vmem:[%s166 + $0x11c] sm:$0xf]
      %v247 = vld [vmem:[%s166 + $0x120] sm:$0xf]
      %v248 = vld [vmem:[%s166 + $0x124] sm:$0xf]
      %v249 = vld [vmem:[%s166 + $0x128] sm:$0xf]
      %v250 = vld [vmem:[%s166 + $0x12c] sm:$0xf]
      %v251 = vld [vmem:[%s166 + $0x130] sm:$0xf]
      %v252 = vld [vmem:[%s166 + $0x134] sm:$0xf]
      %v253 = vld [vmem:[%s166 + $0x138] sm:$0xf]
      %v254 = vld [vmem:[%s166 + $0x13c] sm:$0xf]
      %v255 = vld [vmem:[%s166 + $0x140] sm:$0xf]
      %v256 = vld [vmem:[%s166 + $0x144] sm:$0xf]
      %v257 = vld [vmem:[%s166 + $0x148] sm:$0xf]
      %v258 = vld [vmem:[%s166 + $0x14c] sm:$0xf]
      %v259 = vld [vmem:[%s166 + $0x150] sm:$0xf]
      %v260 = vld [vmem:[%s166 + $0x154] sm:$0xf]
      %v261 = vld [vmem:[%s166 + $0x158] sm:$0xf]
      %v262 = vld [vmem:[%s166 + $0x15c] sm:$0xf]
      %v263 = vld [vmem:[%s166 + $0x160] sm:$0xf]
      %v264 = vld [vmem:[%s166 + $0x164] sm:$0xf]
      %v265 = vld [vmem:[%s166 + $0x168] sm:$0xf]
      %v266 = vld [vmem:[%s166 + $0x16c] sm:$0xf]
      %v267 = vld [vmem:[%s166 + $0x170] sm:$0xf]
      %v268 = vld [vmem:[%s166 + $0x174] sm:$0xf]
      %v269 = vld [vmem:[%s166 + $0x178] sm:$0xf]
      %v270 = vld [vmem:[%s166 + $0x17c] sm:$0xf]
      %v271 = vld [vmem:[%s166 + $0x180] sm:$0xf]
      %v272 = vld [vmem:[%s166 + $0x184] sm:$0xf]
      %v273 = vld [vmem:[%s166 + $0x188] sm:$0xf]
      %v274 = vld [vmem:[%s166 + $0x18c] sm:$0xf]
      %v275 = vld [vmem:[%s166 + $0x190] sm:$0xf]
      %v276 = vld [vmem:[%s166 + $0x194] sm:$0xf]
      %v277 = vld [vmem:[%s166 + $0x198] sm:$0xf]
      %v278 = vld [vmem:[%s166 + $0x19c] sm:$0xf]
      %v279 = vld [vmem:[%s166 + $0x1a0] sm:$0xf]
      %v280 = vld [vmem:[%s166 + $0x1a4] sm:$0xf]
      %v281 = vld [vmem:[%s166 + $0x1a8] sm:$0xf]
      %v282 = vld [vmem:[%s166 + $0x1ac] sm:$0xf]
      %v283 = vld [vmem:[%s166 + $0x1b0] sm:$0xf]
      %v284 = vld [vmem:[%s166 + $0x1b4] sm:$0xf]
      %v285 = vld [vmem:[%s166 + $0x1b8] sm:$0xf]
      %v286 = vld [vmem:[%s166 + $0x1bc] sm:$0xf]
      %v287 = vld [vmem:[%s166 + $0x1c0] sm:$0xf]
      %v288 = vld [vmem:[%s166 + $0x1c4] sm:$0xf]
      %v289 = vld [vmem:[%s166 + $0x1c8] sm:$0xf]
      %v290 = vld [vmem:[%s166 + $0x1cc] sm:$0xf]
      %v291 = vld [vmem:[%s166 + $0x1d0] sm:$0xf]
      %v292 = vld [vmem:[%s166 + $0x1d4] sm:$0xf]
      %v293 = vld [vmem:[%s166 + $0x1d8] sm:$0xf]
      %v294 = vld [vmem:[%s166 + $0x1dc] sm:$0xf]
      %v295 = vld [vmem:[%s166 + $0x1e0] sm:$0xf]
      %v296 = vld [vmem:[%s166 + $0x1e4] sm:$0xf]
      %v297 = vld [vmem:[%s166 + $0x1e8] sm:$0xf]
      %v298 = vld [vmem:[%s166 + $0x1ec] sm:$0xf]
      %v299 = vld [vmem:[%s166 + $0x1f0] sm:$0xf]
      %v300 = vld [vmem:[%s166 + $0x1f4] sm:$0xf]
      %v301 = vld [vmem:[%s166 + $0x1f8] sm:$0xf]
      %v302 = vld [vmem:[%s166 + $0x1fc] sm:$0xf]
      %v303 = vld [vmem:[%s166 + $0x200] sm:$0xf]
      %v304 = vld [vmem:[%s166 + $0x204] sm:$0xf]
      %v305 = vld [vmem:[%s166 + $0x208] sm:$0xf]
      %v306 = vld [vmem:[%s166 + $0x20c] sm:$0xf]
      %v307 = vld [vmem:[%s166 + $0x210] sm:$0xf]
      %v308 = vld [vmem:[%s166 + $0x214] sm:$0xf]
      %v309 = vld [vmem:[%s166 + $0x218] sm:$0xf]
      %v310 = vld [vmem:[%s166 + $0x21c] sm:$0xf]
      %v311 = vld [vmem:[%s166 + $0x220] sm:$0xf]
      %v312 = vld [vmem:[%s166 + $0x224] sm:$0xf]
      %v313 = vld [vmem:[%s166 + $0x228] sm:$0xf]
      %v314 = vld [vmem:[%s166 + $0x22c] sm:$0xf]
      %v315 = vld [vmem:[%s166 + $0x230] sm:$0xf]
      %v316 = vld [vmem:[%s166 + $0x234] sm:$0xf]
      %v317 = vld [vmem:[%s166 + $0x238] sm:$0xf]
      %v318 = vld [vmem:[%s166 + $0x23c] sm:$0xf]
      %v319 = vld [vmem:[%s166 + $0x240] sm:$0xf]
      %v320 = vld [vmem:[%s166 + $0x244] sm:$0xf]
      %v321 = vld [vmem:[%s166 + $0x248] sm:$0xf]
      %v322 = vld [vmem:[%s166 + $0x24c] sm:$0xf]
      %v323 = vld [vmem:[%s166 + $0x250] sm:$0xf]
      %v324 = vld [vmem:[%s166 + $0x254] sm:$0xf]
      %v325 = vld [vmem:[%s166 + $0x258] sm:$0xf]
      %v326 = vld [vmem:[%s166 + $0x25c] sm:$0xf]
      %v327 = vld [vmem:[%s166 + $0x260] sm:$0xf]
      %v328 = vld [vmem:[%s166 + $0x264] sm:$0xf]
      %v329 = vld [vmem:[%s166 + $0x268] sm:$0xf]
      %v330 = vld [vmem:[%s166 + $0x26c] sm:$0xf]
      %v331 = vld [vmem:[%s166 + $0x270] sm:$0xf]
      %v332 = vld [vmem:[%s166 + $0x274] sm:$0xf]
      %v333 = vld [vmem:[%s166 + $0x278] sm:$0xf]
      %v334 = vld [vmem:[%s166 + $0x27c] sm:$0xf]
      %v335 = vld [vmem:[%s166 + $0x280] sm:$0xf]
      %v336 = vld [vmem:[%s166 + $0x284] sm:$0xf]
      %v337 = vld [vmem:[%s166 + $0x288] sm:$0xf]
      %v338 = vld [vmem:[%s166 + $0x28c] sm:$0xf]
      %v339 = vld [vmem:[%s166 + $0x290] sm:$0xf]
      %v340 = vld [vmem:[%s166 + $0x294] sm:$0xf]
      %v341 = vld [vmem:[%s166 + $0x298] sm:$0xf]
      %v342 = vld [vmem:[%s166 + $0x29c] sm:$0xf]
      %v343 = vld [vmem:[%s166 + $0x2a0] sm:$0xf]
      %v344 = vld [vmem:[%s166 + $0x2a4] sm:$0xf]
      %v345 = vld [vmem:[%s166 + $0x2a8] sm:$0xf]
      %v346 = vld [vmem:[%s166 + $0x2ac] sm:$0xf]
      %v347 = vld [vmem:[%s166 + $0x2b0] sm:$0xf]
      %v348 = vld [vmem:[%s166 + $0x2b4] sm:$0xf]
      %v349 = vld [vmem:[%s166 + $0x2b8] sm:$0xf]
      %v350 = vld [vmem:[%s166 + $0x2bc] sm:$0xf]
      %v351 = vld [vmem:[%s166 + $0x2c0] sm:$0xf]
      %v352 = vld [vmem:[%s166 + $0x2c4] sm:$0xf]
      %v353 = vld [vmem:[%s166 + $0x2c8] sm:$0xf]
      %v354 = vld [vmem:[%s166 + $0x2cc] sm:$0xf]
      %v355 = vld [vmem:[%s166 + $0x2d0] sm:$0xf]
      %v356 = vld [vmem:[%s166 + $0x2d4] sm:$0xf]
      %v357 = vld [vmem:[%s166 + $0x2d8] sm:$0xf]
      %v358 = vld [vmem:[%s166 + $0x2dc] sm:$0xf]
      %v359 = vld [vmem:[%s166 + $0x2e0] sm:$0xf]
      %v360 = vld [vmem:[%s166 + $0x2e4] sm:$0xf]
      %v361 = vld [vmem:[%s166 + $0x2e8] sm:$0xf]
      %v362 = vld [vmem:[%s166 + $0x2ec] sm:$0xf]
      %v363 = vld [vmem:[%s166 + $0x2f0] sm:$0xf]
      %v364 = vld [vmem:[%s166 + $0x2f4] sm:$0xf]
      %v365 = vld [vmem:[%s166 + $0x2f8] sm:$0xf]
      %v366 = vld [vmem:[%s166 + $0x2fc] sm:$0xf]
      %v367 = vld [vmem:[%s166 + $0x300] sm:$0xf]
      %v368 = vld [vmem:[%s166 + $0x304] sm:$0xf]
      %v369 = vld [vmem:[%s166 + $0x308] sm:$0xf]
      %v370 = vld [vmem:[%s166 + $0x30c] sm:$0xf]
      %v371 = vld [vmem:[%s166 + $0x310] sm:$0xf]
      %v372 = vld [vmem:[%s166 + $0x314] sm:$0xf]
      %v373 = vld [vmem:[%s166 + $0x318] sm:$0xf]
      %v374 = vld [vmem:[%s166 + $0x31c] sm:$0xf]
      %v375 = vld [vmem:[%s166 + $0x320] sm:$0xf]
      %v376 = vld [vmem:[%s166 + $0x324] sm:$0xf]
      %v377 = vld [vmem:[%s166 + $0x328] sm:$0xf]
      %v378 = vld [vmem:[%s166 + $0x32c] sm:$0xf]
      %v379 = vld [vmem:[%s166 + $0x330] sm:$0xf]
      %v380 = vld [vmem:[%s166 + $0x334] sm:$0xf]
      %v381 = vld [vmem:[%s166 + $0x338] sm:$0xf]
      %v382 = vld [vmem:[%s166 + $0x33c] sm:$0xf]
      %v383 = vld [vmem:[%s166 + $0x340] sm:$0xf]
      %v384 = vld [vmem:[%s166 + $0x344] sm:$0xf]
      %v385 = vld [vmem:[%s166 + $0x348] sm:$0xf]
      %v386 = vld [vmem:[%s166 + $0x34c] sm:$0xf]
      %v387 = vld [vmem:[%s166 + $0x350] sm:$0xf]
      %v388 = vld [vmem:[%s166 + $0x354] sm:$0xf]
      %v389 = vld [vmem:[%s166 + $0x358] sm:$0xf]
      %v390 = vld [vmem:[%s166 + $0x35c] sm:$0xf]
      %v391 = vld [vmem:[%s166 + $0x360] sm:$0xf]
      %v392 = vld [vmem:[%s166 + $0x364] sm:$0xf]
      %v393 = vld [vmem:[%s166 + $0x368] sm:$0xf]
      %v394 = vld [vmem:[%s166 + $0x36c] sm:$0xf]
      %v395 = vld [vmem:[%s166 + $0x370] sm:$0xf]
      %v396 = vld [vmem:[%s166 + $0x374] sm:$0xf]
      %v397 = vld [vmem:[%s166 + $0x378] sm:$0xf]
      %v398 = vld [vmem:[%s166 + $0x37c] sm:$0xf]
      %v399 = vld [vmem:[%s166 + $0x380] sm:$0xf]
      %v400 = vld [vmem:[%s166 + $0x384] sm:$0xf]
      %v401 = vld [vmem:[%s166 + $0x388] sm:$0xf]
      %v402 = vld [vmem:[%s166 + $0x38c] sm:$0xf]
      %v403 = vld [vmem:[%s166 + $0x390] sm:$0xf]
      %v404 = vld [vmem:[%s166 + $0x394] sm:$0xf]
      %v405 = vld [vmem:[%s166 + $0x398] sm:$0xf]
      %v406 = vld [vmem:[%s166 + $0x39c] sm:$0xf]
      %v407 = vld [vmem:[%s166 + $0x3a0] sm:$0xf]
      %v408 = vld [vmem:[%s166 + $0x3a4] sm:$0xf]
      %v409 = vld [vmem:[%s166 + $0x3a8] sm:$0xf]
      %v410 = vld [vmem:[%s166 + $0x3ac] sm:$0xf]
      %v411 = vld [vmem:[%s166 + $0x3b0] sm:$0xf]
      %v412 = vld [vmem:[%s166 + $0x3b4] sm:$0xf]
      %v413 = vld [vmem:[%s166 + $0x3b8] sm:$0xf]
      %v414 = vld [vmem:[%s166 + $0x3bc] sm:$0xf]
      %v415 = vld [vmem:[%s166 + $0x3c0] sm:$0xf]
      %v416 = vld [vmem:[%s166 + $0x3c4] sm:$0xf]
      %v417 = vld [vmem:[%s166 + $0x3c8] sm:$0xf]
      %v418 = vld [vmem:[%s166 + $0x3cc] sm:$0xf]
      %v419 = vld [vmem:[%s166 + $0x3d0] sm:$0xf]
      %v420 = vld [vmem:[%s166 + $0x3d4] sm:$0xf]
      %v421 = vld [vmem:[%s166 + $0x3d8] sm:$0xf]
      %v422 = vld [vmem:[%s166 + $0x3dc] sm:$0xf]
      %v423 = vld [vmem:[%s166 + $0x3e0] sm:$0xf]
      %v424 = vld [vmem:[%s166 + $0x3e4] sm:$0xf]
      %v425 = vld [vmem:[%s166 + $0x3e8] sm:$0xf]
      %v426 = vld [vmem:[%s166 + $0x3ec] sm:$0xf]
      %v427 = vld [vmem:[%s166 + $0x3f0] sm:$0xf]
      %v428 = vld [vmem:[%s166 + $0x3f4] sm:$0xf]
      %v429 = vld [vmem:[%s166 + $0x3f8] sm:$0xf]
      %v430 = vld [vmem:[%s166 + $0x3fc] sm:$0xf]
      %v431 = vld [vmem:[%s166 + $0x400] sm:$0xf]
      %v432 = vld [vmem:[%s166 + $0x404] sm:$0xf]
      %v433 = vld [vmem:[%s166 + $0x408] sm:$0xf]
      %v434 = vld [vmem:[%s166 + $0x40c] sm:$0xf]
      %v435 = vld [vmem:[%s166 + $0x410] sm:$0xf]
      %v436 = vld [vmem:[%s166 + $0x414] sm:$0xf]
      %v437 = vld [vmem:[%s166 + $0x418] sm:$0xf]
      %v438 = vld [vmem:[%s166 + $0x41c] sm:$0xf]
      %v439 = vld [vmem:[%s166 + $0x420] sm:$0xf]
      %v440 = vld [vmem:[%s166 + $0x424] sm:$0xf]
      %v441 = vld [vmem:[%s166 + $0x428] sm:$0xf]
      %v442 = vld [vmem:[%s166 + $0x42c] sm:$0xf]
      %v443 = vld [vmem:[%s166 + $0x430] sm:$0xf]
      %v444 = vld [vmem:[%s166 + $0x434] sm:$0xf]
      %v445 = vld [vmem:[%s166 + $0x438] sm:$0xf]
      %v446 = vld [vmem:[%s166 + $0x43c] sm:$0xf]
      %v447 = vld [vmem:[%s166 + $0x440] sm:$0xf]
      %v448 = vld [vmem:[%s166 + $0x444] sm:$0xf]
      %v449 = vld [vmem:[%s166 + $0x448] sm:$0xf]
      %v450 = vld [vmem:[%s166 + $0x44c] sm:$0xf]
      %v451 = vld [vmem:[%s166 + $0x450] sm:$0xf]
      %v452 = vld [vmem:[%s166 + $0x454] sm:$0xf]
      %v453 = vld [vmem:[%s166 + $0x458] sm:$0xf]
      %v454 = vld [vmem:[%s166 + $0x45c] sm:$0xf]
      %v455 = vld [vmem:[%s166 + $0x460] sm:$0xf]
      %v456 = vld [vmem:[%s166 + $0x464] sm:$0xf]
      %v457 = vld [vmem:[%s166 + $0x468] sm:$0xf]
      %v458 = vld [vmem:[%s166 + $0x46c] sm:$0xf]
      %v459 = vld [vmem:[%s166 + $0x470] sm:$0xf]
      %v460 = vld [vmem:[%s166 + $0x474] sm:$0xf]
      %v461 = vld [vmem:[%s166 + $0x478] sm:$0xf]
      %v462 = vld [vmem:[%s166 + $0x47c] sm:$0xf]
      %v463 = vld [vmem:[%s166 + $0x480] sm:$0xf]
      %v464 = vld [vmem:[%s166 + $0x484] sm:$0xf]
      %v465 = vld [vmem:[%s166 + $0x488] sm:$0xf]
      %v466 = vld [vmem:[%s166 + $0x48c] sm:$0xf]
      %v467 = vld [vmem:[%s166 + $0x490] sm:$0xf]
      %v468 = vld [vmem:[%s166 + $0x494] sm:$0xf]
      %v469 = vld [vmem:[%s166 + $0x498] sm:$0xf]
      %v470 = vld [vmem:[%s166 + $0x49c] sm:$0xf]
      %v471 = vld [vmem:[%s166 + $0x4a0] sm:$0xf]
      %v472 = vld [vmem:[%s166 + $0x4a4] sm:$0xf]
      %v473 = vld [vmem:[%s166 + $0x4a8] sm:$0xf]
      %v474 = vld [vmem:[%s166 + $0x4ac] sm:$0xf]
      %v475 = vld [vmem:[%s166 + $0x4b0] sm:$0xf]
      %v476 = vld [vmem:[%s166 + $0x4b4] sm:$0xf]
      %v477 = vld [vmem:[%s166 + $0x4b8] sm:$0xf]
      %v478 = vld [vmem:[%s166 + $0x4bc] sm:$0xf]
      %v479 = vld [vmem:[%s166 + $0x4c0] sm:$0xf]
      %v480 = vld [vmem:[%s166 + $0x4c4] sm:$0xf]
      %v481 = vld [vmem:[%s166 + $0x4c8] sm:$0xf]
      %v482 = vld [vmem:[%s166 + $0x4cc] sm:$0xf]
      %v483 = vld [vmem:[%s166 + $0x4d0] sm:$0xf]
      %v484 = vld [vmem:[%s166 + $0x4d4] sm:$0xf]
      %v485 = vld [vmem:[%s166 + $0x4d8] sm:$0xf]
      %v486 = vld [vmem:[%s166 + $0x4dc] sm:$0xf]
      %v487 = vld [vmem:[%s166 + $0x4e0] sm:$0xf]
      %v488 = vld [vmem:[%s166 + $0x4e4] sm:$0xf]
      %v489 = vld [vmem:[%s166 + $0x4e8] sm:$0xf]
      %v490 = vld [vmem:[%s166 + $0x4ec] sm:$0xf]
      %v491 = vld [vmem:[%s166 + $0x4f0] sm:$0xf]
      %v492 = vld [vmem:[%s166 + $0x4f4] sm:$0xf]
      %v493 = vld [vmem:[%s166 + $0x4f8] sm:$0xf]
      %v494 = vld [vmem:[%s166 + $0x4fc] sm:$0xf]
      %v495 = vld [vmem:[%s166 + $0x500] sm:$0xf]
      %v496 = vld [vmem:[%s166 + $0x504] sm:$0xf]
      %v497 = vld [vmem:[%s166 + $0x508] sm:$0xf]
      %v498 = vld [vmem:[%s166 + $0x50c] sm:$0xf]
      %v499 = vld [vmem:[%s166 + $0x510] sm:$0xf]
      %v500 = vld [vmem:[%s166 + $0x514] sm:$0xf]
      %v501 = vld [vmem:[%s166 + $0x518] sm:$0xf]
      %v502 = vld [vmem:[%s166 + $0x51c] sm:$0xf]
      %v503 = vld [vmem:[%s166 + $0x520] sm:$0xf]
      %v504 = vld [vmem:[%s166 + $0x524] sm:$0xf]
      %v505 = vld [vmem:[%s166 + $0x528] sm:$0xf]
      %v506 = vld [vmem:[%s166 + $0x52c] sm:$0xf]
      %v507 = vld [vmem:[%s166 + $0x530] sm:$0xf]
      %v508 = vld [vmem:[%s166 + $0x534] sm:$0xf]
      %v509 = vld [vmem:[%s166 + $0x538] sm:$0xf]
      %v510 = vld [vmem:[%s166 + $0x53c] sm:$0xf]
      %v511 = vld [vmem:[%s166 + $0x540] sm:$0xf]
      %v512 = vld [vmem:[%s166 + $0x544] sm:$0xf]
      %v513 = vld [vmem:[%s166 + $0x548] sm:$0xf]
      %v514 = vld [vmem:[%s166 + $0x54c] sm:$0xf]
      %v515 = vld [vmem:[%s166 + $0x550] sm:$0xf]
      %v516 = vld [vmem:[%s166 + $0x554] sm:$0xf]
      %v517 = vld [vmem:[%s166 + $0x558] sm:$0xf]
      %v518 = vld [vmem:[%s166 + $0x55c] sm:$0xf]
      %v519 = vld [vmem:[%s166 + $0x560] sm:$0xf]
      %v520 = vld [vmem:[%s166 + $0x564] sm:$0xf]
      %v521 = vld [vmem:[%s166 + $0x568] sm:$0xf]
      %v522 = vld [vmem:[%s166 + $0x56c] sm:$0xf]
      %v523 = vld [vmem:[%s166 + $0x570] sm:$0xf]
      %v524 = vld [vmem:[%s166 + $0x574] sm:$0xf]
      %v525 = vld [vmem:[%s166 + $0x578] sm:$0xf]
      %v526 = vld [vmem:[%s166 + $0x57c] sm:$0xf]
      %v527 = vld [vmem:[%s166 + $0x580] sm:$0xf]
      %v528 = vld [vmem:[%s166 + $0x584] sm:$0xf]
      %v529 = vld [vmem:[%s166 + $0x588] sm:$0xf]
      %v530 = vld [vmem:[%s166 + $0x58c] sm:$0xf]
      %v531 = vld [vmem:[%s166 + $0x590] sm:$0xf]
      %v532 = vld [vmem:[%s166 + $0x594] sm:$0xf]
      %v533 = vld [vmem:[%s166 + $0x598] sm:$0xf]
      %v534 = vld [vmem:[%s166 + $0x59c] sm:$0xf]
      %v535 = vld [vmem:[%s166 + $0x5a0] sm:$0xf]
      %v536 = vld [vmem:[%s166 + $0x5a4] sm:$0xf]
      %v537 = vld [vmem:[%s166 + $0x5a8] sm:$0xf]
      %v538 = vld [vmem:[%s166 + $0x5ac] sm:$0xf]
      %v539 = vld [vmem:[%s166 + $0x5b0] sm:$0xf]
      %v540 = vld [vmem:[%s166 + $0x5b4] sm:$0xf]
      %v541 = vld [vmem:[%s166 + $0x5b8] sm:$0xf]
      %v542 = vld [vmem:[%s166 + $0x5bc] sm:$0xf]
      %v543 = vld [vmem:[%s166 + $0x5c0] sm:$0xf]
      %v544 = vld [vmem:[%s166 + $0x5c4] sm:$0xf]
      %v545 = vld [vmem:[%s166 + $0x5c8] sm:$0xf]
      %v546 = vld [vmem:[%s166 + $0x5cc] sm:$0xf]
      %v547 = vld [vmem:[%s166 + $0x5d0] sm:$0xf]
      %v548 = vld [vmem:[%s166 + $0x5d4] sm:$0xf]
      %v549 = vld [vmem:[%s166 + $0x5d8] sm:$0xf]
      %v550 = vld [vmem:[%s166 + $0x5dc] sm:$0xf]
      %v551 = vld [vmem:[%s166 + $0x5e0] sm:$0xf]
      %v552 = vld [vmem:[%s166 + $0x5e4] sm:$0xf]
      %v553 = vld [vmem:[%s166 + $0x5e8] sm:$0xf]
      %v554 = vld [vmem:[%s166 + $0x5ec] sm:$0xf]
      %v555 = vld [vmem:[%s166 + $0x5f0] sm:$0xf]
      %v556 = vld [vmem:[%s166 + $0x5f4] sm:$0xf]
      %v557 = vld [vmem:[%s166 + $0x5f8] sm:$0xf]
      %v558 = vld [vmem:[%s166 + $0x5fc] sm:$0xf]
      %v559 = vld [vmem:[%s166 + $0x600] sm:$0xf]
      %v560 = vld [vmem:[%s166 + $0x604] sm:$0xf]
      %v561 = vld [vmem:[%s166 + $0x608] sm:$0xf]
      %v562 = vld [vmem:[%s166 + $0x60c] sm:$0xf]
      %v563 = vld [vmem:[%s166 + $0x610] sm:$0xf]
      %v564 = vld [vmem:[%s166 + $0x614] sm:$0xf]
      %v565 = vld [vmem:[%s166 + $0x618] sm:$0xf]
      %v566 = vld [vmem:[%s166 + $0x61c] sm:$0xf]
      %v567 = vld [vmem:[%s166 + $0x620] sm:$0xf]
      %v568 = vld [vmem:[%s166 + $0x624] sm:$0xf]
      %v569 = vld [vmem:[%s166 + $0x628] sm:$0xf]
      %v570 = vld [vmem:[%s166 + $0x62c] sm:$0xf]
      %v571 = vld [vmem:[%s166 + $0x630] sm:$0xf]
      %v572 = vld [vmem:[%s166 + $0x634] sm:$0xf]
      %v573 = vld [vmem:[%s166 + $0x638] sm:$0xf]
      %v574 = vld [vmem:[%s166 + $0x63c] sm:$0xf]
      %v575 = vld [vmem:[%s166 + $0x640] sm:$0xf]
      %v576 = vld [vmem:[%s166 + $0x644] sm:$0xf]
      %v577 = vld [vmem:[%s166 + $0x648] sm:$0xf]
      %v578 = vld [vmem:[%s166 + $0x64c] sm:$0xf]
      %v579 = vld [vmem:[%s166 + $0x650] sm:$0xf]
      %v580 = vld [vmem:[%s166 + $0x654] sm:$0xf]
      %v581 = vld [vmem:[%s166 + $0x658] sm:$0xf]
      %v582 = vld [vmem:[%s166 + $0x65c] sm:$0xf]
      %v583 = vld [vmem:[%s166 + $0x660] sm:$0xf]
      %v584 = vld [vmem:[%s166 + $0x664] sm:$0xf]
      %v585 = vld [vmem:[%s166 + $0x668] sm:$0xf]
      %v586 = vld [vmem:[%s166 + $0x66c] sm:$0xf]
      %v587 = vld [vmem:[%s166 + $0x670] sm:$0xf]
      %v588 = vld [vmem:[%s166 + $0x674] sm:$0xf]
      %v589 = vld [vmem:[%s166 + $0x678] sm:$0xf]
      %v590 = vld [vmem:[%s166 + $0x67c] sm:$0xf]
      %v591 = vld [vmem:[%s166 + $0x680] sm:$0xf]
      %v592 = vld [vmem:[%s166 + $0x684] sm:$0xf]
      %v593 = vld [vmem:[%s166 + $0x688] sm:$0xf]
      %v594 = vld [vmem:[%s166 + $0x68c] sm:$0xf]
      %v595 = vld [vmem:[%s166 + $0x690] sm:$0xf]
      %v596 = vld [vmem:[%s166 + $0x694] sm:$0xf]
      %v597 = vld [vmem:[%s166 + $0x698] sm:$0xf]
      %v598 = vld [vmem:[%s166 + $0x69c] sm:$0xf]
      %v599 = vld [vmem:[%s166 + $0x6a0] sm:$0xf]
      %v600 = vld [vmem:[%s166 + $0x6a4] sm:$0xf]
      %v601 = vld [vmem:[%s166 + $0x6a8] sm:$0xf]
      %v602 = vld [vmem:[%s166 + $0x6ac] sm:$0xf]
      %v603 = vld [vmem:[%s166 + $0x6b0] sm:$0xf]
      %v604 = vld [vmem:[%s166 + $0x6b4] sm:$0xf]
      %v605 = vld [vmem:[%s166 + $0x6b8] sm:$0xf]
      %v606 = vld [vmem:[%s166 + $0x6bc] sm:$0xf]
      %v607 = vld [vmem:[%s166 + $0x6c0] sm:$0xf]
      %v608 = vld [vmem:[%s166 + $0x6c4] sm:$0xf]
      %v609 = vld [vmem:[%s166 + $0x6c8] sm:$0xf]
      %v610 = vld [vmem:[%s166 + $0x6cc] sm:$0xf]
      %v611 = vld [vmem:[%s166 + $0x6d0] sm:$0xf]
      %v612 = vld [vmem:[%s166 + $0x6d4] sm:$0xf]
      %v613 = vld [vmem:[%s166 + $0x6d8] sm:$0xf]
      %v614 = vld [vmem:[%s166 + $0x6dc] sm:$0xf]
      %v615 = vld [vmem:[%s166 + $0x6e0] sm:$0xf]
      %v616 = vld [vmem:[%s166 + $0x6e4] sm:$0xf]
      %v617 = vld [vmem:[%s166 + $0x6e8] sm:$0xf]
      %v618 = vld [vmem:[%s166 + $0x6ec] sm:$0xf]
      %v619 = vld [vmem:[%s166 + $0x6f0] sm:$0xf]
      %v620 = vld [vmem:[%s166 + $0x6f4] sm:$0xf]
      %v621 = vld [vmem:[%s166 + $0x6f8] sm:$0xf]
      %v622 = vld [vmem:[%s166 + $0x6fc] sm:$0xf]
      %v623 = vld [vmem:[%s166 + $0x700] sm:$0xf]
      %v624 = vld [vmem:[%s166 + $0x704] sm:$0xf]
      %v625 = vld [vmem:[%s166 + $0x708] sm:$0xf]
      %v626 = vld [vmem:[%s166 + $0x70c] sm:$0xf]
      %v627 = vld [vmem:[%s166 + $0x710] sm:$0xf]
      %v628 = vld [vmem:[%s166 + $0x714] sm:$0xf]
      %v629 = vld [vmem:[%s166 + $0x718] sm:$0xf]
      %v630 = vld [vmem:[%s166 + $0x71c] sm:$0xf]
      %v631 = vld [vmem:[%s166 + $0x720] sm:$0xf]
      %v632 = vld [vmem:[%s166 + $0x724] sm:$0xf]
      %v633 = vld [vmem:[%s166 + $0x728] sm:$0xf]
      %v634 = vld [vmem:[%s166 + $0x72c] sm:$0xf]
      %v635 = vld [vmem:[%s166 + $0x730] sm:$0xf]
      %v636 = vld [vmem:[%s166 + $0x734] sm:$0xf]
      %v637 = vld [vmem:[%s166 + $0x738] sm:$0xf]
      %v638 = vld [vmem:[%s166 + $0x73c] sm:$0xf]
      %v639 = vld [vmem:[%s166 + $0x740] sm:$0xf]
      %v640 = vld [vmem:[%s166 + $0x744] sm:$0xf]
      %v641 = vld [vmem:[%s166 + $0x748] sm:$0xf]
      %v642 = vld [vmem:[%s166 + $0x74c] sm:$0xf]
      %v643 = vld [vmem:[%s166 + $0x750] sm:$0xf]
      %v644 = vld [vmem:[%s166 + $0x754] sm:$0xf]
      %v645 = vld [vmem:[%s166 + $0x758] sm:$0xf]
      %v646 = vld [vmem:[%s166 + $0x75c] sm:$0xf]
      %v647 = vld [vmem:[%s166 + $0x760] sm:$0xf]
      %v648 = vld [vmem:[%s166 + $0x764] sm:$0xf]
      %v649 = vld [vmem:[%s166 + $0x768] sm:$0xf]
      %v650 = vld [vmem:[%s166 + $0x76c] sm:$0xf]
      %v651 = vld [vmem:[%s166 + $0x770] sm:$0xf]
      %v652 = vld [vmem:[%s166 + $0x774] sm:$0xf]
      %v653 = vld [vmem:[%s166 + $0x778] sm:$0xf]
      %v654 = vld [vmem:[%s166 + $0x77c] sm:$0xf]
      %v655 = vld [vmem:[%s166 + $0x780] sm:$0xf]
      %v656 = vld [vmem:[%s166 + $0x784] sm:$0xf]
      %v657 = vld [vmem:[%s166 + $0x788] sm:$0xf]
      %v658 = vld [vmem:[%s166 + $0x78c] sm:$0xf]
      %v659 = vld [vmem:[%s166 + $0x790] sm:$0xf]
      %v660 = vld [vmem:[%s166 + $0x794] sm:$0xf]
      %v661 = vld [vmem:[%s166 + $0x798] sm:$0xf]
      %v662 = vld [vmem:[%s166 + $0x79c] sm:$0xf]
      %v663 = vld [vmem:[%s166 + $0x7a0] sm:$0xf]
      %v664 = vld [vmem:[%s166 + $0x7a4] sm:$0xf]
      %v665 = vld [vmem:[%s166 + $0x7a8] sm:$0xf]
      %v666 = vld [vmem:[%s166 + $0x7ac] sm:$0xf]
      %v667 = vld [vmem:[%s166 + $0x7b0] sm:$0xf]
      %v668 = vld [vmem:[%s166 + $0x7b4] sm:$0xf]
      %v669 = vld [vmem:[%s166 + $0x7b8] sm:$0xf]
      %v670 = vld [vmem:[%s166 + $0x7bc] sm:$0xf]
      %v671 = vld [vmem:[%s166 + $0x7c0] sm:$0xf]
      %v672 = vld [vmem:[%s166 + $0x7c4] sm:$0xf]
      %v673 = vld [vmem:[%s166 + $0x7c8] sm:$0xf]
      %v674 = vld [vmem:[%s166 + $0x7cc] sm:$0xf]
      %v675 = vld [vmem:[%s166 + $0x7d0] sm:$0xf]
      %v676 = vld [vmem:[%s166 + $0x7d4] sm:$0xf]
      %v677 = vld [vmem:[%s166 + $0x7d8] sm:$0xf]
      %v678 = vld [vmem:[%s166 + $0x7dc] sm:$0xf]
      %v679 = vld [vmem:[%s166 + $0x7e0] sm:$0xf]
      %v680 = vld [vmem:[%s1] sm:$0xf]
      %v681 = vld [vmem:[%s1 + $0x4] sm:$0xf]
      %v682 = vld [vmem:[%s1 + $0x8] sm:$0xf]
      %v683 = vld [vmem:[%s1 + $0xc] sm:$0x3]
      %v684 = vld [vmem:[%s2] sm:$0x1]
      %v686 = vlaneseq
      %v687 = vshrl.u32 %v686, 7
      %v688 = vsub.s32 0, %v687
      %v689 = vrot.slane %v684, %v688
      %v1196 = vunpack.c.l.b16 %v175
      %v1197 = vunpack.c.l.b16 %v176
      %v1198 = vunpack.c.l.b16 %v177
      %v1199 = vunpack.c.l.b16 %v178
      %v1200 = vunpack.c.l.b16 %v179
      %v1201 = vunpack.c.l.b16 %v180
      %v1202 = vunpack.c.l.b16 %v181
      %v1203 = vunpack.c.l.b16 %v182
      %v1204 = vunpack.c.l.b16 %v183
      %v1205 = vunpack.c.l.b16 %v184
      %v1206 = vunpack.c.l.b16 %v185
      %v1207 = vunpack.c.l.b16 %v186
      %v1208 = vunpack.c.l.b16 %v187
      %v1209 = vunpack.c.l.b16 %v188
      %v1210 = vunpack.c.l.b16 %v189
      %v1211 = vunpack.c.l.b16 %v190
      %v1212 = vunpack.c.l.b16 %v191
      %v1213 = vunpack.c.l.b16 %v192
      %v1214 = vunpack.c.l.b16 %v193
      %v1215 = vunpack.c.l.b16 %v194
      %v1216 = vunpack.c.l.b16 %v195
      %v1217 = vunpack.c.l.b16 %v196
      %v1218 = vunpack.c.l.b16 %v197
      %v1219 = vunpack.c.l.b16 %v198
      %v1220 = vunpack.c.l.b16 %v199
      %v1221 = vunpack.c.l.b16 %v200
      %v1222 = vunpack.c.l.b16 %v201
      %v1223 = vunpack.c.l.b16 %v202
      %v1224 = vunpack.c.l.b16 %v203
      %v1225 = vunpack.c.l.b16 %v204
      %v1226 = vunpack.c.l.b16 %v205
      %v1227 = vunpack.c.l.b16 %v206
      %v1228 = vunpack.c.l.b16 %v207
      %v1229 = vunpack.c.l.b16 %v208
      %v1230 = vunpack.c.l.b16 %v209
      %v1231 = vunpack.c.l.b16 %v210
      %v1232 = vunpack.c.l.b16 %v211
      %v1233 = vunpack.c.l.b16 %v212
      %v1234 = vunpack.c.l.b16 %v213
      %v1235 = vunpack.c.l.b16 %v214
      %v1236 = vunpack.c.l.b16 %v215
      %v1237 = vunpack.c.l.b16 %v216
      %v1238 = vunpack.c.l.b16 %v217
      %v1239 = vunpack.c.l.b16 %v218
      %v1240 = vunpack.c.l.b16 %v219
      %v1241 = vunpack.c.l.b16 %v220
      %v1242 = vunpack.c.l.b16 %v221
      %v1243 = vunpack.c.l.b16 %v222
      %v1244 = vunpack.c.l.b16 %v223
      %v1245 = vunpack.c.l.b16 %v224
      %v1246 = vunpack.c.l.b16 %v225
      %v1247 = vunpack.c.l.b16 %v226
      %v1248 = vunpack.c.l.b16 %v227
      %v1249 = vunpack.c.l.b16 %v228
      %v1250 = vunpack.c.l.b16 %v229
      %v1251 = vunpack.c.l.b16 %v230
      %v1252 = vunpack.c.l.b16 %v231
      %v1253 = vunpack.c.l.b16 %v232
      %v1254 = vunpack.c.l.b16 %v233
      %v1255 = vunpack.c.l.b16 %v234
      %v1256 = vunpack.c.l.b16 %v235
      %v1257 = vunpack.c.l.b16 %v236
      %v1258 = vunpack.c.l.b16 %v237
      %v1259 = vunpack.c.l.b16 %v238
      %v1260 = vunpack.c.l.b16 %v239
      %v1261 = vunpack.c.l.b16 %v240
      %v1262 = vunpack.c.l.b16 %v241
      %v1263 = vunpack.c.l.b16 %v242
      %v1264 = vunpack.c.l.b16 %v243
      %v1265 = vunpack.c.l.b16 %v244
      %v1266 = vunpack.c.l.b16 %v245
      %v1267 = vunpack.c.l.b16 %v246
      %v1268 = vunpack.c.l.b16 %v247
      %v1269 = vunpack.c.l.b16 %v248
      %v1270 = vunpack.c.l.b16 %v249
      %v1271 = vunpack.c.l.b16 %v250
      %v1272 = vunpack.c.l.b16 %v251
      %v1273 = vunpack.c.l.b16 %v252
      %v1274 = vunpack.c.l.b16 %v253
      %v1275 = vunpack.c.l.b16 %v254
      %v1276 = vunpack.c.l.b16 %v255
      %v1277 = vunpack.c.l.b16 %v256
      %v1278 = vunpack.c.l.b16 %v257
      %v1279 = vunpack.c.l.b16 %v258
      %v1280 = vunpack.c.l.b16 %v259
      %v1281 = vunpack.c.l.b16 %v260
      %v1282 = vunpack.c.l.b16 %v261
      %v1283 = vunpack.c.l.b16 %v262
      %v1284 = vunpack.c.l.b16 %v263
      %v1285 = vunpack.c.l.b16 %v264
      %v1286 = vunpack.c.l.b16 %v265
      %v1287 = vunpack.c.l.b16 %v266
      %v1288 = vunpack.c.l.b16 %v267
      %v1289 = vunpack.c.l.b16 %v268
      %v1290 = vunpack.c.l.b16 %v269
      %v1291 = vunpack.c.l.b16 %v270
      %v1292 = vunpack.c.l.b16 %v271
      %v1293 = vunpack.c.l.b16 %v272
      %v1294 = vunpack.c.l.b16 %v273
      %v1295 = vunpack.c.l.b16 %v274
      %v1296 = vunpack.c.l.b16 %v275
      %v1297 = vunpack.c.l.b16 %v276
      %v1298 = vunpack.c.l.b16 %v277
      %v1299 = vunpack.c.l.b16 %v278
      %v1300 = vunpack.c.l.b16 %v279
      %v1301 = vunpack.c.l.b16 %v280
      %v1302 = vunpack.c.l.b16 %v281
      %v1303 = vunpack.c.l.b16 %v282
      %v1304 = vunpack.c.l.b16 %v283
      %v1305 = vunpack.c.l.b16 %v284
      %v1306 = vunpack.c.l.b16 %v285
      %v1307 = vunpack.c.l.b16 %v286
      %v1308 = vunpack.c.l.b16 %v287
      %v1309 = vunpack.c.l.b16 %v288
      %v1310 = vunpack.c.l.b16 %v289
      %v1311 = vunpack.c.l.b16 %v290
      %v1312 = vunpack.c.l.b16 %v291
      %v1313 = vunpack.c.l.b16 %v292
      %v1314 = vunpack.c.l.b16 %v293
      %v1315 = vunpack.c.l.b16 %v294
      %v1316 = vunpack.c.l.b16 %v295
      %v1317 = vunpack.c.l.b16 %v296
      %v1318 = vunpack.c.l.b16 %v297
      %v1319 = vunpack.c.l.b16 %v298
      %v1320 = vunpack.c.l.b16 %v299
      %v1321 = vunpack.c.l.b16 %v300
      %v1322 = vunpack.c.l.b16 %v301
      %v1323 = vunpack.c.l.b16 %v302
      %v1324 = vunpack.c.l.b16 %v303
      %v1325 = vunpack.c.l.b16 %v304
      %v1326 = vunpack.c.l.b16 %v305
      %v1327 = vunpack.c.l.b16 %v306
      %v1328 = vunpack.c.l.b16 %v307
      %v1329 = vunpack.c.l.b16 %v308
      %v1330 = vunpack.c.l.b16 %v309
      %v1331 = vunpack.c.l.b16 %v310
      %v1332 = vunpack.c.l.b16 %v311
      %v1333 = vunpack.c.l.b16 %v312
      %v1334 = vunpack.c.l.b16 %v313
      %v1335 = vunpack.c.l.b16 %v314
      %v1336 = vunpack.c.l.b16 %v315
      %v1337 = vunpack.c.l.b16 %v316
      %v1338 = vunpack.c.l.b16 %v317
      %v1339 = vunpack.c.l.b16 %v318
      %v1340 = vunpack.c.l.b16 %v319
      %v1341 = vunpack.c.l.b16 %v320
      %v1342 = vunpack.c.l.b16 %v321
      %v1343 = vunpack.c.l.b16 %v322
      %v1344 = vunpack.c.l.b16 %v323
      %v1345 = vunpack.c.l.b16 %v324
      %v1346 = vunpack.c.l.b16 %v325
      %v1347 = vunpack.c.l.b16 %v326
      %v1348 = vunpack.c.l.b16 %v327
      %v1349 = vunpack.c.l.b16 %v328
      %v1350 = vunpack.c.l.b16 %v329
      %v1351 = vunpack.c.l.b16 %v330
      %v1352 = vunpack.c.l.b16 %v331
      %v1353 = vunpack.c.l.b16 %v332
      %v1354 = vunpack.c.l.b16 %v333
      %v1355 = vunpack.c.l.b16 %v334
      %v1356 = vunpack.c.l.b16 %v335
      %v1357 = vunpack.c.l.b16 %v336
      %v1358 = vunpack.c.l.b16 %v337
      %v1359 = vunpack.c.l.b16 %v338
      %v1360 = vunpack.c.l.b16 %v339
      %v1361 = vunpack.c.l.b16 %v340
      %v1362 = vunpack.c.l.b16 %v341
      %v1363 = vunpack.c.l.b16 %v342
      %v1364 = vunpack.c.l.b16 %v343
      %v1365 = vunpack.c.l.b16 %v344
      %v1366 = vunpack.c.l.b16 %v345
      %v1367 = vunpack.c.l.b16 %v346
      %v1368 = vunpack.c.l.b16 %v347
      %v1369 = vunpack.c.l.b16 %v348
      %v1370 = vunpack.c.l.b16 %v349
      %v1371 = vunpack.c.l.b16 %v350
      %v1372 = vunpack.c.l.b16 %v351
      %v1373 = vunpack.c.l.b16 %v352
      %v1374 = vunpack.c.l.b16 %v353
      %v1375 = vunpack.c.l.b16 %v354
      %v1376 = vunpack.c.l.b16 %v355
      %v1377 = vunpack.c.l.b16 %v356
      %v1378 = vunpack.c.l.b16 %v357
      %v1379 = vunpack.c.l.b16 %v358
      %v1380 = vunpack.c.l.b16 %v359
      %v1381 = vunpack.c.l.b16 %v360
      %v1382 = vunpack.c.l.b16 %v361
      %v1383 = vunpack.c.l.b16 %v362
      %v1384 = vunpack.c.l.b16 %v363
      %v1385 = vunpack.c.l.b16 %v364
      %v1386 = vunpack.c.l.b16 %v365
      %v1387 = vunpack.c.l.b16 %v366
      %v1388 = vunpack.c.l.b16 %v367
      %v1389 = vunpack.c.l.b16 %v368
      %v1390 = vunpack.c.l.b16 %v369
      %v1391 = vunpack.c.l.b16 %v370
      %v1392 = vunpack.c.l.b16 %v371
      %v1393 = vunpack.c.l.b16 %v372
      %v1394 = vunpack.c.l.b16 %v373
      %v1395 = vunpack.c.l.b16 %v374
      %v1396 = vunpack.c.l.b16 %v375
      %v1397 = vunpack.c.l.b16 %v376
      %v1398 = vunpack.c.l.b16 %v377
      %v1399 = vunpack.c.l.b16 %v378
      %v1400 = vunpack.c.l.b16 %v379
      %v1401 = vunpack.c.l.b16 %v380
      %v1402 = vunpack.c.l.b16 %v381
      %v1403 = vunpack.c.l.b16 %v382
      %v1404 = vunpack.c.l.b16 %v383
      %v1405 = vunpack.c.l.b16 %v384
      %v1406 = vunpack.c.l.b16 %v385
      %v1407 = vunpack.c.l.b16 %v386
      %v1408 = vunpack.c.l.b16 %v387
      %v1409 = vunpack.c.l.b16 %v388
      %v1410 = vunpack.c.l.b16 %v389
      %v1411 = vunpack.c.l.b16 %v390
      %v1412 = vunpack.c.l.b16 %v391
      %v1413 = vunpack.c.l.b16 %v392
      %v1414 = vunpack.c.l.b16 %v393
      %v1415 = vunpack.c.l.b16 %v394
      %v1416 = vunpack.c.l.b16 %v395
      %v1417 = vunpack.c.l.b16 %v396
      %v1418 = vunpack.c.l.b16 %v397
      %v1419 = vunpack.c.l.b16 %v398
      %v1420 = vunpack.c.l.b16 %v399
      %v1421 = vunpack.c.l.b16 %v400
      %v1422 = vunpack.c.l.b16 %v401
      %v1423 = vunpack.c.l.b16 %v402
      %v1424 = vunpack.c.l.b16 %v403
      %v1425 = vunpack.c.l.b16 %v404
      %v1426 = vunpack.c.l.b16 %v405
      %v1427 = vunpack.c.l.b16 %v406
      %v1428 = vunpack.c.l.b16 %v407
      %v1429 = vunpack.c.l.b16 %v408
      %v1430 = vunpack.c.l.b16 %v409
      %v1431 = vunpack.c.l.b16 %v410
      %v1432 = vunpack.c.l.b16 %v411
      %v1433 = vunpack.c.l.b16 %v412
      %v1434 = vunpack.c.l.b16 %v413
      %v1435 = vunpack.c.l.b16 %v414
      %v1436 = vunpack.c.l.b16 %v415
      %v1437 = vunpack.c.l.b16 %v416
      %v1438 = vunpack.c.l.b16 %v417
      %v1439 = vunpack.c.l.b16 %v418
      %v1440 = vunpack.c.l.b16 %v419
      %v1441 = vunpack.c.l.b16 %v420
      %v1442 = vunpack.c.l.b16 %v421
      %v1443 = vunpack.c.l.b16 %v422
      %v1444 = vunpack.c.l.b16 %v423
      %v1445 = vunpack.c.l.b16 %v424
      %v1446 = vunpack.c.l.b16 %v425
      %v1447 = vunpack.c.l.b16 %v426
      %v1448 = vunpack.c.l.b16 %v427
      %v1449 = vunpack.c.l.b16 %v428
      %v1450 = vunpack.c.l.b16 %v429
      %v1451 = vunpack.c.l.b16 %v430
      %v1452 = vunpack.c.l.b16 %v431
      %v1453 = vunpack.c.l.b16 %v432
      %v1454 = vunpack.c.l.b16 %v433
      %v1455 = vunpack.c.l.b16 %v434
      %v1456 = vunpack.c.l.b16 %v435
      %v1457 = vunpack.c.l.b16 %v436
      %v1458 = vunpack.c.l.b16 %v437
      %v1459 = vunpack.c.l.b16 %v438
      %v1460 = vunpack.c.l.b16 %v439
      %v1461 = vunpack.c.l.b16 %v440
      %v1462 = vunpack.c.l.b16 %v441
      %v1463 = vunpack.c.l.b16 %v442
      %v1464 = vunpack.c.l.b16 %v443
      %v1465 = vunpack.c.l.b16 %v444
      %v1466 = vunpack.c.l.b16 %v445
      %v1467 = vunpack.c.l.b16 %v446
      %v1468 = vunpack.c.l.b16 %v447
      %v1469 = vunpack.c.l.b16 %v448
      %v1470 = vunpack.c.l.b16 %v449
      %v1471 = vunpack.c.l.b16 %v450
      %v1472 = vunpack.c.l.b16 %v451
      %v1473 = vunpack.c.l.b16 %v452
      %v1474 = vunpack.c.l.b16 %v453
      %v1475 = vunpack.c.l.b16 %v454
      %v1476 = vunpack.c.l.b16 %v455
      %v1477 = vunpack.c.l.b16 %v456
      %v1478 = vunpack.c.l.b16 %v457
      %v1479 = vunpack.c.l.b16 %v458
      %v1480 = vunpack.c.l.b16 %v459
      %v1481 = vunpack.c.l.b16 %v460
      %v1482 = vunpack.c.l.b16 %v461
      %v1483 = vunpack.c.l.b16 %v462
      %v1484 = vunpack.c.l.b16 %v463
      %v1485 = vunpack.c.l.b16 %v464
      %v1486 = vunpack.c.l.b16 %v465
      %v1487 = vunpack.c.l.b16 %v466
      %v1488 = vunpack.c.l.b16 %v467
      %v1489 = vunpack.c.l.b16 %v468
      %v1490 = vunpack.c.l.b16 %v469
      %v1491 = vunpack.c.l.b16 %v470
      %v1492 = vunpack.c.l.b16 %v471
      %v1493 = vunpack.c.l.b16 %v472
      %v1494 = vunpack.c.l.b16 %v473
      %v1495 = vunpack.c.l.b16 %v474
      %v1496 = vunpack.c.l.b16 %v475
      %v1497 = vunpack.c.l.b16 %v476
      %v1498 = vunpack.c.l.b16 %v477
      %v1499 = vunpack.c.l.b16 %v478
      %v1500 = vunpack.c.l.b16 %v479
      %v1501 = vunpack.c.l.b16 %v480
      %v1502 = vunpack.c.l.b16 %v481
      %v1503 = vunpack.c.l.b16 %v482
      %v1504 = vunpack.c.l.b16 %v483
      %v1505 = vunpack.c.l.b16 %v484
      %v1506 = vunpack.c.l.b16 %v485
      %v1507 = vunpack.c.l.b16 %v486
      %v1508 = vunpack.c.l.b16 %v487
      %v1509 = vunpack.c.l.b16 %v488
      %v1510 = vunpack.c.l.b16 %v489
      %v1511 = vunpack.c.l.b16 %v490
      %v1512 = vunpack.c.l.b16 %v491
      %v1513 = vunpack.c.l.b16 %v492
      %v1514 = vunpack.c.l.b16 %v493
      %v1515 = vunpack.c.l.b16 %v494
      %v1516 = vunpack.c.l.b16 %v495
      %v1517 = vunpack.c.l.b16 %v496
      %v1518 = vunpack.c.l.b16 %v497
      %v1519 = vunpack.c.l.b16 %v498
      %v1520 = vunpack.c.l.b16 %v499
      %v1521 = vunpack.c.l.b16 %v500
      %v1522 = vunpack.c.l.b16 %v501
      %v1523 = vunpack.c.l.b16 %v502
      %v1524 = vunpack.c.l.b16 %v503
      %v1525 = vunpack.c.l.b16 %v504
      %v1526 = vunpack.c.l.b16 %v505
      %v1527 = vunpack.c.l.b16 %v506
      %v1528 = vunpack.c.l.b16 %v507
      %v1529 = vunpack.c.l.b16 %v508
      %v1530 = vunpack.c.l.b16 %v509
      %v1531 = vunpack.c.l.b16 %v510
      %v1532 = vunpack.c.l.b16 %v511
      %v1533 = vunpack.c.l.b16 %v512
      %v1534 = vunpack.c.l.b16 %v513
      %v1535 = vunpack.c.l.b16 %v514
      %v1536 = vunpack.c.l.b16 %v515
      %v1537 = vunpack.c.l.b16 %v516
      %v1538 = vunpack.c.l.b16 %v517
      %v1539 = vunpack.c.l.b16 %v518
      %v1540 = vunpack.c.l.b16 %v519
      %v1541 = vunpack.c.l.b16 %v520
      %v1542 = vunpack.c.l.b16 %v521
      %v1543 = vunpack.c.l.b16 %v522
      %v1544 = vunpack.c.l.b16 %v523
      %v1545 = vunpack.c.l.b16 %v524
      %v1546 = vunpack.c.l.b16 %v525
      %v1547 = vunpack.c.l.b16 %v526
      %v1548 = vunpack.c.l.b16 %v527
      %v1549 = vunpack.c.l.b16 %v528
      %v1550 = vunpack.c.l.b16 %v529
      %v1551 = vunpack.c.l.b16 %v530
      %v1552 = vunpack.c.l.b16 %v531
      %v1553 = vunpack.c.l.b16 %v532
      %v1554 = vunpack.c.l.b16 %v533
      %v1555 = vunpack.c.l.b16 %v534
      %v1556 = vunpack.c.l.b16 %v535
      %v1557 = vunpack.c.l.b16 %v536
      %v1558 = vunpack.c.l.b16 %v537
      %v1559 = vunpack.c.l.b16 %v538
      %v1560 = vunpack.c.l.b16 %v539
      %v1561 = vunpack.c.l.b16 %v540
      %v1562 = vunpack.c.l.b16 %v541
      %v1563 = vunpack.c.l.b16 %v542
      %v1564 = vunpack.c.l.b16 %v543
      %v1565 = vunpack.c.l.b16 %v544
      %v1566 = vunpack.c.l.b16 %v545
      %v1567 = vunpack.c.l.b16 %v546
      %v1568 = vunpack.c.l.b16 %v547
      %v1569 = vunpack.c.l.b16 %v548
      %v1570 = vunpack.c.l.b16 %v549
      %v1571 = vunpack.c.l.b16 %v550
      %v1572 = vunpack.c.l.b16 %v551
      %v1573 = vunpack.c.l.b16 %v552
      %v1574 = vunpack.c.l.b16 %v553
      %v1575 = vunpack.c.l.b16 %v554
      %v1576 = vunpack.c.l.b16 %v555
      %v1577 = vunpack.c.l.b16 %v556
      %v1578 = vunpack.c.l.b16 %v557
      %v1579 = vunpack.c.l.b16 %v558
      %v1580 = vunpack.c.l.b16 %v559
      %v1581 = vunpack.c.l.b16 %v560
      %v1582 = vunpack.c.l.b16 %v561
      %v1583 = vunpack.c.l.b16 %v562
      %v1584 = vunpack.c.l.b16 %v563
      %v1585 = vunpack.c.l.b16 %v564
      %v1586 = vunpack.c.l.b16 %v565
      %v1587 = vunpack.c.l.b16 %v566
      %v1588 = vunpack.c.l.b16 %v567
      %v1589 = vunpack.c.l.b16 %v568
      %v1590 = vunpack.c.l.b16 %v569
      %v1591 = vunpack.c.l.b16 %v570
      %v1592 = vunpack.c.l.b16 %v571
      %v1593 = vunpack.c.l.b16 %v572
      %v1594 = vunpack.c.l.b16 %v573
      %v1595 = vunpack.c.l.b16 %v574
      %v1596 = vunpack.c.l.b16 %v575
      %v1597 = vunpack.c.l.b16 %v576
      %v1598 = vunpack.c.l.b16 %v577
      %v1599 = vunpack.c.l.b16 %v578
      %v1600 = vunpack.c.l.b16 %v579
      %v1601 = vunpack.c.l.b16 %v580
      %v1602 = vunpack.c.l.b16 %v581
      %v1603 = vunpack.c.l.b16 %v582
      %v1604 = vunpack.c.l.b16 %v583
      %v1605 = vunpack.c.l.b16 %v584
      %v1606 = vunpack.c.l.b16 %v585
      %v1607 = vunpack.c.l.b16 %v586
      %v1608 = vunpack.c.l.b16 %v587
      %v1609 = vunpack.c.l.b16 %v588
      %v1610 = vunpack.c.l.b16 %v589
      %v1611 = vunpack.c.l.b16 %v590
      %v1612 = vunpack.c.l.b16 %v591
      %v1613 = vunpack.c.l.b16 %v592
      %v1614 = vunpack.c.l.b16 %v593
      %v1615 = vunpack.c.l.b16 %v594
      %v1616 = vunpack.c.l.b16 %v595
      %v1617 = vunpack.c.l.b16 %v596
      %v1618 = vunpack.c.l.b16 %v597
      %v1619 = vunpack.c.l.b16 %v598
      %v1620 = vunpack.c.l.b16 %v599
      %v1621 = vunpack.c.l.b16 %v600
      %v1622 = vunpack.c.l.b16 %v601
      %v1623 = vunpack.c.l.b16 %v602
      %v1624 = vunpack.c.l.b16 %v603
      %v1625 = vunpack.c.l.b16 %v604
      %v1626 = vunpack.c.l.b16 %v605
      %v1627 = vunpack.c.l.b16 %v606
      %v1628 = vunpack.c.l.b16 %v607
      %v1629 = vunpack.c.l.b16 %v608
      %v1630 = vunpack.c.l.b16 %v609
      %v1631 = vunpack.c.l.b16 %v610
      %v1632 = vunpack.c.l.b16 %v611
      %v1633 = vunpack.c.l.b16 %v612
      %v1634 = vunpack.c.l.b16 %v613
      %v1635 = vunpack.c.l.b16 %v614
      %v1636 = vunpack.c.l.b16 %v615
      %v1637 = vunpack.c.l.b16 %v616
      %v1638 = vunpack.c.l.b16 %v617
      %v1639 = vunpack.c.l.b16 %v618
      %v1640 = vunpack.c.l.b16 %v619
      %v1641 = vunpack.c.l.b16 %v620
      %v1642 = vunpack.c.l.b16 %v621
      %v1643 = vunpack.c.l.b16 %v622
      %v1644 = vunpack.c.l.b16 %v623
      %v1645 = vunpack.c.l.b16 %v624
      %v1646 = vunpack.c.l.b16 %v625
      %v1647 = vunpack.c.l.b16 %v626
      %v1648 = vunpack.c.l.b16 %v627
      %v1649 = vunpack.c.l.b16 %v628
      %v1650 = vunpack.c.l.b16 %v629
      %v1651 = vunpack.c.l.b16 %v630
      %v1652 = vunpack.c.l.b16 %v631
      %v1653 = vunpack.c.l.b16 %v632
      %v1654 = vunpack.c.l.b16 %v633
      %v1655 = vunpack.c.l.b16 %v634
      %v1656 = vunpack.c.l.b16 %v635
      %v1657 = vunpack.c.l.b16 %v636
      %v1658 = vunpack.c.l.b16 %v637
      %v1659 = vunpack.c.l.b16 %v638
      %v1660 = vunpack.c.l.b16 %v639
      %v1661 = vunpack.c.l.b16 %v640
      %v1662 = vunpack.c.l.b16 %v641
      %v1663 = vunpack.c.l.b16 %v642
      %v1664 = vunpack.c.l.b16 %v643
      %v1665 = vunpack.c.l.b16 %v644
      %v1666 = vunpack.c.l.b16 %v645
      %v1667 = vunpack.c.l.b16 %v646
      %v1668 = vunpack.c.l.b16 %v647
      %v1669 = vunpack.c.l.b16 %v648
      %v1670 = vunpack.c.l.b16 %v649
      %v1671 = vunpack.c.l.b16 %v650
      %v1672 = vunpack.c.l.b16 %v651
      %v1673 = vunpack.c.l.b16 %v652
      %v1674 = vunpack.c.l.b16 %v653
      %v1675 = vunpack.c.l.b16 %v654
      %v1676 = vunpack.c.l.b16 %v655
      %v1677 = vunpack.c.l.b16 %v656
      %v1678 = vunpack.c.l.b16 %v657
      %v1679 = vunpack.c.l.b16 %v658
      %v1680 = vunpack.c.l.b16 %v659
      %v1681 = vunpack.c.l.b16 %v660
      %v1682 = vunpack.c.l.b16 %v661
      %v1683 = vunpack.c.l.b16 %v662
      %v1684 = vunpack.c.l.b16 %v663
      %v1685 = vunpack.c.l.b16 %v664
      %v1686 = vunpack.c.l.b16 %v665
      %v1687 = vunpack.c.l.b16 %v666
      %v1688 = vunpack.c.l.b16 %v667
      %v1689 = vunpack.c.l.b16 %v668
      %v1690 = vunpack.c.l.b16 %v669
      %v1691 = vunpack.c.l.b16 %v670
      %v1692 = vunpack.c.l.b16 %v671
      %v1693 = vunpack.c.l.b16 %v672
      %v1694 = vunpack.c.l.b16 %v673
      %v1695 = vunpack.c.l.b16 %v674
      %v1696 = vunpack.c.l.b16 %v675
      %v1697 = vunpack.c.l.b16 %v676
      %v1698 = vunpack.c.l.b16 %v677
      %v1699 = vunpack.c.l.b16 %v678
      %v1700 = vunpack.c.l.b16 %v679
      %v1701 = vpack.c.b16 %v1197, %v1196
      %v1702 = vpack.c.b16 %v1199, %v1198
      %v1703 = vpack.c.b16 %v1201, %v1200
      %v1704 = vpack.c.b16 %v1203, %v1202
      %v1705 = vpack.c.b16 %v1205, %v1204
      %v1706 = vpack.c.b16 %v1207, %v1206
      %v1707 = vpack.c.b16 %v1209, %v1208
      %v1708 = vpack.c.b16 %v1211, %v1210
      %v1709 = vpack.c.b16 %v1213, %v1212
      %v1710 = vpack.c.b16 %v1215, %v1214
      %v1711 = vpack.c.b16 %v1217, %v1216
      %v1712 = vpack.c.b16 %v1219, %v1218
      %v1713 = vpack.c.b16 %v1221, %v1220
      %v1714 = vpack.c.b16 %v1223, %v1222
      %v1715 = vpack.c.b16 %v1225, %v1224
      %v1716 = vpack.c.b16 %v1227, %v1226
      %v1717 = vpack.c.b16 %v1229, %v1228
      %v1718 = vpack.c.b16 %v1231, %v1230
      %v1719 = vpack.c.b16 %v1233, %v1232
      %v1720 = vpack.c.b16 %v1235, %v1234
      %v1721 = vpack.c.b16 %v1237, %v1236
      %v1722 = vpack.c.b16 %v1239, %v1238
      %v1723 = vpack.c.b16 %v1241, %v1240
      %v1724 = vpack.c.b16 %v1243, %v1242
      %v1725 = vpack.c.b16 %v1245, %v1244
      %v1726 = vpack.c.b16 %v1247, %v1246
      %v1727 = vpack.c.b16 %v1249, %v1248
      %v1728 = vpack.c.b16 %v1251, %v1250
      %v1729 = vpack.c.b16 %v1253, %v1252
      %v1730 = vpack.c.b16 %v1255, %v1254
      %v1731 = vpack.c.b16 %v1257, %v1256
      %v1732 = vpack.c.b16 %v1259, %v1258
      %v1733 = vpack.c.b16 %v1261, %v1260
      %v1734 = vpack.c.b16 %v1263, %v1262
      %v1735 = vpack.c.b16 %v1265, %v1264
      %v1736 = vpack.c.b16 %v1267, %v1266
      %v1737 = vpack.c.b16 %v1269, %v1268
      %v1738 = vpack.c.b16 %v1271, %v1270
      %v1739 = vpack.c.b16 %v1273, %v1272
      %v1740 = vpack.c.b16 %v1275, %v1274
      %v1741 = vpack.c.b16 %v1277, %v1276
      %v1742 = vpack.c.b16 %v1279, %v1278
      %v1743 = vpack.c.b16 %v1281, %v1280
      %v1744 = vpack.c.b16 %v1283, %v1282
      %v1745 = vpack.c.b16 %v1285, %v1284
      %v1746 = vpack.c.b16 %v1287, %v1286
      %v1747 = vpack.c.b16 %v1289, %v1288
      %v1748 = vpack.c.b16 %v1291, %v1290
      %v1749 = vpack.c.b16 %v1293, %v1292
      %v1750 = vpack.c.b16 %v1295, %v1294
      %v1751 = vpack.c.b16 %v1297, %v1296
      %v1752 = vpack.c.b16 %v1299, %v1298
      %v1753 = vpack.c.b16 %v1301, %v1300
      %v1754 = vpack.c.b16 %v1303, %v1302
      %v1755 = vpack.c.b16 %v1305, %v1304
      %v1756 = vpack.c.b16 %v1307, %v1306
      %v1757 = vpack.c.b16 %v1309, %v1308
      %v1758 = vpack.c.b16 %v1311, %v1310
      %v1759 = vpack.c.b16 %v1313, %v1312
      %v1760 = vpack.c.b16 %v1315, %v1314
      %v1761 = vpack.c.b16 %v1317, %v1316
      %v1762 = vpack.c.b16 %v1319, %v1318
      %v1763 = vpack.c.b16 %v1321, %v1320
      %v1764 = vpack.c.b16 %v1323, %v1322
      %v1765 = vpack.c.b16 %v1325, %v1324
      %v1766 = vpack.c.b16 %v1327, %v1326
      %v1767 = vpack.c.b16 %v1329, %v1328
      %v1768 = vpack.c.b16 %v1331, %v1330
      %v1769 = vpack.c.b16 %v1333, %v1332
      %v1770 = vpack.c.b16 %v1335, %v1334
      %v1771 = vpack.c.b16 %v1337, %v1336
      %v1772 = vpack.c.b16 %v1339, %v1338
      %v1773 = vpack.c.b16 %v1341, %v1340
      %v1774 = vpack.c.b16 %v1343, %v1342
      %v1775 = vpack.c.b16 %v1345, %v1344
      %v1776 = vpack.c.b16 %v1347, %v1346
      %v1777 = vpack.c.b16 %v1349, %v1348
      %v1778 = vpack.c.b16 %v1351, %v1350
      %v1779 = vpack.c.b16 %v1353, %v1352
      %v1780 = vpack.c.b16 %v1355, %v1354
      %v1781 = vpack.c.b16 %v1357, %v1356
      %v1782 = vpack.c.b16 %v1359, %v1358
      %v1783 = vpack.c.b16 %v1361, %v1360
      %v1784 = vpack.c.b16 %v1363, %v1362
      %v1785 = vpack.c.b16 %v1365, %v1364
      %v1786 = vpack.c.b16 %v1367, %v1366
      %v1787 = vpack.c.b16 %v1369, %v1368
      %v1788 = vpack.c.b16 %v1371, %v1370
      %v1789 = vpack.c.b16 %v1373, %v1372
      %v1790 = vpack.c.b16 %v1375, %v1374
      %v1791 = vpack.c.b16 %v1377, %v1376
      %v1792 = vpack.c.b16 %v1379, %v1378
      %v1793 = vpack.c.b16 %v1381, %v1380
      %v1794 = vpack.c.b16 %v1383, %v1382
      %v1795 = vpack.c.b16 %v1385, %v1384
      %v1796 = vpack.c.b16 %v1387, %v1386
      %v1797 = vpack.c.b16 %v1389, %v1388
      %v1798 = vpack.c.b16 %v1391, %v1390
      %v1799 = vpack.c.b16 %v1393, %v1392
      %v1800 = vpack.c.b16 %v1395, %v1394
      %v1801 = vpack.c.b16 %v1397, %v1396
      %v1802 = vpack.c.b16 %v1399, %v1398
      %v1803 = vpack.c.b16 %v1401, %v1400
      %v1804 = vpack.c.b16 %v1403, %v1402
      %v1805 = vpack.c.b16 %v1405, %v1404
      %v1806 = vpack.c.b16 %v1407, %v1406
      %v1807 = vpack.c.b16 %v1409, %v1408
      %v1808 = vpack.c.b16 %v1411, %v1410
      %v1809 = vpack.c.b16 %v1413, %v1412
      %v1810 = vpack.c.b16 %v1415, %v1414
      %v1811 = vpack.c.b16 %v1417, %v1416
      %v1812 = vpack.c.b16 %v1419, %v1418
      %v1813 = vpack.c.b16 %v1421, %v1420
      %v1814 = vpack.c.b16 %v1423, %v1422
      %v1815 = vpack.c.b16 %v1425, %v1424
      %v1816 = vpack.c.b16 %v1427, %v1426
      %v1817 = vpack.c.b16 %v1429, %v1428
      %v1818 = vpack.c.b16 %v1431, %v1430
      %v1819 = vpack.c.b16 %v1433, %v1432
      %v1820 = vpack.c.b16 %v1435, %v1434
      %v1821 = vpack.c.b16 %v1437, %v1436
      %v1822 = vpack.c.b16 %v1439, %v1438
      %v1823 = vpack.c.b16 %v1441, %v1440
      %v1824 = vpack.c.b16 %v1443, %v1442
      %v1825 = vpack.c.b16 %v1445, %v1444
      %v1826 = vpack.c.b16 %v1447, %v1446
      %v1827 = vpack.c.b16 %v1449, %v1448
      %v1828 = vpack.c.b16 %v1451, %v1450
      %v1829 = vpack.c.b16 %v1453, %v1452
      %v1830 = vpack.c.b16 %v1455, %v1454
      %v1831 = vpack.c.b16 %v1457, %v1456
      %v1832 = vpack.c.b16 %v1459, %v1458
      %v1833 = vpack.c.b16 %v1461, %v1460
      %v1834 = vpack.c.b16 %v1463, %v1462
      %v1835 = vpack.c.b16 %v1465, %v1464
      %v1836 = vpack.c.b16 %v1467, %v1466
      %v1837 = vpack.c.b16 %v1469, %v1468
      %v1838 = vpack.c.b16 %v1471, %v1470
      %v1839 = vpack.c.b16 %v1473, %v1472
      %v1840 = vpack.c.b16 %v1475, %v1474
      %v1841 = vpack.c.b16 %v1477, %v1476
      %v1842 = vpack.c.b16 %v1479, %v1478
      %v1843 = vpack.c.b16 %v1481, %v1480
      %v1844 = vpack.c.b16 %v1483, %v1482
      %v1845 = vpack.c.b16 %v1485, %v1484
      %v1846 = vpack.c.b16 %v1487, %v1486
      %v1847 = vpack.c.b16 %v1489, %v1488
      %v1848 = vpack.c.b16 %v1491, %v1490
      %v1849 = vpack.c.b16 %v1493, %v1492
      %v1850 = vpack.c.b16 %v1495, %v1494
      %v1851 = vpack.c.b16 %v1497, %v1496
      %v1852 = vpack.c.b16 %v1499, %v1498
      %v1853 = vpack.c.b16 %v1501, %v1500
      %v1854 = vpack.c.b16 %v1503, %v1502
      %v1855 = vpack.c.b16 %v1505, %v1504
      %v1856 = vpack.c.b16 %v1507, %v1506
      %v1857 = vpack.c.b16 %v1509, %v1508
      %v1858 = vpack.c.b16 %v1511, %v1510
      %v1859 = vpack.c.b16 %v1513, %v1512
      %v1860 = vpack.c.b16 %v1515, %v1514
      %v1861 = vpack.c.b16 %v1517, %v1516
      %v1862 = vpack.c.b16 %v1519, %v1518
      %v1863 = vpack.c.b16 %v1521, %v1520
      %v1864 = vpack.c.b16 %v1523, %v1522
      %v1865 = vpack.c.b16 %v1525, %v1524
      %v1866 = vpack.c.b16 %v1527, %v1526
      %v1867 = vpack.c.b16 %v1529, %v1528
      %v1868 = vpack.c.b16 %v1531, %v1530
      %v1869 = vpack.c.b16 %v1533, %v1532
      %v1870 = vpack.c.b16 %v1535, %v1534
      %v1871 = vpack.c.b16 %v1537, %v1536
      %v1872 = vpack.c.b16 %v1539, %v1538
      %v1873 = vpack.c.b16 %v1541, %v1540
      %v1874 = vpack.c.b16 %v1543, %v1542
      %v1875 = vpack.c.b16 %v1545, %v1544
      %v1876 = vpack.c.b16 %v1547, %v1546
      %v1877 = vpack.c.b16 %v1549, %v1548
      %v1878 = vpack.c.b16 %v1551, %v1550
      %v1879 = vpack.c.b16 %v1553, %v1552
      %v1880 = vpack.c.b16 %v1555, %v1554
      %v1881 = vpack.c.b16 %v1557, %v1556
      %v1882 = vpack.c.b16 %v1559, %v1558
      %v1883 = vpack.c.b16 %v1561, %v1560
      %v1884 = vpack.c.b16 %v1563, %v1562
      %v1885 = vpack.c.b16 %v1565, %v1564
      %v1886 = vpack.c.b16 %v1567, %v1566
      %v1887 = vpack.c.b16 %v1569, %v1568
      %v1888 = vpack.c.b16 %v1571, %v1570
      %v1889 = vpack.c.b16 %v1573, %v1572
      %v1890 = vpack.c.b16 %v1575, %v1574
      %v1891 = vpack.c.b16 %v1577, %v1576
      %v1892 = vpack.c.b16 %v1579, %v1578
      %v1893 = vpack.c.b16 %v1581, %v1580
      %v1894 = vpack.c.b16 %v1583, %v1582
      %v1895 = vpack.c.b16 %v1585, %v1584
      %v1896 = vpack.c.b16 %v1587, %v1586
      %v1897 = vpack.c.b16 %v1589, %v1588
      %v1898 = vpack.c.b16 %v1591, %v1590
      %v1899 = vpack.c.b16 %v1593, %v1592
      %v1900 = vpack.c.b16 %v1595, %v1594
      %v1901 = vpack.c.b16 %v1597, %v1596
      %v1902 = vpack.c.b16 %v1599, %v1598
      %v1903 = vpack.c.b16 %v1601, %v1600
      %v1904 = vpack.c.b16 %v1603, %v1602
      %v1905 = vpack.c.b16 %v1605, %v1604
      %v1906 = vpack.c.b16 %v1607, %v1606
      %v1907 = vpack.c.b16 %v1609, %v1608
      %v1908 = vpack.c.b16 %v1611, %v1610
      %v1909 = vpack.c.b16 %v1613, %v1612
      %v1910 = vpack.c.b16 %v1615, %v1614
      %v1911 = vpack.c.b16 %v1617, %v1616
      %v1912 = vpack.c.b16 %v1619, %v1618
      %v1913 = vpack.c.b16 %v1621, %v1620
      %v1914 = vpack.c.b16 %v1623, %v1622
      %v1915 = vpack.c.b16 %v1625, %v1624
      %v1916 = vpack.c.b16 %v1627, %v1626
      %v1917 = vpack.c.b16 %v1629, %v1628
      %v1918 = vpack.c.b16 %v1631, %v1630
      %v1919 = vpack.c.b16 %v1633, %v1632
      %v1920 = vpack.c.b16 %v1635, %v1634
      %v1921 = vpack.c.b16 %v1637, %v1636
      %v1922 = vpack.c.b16 %v1639, %v1638
      %v1923 = vpack.c.b16 %v1641, %v1640
      %v1924 = vpack.c.b16 %v1643, %v1642
      %v1925 = vpack.c.b16 %v1645, %v1644
      %v1926 = vpack.c.b16 %v1647, %v1646
      %v1927 = vpack.c.b16 %v1649, %v1648
      %v1928 = vpack.c.b16 %v1651, %v1650
      %v1929 = vpack.c.b16 %v1653, %v1652
      %v1930 = vpack.c.b16 %v1655, %v1654
      %v1931 = vpack.c.b16 %v1657, %v1656
      %v1932 = vpack.c.b16 %v1659, %v1658
      %v1933 = vpack.c.b16 %v1661, %v1660
      %v1934 = vpack.c.b16 %v1663, %v1662
      %v1935 = vpack.c.b16 %v1665, %v1664
      %v1936 = vpack.c.b16 %v1667, %v1666
      %v1937 = vpack.c.b16 %v1669, %v1668
      %v1938 = vpack.c.b16 %v1671, %v1670
      %v1939 = vpack.c.b16 %v1673, %v1672
      %v1940 = vpack.c.b16 %v1675, %v1674
      %v1941 = vpack.c.b16 %v1677, %v1676
      %v1942 = vpack.c.b16 %v1679, %v1678
      %v1943 = vpack.c.b16 %v1681, %v1680
      %v1944 = vpack.c.b16 %v1683, %v1682
      %v1945 = vpack.c.b16 %v1685, %v1684
      %v1946 = vpack.c.b16 %v1687, %v1686
      %v1947 = vpack.c.b16 %v1689, %v1688
      %v1948 = vpack.c.b16 %v1691, %v1690
      %v1949 = vpack.c.b16 %v1693, %v1692
      %v1950 = vpack.c.b16 %v1695, %v1694
      %v1951 = vpack.c.b16 %v1697, %v1696
      %v1952 = vpack.c.b16 %v1699, %v1698
      %v1953 = vpack.c.b16 %v1700, %v1700
      %v1958 = vunpack.c.l.b16 %v680
      %v1959 = vunpack.c.l.b16 %v681
      %v1960 = vunpack.c.l.b16 %v682
      %v1961 = vunpack.c.l.b16 %v683
      %v1962 = vpack.c.b16 %v1959, %v1958
      %v1963 = vpack.c.b16 %v1961, %v1960
      %vm1965 = vcmask 220160
      %v1967 = vsel %vm1965, %v1701, 0
      %v1970 = vsel %vm1965, %v1702, 0
      %v1973 = vsel %vm1965, %v1703, 0
      %v1976 = vsel %vm1965, %v1704, 0
      %v1979 = vsel %vm1965, %v1705, 0
      %v1982 = vsel %vm1965, %v1706, 0
      %v1985 = vsel %vm1965, %v1707, 0
      %v1988 = vsel %vm1965, %v1708, 0
      %v1991 = vsel %vm1965, %v1709, 0
      %v1994 = vsel %vm1965, %v1710, 0
      %v1997 = vsel %vm1965, %v1711, 0
      %v2000 = vsel %vm1965, %v1712, 0
      %v2003 = vsel %vm1965, %v1713, 0
      %v2006 = vsel %vm1965, %v1714, 0
      %v2009 = vsel %vm1965, %v1715, 0
      %v2012 = vsel %vm1965, %v1716, 0
      %v2015 = vsel %vm1965, %v1717, 0
      %v2018 = vsel %vm1965, %v1718, 0
      %v2021 = vsel %vm1965, %v1719, 0
      %v2024 = vsel %vm1965, %v1720, 0
      %v2027 = vsel %vm1965, %v1721, 0
      %v2030 = vsel %vm1965, %v1722, 0
      %v2033 = vsel %vm1965, %v1723, 0
      %v2036 = vsel %vm1965, %v1724, 0
      %v2039 = vsel %vm1965, %v1725, 0
      %v2042 = vsel %vm1965, %v1726, 0
      %v2045 = vsel %vm1965, %v1727, 0
      %v2048 = vsel %vm1965, %v1728, 0
      %v2051 = vsel %vm1965, %v1729, 0
      %v2054 = vsel %vm1965, %v1730, 0
      %v2057 = vsel %vm1965, %v1731, 0
      %v2060 = vsel %vm1965, %v1732, 0
      %v2063 = vsel %vm1965, %v1733, 0
      %v2066 = vsel %vm1965, %v1734, 0
      %v2069 = vsel %vm1965, %v1735, 0
      %v2072 = vsel %vm1965, %v1736, 0
      %v2075 = vsel %vm1965, %v1737, 0
      %v2078 = vsel %vm1965, %v1738, 0
      %v2081 = vsel %vm1965, %v1739, 0
      %v2084 = vsel %vm1965, %v1740, 0
      %v2087 = vsel %vm1965, %v1741, 0
      %v2090 = vsel %vm1965, %v1742, 0
      %v2093 = vsel %vm1965, %v1743, 0
      %v2096 = vsel %vm1965, %v1744, 0
      %v2099 = vsel %vm1965, %v1745, 0
      %v2102 = vsel %vm1965, %v1746, 0
      %v2105 = vsel %vm1965, %v1747, 0
      %v2108 = vsel %vm1965, %v1748, 0
      %v2111 = vsel %vm1965, %v1749, 0
      %v2114 = vsel %vm1965, %v1750, 0
      %v2117 = vsel %vm1965, %v1751, 0
      %v2120 = vsel %vm1965, %v1752, 0
      %v2123 = vsel %vm1965, %v1753, 0
      %v2126 = vsel %vm1965, %v1754, 0
      %v2129 = vsel %vm1965, %v1755, 0
      %v2132 = vsel %vm1965, %v1756, 0
      %v2135 = vsel %vm1965, %v1757, 0
      %v2138 = vsel %vm1965, %v1758, 0
      %v2141 = vsel %vm1965, %v1759, 0
      %v2144 = vsel %vm1965, %v1760, 0
      %v2147 = vsel %vm1965, %v1761, 0
      %v2150 = vsel %vm1965, %v1762, 0
      %v2153 = vsel %vm1965, %v1763, 0
      %v2156 = vsel %vm1965, %v1764, 0
      %v2159 = vsel %vm1965, %v1765, 0
      %v2162 = vsel %vm1965, %v1766, 0
      %v2165 = vsel %vm1965, %v1767, 0
      %v2168 = vsel %vm1965, %v1768, 0
      %v2171 = vsel %vm1965, %v1769, 0
      %v2174 = vsel %vm1965, %v1770, 0
      %v2177 = vsel %vm1965, %v1771, 0
      %v2180 = vsel %vm1965, %v1772, 0
      %v2183 = vsel %vm1965, %v1773, 0
      %v2186 = vsel %vm1965, %v1774, 0
      %v2189 = vsel %vm1965, %v1775, 0
      %v2192 = vsel %vm1965, %v1776, 0
      %v2195 = vsel %vm1965, %v1777, 0
      %v2198 = vsel %vm1965, %v1778, 0
      %v2201 = vsel %vm1965, %v1779, 0
      %v2204 = vsel %vm1965, %v1780, 0
      %v2207 = vsel %vm1965, %v1781, 0
      %v2210 = vsel %vm1965, %v1782, 0
      %v2213 = vsel %vm1965, %v1783, 0
      %v2216 = vsel %vm1965, %v1784, 0
      %v2219 = vsel %vm1965, %v1785, 0
      %v2222 = vsel %vm1965, %v1786, 0
      %v2225 = vsel %vm1965, %v1787, 0
      %v2228 = vsel %vm1965, %v1788, 0
      %v2231 = vsel %vm1965, %v1789, 0
      %v2234 = vsel %vm1965, %v1790, 0
      %v2237 = vsel %vm1965, %v1791, 0
      %v2240 = vsel %vm1965, %v1792, 0
      %v2243 = vsel %vm1965, %v1793, 0
      %v2246 = vsel %vm1965, %v1794, 0
      %v2249 = vsel %vm1965, %v1795, 0
      %v2252 = vsel %vm1965, %v1796, 0
      %v2255 = vsel %vm1965, %v1797, 0
      %v2258 = vsel %vm1965, %v1798, 0
      %v2261 = vsel %vm1965, %v1799, 0
      %v2264 = vsel %vm1965, %v1800, 0
      %v2267 = vsel %vm1965, %v1801, 0
      %v2270 = vsel %vm1965, %v1802, 0
      %v2273 = vsel %vm1965, %v1803, 0
      %v2276 = vsel %vm1965, %v1804, 0
      %v2279 = vsel %vm1965, %v1805, 0
      %v2282 = vsel %vm1965, %v1806, 0
      %v2285 = vsel %vm1965, %v1807, 0
      %v2288 = vsel %vm1965, %v1808, 0
      %v2291 = vsel %vm1965, %v1809, 0
      %v2294 = vsel %vm1965, %v1810, 0
      %v2297 = vsel %vm1965, %v1811, 0
      %v2300 = vsel %vm1965, %v1812, 0
      %v2303 = vsel %vm1965, %v1813, 0
      %v2306 = vsel %vm1965, %v1814, 0
      %v2309 = vsel %vm1965, %v1815, 0
      %v2312 = vsel %vm1965, %v1816, 0
      %v2315 = vsel %vm1965, %v1817, 0
      %v2318 = vsel %vm1965, %v1818, 0
      %v2321 = vsel %vm1965, %v1819, 0
      %v2324 = vsel %vm1965, %v1820, 0
      %v2327 = vsel %vm1965, %v1821, 0
      %v2330 = vsel %vm1965, %v1822, 0
      %v2333 = vsel %vm1965, %v1823, 0
      %v2336 = vsel %vm1965, %v1824, 0
      %v2339 = vsel %vm1965, %v1825, 0
      %v2342 = vsel %vm1965, %v1826, 0
      %v2345 = vsel %vm1965, %v1827, 0
      %v2348 = vsel %vm1965, %v1828, 0
      %v2351 = vsel %vm1965, %v1829, 0
      %v2354 = vsel %vm1965, %v1830, 0
      %v2357 = vsel %vm1965, %v1831, 0
      %v2360 = vsel %vm1965, %v1832, 0
      %v2363 = vsel %vm1965, %v1833, 0
      %v2366 = vsel %vm1965, %v1834, 0
      %v2369 = vsel %vm1965, %v1835, 0
      %v2372 = vsel %vm1965, %v1836, 0
      %v2375 = vsel %vm1965, %v1837, 0
      %v2378 = vsel %vm1965, %v1838, 0
      %v2381 = vsel %vm1965, %v1839, 0
      %v2384 = vsel %vm1965, %v1840, 0
      %v2387 = vsel %vm1965, %v1841, 0
      %v2390 = vsel %vm1965, %v1842, 0
      %v2393 = vsel %vm1965, %v1843, 0
      %v2396 = vsel %vm1965, %v1844, 0
      %v2399 = vsel %vm1965, %v1845, 0
      %v2402 = vsel %vm1965, %v1846, 0
      %v2405 = vsel %vm1965, %v1847, 0
      %v2408 = vsel %vm1965, %v1848, 0
      %v2411 = vsel %vm1965, %v1849, 0
      %v2414 = vsel %vm1965, %v1850, 0
      %v2417 = vsel %vm1965, %v1851, 0
      %v2420 = vsel %vm1965, %v1852, 0
      %v2423 = vsel %vm1965, %v1853, 0
      %v2426 = vsel %vm1965, %v1854, 0
      %v2429 = vsel %vm1965, %v1855, 0
      %v2432 = vsel %vm1965, %v1856, 0
      %v2435 = vsel %vm1965, %v1857, 0
      %v2438 = vsel %vm1965, %v1858, 0
      %v2441 = vsel %vm1965, %v1859, 0
      %v2444 = vsel %vm1965, %v1860, 0
      %v2447 = vsel %vm1965, %v1861, 0
      %v2450 = vsel %vm1965, %v1862, 0
      %v2453 = vsel %vm1965, %v1863, 0
      %v2456 = vsel %vm1965, %v1864, 0
      %v2459 = vsel %vm1965, %v1865, 0
      %v2462 = vsel %vm1965, %v1866, 0
      %v2465 = vsel %vm1965, %v1867, 0
      %v2468 = vsel %vm1965, %v1868, 0
      %v2471 = vsel %vm1965, %v1869, 0
      %v2474 = vsel %vm1965, %v1870, 0
      %v2477 = vsel %vm1965, %v1871, 0
      %v2480 = vsel %vm1965, %v1872, 0
      %v2483 = vsel %vm1965, %v1873, 0
      %v2486 = vsel %vm1965, %v1874, 0
      %v2489 = vsel %vm1965, %v1875, 0
      %v2492 = vsel %vm1965, %v1876, 0
      %v2495 = vsel %vm1965, %v1877, 0
      %v2498 = vsel %vm1965, %v1878, 0
      %v2501 = vsel %vm1965, %v1879, 0
      %v2504 = vsel %vm1965, %v1880, 0
      %v2507 = vsel %vm1965, %v1881, 0
      %v2510 = vsel %vm1965, %v1882, 0
      %v2513 = vsel %vm1965, %v1883, 0
      %v2516 = vsel %vm1965, %v1884, 0
      %v2519 = vsel %vm1965, %v1885, 0
      %v2522 = vsel %vm1965, %v1886, 0
      %v2525 = vsel %vm1965, %v1887, 0
      %v2528 = vsel %vm1965, %v1888, 0
      %v2531 = vsel %vm1965, %v1889, 0
      %v2534 = vsel %vm1965, %v1890, 0
      %v2537 = vsel %vm1965, %v1891, 0
      %v2540 = vsel %vm1965, %v1892, 0
      %v2543 = vsel %vm1965, %v1893, 0
      %v2546 = vsel %vm1965, %v1894, 0
      %v2549 = vsel %vm1965, %v1895, 0
      %v2552 = vsel %vm1965, %v1896, 0
      %v2555 = vsel %vm1965, %v1897, 0
      %v2558 = vsel %vm1965, %v1898, 0
      %v2561 = vsel %vm1965, %v1899, 0
      %v2564 = vsel %vm1965, %v1900, 0
      %v2567 = vsel %vm1965, %v1901, 0
      %v2570 = vsel %vm1965, %v1902, 0
      %v2573 = vsel %vm1965, %v1903, 0
      %v2576 = vsel %vm1965, %v1904, 0
      %v2579 = vsel %vm1965, %v1905, 0
      %v2582 = vsel %vm1965, %v1906, 0
      %v2585 = vsel %vm1965, %v1907, 0
      %v2588 = vsel %vm1965, %v1908, 0
      %v2591 = vsel %vm1965, %v1909, 0
      %v2594 = vsel %vm1965, %v1910, 0
      %v2597 = vsel %vm1965, %v1911, 0
      %v2600 = vsel %vm1965, %v1912, 0
      %v2603 = vsel %vm1965, %v1913, 0
      %v2606 = vsel %vm1965, %v1914, 0
      %v2609 = vsel %vm1965, %v1915, 0
      %v2612 = vsel %vm1965, %v1916, 0
      %v2615 = vsel %vm1965, %v1917, 0
      %v2618 = vsel %vm1965, %v1918, 0
      %v2621 = vsel %vm1965, %v1919, 0
      %v2624 = vsel %vm1965, %v1920, 0
      %v2627 = vsel %vm1965, %v1921, 0
      %v2630 = vsel %vm1965, %v1922, 0
      %v2633 = vsel %vm1965, %v1923, 0
      %v2636 = vsel %vm1965, %v1924, 0
      %v2639 = vsel %vm1965, %v1925, 0
      %v2642 = vsel %vm1965, %v1926, 0
      %v2645 = vsel %vm1965, %v1927, 0
      %v2648 = vsel %vm1965, %v1928, 0
      %v2651 = vsel %vm1965, %v1929, 0
      %v2654 = vsel %vm1965, %v1930, 0
      %v2657 = vsel %vm1965, %v1931, 0
      %v2660 = vsel %vm1965, %v1932, 0
      %v2663 = vsel %vm1965, %v1933, 0
      %v2666 = vsel %vm1965, %v1934, 0
      %v2669 = vsel %vm1965, %v1935, 0
      %v2672 = vsel %vm1965, %v1936, 0
      %v2675 = vsel %vm1965, %v1937, 0
      %v2678 = vsel %vm1965, %v1938, 0
      %v2681 = vsel %vm1965, %v1939, 0
      %v2684 = vsel %vm1965, %v1940, 0
      %v2687 = vsel %vm1965, %v1941, 0
      %v2690 = vsel %vm1965, %v1942, 0
      %v2693 = vsel %vm1965, %v1943, 0
      %v2696 = vsel %vm1965, %v1944, 0
      %v2699 = vsel %vm1965, %v1945, 0
      %v2702 = vsel %vm1965, %v1946, 0
      %v2705 = vsel %vm1965, %v1947, 0
      %v2708 = vsel %vm1965, %v1948, 0
      %v2711 = vsel %vm1965, %v1949, 0
      %v2714 = vsel %vm1965, %v1950, 0
      %v2717 = vsel %vm1965, %v1951, 0
      %v2720 = vsel %vm1965, %v1952, 0
      %v2723 = vsel %vm1965, %v1953, 0
      %vm2725 = vcmask 1044480
      %vm2726 = vcmask 1045504
      %v2727 = vsel %vm2725, 4294967295, 65535
      %v2728 = vsel %vm2726, %v2727, 0
      %v2730 = vand.u32 %v1963, %v2728
      %2732 = vmatprep.subr.bf16.mxu0 0
      %2733 = vmatpush1.bf16.msra.mxu0 0
      %2734 = vmatprep.subr.bf16.mxu0 0
      %2735 = vmatpush1.bf16.msra.mxu0 0
      %2736 = vmatprep.subr.bf16.mxu0 0
      %2737 = vmatpush1.bf16.msra.mxu0 0
      %2738 = vmatprep.subr.bf16.mxu0 0
      %2739 = vmatpush1.bf16.msra.mxu0 0
      %2740 = vmatprep.subr.bf16.mxu0 0
      %2741 = vmatpush1.bf16.msra.mxu0 0
      %2742 = vmatprep.subr.bf16.mxu0 0
      %2743 = vmatpush1.bf16.msra.mxu0 0
      %2744 = vmatprep.subr.bf16.mxu0 0
      %2745 = vmatpush1.bf16.msra.mxu0 %v2730
      %2746 = vmatprep.subr.bf16.mxu0 0
      %2747 = vmatpush1.bf16.msra.mxu0 %v1962
      %2748 = vmatprep.subr.bf16.mxu0 0
      %2749 = vmatpush2.bf16.msra.mxu0 0
      %2750 = vmatprep.subr.bf16.mxu0 0
      %2751 = vmatpush2.bf16.msra.mxu0 0
      %2752 = vmatprep.subr.bf16.mxu0 0
      %2753 = vmatpush2.bf16.msra.mxu0 0
      %2754 = vmatprep.subr.bf16.mxu0 0
      %2755 = vmatpush2.bf16.msra.mxu0 0
      %2756 = vmatprep.subr.bf16.mxu0 0
      %2757 = vmatpush2.bf16.msra.mxu0 0
      %2758 = vmatprep.subr.bf16.mxu0 0
      %2759 = vmatpush2.bf16.msra.mxu0 0
      %2760 = vmatprep.subr.bf16.mxu0 0
      %2761 = vmatpush2.bf16.msra.mxu0 0
      %2762 = vmatprep.subr.bf16.mxu0 0
      %2763 = vmatpush2.bf16.msra.mxu0 0
      %2764 = vmatprep.mubr.bf16.mxu0 0
      %2765 = vmatmul.mubr.bf16.gmra.mxu0 %v1967
      %v2766 = vpop.f32.mrf.mxu0
      %v2767 = vadd.f32 %v689, %v2766
      %v2768 = vpop.f32.mrf.mxu0
      %v2769 = vpop.f32.mrf.mxu0
      %v2770 = vadd.f32 %v689, %v2769
      %v2771 = vpop.f32.mrf.mxu0
      %2772 = vmatprep.mubr.bf16.mxu0 0
      %2773 = vmatmul.mubr.bf16.gmra.mxu0 %v1970
      %v2774 = vpop.f32.mrf.mxu0
      %v2775 = vadd.f32 %v689, %v2774
      %v2776 = vpop.f32.mrf.mxu0
      %v2777 = vpop.f32.mrf.mxu0
      %v2778 = vadd.f32 %v689, %v2777
      %v2779 = vpop.f32.mrf.mxu0
      %2780 = vmatprep.mubr.bf16.mxu0 0
      %2781 = vmatmul.mubr.bf16.gmra.mxu0 %v1973
      %v2782 = vpop.f32.mrf.mxu0
      %v2783 = vadd.f32 %v689, %v2782
      %v2784 = vpop.f32.mrf.mxu0
      %v2785 = vpop.f32.mrf.mxu0
      %v2786 = vadd.f32 %v689, %v2785
      %v2787 = vpop.f32.mrf.mxu0
      %2788 = vmatprep.mubr.bf16.mxu0 0
      %2789 = vmatmul.mubr.bf16.gmra.mxu0 %v1976
      %v2790 = vpop.f32.mrf.mxu0
      %v2791 = vadd.f32 %v689, %v2790
      %v2792 = vpop.f32.mrf.mxu0
      %v2793 = vpop.f32.mrf.mxu0
      %v2794 = vadd.f32 %v689, %v2793
      %v2795 = vpop.f32.mrf.mxu0
      %2796 = vmatprep.mubr.bf16.mxu0 0
      %2797 = vmatmul.mubr.bf16.gmra.mxu0 %v1979
      %v2798 = vpop.f32.mrf.mxu0
      %v2799 = vadd.f32 %v689, %v2798
      %v2800 = vpop.f32.mrf.mxu0
      %v2801 = vpop.f32.mrf.mxu0
      %v2802 = vadd.f32 %v689, %v2801
      %v2803 = vpop.f32.mrf.mxu0
      %2804 = vmatprep.mubr.bf16.mxu0 0
      %2805 = vmatmul.mubr.bf16.gmra.mxu0 %v1982
      %v2806 = vpop.f32.mrf.mxu0
      %v2807 = vadd.f32 %v689, %v2806
      %v2808 = vpop.f32.mrf.mxu0
      %v2809 = vpop.f32.mrf.mxu0
      %v2810 = vadd.f32 %v689, %v2809
      %v2811 = vpop.f32.mrf.mxu0
      %2812 = vmatprep.mubr.bf16.mxu0 0
      %2813 = vmatmul.mubr.bf16.gmra.mxu0 %v1985
      %v2814 = vpop.f32.mrf.mxu0
      %v2815 = vadd.f32 %v689, %v2814
      %v2816 = vpop.f32.mrf.mxu0
      %v2817 = vpop.f32.mrf.mxu0
      %v2818 = vadd.f32 %v689, %v2817
      %v2819 = vpop.f32.mrf.mxu0
      %2820 = vmatprep.mubr.bf16.mxu0 0
      %2821 = vmatmul.mubr.bf16.gmra.mxu0 %v1988
      %v2822 = vpop.f32.mrf.mxu0
      %v2823 = vadd.f32 %v689, %v2822
      %v2824 = vpop.f32.mrf.mxu0
      %v2825 = vpop.f32.mrf.mxu0
      %v2826 = vadd.f32 %v689, %v2825
      %v2827 = vpop.f32.mrf.mxu0
      %2828 = vmatprep.mubr.bf16.mxu0 0
      %2829 = vmatmul.mubr.bf16.gmra.mxu0 %v1991
      %v2830 = vpop.f32.mrf.mxu0
      %v2831 = vadd.f32 %v689, %v2830
      %v2832 = vpop.f32.mrf.mxu0
      %v2833 = vpop.f32.mrf.mxu0
      %v2834 = vadd.f32 %v689, %v2833
      %v2835 = vpop.f32.mrf.mxu0
      %2836 = vmatprep.mubr.bf16.mxu0 0
      %2837 = vmatmul.mubr.bf16.gmra.mxu0 %v1994
      %v2838 = vpop.f32.mrf.mxu0
      %v2839 = vadd.f32 %v689, %v2838
      %v2840 = vpop.f32.mrf.mxu0
      %v2841 = vpop.f32.mrf.mxu0
      %v2842 = vadd.f32 %v689, %v2841
      %v2843 = vpop.f32.mrf.mxu0
      %2844 = vmatprep.mubr.bf16.mxu0 0
      %2845 = vmatmul.mubr.bf16.gmra.mxu0 %v1997
      %v2846 = vpop.f32.mrf.mxu0
      %v2847 = vadd.f32 %v689, %v2846
      %v2848 = vpop.f32.mrf.mxu0
      %v2849 = vpop.f32.mrf.mxu0
      %v2850 = vadd.f32 %v689, %v2849
      %v2851 = vpop.f32.mrf.mxu0
      %2852 = vmatprep.mubr.bf16.mxu0 0
      %2853 = vmatmul.mubr.bf16.gmra.mxu0 %v2000
      %v2854 = vpop.f32.mrf.mxu0
      %v2855 = vadd.f32 %v689, %v2854
      %v2856 = vpop.f32.mrf.mxu0
      %v2857 = vpop.f32.mrf.mxu0
      %v2858 = vadd.f32 %v689, %v2857
      %v2859 = vpop.f32.mrf.mxu0
      %2860 = vmatprep.mubr.bf16.mxu0 0
      %2861 = vmatmul.mubr.bf16.gmra.mxu0 %v2003
      %v2862 = vpop.f32.mrf.mxu0
      %v2863 = vadd.f32 %v689, %v2862
      %v2864 = vpop.f32.mrf.mxu0
      %v2865 = vpop.f32.mrf.mxu0
      %v2866 = vadd.f32 %v689, %v2865
      %v2867 = vpop.f32.mrf.mxu0
      %2868 = vmatprep.mubr.bf16.mxu0 0
      %2869 = vmatmul.mubr.bf16.gmra.mxu0 %v2006
      %v2870 = vpop.f32.mrf.mxu0
      %v2871 = vadd.f32 %v689, %v2870
      %v2872 = vpop.f32.mrf.mxu0
      %v2873 = vpop.f32.mrf.mxu0
      %v2874 = vadd.f32 %v689, %v2873
      %v2875 = vpop.f32.mrf.mxu0
      %2876 = vmatprep.mubr.bf16.mxu0 0
      %2877 = vmatmul.mubr.bf16.gmra.mxu0 %v2009
      %v2878 = vpop.f32.mrf.mxu0
      %v2879 = vadd.f32 %v689, %v2878
      %v2880 = vpop.f32.mrf.mxu0
      %v2881 = vpop.f32.mrf.mxu0
      %v2882 = vadd.f32 %v689, %v2881
      %v2883 = vpop.f32.mrf.mxu0
      %2884 = vmatprep.mubr.bf16.mxu0 0
      %2885 = vmatmul.mubr.bf16.gmra.mxu0 %v2012
      %v2886 = vpop.f32.mrf.mxu0
      %v2887 = vadd.f32 %v689, %v2886
      %v2888 = vpop.f32.mrf.mxu0
      %v2889 = vpop.f32.mrf.mxu0
      %v2890 = vadd.f32 %v689, %v2889
      %v2891 = vpop.f32.mrf.mxu0
      %2892 = vmatprep.mubr.bf16.mxu0 0
      %2893 = vmatmul.mubr.bf16.gmra.mxu0 %v2015
      %v2894 = vpop.f32.mrf.mxu0
      %v2895 = vadd.f32 %v689, %v2894
      %v2896 = vpop.f32.mrf.mxu0
      %v2897 = vpop.f32.mrf.mxu0
      %v2898 = vadd.f32 %v689, %v2897
      %v2899 = vpop.f32.mrf.mxu0
      %2900 = vmatprep.mubr.bf16.mxu0 0
      %2901 = vmatmul.mubr.bf16.gmra.mxu0 %v2018
      %v2902 = vpop.f32.mrf.mxu0
      %v2903 = vadd.f32 %v689, %v2902
      %v2904 = vpop.f32.mrf.mxu0
      %v2905 = vpop.f32.mrf.mxu0
      %v2906 = vadd.f32 %v689, %v2905
      %v2907 = vpop.f32.mrf.mxu0
      %2908 = vmatprep.mubr.bf16.mxu0 0
      %2909 = vmatmul.mubr.bf16.gmra.mxu0 %v2021
      %v2910 = vpop.f32.mrf.mxu0
      %v2911 = vadd.f32 %v689, %v2910
      %v2912 = vpop.f32.mrf.mxu0
      %v2913 = vpop.f32.mrf.mxu0
      %v2914 = vadd.f32 %v689, %v2913
      %v2915 = vpop.f32.mrf.mxu0
      %2916 = vmatprep.mubr.bf16.mxu0 0
      %2917 = vmatmul.mubr.bf16.gmra.mxu0 %v2024
      %v2918 = vpop.f32.mrf.mxu0
      %v2919 = vadd.f32 %v689, %v2918
      %v2920 = vpop.f32.mrf.mxu0
      %v2921 = vpop.f32.mrf.mxu0
      %v2922 = vadd.f32 %v689, %v2921
      %v2923 = vpop.f32.mrf.mxu0
      %2924 = vmatprep.mubr.bf16.mxu0 0
      %2925 = vmatmul.mubr.bf16.gmra.mxu0 %v2027
      %v2926 = vpop.f32.mrf.mxu0
      %v2927 = vadd.f32 %v689, %v2926
      %v2928 = vpop.f32.mrf.mxu0
      %v2929 = vpop.f32.mrf.mxu0
      %v2930 = vadd.f32 %v689, %v2929
      %v2931 = vpop.f32.mrf.mxu0
      %2932 = vmatprep.mubr.bf16.mxu0 0
      %2933 = vmatmul.mubr.bf16.gmra.mxu0 %v2030
      %v2934 = vpop.f32.mrf.mxu0
      %v2935 = vadd.f32 %v689, %v2934
      %v2936 = vpop.f32.mrf.mxu0
      %v2937 = vpop.f32.mrf.mxu0
      %v2938 = vadd.f32 %v689, %v2937
      %v2939 = vpop.f32.mrf.mxu0
      %2940 = vmatprep.mubr.bf16.mxu0 0
      %2941 = vmatmul.mubr.bf16.gmra.mxu0 %v2033
      %v2942 = vpop.f32.mrf.mxu0
      %v2943 = vadd.f32 %v689, %v2942
      %v2944 = vpop.f32.mrf.mxu0
      %v2945 = vpop.f32.mrf.mxu0
      %v2946 = vadd.f32 %v689, %v2945
      %v2947 = vpop.f32.mrf.mxu0
      %2948 = vmatprep.mubr.bf16.mxu0 0
      %2949 = vmatmul.mubr.bf16.gmra.mxu0 %v2036
      %v2950 = vpop.f32.mrf.mxu0
      %v2951 = vadd.f32 %v689, %v2950
      %v2952 = vpop.f32.mrf.mxu0
      %v2953 = vpop.f32.mrf.mxu0
      %v2954 = vadd.f32 %v689, %v2953
      %v2955 = vpop.f32.mrf.mxu0
      %2956 = vmatprep.mubr.bf16.mxu0 0
      %2957 = vmatmul.mubr.bf16.gmra.mxu0 %v2039
      %v2958 = vpop.f32.mrf.mxu0
      %v2959 = vadd.f32 %v689, %v2958
      %v2960 = vpop.f32.mrf.mxu0
      %v2961 = vpop.f32.mrf.mxu0
      %v2962 = vadd.f32 %v689, %v2961
      %v2963 = vpop.f32.mrf.mxu0
      %2964 = vmatprep.mubr.bf16.mxu0 0
      %2965 = vmatmul.mubr.bf16.gmra.mxu0 %v2042
      %v2966 = vpop.f32.mrf.mxu0
      %v2967 = vadd.f32 %v689, %v2966
      %v2968 = vpop.f32.mrf.mxu0
      %v2969 = vpop.f32.mrf.mxu0
      %v2970 = vadd.f32 %v689, %v2969
      %v2971 = vpop.f32.mrf.mxu0
      %2972 = vmatprep.mubr.bf16.mxu0 0
      %2973 = vmatmul.mubr.bf16.gmra.mxu0 %v2045
      %v2974 = vpop.f32.mrf.mxu0
      %v2975 = vadd.f32 %v689, %v2974
      %v2976 = vpop.f32.mrf.mxu0
      %v2977 = vpop.f32.mrf.mxu0
      %v2978 = vadd.f32 %v689, %v2977
      %v2979 = vpop.f32.mrf.mxu0
      %2980 = vmatprep.mubr.bf16.mxu0 0
      %2981 = vmatmul.mubr.bf16.gmra.mxu0 %v2048
      %v2982 = vpop.f32.mrf.mxu0
      %v2983 = vadd.f32 %v689, %v2982
      %v2984 = vpop.f32.mrf.mxu0
      %v2985 = vpop.f32.mrf.mxu0
      %v2986 = vadd.f32 %v689, %v2985
      %v2987 = vpop.f32.mrf.mxu0
      %2988 = vmatprep.mubr.bf16.mxu0 0
      %2989 = vmatmul.mubr.bf16.gmra.mxu0 %v2051
      %v2990 = vpop.f32.mrf.mxu0
      %v2991 = vadd.f32 %v689, %v2990
      %v2992 = vpop.f32.mrf.mxu0
      %v2993 = vpop.f32.mrf.mxu0
      %v2994 = vadd.f32 %v689, %v2993
      %v2995 = vpop.f32.mrf.mxu0
      %2996 = vmatprep.mubr.bf16.mxu0 0
      %2997 = vmatmul.mubr.bf16.gmra.mxu0 %v2054
      %v2998 = vpop.f32.mrf.mxu0
      %v2999 = vadd.f32 %v689, %v2998
      %v3000 = vpop.f32.mrf.mxu0
      %v3001 = vpop.f32.mrf.mxu0
      %v3002 = vadd.f32 %v689, %v3001
      %v3003 = vpop.f32.mrf.mxu0
      %3004 = vmatprep.mubr.bf16.mxu0 0
      %3005 = vmatmul.mubr.bf16.gmra.mxu0 %v2057
      %v3006 = vpop.f32.mrf.mxu0
      %v3007 = vadd.f32 %v689, %v3006
      %v3008 = vpop.f32.mrf.mxu0
      %v3009 = vpop.f32.mrf.mxu0
      %v3010 = vadd.f32 %v689, %v3009
      %v3011 = vpop.f32.mrf.mxu0
      %3012 = vmatprep.mubr.bf16.mxu0 0
      %3013 = vmatmul.mubr.bf16.gmra.mxu0 %v2060
      %v3014 = vpop.f32.mrf.mxu0
      %v3015 = vadd.f32 %v689, %v3014
      %v3016 = vpop.f32.mrf.mxu0
      %v3017 = vpop.f32.mrf.mxu0
      %v3018 = vadd.f32 %v689, %v3017
      %v3019 = vpop.f32.mrf.mxu0
      %3020 = vmatprep.mubr.bf16.mxu0 0
      %3021 = vmatmul.mubr.bf16.gmra.mxu0 %v2063
      %v3022 = vpop.f32.mrf.mxu0
      %v3023 = vadd.f32 %v689, %v3022
      %v3024 = vpop.f32.mrf.mxu0
      %v3025 = vpop.f32.mrf.mxu0
      %v3026 = vadd.f32 %v689, %v3025
      %v3027 = vpop.f32.mrf.mxu0
      %3028 = vmatprep.mubr.bf16.mxu0 0
      %3029 = vmatmul.mubr.bf16.gmra.mxu0 %v2066
      %v3030 = vpop.f32.mrf.mxu0
      %v3031 = vadd.f32 %v689, %v3030
      %v3032 = vpop.f32.mrf.mxu0
      %v3033 = vpop.f32.mrf.mxu0
      %v3034 = vadd.f32 %v689, %v3033
      %v3035 = vpop.f32.mrf.mxu0
      %3036 = vmatprep.mubr.bf16.mxu0 0
      %3037 = vmatmul.mubr.bf16.gmra.mxu0 %v2069
      %v3038 = vpop.f32.mrf.mxu0
      %v3039 = vadd.f32 %v689, %v3038
      %v3040 = vpop.f32.mrf.mxu0
      %v3041 = vpop.f32.mrf.mxu0
      %v3042 = vadd.f32 %v689, %v3041
      %v3043 = vpop.f32.mrf.mxu0
      %3044 = vmatprep.mubr.bf16.mxu0 0
      %3045 = vmatmul.mubr.bf16.gmra.mxu0 %v2072
      %v3046 = vpop.f32.mrf.mxu0
      %v3047 = vadd.f32 %v689, %v3046
      %v3048 = vpop.f32.mrf.mxu0
      %v3049 = vpop.f32.mrf.mxu0
      %v3050 = vadd.f32 %v689, %v3049
      %v3051 = vpop.f32.mrf.mxu0
      %3052 = vmatprep.mubr.bf16.mxu0 0
      %3053 = vmatmul.mubr.bf16.gmra.mxu0 %v2075
      %v3054 = vpop.f32.mrf.mxu0
      %v3055 = vadd.f32 %v689, %v3054
      %v3056 = vpop.f32.mrf.mxu0
      %v3057 = vpop.f32.mrf.mxu0
      %v3058 = vadd.f32 %v689, %v3057
      %v3059 = vpop.f32.mrf.mxu0
      %3060 = vmatprep.mubr.bf16.mxu0 0
      %3061 = vmatmul.mubr.bf16.gmra.mxu0 %v2078
      %v3062 = vpop.f32.mrf.mxu0
      %v3063 = vadd.f32 %v689, %v3062
      %v3064 = vpop.f32.mrf.mxu0
      %v3065 = vpop.f32.mrf.mxu0
      %v3066 = vadd.f32 %v689, %v3065
      %v3067 = vpop.f32.mrf.mxu0
      %3068 = vmatprep.mubr.bf16.mxu0 0
      %3069 = vmatmul.mubr.bf16.gmra.mxu0 %v2081
      %v3070 = vpop.f32.mrf.mxu0
      %v3071 = vadd.f32 %v689, %v3070
      %v3072 = vpop.f32.mrf.mxu0
      %v3073 = vpop.f32.mrf.mxu0
      %v3074 = vadd.f32 %v689, %v3073
      %v3075 = vpop.f32.mrf.mxu0
      %3076 = vmatprep.mubr.bf16.mxu0 0
      %3077 = vmatmul.mubr.bf16.gmra.mxu0 %v2084
      %v3078 = vpop.f32.mrf.mxu0
      %v3079 = vadd.f32 %v689, %v3078
      %v3080 = vpop.f32.mrf.mxu0
      %v3081 = vpop.f32.mrf.mxu0
      %v3082 = vadd.f32 %v689, %v3081
      %v3083 = vpop.f32.mrf.mxu0
      %3084 = vmatprep.mubr.bf16.mxu0 0
      %3085 = vmatmul.mubr.bf16.gmra.mxu0 %v2087
      %v3086 = vpop.f32.mrf.mxu0
      %v3087 = vadd.f32 %v689, %v3086
      %v3088 = vpop.f32.mrf.mxu0
      %v3089 = vpop.f32.mrf.mxu0
      %v3090 = vadd.f32 %v689, %v3089
      %v3091 = vpop.f32.mrf.mxu0
      %3092 = vmatprep.mubr.bf16.mxu0 0
      %3093 = vmatmul.mubr.bf16.gmra.mxu0 %v2090
      %v3094 = vpop.f32.mrf.mxu0
      %v3095 = vadd.f32 %v689, %v3094
      %v3096 = vpop.f32.mrf.mxu0
      %v3097 = vpop.f32.mrf.mxu0
      %v3098 = vadd.f32 %v689, %v3097
      %v3099 = vpop.f32.mrf.mxu0
      %3100 = vmatprep.mubr.bf16.mxu0 0
      %3101 = vmatmul.mubr.bf16.gmra.mxu0 %v2093
      %v3102 = vpop.f32.mrf.mxu0
      %v3103 = vadd.f32 %v689, %v3102
      %v3104 = vpop.f32.mrf.mxu0
      %v3105 = vpop.f32.mrf.mxu0
      %v3106 = vadd.f32 %v689, %v3105
      %v3107 = vpop.f32.mrf.mxu0
      %3108 = vmatprep.mubr.bf16.mxu0 0
      %3109 = vmatmul.mubr.bf16.gmra.mxu0 %v2096
      %v3110 = vpop.f32.mrf.mxu0
      %v3111 = vadd.f32 %v689, %v3110
      %v3112 = vpop.f32.mrf.mxu0
      %v3113 = vpop.f32.mrf.mxu0
      %v3114 = vadd.f32 %v689, %v3113
      %v3115 = vpop.f32.mrf.mxu0
      %3116 = vmatprep.mubr.bf16.mxu0 0
      %3117 = vmatmul.mubr.bf16.gmra.mxu0 %v2099
      %v3118 = vpop.f32.mrf.mxu0
      %v3119 = vadd.f32 %v689, %v3118
      %v3120 = vpop.f32.mrf.mxu0
      %v3121 = vpop.f32.mrf.mxu0
      %v3122 = vadd.f32 %v689, %v3121
      %v3123 = vpop.f32.mrf.mxu0
      %3124 = vmatprep.mubr.bf16.mxu0 0
      %3125 = vmatmul.mubr.bf16.gmra.mxu0 %v2102
      %v3126 = vpop.f32.mrf.mxu0
      %v3127 = vadd.f32 %v689, %v3126
      %v3128 = vpop.f32.mrf.mxu0
      %v3129 = vpop.f32.mrf.mxu0
      %v3130 = vadd.f32 %v689, %v3129
      %v3131 = vpop.f32.mrf.mxu0
      %3132 = vmatprep.mubr.bf16.mxu0 0
      %3133 = vmatmul.mubr.bf16.gmra.mxu0 %v2105
      %v3134 = vpop.f32.mrf.mxu0
      %v3135 = vadd.f32 %v689, %v3134
      %v3136 = vpop.f32.mrf.mxu0
      %v3137 = vpop.f32.mrf.mxu0
      %v3138 = vadd.f32 %v689, %v3137
      %v3139 = vpop.f32.mrf.mxu0
      %3140 = vmatprep.mubr.bf16.mxu0 0
      %3141 = vmatmul.mubr.bf16.gmra.mxu0 %v2108
      %v3142 = vpop.f32.mrf.mxu0
      %v3143 = vadd.f32 %v689, %v3142
      %v3144 = vpop.f32.mrf.mxu0
      %v3145 = vpop.f32.mrf.mxu0
      %v3146 = vadd.f32 %v689, %v3145
      %v3147 = vpop.f32.mrf.mxu0
      %3148 = vmatprep.mubr.bf16.mxu0 0
      %3149 = vmatmul.mubr.bf16.gmra.mxu0 %v2111
      %v3150 = vpop.f32.mrf.mxu0
      %v3151 = vadd.f32 %v689, %v3150
      %v3152 = vpop.f32.mrf.mxu0
      %v3153 = vpop.f32.mrf.mxu0
      %v3154 = vadd.f32 %v689, %v3153
      %v3155 = vpop.f32.mrf.mxu0
      %3156 = vmatprep.mubr.bf16.mxu0 0
      %3157 = vmatmul.mubr.bf16.gmra.mxu0 %v2114
      %v3158 = vpop.f32.mrf.mxu0
      %v3159 = vadd.f32 %v689, %v3158
      %v3160 = vpop.f32.mrf.mxu0
      %v3161 = vpop.f32.mrf.mxu0
      %v3162 = vadd.f32 %v689, %v3161
      %v3163 = vpop.f32.mrf.mxu0
      %3164 = vmatprep.mubr.bf16.mxu0 0
      %3165 = vmatmul.mubr.bf16.gmra.mxu0 %v2117
      %v3166 = vpop.f32.mrf.mxu0
      %v3167 = vadd.f32 %v689, %v3166
      %v3168 = vpop.f32.mrf.mxu0
      %v3169 = vpop.f32.mrf.mxu0
      %v3170 = vadd.f32 %v689, %v3169
      %v3171 = vpop.f32.mrf.mxu0
      %3172 = vmatprep.mubr.bf16.mxu0 0
      %3173 = vmatmul.mubr.bf16.gmra.mxu0 %v2120
      %v3174 = vpop.f32.mrf.mxu0
      %v3175 = vadd.f32 %v689, %v3174
      %v3176 = vpop.f32.mrf.mxu0
      %v3177 = vpop.f32.mrf.mxu0
      %v3178 = vadd.f32 %v689, %v3177
      %v3179 = vpop.f32.mrf.mxu0
      %3180 = vmatprep.mubr.bf16.mxu0 0
      %3181 = vmatmul.mubr.bf16.gmra.mxu0 %v2123
      %v3182 = vpop.f32.mrf.mxu0
      %v3183 = vadd.f32 %v689, %v3182
      %v3184 = vpop.f32.mrf.mxu0
      %v3185 = vpop.f32.mrf.mxu0
      %v3186 = vadd.f32 %v689, %v3185
      %v3187 = vpop.f32.mrf.mxu0
      %3188 = vmatprep.mubr.bf16.mxu0 0
      %3189 = vmatmul.mubr.bf16.gmra.mxu0 %v2126
      %v3190 = vpop.f32.mrf.mxu0
      %v3191 = vadd.f32 %v689, %v3190
      %v3192 = vpop.f32.mrf.mxu0
      %v3193 = vpop.f32.mrf.mxu0
      %v3194 = vadd.f32 %v689, %v3193
      %v3195 = vpop.f32.mrf.mxu0
      %3196 = vmatprep.mubr.bf16.mxu0 0
      %3197 = vmatmul.mubr.bf16.gmra.mxu0 %v2129
      %v3198 = vpop.f32.mrf.mxu0
      %v3199 = vadd.f32 %v689, %v3198
      %v3200 = vpop.f32.mrf.mxu0
      %v3201 = vpop.f32.mrf.mxu0
      %v3202 = vadd.f32 %v689, %v3201
      %v3203 = vpop.f32.mrf.mxu0
      %3204 = vmatprep.mubr.bf16.mxu0 0
      %3205 = vmatmul.mubr.bf16.gmra.mxu0 %v2132
      %v3206 = vpop.f32.mrf.mxu0
      %v3207 = vadd.f32 %v689, %v3206
      %v3208 = vpop.f32.mrf.mxu0
      %v3209 = vpop.f32.mrf.mxu0
      %v3210 = vadd.f32 %v689, %v3209
      %v3211 = vpop.f32.mrf.mxu0
      %3212 = vmatprep.mubr.bf16.mxu0 0
      %3213 = vmatmul.mubr.bf16.gmra.mxu0 %v2135
      %v3214 = vpop.f32.mrf.mxu0
      %v3215 = vadd.f32 %v689, %v3214
      %v3216 = vpop.f32.mrf.mxu0
      %v3217 = vpop.f32.mrf.mxu0
      %v3218 = vadd.f32 %v689, %v3217
      %v3219 = vpop.f32.mrf.mxu0
      %3220 = vmatprep.mubr.bf16.mxu0 0
      %3221 = vmatmul.mubr.bf16.gmra.mxu0 %v2138
      %v3222 = vpop.f32.mrf.mxu0
      %v3223 = vadd.f32 %v689, %v3222
      %v3224 = vpop.f32.mrf.mxu0
      %v3225 = vpop.f32.mrf.mxu0
      %v3226 = vadd.f32 %v689, %v3225
      %v3227 = vpop.f32.mrf.mxu0
      %3228 = vmatprep.mubr.bf16.mxu0 0
      %3229 = vmatmul.mubr.bf16.gmra.mxu0 %v2141
      %v3230 = vpop.f32.mrf.mxu0
      %v3231 = vadd.f32 %v689, %v3230
      %v3232 = vpop.f32.mrf.mxu0
      %v3233 = vpop.f32.mrf.mxu0
      %v3234 = vadd.f32 %v689, %v3233
      %v3235 = vpop.f32.mrf.mxu0
      %3236 = vmatprep.mubr.bf16.mxu0 0
      %3237 = vmatmul.mubr.bf16.gmra.mxu0 %v2144
      %v3238 = vpop.f32.mrf.mxu0
      %v3239 = vadd.f32 %v689, %v3238
      %v3240 = vpop.f32.mrf.mxu0
      %v3241 = vpop.f32.mrf.mxu0
      %v3242 = vadd.f32 %v689, %v3241
      %v3243 = vpop.f32.mrf.mxu0
      %3244 = vmatprep.mubr.bf16.mxu0 0
      %3245 = vmatmul.mubr.bf16.gmra.mxu0 %v2147
      %v3246 = vpop.f32.mrf.mxu0
      %v3247 = vadd.f32 %v689, %v3246
      %v3248 = vpop.f32.mrf.mxu0
      %v3249 = vpop.f32.mrf.mxu0
      %v3250 = vadd.f32 %v689, %v3249
      %v3251 = vpop.f32.mrf.mxu0
      %3252 = vmatprep.mubr.bf16.mxu0 0
      %3253 = vmatmul.mubr.bf16.gmra.mxu0 %v2150
      %v3254 = vpop.f32.mrf.mxu0
      %v3255 = vadd.f32 %v689, %v3254
      %v3256 = vpop.f32.mrf.mxu0
      %v3257 = vpop.f32.mrf.mxu0
      %v3258 = vadd.f32 %v689, %v3257
      %v3259 = vpop.f32.mrf.mxu0
      %3260 = vmatprep.mubr.bf16.mxu0 0
      %3261 = vmatmul.mubr.bf16.gmra.mxu0 %v2153
      %v3262 = vpop.f32.mrf.mxu0
      %v3263 = vadd.f32 %v689, %v3262
      %v3264 = vpop.f32.mrf.mxu0
      %v3265 = vpop.f32.mrf.mxu0
      %v3266 = vadd.f32 %v689, %v3265
      %v3267 = vpop.f32.mrf.mxu0
      %3268 = vmatprep.mubr.bf16.mxu0 0
      %3269 = vmatmul.mubr.bf16.gmra.mxu0 %v2156
      %v3270 = vpop.f32.mrf.mxu0
      %v3271 = vadd.f32 %v689, %v3270
      %v3272 = vpop.f32.mrf.mxu0
      %v3273 = vpop.f32.mrf.mxu0
      %v3274 = vadd.f32 %v689, %v3273
      %v3275 = vpop.f32.mrf.mxu0
      %3276 = vmatprep.mubr.bf16.mxu0 0
      %3277 = vmatmul.mubr.bf16.gmra.mxu0 %v2159
      %v3278 = vpop.f32.mrf.mxu0
      %v3279 = vadd.f32 %v689, %v3278
      %v3280 = vpop.f32.mrf.mxu0
      %v3281 = vpop.f32.mrf.mxu0
      %v3282 = vadd.f32 %v689, %v3281
      %v3283 = vpop.f32.mrf.mxu0
      %3284 = vmatprep.mubr.bf16.mxu0 0
      %3285 = vmatmul.mubr.bf16.gmra.mxu0 %v2162
      %v3286 = vpop.f32.mrf.mxu0
      %v3287 = vadd.f32 %v689, %v3286
      %v3288 = vpop.f32.mrf.mxu0
      %v3289 = vpop.f32.mrf.mxu0
      %v3290 = vadd.f32 %v689, %v3289
      %v3291 = vpop.f32.mrf.mxu0
      %3292 = vmatprep.mubr.bf16.mxu0 0
      %3293 = vmatmul.mubr.bf16.gmra.mxu0 %v2165
      %v3294 = vpop.f32.mrf.mxu0
      %v3295 = vadd.f32 %v689, %v3294
      %v3296 = vpop.f32.mrf.mxu0
      %v3297 = vpop.f32.mrf.mxu0
      %v3298 = vadd.f32 %v689, %v3297
      %v3299 = vpop.f32.mrf.mxu0
      %3300 = vmatprep.mubr.bf16.mxu0 0
      %3301 = vmatmul.mubr.bf16.gmra.mxu0 %v2168
      %v3302 = vpop.f32.mrf.mxu0
      %v3303 = vadd.f32 %v689, %v3302
      %v3304 = vpop.f32.mrf.mxu0
      %v3305 = vpop.f32.mrf.mxu0
      %v3306 = vadd.f32 %v689, %v3305
      %v3307 = vpop.f32.mrf.mxu0
      %3308 = vmatprep.mubr.bf16.mxu0 0
      %3309 = vmatmul.mubr.bf16.gmra.mxu0 %v2171
      %v3310 = vpop.f32.mrf.mxu0
      %v3311 = vadd.f32 %v689, %v3310
      %v3312 = vpop.f32.mrf.mxu0
      %v3313 = vpop.f32.mrf.mxu0
      %v3314 = vadd.f32 %v689, %v3313
      %v3315 = vpop.f32.mrf.mxu0
      %3316 = vmatprep.mubr.bf16.mxu0 0
      %3317 = vmatmul.mubr.bf16.gmra.mxu0 %v2174
      %v3318 = vpop.f32.mrf.mxu0
      %v3319 = vadd.f32 %v689, %v3318
      %v3320 = vpop.f32.mrf.mxu0
      %v3321 = vpop.f32.mrf.mxu0
      %v3322 = vadd.f32 %v689, %v3321
      %v3323 = vpop.f32.mrf.mxu0
      %3324 = vmatprep.mubr.bf16.mxu0 0
      %3325 = vmatmul.mubr.bf16.gmra.mxu0 %v2177
      %v3326 = vpop.f32.mrf.mxu0
      %v3327 = vadd.f32 %v689, %v3326
      %v3328 = vpop.f32.mrf.mxu0
      %v3329 = vpop.f32.mrf.mxu0
      %v3330 = vadd.f32 %v689, %v3329
      %v3331 = vpop.f32.mrf.mxu0
      %3332 = vmatprep.mubr.bf16.mxu0 0
      %3333 = vmatmul.mubr.bf16.gmra.mxu0 %v2180
      %v3334 = vpop.f32.mrf.mxu0
      %v3335 = vadd.f32 %v689, %v3334
      %v3336 = vpop.f32.mrf.mxu0
      %v3337 = vpop.f32.mrf.mxu0
      %v3338 = vadd.f32 %v689, %v3337
      %v3339 = vpop.f32.mrf.mxu0
      %3340 = vmatprep.mubr.bf16.mxu0 0
      %3341 = vmatmul.mubr.bf16.gmra.mxu0 %v2183
      %v3342 = vpop.f32.mrf.mxu0
      %v3343 = vadd.f32 %v689, %v3342
      %v3344 = vpop.f32.mrf.mxu0
      %v3345 = vpop.f32.mrf.mxu0
      %v3346 = vadd.f32 %v689, %v3345
      %v3347 = vpop.f32.mrf.mxu0
      %3348 = vmatprep.mubr.bf16.mxu0 0
      %3349 = vmatmul.mubr.bf16.gmra.mxu0 %v2186
      %v3350 = vpop.f32.mrf.mxu0
      %v3351 = vadd.f32 %v689, %v3350
      %v3352 = vpop.f32.mrf.mxu0
      %v3353 = vpop.f32.mrf.mxu0
      %v3354 = vadd.f32 %v689, %v3353
      %v3355 = vpop.f32.mrf.mxu0
      %3356 = vmatprep.mubr.bf16.mxu0 0
      %3357 = vmatmul.mubr.bf16.gmra.mxu0 %v2189
      %v3358 = vpop.f32.mrf.mxu0
      %v3359 = vadd.f32 %v689, %v3358
      %v3360 = vpop.f32.mrf.mxu0
      %v3361 = vpop.f32.mrf.mxu0
      %v3362 = vadd.f32 %v689, %v3361
      %v3363 = vpop.f32.mrf.mxu0
      %3364 = vmatprep.mubr.bf16.mxu0 0
      %3365 = vmatmul.mubr.bf16.gmra.mxu0 %v2192
      %v3366 = vpop.f32.mrf.mxu0
      %v3367 = vadd.f32 %v689, %v3366
      %v3368 = vpop.f32.mrf.mxu0
      %v3369 = vpop.f32.mrf.mxu0
      %v3370 = vadd.f32 %v689, %v3369
      %v3371 = vpop.f32.mrf.mxu0
      %3372 = vmatprep.mubr.bf16.mxu0 0
      %3373 = vmatmul.mubr.bf16.gmra.mxu0 %v2195
      %v3374 = vpop.f32.mrf.mxu0
      %v3375 = vadd.f32 %v689, %v3374
      %v3376 = vpop.f32.mrf.mxu0
      %v3377 = vpop.f32.mrf.mxu0
      %v3378 = vadd.f32 %v689, %v3377
      %v3379 = vpop.f32.mrf.mxu0
      %3380 = vmatprep.mubr.bf16.mxu0 0
      %3381 = vmatmul.mubr.bf16.gmra.mxu0 %v2198
      %v3382 = vpop.f32.mrf.mxu0
      %v3383 = vadd.f32 %v689, %v3382
      %v3384 = vpop.f32.mrf.mxu0
      %v3385 = vpop.f32.mrf.mxu0
      %v3386 = vadd.f32 %v689, %v3385
      %v3387 = vpop.f32.mrf.mxu0
      %3388 = vmatprep.mubr.bf16.mxu0 0
      %3389 = vmatmul.mubr.bf16.gmra.mxu0 %v2201
      %v3390 = vpop.f32.mrf.mxu0
      %v3391 = vadd.f32 %v689, %v3390
      %v3392 = vpop.f32.mrf.mxu0
      %v3393 = vpop.f32.mrf.mxu0
      %v3394 = vadd.f32 %v689, %v3393
      %v3395 = vpop.f32.mrf.mxu0
      %3396 = vmatprep.mubr.bf16.mxu0 0
      %3397 = vmatmul.mubr.bf16.gmra.mxu0 %v2204
      %v3398 = vpop.f32.mrf.mxu0
      %v3399 = vadd.f32 %v689, %v3398
      %v3400 = vpop.f32.mrf.mxu0
      %v3401 = vpop.f32.mrf.mxu0
      %v3402 = vadd.f32 %v689, %v3401
      %v3403 = vpop.f32.mrf.mxu0
      %3404 = vmatprep.mubr.bf16.mxu0 0
      %3405 = vmatmul.mubr.bf16.gmra.mxu0 %v2207
      %v3406 = vpop.f32.mrf.mxu0
      %v3407 = vadd.f32 %v689, %v3406
      %v3408 = vpop.f32.mrf.mxu0
      %v3409 = vpop.f32.mrf.mxu0
      %v3410 = vadd.f32 %v689, %v3409
      %v3411 = vpop.f32.mrf.mxu0
      %3412 = vmatprep.mubr.bf16.mxu0 0
      %3413 = vmatmul.mubr.bf16.gmra.mxu0 %v2210
      %v3414 = vpop.f32.mrf.mxu0
      %v3415 = vadd.f32 %v689, %v3414
      %v3416 = vpop.f32.mrf.mxu0
      %v3417 = vpop.f32.mrf.mxu0
      %v3418 = vadd.f32 %v689, %v3417
      %v3419 = vpop.f32.mrf.mxu0
      %3420 = vmatprep.mubr.bf16.mxu0 0
      %3421 = vmatmul.mubr.bf16.gmra.mxu0 %v2213
      %v3422 = vpop.f32.mrf.mxu0
      %v3423 = vadd.f32 %v689, %v3422
      %v3424 = vpop.f32.mrf.mxu0
      %v3425 = vpop.f32.mrf.mxu0
      %v3426 = vadd.f32 %v689, %v3425
      %v3427 = vpop.f32.mrf.mxu0
      %3428 = vmatprep.mubr.bf16.mxu0 0
      %3429 = vmatmul.mubr.bf16.gmra.mxu0 %v2216
      %v3430 = vpop.f32.mrf.mxu0
      %v3431 = vadd.f32 %v689, %v3430
      %v3432 = vpop.f32.mrf.mxu0
      %v3433 = vpop.f32.mrf.mxu0
      %v3434 = vadd.f32 %v689, %v3433
      %v3435 = vpop.f32.mrf.mxu0
      %3436 = vmatprep.mubr.bf16.mxu0 0
      %3437 = vmatmul.mubr.bf16.gmra.mxu0 %v2219
      %v3438 = vpop.f32.mrf.mxu0
      %v3439 = vadd.f32 %v689, %v3438
      %v3440 = vpop.f32.mrf.mxu0
      %v3441 = vpop.f32.mrf.mxu0
      %v3442 = vadd.f32 %v689, %v3441
      %v3443 = vpop.f32.mrf.mxu0
      %3444 = vmatprep.mubr.bf16.mxu0 0
      %3445 = vmatmul.mubr.bf16.gmra.mxu0 %v2222
      %v3446 = vpop.f32.mrf.mxu0
      %v3447 = vadd.f32 %v689, %v3446
      %v3448 = vpop.f32.mrf.mxu0
      %v3449 = vpop.f32.mrf.mxu0
      %v3450 = vadd.f32 %v689, %v3449
      %v3451 = vpop.f32.mrf.mxu0
      %3452 = vmatprep.mubr.bf16.mxu0 0
      %3453 = vmatmul.mubr.bf16.gmra.mxu0 %v2225
      %v3454 = vpop.f32.mrf.mxu0
      %v3455 = vadd.f32 %v689, %v3454
      %v3456 = vpop.f32.mrf.mxu0
      %v3457 = vpop.f32.mrf.mxu0
      %v3458 = vadd.f32 %v689, %v3457
      %v3459 = vpop.f32.mrf.mxu0
      %3460 = vmatprep.mubr.bf16.mxu0 0
      %3461 = vmatmul.mubr.bf16.gmra.mxu0 %v2228
      %v3462 = vpop.f32.mrf.mxu0
      %v3463 = vadd.f32 %v689, %v3462
      %v3464 = vpop.f32.mrf.mxu0
      %v3465 = vpop.f32.mrf.mxu0
      %v3466 = vadd.f32 %v689, %v3465
      %v3467 = vpop.f32.mrf.mxu0
      %3468 = vmatprep.mubr.bf16.mxu0 0
      %3469 = vmatmul.mubr.bf16.gmra.mxu0 %v2231
      %v3470 = vpop.f32.mrf.mxu0
      %v3471 = vadd.f32 %v689, %v3470
      %v3472 = vpop.f32.mrf.mxu0
      %v3473 = vpop.f32.mrf.mxu0
      %v3474 = vadd.f32 %v689, %v3473
      %v3475 = vpop.f32.mrf.mxu0
      %3476 = vmatprep.mubr.bf16.mxu0 0
      %3477 = vmatmul.mubr.bf16.gmra.mxu0 %v2234
      %v3478 = vpop.f32.mrf.mxu0
      %v3479 = vadd.f32 %v689, %v3478
      %v3480 = vpop.f32.mrf.mxu0
      %v3481 = vpop.f32.mrf.mxu0
      %v3482 = vadd.f32 %v689, %v3481
      %v3483 = vpop.f32.mrf.mxu0
      %3484 = vmatprep.mubr.bf16.mxu0 0
      %3485 = vmatmul.mubr.bf16.gmra.mxu0 %v2237
      %v3486 = vpop.f32.mrf.mxu0
      %v3487 = vadd.f32 %v689, %v3486
      %v3488 = vpop.f32.mrf.mxu0
      %v3489 = vpop.f32.mrf.mxu0
      %v3490 = vadd.f32 %v689, %v3489
      %v3491 = vpop.f32.mrf.mxu0
      %3492 = vmatprep.mubr.bf16.mxu0 0
      %3493 = vmatmul.mubr.bf16.gmra.mxu0 %v2240
      %v3494 = vpop.f32.mrf.mxu0
      %v3495 = vadd.f32 %v689, %v3494
      %v3496 = vpop.f32.mrf.mxu0
      %v3497 = vpop.f32.mrf.mxu0
      %v3498 = vadd.f32 %v689, %v3497
      %v3499 = vpop.f32.mrf.mxu0
      %3500 = vmatprep.mubr.bf16.mxu0 0
      %3501 = vmatmul.mubr.bf16.gmra.mxu0 %v2243
      %v3502 = vpop.f32.mrf.mxu0
      %v3503 = vadd.f32 %v689, %v3502
      %v3504 = vpop.f32.mrf.mxu0
      %v3505 = vpop.f32.mrf.mxu0
      %v3506 = vadd.f32 %v689, %v3505
      %v3507 = vpop.f32.mrf.mxu0
      %3508 = vmatprep.mubr.bf16.mxu0 0
      %3509 = vmatmul.mubr.bf16.gmra.mxu0 %v2246
      %v3510 = vpop.f32.mrf.mxu0
      %v3511 = vadd.f32 %v689, %v3510
      %v3512 = vpop.f32.mrf.mxu0
      %v3513 = vpop.f32.mrf.mxu0
      %v3514 = vadd.f32 %v689, %v3513
      %v3515 = vpop.f32.mrf.mxu0
      %3516 = vmatprep.mubr.bf16.mxu0 0
      %3517 = vmatmul.mubr.bf16.gmra.mxu0 %v2249
      %v3518 = vpop.f32.mrf.mxu0
      %v3519 = vadd.f32 %v689, %v3518
      %v3520 = vpop.f32.mrf.mxu0
      %v3521 = vpop.f32.mrf.mxu0
      %v3522 = vadd.f32 %v689, %v3521
      %v3523 = vpop.f32.mrf.mxu0
      %3524 = vmatprep.mubr.bf16.mxu0 0
      %3525 = vmatmul.mubr.bf16.gmra.mxu0 %v2252
      %v3526 = vpop.f32.mrf.mxu0
      %v3527 = vadd.f32 %v689, %v3526
      %v3528 = vpop.f32.mrf.mxu0
      %v3529 = vpop.f32.mrf.mxu0
      %v3530 = vadd.f32 %v689, %v3529
      %v3531 = vpop.f32.mrf.mxu0
      %3532 = vmatprep.mubr.bf16.mxu0 0
      %3533 = vmatmul.mubr.bf16.gmra.mxu0 %v2255
      %v3534 = vpop.f32.mrf.mxu0
      %v3535 = vadd.f32 %v689, %v3534
      %v3536 = vpop.f32.mrf.mxu0
      %v3537 = vpop.f32.mrf.mxu0
      %v3538 = vadd.f32 %v689, %v3537
      %v3539 = vpop.f32.mrf.mxu0
      %3540 = vmatprep.mubr.bf16.mxu0 0
      %3541 = vmatmul.mubr.bf16.gmra.mxu0 %v2258
      %v3542 = vpop.f32.mrf.mxu0
      %v3543 = vadd.f32 %v689, %v3542
      %v3544 = vpop.f32.mrf.mxu0
      %v3545 = vpop.f32.mrf.mxu0
      %v3546 = vadd.f32 %v689, %v3545
      %v3547 = vpop.f32.mrf.mxu0
      %3548 = vmatprep.mubr.bf16.mxu0 0
      %3549 = vmatmul.mubr.bf16.gmra.mxu0 %v2261
      %v3550 = vpop.f32.mrf.mxu0
      %v3551 = vadd.f32 %v689, %v3550
      %v3552 = vpop.f32.mrf.mxu0
      %v3553 = vpop.f32.mrf.mxu0
      %v3554 = vadd.f32 %v689, %v3553
      %v3555 = vpop.f32.mrf.mxu0
      %3556 = vmatprep.mubr.bf16.mxu0 0
      %3557 = vmatmul.mubr.bf16.gmra.mxu0 %v2264
      %v3558 = vpop.f32.mrf.mxu0
      %v3559 = vadd.f32 %v689, %v3558
      %v3560 = vpop.f32.mrf.mxu0
      %v3561 = vpop.f32.mrf.mxu0
      %v3562 = vadd.f32 %v689, %v3561
      %v3563 = vpop.f32.mrf.mxu0
      %3564 = vmatprep.mubr.bf16.mxu0 0
      %3565 = vmatmul.mubr.bf16.gmra.mxu0 %v2267
      %v3566 = vpop.f32.mrf.mxu0
      %v3567 = vadd.f32 %v689, %v3566
      %v3568 = vpop.f32.mrf.mxu0
      %v3569 = vpop.f32.mrf.mxu0
      %v3570 = vadd.f32 %v689, %v3569
      %v3571 = vpop.f32.mrf.mxu0
      %3572 = vmatprep.mubr.bf16.mxu0 0
      %3573 = vmatmul.mubr.bf16.gmra.mxu0 %v2270
      %v3574 = vpop.f32.mrf.mxu0
      %v3575 = vadd.f32 %v689, %v3574
      %v3576 = vpop.f32.mrf.mxu0
      %v3577 = vpop.f32.mrf.mxu0
      %v3578 = vadd.f32 %v689, %v3577
      %v3579 = vpop.f32.mrf.mxu0
      %3580 = vmatprep.mubr.bf16.mxu0 0
      %3581 = vmatmul.mubr.bf16.gmra.mxu0 %v2273
      %v3582 = vpop.f32.mrf.mxu0
      %v3583 = vadd.f32 %v689, %v3582
      %v3584 = vpop.f32.mrf.mxu0
      %v3585 = vpop.f32.mrf.mxu0
      %v3586 = vadd.f32 %v689, %v3585
      %v3587 = vpop.f32.mrf.mxu0
      %3588 = vmatprep.mubr.bf16.mxu0 0
      %3589 = vmatmul.mubr.bf16.gmra.mxu0 %v2276
      %v3590 = vpop.f32.mrf.mxu0
      %v3591 = vadd.f32 %v689, %v3590
      %v3592 = vpop.f32.mrf.mxu0
      %v3593 = vpop.f32.mrf.mxu0
      %v3594 = vadd.f32 %v689, %v3593
      %v3595 = vpop.f32.mrf.mxu0
      %3596 = vmatprep.mubr.bf16.mxu0 0
      %3597 = vmatmul.mubr.bf16.gmra.mxu0 %v2279
      %v3598 = vpop.f32.mrf.mxu0
      %v3599 = vadd.f32 %v689, %v3598
      %v3600 = vpop.f32.mrf.mxu0
      %v3601 = vpop.f32.mrf.mxu0
      %v3602 = vadd.f32 %v689, %v3601
      %v3603 = vpop.f32.mrf.mxu0
      %3604 = vmatprep.mubr.bf16.mxu0 0
      %3605 = vmatmul.mubr.bf16.gmra.mxu0 %v2282
      %v3606 = vpop.f32.mrf.mxu0
      %v3607 = vadd.f32 %v689, %v3606
      %v3608 = vpop.f32.mrf.mxu0
      %v3609 = vpop.f32.mrf.mxu0
      %v3610 = vadd.f32 %v689, %v3609
      %v3611 = vpop.f32.mrf.mxu0
      %3612 = vmatprep.mubr.bf16.mxu0 0
      %3613 = vmatmul.mubr.bf16.gmra.mxu0 %v2285
      %v3614 = vpop.f32.mrf.mxu0
      %v3615 = vadd.f32 %v689, %v3614
      %v3616 = vpop.f32.mrf.mxu0
      %v3617 = vpop.f32.mrf.mxu0
      %v3618 = vadd.f32 %v689, %v3617
      %v3619 = vpop.f32.mrf.mxu0
      %3620 = vmatprep.mubr.bf16.mxu0 0
      %3621 = vmatmul.mubr.bf16.gmra.mxu0 %v2288
      %v3622 = vpop.f32.mrf.mxu0
      %v3623 = vadd.f32 %v689, %v3622
      %v3624 = vpop.f32.mrf.mxu0
      %v3625 = vpop.f32.mrf.mxu0
      %v3626 = vadd.f32 %v689, %v3625
      %v3627 = vpop.f32.mrf.mxu0
      %3628 = vmatprep.mubr.bf16.mxu0 0
      %3629 = vmatmul.mubr.bf16.gmra.mxu0 %v2291
      %v3630 = vpop.f32.mrf.mxu0
      %v3631 = vadd.f32 %v689, %v3630
      %v3632 = vpop.f32.mrf.mxu0
      %v3633 = vpop.f32.mrf.mxu0
      %v3634 = vadd.f32 %v689, %v3633
      %v3635 = vpop.f32.mrf.mxu0
      %3636 = vmatprep.mubr.bf16.mxu0 0
      %3637 = vmatmul.mubr.bf16.gmra.mxu0 %v2294
      %v3638 = vpop.f32.mrf.mxu0
      %v3639 = vadd.f32 %v689, %v3638
      %v3640 = vpop.f32.mrf.mxu0
      %v3641 = vpop.f32.mrf.mxu0
      %v3642 = vadd.f32 %v689, %v3641
      %v3643 = vpop.f32.mrf.mxu0
      %3644 = vmatprep.mubr.bf16.mxu0 0
      %3645 = vmatmul.mubr.bf16.gmra.mxu0 %v2297
      %v3646 = vpop.f32.mrf.mxu0
      %v3647 = vadd.f32 %v689, %v3646
      %v3648 = vpop.f32.mrf.mxu0
      %v3649 = vpop.f32.mrf.mxu0
      %v3650 = vadd.f32 %v689, %v3649
      %v3651 = vpop.f32.mrf.mxu0
      %3652 = vmatprep.mubr.bf16.mxu0 0
      %3653 = vmatmul.mubr.bf16.gmra.mxu0 %v2300
      %v3654 = vpop.f32.mrf.mxu0
      %v3655 = vadd.f32 %v689, %v3654
      %v3656 = vpop.f32.mrf.mxu0
      %v3657 = vpop.f32.mrf.mxu0
      %v3658 = vadd.f32 %v689, %v3657
      %v3659 = vpop.f32.mrf.mxu0
      %3660 = vmatprep.mubr.bf16.mxu0 0
      %3661 = vmatmul.mubr.bf16.gmra.mxu0 %v2303
      %v3662 = vpop.f32.mrf.mxu0
      %v3663 = vadd.f32 %v689, %v3662
      %v3664 = vpop.f32.mrf.mxu0
      %v3665 = vpop.f32.mrf.mxu0
      %v3666 = vadd.f32 %v689, %v3665
      %v3667 = vpop.f32.mrf.mxu0
      %3668 = vmatprep.mubr.bf16.mxu0 0
      %3669 = vmatmul.mubr.bf16.gmra.mxu0 %v2306
      %v3670 = vpop.f32.mrf.mxu0
      %v3671 = vadd.f32 %v689, %v3670
      %v3672 = vpop.f32.mrf.mxu0
      %v3673 = vpop.f32.mrf.mxu0
      %v3674 = vadd.f32 %v689, %v3673
      %v3675 = vpop.f32.mrf.mxu0
      %3676 = vmatprep.mubr.bf16.mxu0 0
      %3677 = vmatmul.mubr.bf16.gmra.mxu0 %v2309
      %v3678 = vpop.f32.mrf.mxu0
      %v3679 = vadd.f32 %v689, %v3678
      %v3680 = vpop.f32.mrf.mxu0
      %v3681 = vpop.f32.mrf.mxu0
      %v3682 = vadd.f32 %v689, %v3681
      %v3683 = vpop.f32.mrf.mxu0
      %3684 = vmatprep.mubr.bf16.mxu0 0
      %3685 = vmatmul.mubr.bf16.gmra.mxu0 %v2312
      %v3686 = vpop.f32.mrf.mxu0
      %v3687 = vadd.f32 %v689, %v3686
      %v3688 = vpop.f32.mrf.mxu0
      %v3689 = vpop.f32.mrf.mxu0
      %v3690 = vadd.f32 %v689, %v3689
      %v3691 = vpop.f32.mrf.mxu0
      %3692 = vmatprep.mubr.bf16.mxu0 0
      %3693 = vmatmul.mubr.bf16.gmra.mxu0 %v2315
      %v3694 = vpop.f32.mrf.mxu0
      %v3695 = vadd.f32 %v689, %v3694
      %v3696 = vpop.f32.mrf.mxu0
      %v3697 = vpop.f32.mrf.mxu0
      %v3698 = vadd.f32 %v689, %v3697
      %v3699 = vpop.f32.mrf.mxu0
      %3700 = vmatprep.mubr.bf16.mxu0 0
      %3701 = vmatmul.mubr.bf16.gmra.mxu0 %v2318
      %v3702 = vpop.f32.mrf.mxu0
      %v3703 = vadd.f32 %v689, %v3702
      %v3704 = vpop.f32.mrf.mxu0
      %v3705 = vpop.f32.mrf.mxu0
      %v3706 = vadd.f32 %v689, %v3705
      %v3707 = vpop.f32.mrf.mxu0
      %3708 = vmatprep.mubr.bf16.mxu0 0
      %3709 = vmatmul.mubr.bf16.gmra.mxu0 %v2321
      %v3710 = vpop.f32.mrf.mxu0
      %v3711 = vadd.f32 %v689, %v3710
      %v3712 = vpop.f32.mrf.mxu0
      %v3713 = vpop.f32.mrf.mxu0
      %v3714 = vadd.f32 %v689, %v3713
      %v3715 = vpop.f32.mrf.mxu0
      %3716 = vmatprep.mubr.bf16.mxu0 0
      %3717 = vmatmul.mubr.bf16.gmra.mxu0 %v2324
      %v3718 = vpop.f32.mrf.mxu0
      %v3719 = vadd.f32 %v689, %v3718
      %v3720 = vpop.f32.mrf.mxu0
      %v3721 = vpop.f32.mrf.mxu0
      %v3722 = vadd.f32 %v689, %v3721
      %v3723 = vpop.f32.mrf.mxu0
      %3724 = vmatprep.mubr.bf16.mxu0 0
      %3725 = vmatmul.mubr.bf16.gmra.mxu0 %v2327
      %v3726 = vpop.f32.mrf.mxu0
      %v3727 = vadd.f32 %v689, %v3726
      %v3728 = vpop.f32.mrf.mxu0
      %v3729 = vpop.f32.mrf.mxu0
      %v3730 = vadd.f32 %v689, %v3729
      %v3731 = vpop.f32.mrf.mxu0
      %3732 = vmatprep.mubr.bf16.mxu0 0
      %3733 = vmatmul.mubr.bf16.gmra.mxu0 %v2330
      %v3734 = vpop.f32.mrf.mxu0
      %v3735 = vadd.f32 %v689, %v3734
      %v3736 = vpop.f32.mrf.mxu0
      %v3737 = vpop.f32.mrf.mxu0
      %v3738 = vadd.f32 %v689, %v3737
      %v3739 = vpop.f32.mrf.mxu0
      %3740 = vmatprep.mubr.bf16.mxu0 0
      %3741 = vmatmul.mubr.bf16.gmra.mxu0 %v2333
      %v3742 = vpop.f32.mrf.mxu0
      %v3743 = vadd.f32 %v689, %v3742
      %v3744 = vpop.f32.mrf.mxu0
      %v3745 = vpop.f32.mrf.mxu0
      %v3746 = vadd.f32 %v689, %v3745
      %v3747 = vpop.f32.mrf.mxu0
      %3748 = vmatprep.mubr.bf16.mxu0 0
      %3749 = vmatmul.mubr.bf16.gmra.mxu0 %v2336
      %v3750 = vpop.f32.mrf.mxu0
      %v3751 = vadd.f32 %v689, %v3750
      %v3752 = vpop.f32.mrf.mxu0
      %v3753 = vpop.f32.mrf.mxu0
      %v3754 = vadd.f32 %v689, %v3753
      %v3755 = vpop.f32.mrf.mxu0
      %3756 = vmatprep.mubr.bf16.mxu0 0
      %3757 = vmatmul.mubr.bf16.gmra.mxu0 %v2339
      %v3758 = vpop.f32.mrf.mxu0
      %v3759 = vadd.f32 %v689, %v3758
      %v3760 = vpop.f32.mrf.mxu0
      %v3761 = vpop.f32.mrf.mxu0
      %v3762 = vadd.f32 %v689, %v3761
      %v3763 = vpop.f32.mrf.mxu0
      %3764 = vmatprep.mubr.bf16.mxu0 0
      %3765 = vmatmul.mubr.bf16.gmra.mxu0 %v2342
      %v3766 = vpop.f32.mrf.mxu0
      %v3767 = vadd.f32 %v689, %v3766
      %v3768 = vpop.f32.mrf.mxu0
      %v3769 = vpop.f32.mrf.mxu0
      %v3770 = vadd.f32 %v689, %v3769
      %v3771 = vpop.f32.mrf.mxu0
      %3772 = vmatprep.mubr.bf16.mxu0 0
      %3773 = vmatmul.mubr.bf16.gmra.mxu0 %v2345
      %v3774 = vpop.f32.mrf.mxu0
      %v3775 = vadd.f32 %v689, %v3774
      %v3776 = vpop.f32.mrf.mxu0
      %v3777 = vpop.f32.mrf.mxu0
      %v3778 = vadd.f32 %v689, %v3777
      %v3779 = vpop.f32.mrf.mxu0
      %3780 = vmatprep.mubr.bf16.mxu0 0
      %3781 = vmatmul.mubr.bf16.gmra.mxu0 %v2348
      %v3782 = vpop.f32.mrf.mxu0
      %v3783 = vadd.f32 %v689, %v3782
      %v3784 = vpop.f32.mrf.mxu0
      %v3785 = vpop.f32.mrf.mxu0
      %v3786 = vadd.f32 %v689, %v3785
      %v3787 = vpop.f32.mrf.mxu0
      %3788 = vmatprep.mubr.bf16.mxu0 0
      %3789 = vmatmul.mubr.bf16.gmra.mxu0 %v2351
      %v3790 = vpop.f32.mrf.mxu0
      %v3791 = vadd.f32 %v689, %v3790
      %v3792 = vpop.f32.mrf.mxu0
      %v3793 = vpop.f32.mrf.mxu0
      %v3794 = vadd.f32 %v689, %v3793
      %v3795 = vpop.f32.mrf.mxu0
      %3796 = vmatprep.mubr.bf16.mxu0 0
      %3797 = vmatmul.mubr.bf16.gmra.mxu0 %v2354
      %v3798 = vpop.f32.mrf.mxu0
      %v3799 = vadd.f32 %v689, %v3798
      %v3800 = vpop.f32.mrf.mxu0
      %v3801 = vpop.f32.mrf.mxu0
      %v3802 = vadd.f32 %v689, %v3801
      %v3803 = vpop.f32.mrf.mxu0
      %3804 = vmatprep.mubr.bf16.mxu0 0
      %3805 = vmatmul.mubr.bf16.gmra.mxu0 %v2357
      %v3806 = vpop.f32.mrf.mxu0
      %v3807 = vadd.f32 %v689, %v3806
      %v3808 = vpop.f32.mrf.mxu0
      %v3809 = vpop.f32.mrf.mxu0
      %v3810 = vadd.f32 %v689, %v3809
      %v3811 = vpop.f32.mrf.mxu0
      %3812 = vmatprep.mubr.bf16.mxu0 0
      %3813 = vmatmul.mubr.bf16.gmra.mxu0 %v2360
      %v3814 = vpop.f32.mrf.mxu0
      %v3815 = vadd.f32 %v689, %v3814
      %v3816 = vpop.f32.mrf.mxu0
      %v3817 = vpop.f32.mrf.mxu0
      %v3818 = vadd.f32 %v689, %v3817
      %v3819 = vpop.f32.mrf.mxu0
      %3820 = vmatprep.mubr.bf16.mxu0 0
      %3821 = vmatmul.mubr.bf16.gmra.mxu0 %v2363
      %v3822 = vpop.f32.mrf.mxu0
      %v3823 = vadd.f32 %v689, %v3822
      %v3824 = vpop.f32.mrf.mxu0
      %v3825 = vpop.f32.mrf.mxu0
      %v3826 = vadd.f32 %v689, %v3825
      %v3827 = vpop.f32.mrf.mxu0
      %3828 = vmatprep.mubr.bf16.mxu0 0
      %3829 = vmatmul.mubr.bf16.gmra.mxu0 %v2366
      %v3830 = vpop.f32.mrf.mxu0
      %v3831 = vadd.f32 %v689, %v3830
      %v3832 = vpop.f32.mrf.mxu0
      %v3833 = vpop.f32.mrf.mxu0
      %v3834 = vadd.f32 %v689, %v3833
      %v3835 = vpop.f32.mrf.mxu0
      %3836 = vmatprep.mubr.bf16.mxu0 0
      %3837 = vmatmul.mubr.bf16.gmra.mxu0 %v2369
      %v3838 = vpop.f32.mrf.mxu0
      %v3839 = vadd.f32 %v689, %v3838
      %v3840 = vpop.f32.mrf.mxu0
      %v3841 = vpop.f32.mrf.mxu0
      %v3842 = vadd.f32 %v689, %v3841
      %v3843 = vpop.f32.mrf.mxu0
      %3844 = vmatprep.mubr.bf16.mxu0 0
      %3845 = vmatmul.mubr.bf16.gmra.mxu0 %v2372
      %v3846 = vpop.f32.mrf.mxu0
      %v3847 = vadd.f32 %v689, %v3846
      %v3848 = vpop.f32.mrf.mxu0
      %v3849 = vpop.f32.mrf.mxu0
      %v3850 = vadd.f32 %v689, %v3849
      %v3851 = vpop.f32.mrf.mxu0
      %3852 = vmatprep.mubr.bf16.mxu0 0
      %3853 = vmatmul.mubr.bf16.gmra.mxu0 %v2375
      %v3854 = vpop.f32.mrf.mxu0
      %v3855 = vadd.f32 %v689, %v3854
      %v3856 = vpop.f32.mrf.mxu0
      %v3857 = vpop.f32.mrf.mxu0
      %v3858 = vadd.f32 %v689, %v3857
      %v3859 = vpop.f32.mrf.mxu0
      %3860 = vmatprep.mubr.bf16.mxu0 0
      %3861 = vmatmul.mubr.bf16.gmra.mxu0 %v2378
      %v3862 = vpop.f32.mrf.mxu0
      %v3863 = vadd.f32 %v689, %v3862
      %v3864 = vpop.f32.mrf.mxu0
      %v3865 = vpop.f32.mrf.mxu0
      %v3866 = vadd.f32 %v689, %v3865
      %v3867 = vpop.f32.mrf.mxu0
      %3868 = vmatprep.mubr.bf16.mxu0 0
      %3869 = vmatmul.mubr.bf16.gmra.mxu0 %v2381
      %v3870 = vpop.f32.mrf.mxu0
      %v3871 = vadd.f32 %v689, %v3870
      %v3872 = vpop.f32.mrf.mxu0
      %v3873 = vpop.f32.mrf.mxu0
      %v3874 = vadd.f32 %v689, %v3873
      %v3875 = vpop.f32.mrf.mxu0
      %3876 = vmatprep.mubr.bf16.mxu0 0
      %3877 = vmatmul.mubr.bf16.gmra.mxu0 %v2384
      %v3878 = vpop.f32.mrf.mxu0
      %v3879 = vadd.f32 %v689, %v3878
      %v3880 = vpop.f32.mrf.mxu0
      %v3881 = vpop.f32.mrf.mxu0
      %v3882 = vadd.f32 %v689, %v3881
      %v3883 = vpop.f32.mrf.mxu0
      %3884 = vmatprep.mubr.bf16.mxu0 0
      %3885 = vmatmul.mubr.bf16.gmra.mxu0 %v2387
      %v3886 = vpop.f32.mrf.mxu0
      %v3887 = vadd.f32 %v689, %v3886
      %v3888 = vpop.f32.mrf.mxu0
      %v3889 = vpop.f32.mrf.mxu0
      %v3890 = vadd.f32 %v689, %v3889
      %v3891 = vpop.f32.mrf.mxu0
      %3892 = vmatprep.mubr.bf16.mxu0 0
      %3893 = vmatmul.mubr.bf16.gmra.mxu0 %v2390
      %v3894 = vpop.f32.mrf.mxu0
      %v3895 = vadd.f32 %v689, %v3894
      %v3896 = vpop.f32.mrf.mxu0
      %v3897 = vpop.f32.mrf.mxu0
      %v3898 = vadd.f32 %v689, %v3897
      %v3899 = vpop.f32.mrf.mxu0
      %3900 = vmatprep.mubr.bf16.mxu0 0
      %3901 = vmatmul.mubr.bf16.gmra.mxu0 %v2393
      %v3902 = vpop.f32.mrf.mxu0
      %v3903 = vadd.f32 %v689, %v3902
      %v3904 = vpop.f32.mrf.mxu0
      %v3905 = vpop.f32.mrf.mxu0
      %v3906 = vadd.f32 %v689, %v3905
      %v3907 = vpop.f32.mrf.mxu0
      %3908 = vmatprep.mubr.bf16.mxu0 0
      %3909 = vmatmul.mubr.bf16.gmra.mxu0 %v2396
      %v3910 = vpop.f32.mrf.mxu0
      %v3911 = vadd.f32 %v689, %v3910
      %v3912 = vpop.f32.mrf.mxu0
      %v3913 = vpop.f32.mrf.mxu0
      %v3914 = vadd.f32 %v689, %v3913
      %v3915 = vpop.f32.mrf.mxu0
      %3916 = vmatprep.mubr.bf16.mxu0 0
      %3917 = vmatmul.mubr.bf16.gmra.mxu0 %v2399
      %v3918 = vpop.f32.mrf.mxu0
      %v3919 = vadd.f32 %v689, %v3918
      %v3920 = vpop.f32.mrf.mxu0
      %v3921 = vpop.f32.mrf.mxu0
      %v3922 = vadd.f32 %v689, %v3921
      %v3923 = vpop.f32.mrf.mxu0
      %3924 = vmatprep.mubr.bf16.mxu0 0
      %3925 = vmatmul.mubr.bf16.gmra.mxu0 %v2402
      %v3926 = vpop.f32.mrf.mxu0
      %v3927 = vadd.f32 %v689, %v3926
      %v3928 = vpop.f32.mrf.mxu0
      %v3929 = vpop.f32.mrf.mxu0
      %v3930 = vadd.f32 %v689, %v3929
      %v3931 = vpop.f32.mrf.mxu0
      %3932 = vmatprep.mubr.bf16.mxu0 0
      %3933 = vmatmul.mubr.bf16.gmra.mxu0 %v2405
      %v3934 = vpop.f32.mrf.mxu0
      %v3935 = vadd.f32 %v689, %v3934
      %v3936 = vpop.f32.mrf.mxu0
      %v3937 = vpop.f32.mrf.mxu0
      %v3938 = vadd.f32 %v689, %v3937
      %v3939 = vpop.f32.mrf.mxu0
      %3940 = vmatprep.mubr.bf16.mxu0 0
      %3941 = vmatmul.mubr.bf16.gmra.mxu0 %v2408
      %v3942 = vpop.f32.mrf.mxu0
      %v3943 = vadd.f32 %v689, %v3942
      %v3944 = vpop.f32.mrf.mxu0
      %v3945 = vpop.f32.mrf.mxu0
      %v3946 = vadd.f32 %v689, %v3945
      %v3947 = vpop.f32.mrf.mxu0
      %3948 = vmatprep.mubr.bf16.mxu0 0
      %3949 = vmatmul.mubr.bf16.gmra.mxu0 %v2411
      %v3950 = vpop.f32.mrf.mxu0
      %v3951 = vadd.f32 %v689, %v3950
      %v3952 = vpop.f32.mrf.mxu0
      %v3953 = vpop.f32.mrf.mxu0
      %v3954 = vadd.f32 %v689, %v3953
      %v3955 = vpop.f32.mrf.mxu0
      %3956 = vmatprep.mubr.bf16.mxu0 0
      %3957 = vmatmul.mubr.bf16.gmra.mxu0 %v2414
      %v3958 = vpop.f32.mrf.mxu0
      %v3959 = vadd.f32 %v689, %v3958
      %v3960 = vpop.f32.mrf.mxu0
      %v3961 = vpop.f32.mrf.mxu0
      %v3962 = vadd.f32 %v689, %v3961
      %v3963 = vpop.f32.mrf.mxu0
      %3964 = vmatprep.mubr.bf16.mxu0 0
      %3965 = vmatmul.mubr.bf16.gmra.mxu0 %v2417
      %v3966 = vpop.f32.mrf.mxu0
      %v3967 = vadd.f32 %v689, %v3966
      %v3968 = vpop.f32.mrf.mxu0
      %v3969 = vpop.f32.mrf.mxu0
      %v3970 = vadd.f32 %v689, %v3969
      %v3971 = vpop.f32.mrf.mxu0
      %3972 = vmatprep.mubr.bf16.mxu0 0
      %3973 = vmatmul.mubr.bf16.gmra.mxu0 %v2420
      %v3974 = vpop.f32.mrf.mxu0
      %v3975 = vadd.f32 %v689, %v3974
      %v3976 = vpop.f32.mrf.mxu0
      %v3977 = vpop.f32.mrf.mxu0
      %v3978 = vadd.f32 %v689, %v3977
      %v3979 = vpop.f32.mrf.mxu0
      %3980 = vmatprep.mubr.bf16.mxu0 0
      %3981 = vmatmul.mubr.bf16.gmra.mxu0 %v2423
      %v3982 = vpop.f32.mrf.mxu0
      %v3983 = vadd.f32 %v689, %v3982
      %v3984 = vpop.f32.mrf.mxu0
      %v3985 = vpop.f32.mrf.mxu0
      %v3986 = vadd.f32 %v689, %v3985
      %v3987 = vpop.f32.mrf.mxu0
      %3988 = vmatprep.mubr.bf16.mxu0 0
      %3989 = vmatmul.mubr.bf16.gmra.mxu0 %v2426
      %v3990 = vpop.f32.mrf.mxu0
      %v3991 = vadd.f32 %v689, %v3990
      %v3992 = vpop.f32.mrf.mxu0
      %v3993 = vpop.f32.mrf.mxu0
      %v3994 = vadd.f32 %v689, %v3993
      %v3995 = vpop.f32.mrf.mxu0
      %3996 = vmatprep.mubr.bf16.mxu0 0
      %3997 = vmatmul.mubr.bf16.gmra.mxu0 %v2429
      %v3998 = vpop.f32.mrf.mxu0
      %v3999 = vadd.f32 %v689, %v3998
      %v4000 = vpop.f32.mrf.mxu0
      %v4001 = vpop.f32.mrf.mxu0
      %v4002 = vadd.f32 %v689, %v4001
      %v4003 = vpop.f32.mrf.mxu0
      %4004 = vmatprep.mubr.bf16.mxu0 0
      %4005 = vmatmul.mubr.bf16.gmra.mxu0 %v2432
      %v4006 = vpop.f32.mrf.mxu0
      %v4007 = vadd.f32 %v689, %v4006
      %v4008 = vpop.f32.mrf.mxu0
      %v4009 = vpop.f32.mrf.mxu0
      %v4010 = vadd.f32 %v689, %v4009
      %v4011 = vpop.f32.mrf.mxu0
      %4012 = vmatprep.mubr.bf16.mxu0 0
      %4013 = vmatmul.mubr.bf16.gmra.mxu0 %v2435
      %v4014 = vpop.f32.mrf.mxu0
      %v4015 = vadd.f32 %v689, %v4014
      %v4016 = vpop.f32.mrf.mxu0
      %v4017 = vpop.f32.mrf.mxu0
      %v4018 = vadd.f32 %v689, %v4017
      %v4019 = vpop.f32.mrf.mxu0
      %4020 = vmatprep.mubr.bf16.mxu0 0
      %4021 = vmatmul.mubr.bf16.gmra.mxu0 %v2438
      %v4022 = vpop.f32.mrf.mxu0
      %v4023 = vadd.f32 %v689, %v4022
      %v4024 = vpop.f32.mrf.mxu0
      %v4025 = vpop.f32.mrf.mxu0
      %v4026 = vadd.f32 %v689, %v4025
      %v4027 = vpop.f32.mrf.mxu0
      %4028 = vmatprep.mubr.bf16.mxu0 0
      %4029 = vmatmul.mubr.bf16.gmra.mxu0 %v2441
      %v4030 = vpop.f32.mrf.mxu0
      %v4031 = vadd.f32 %v689, %v4030
      %v4032 = vpop.f32.mrf.mxu0
      %v4033 = vpop.f32.mrf.mxu0
      %v4034 = vadd.f32 %v689, %v4033
      %v4035 = vpop.f32.mrf.mxu0
      %4036 = vmatprep.mubr.bf16.mxu0 0
      %4037 = vmatmul.mubr.bf16.gmra.mxu0 %v2444
      %v4038 = vpop.f32.mrf.mxu0
      %v4039 = vadd.f32 %v689, %v4038
      %v4040 = vpop.f32.mrf.mxu0
      %v4041 = vpop.f32.mrf.mxu0
      %v4042 = vadd.f32 %v689, %v4041
      %v4043 = vpop.f32.mrf.mxu0
      %4044 = vmatprep.mubr.bf16.mxu0 0
      %4045 = vmatmul.mubr.bf16.gmra.mxu0 %v2447
      %v4046 = vpop.f32.mrf.mxu0
      %v4047 = vadd.f32 %v689, %v4046
      %v4048 = vpop.f32.mrf.mxu0
      %v4049 = vpop.f32.mrf.mxu0
      %v4050 = vadd.f32 %v689, %v4049
      %v4051 = vpop.f32.mrf.mxu0
      %4052 = vmatprep.mubr.bf16.mxu0 0
      %4053 = vmatmul.mubr.bf16.gmra.mxu0 %v2450
      %v4054 = vpop.f32.mrf.mxu0
      %v4055 = vadd.f32 %v689, %v4054
      %v4056 = vpop.f32.mrf.mxu0
      %v4057 = vpop.f32.mrf.mxu0
      %v4058 = vadd.f32 %v689, %v4057
      %v4059 = vpop.f32.mrf.mxu0
      %4060 = vmatprep.mubr.bf16.mxu0 0
      %4061 = vmatmul.mubr.bf16.gmra.mxu0 %v2453
      %v4062 = vpop.f32.mrf.mxu0
      %v4063 = vadd.f32 %v689, %v4062
      %v4064 = vpop.f32.mrf.mxu0
      %v4065 = vpop.f32.mrf.mxu0
      %v4066 = vadd.f32 %v689, %v4065
      %v4067 = vpop.f32.mrf.mxu0
      %4068 = vmatprep.mubr.bf16.mxu0 0
      %4069 = vmatmul.mubr.bf16.gmra.mxu0 %v2456
      %v4070 = vpop.f32.mrf.mxu0
      %v4071 = vadd.f32 %v689, %v4070
      %v4072 = vpop.f32.mrf.mxu0
      %v4073 = vpop.f32.mrf.mxu0
      %v4074 = vadd.f32 %v689, %v4073
      %v4075 = vpop.f32.mrf.mxu0
      %4076 = vmatprep.mubr.bf16.mxu0 0
      %4077 = vmatmul.mubr.bf16.gmra.mxu0 %v2459
      %v4078 = vpop.f32.mrf.mxu0
      %v4079 = vadd.f32 %v689, %v4078
      %v4080 = vpop.f32.mrf.mxu0
      %v4081 = vpop.f32.mrf.mxu0
      %v4082 = vadd.f32 %v689, %v4081
      %v4083 = vpop.f32.mrf.mxu0
      %4084 = vmatprep.mubr.bf16.mxu0 0
      %4085 = vmatmul.mubr.bf16.gmra.mxu0 %v2462
      %v4086 = vpop.f32.mrf.mxu0
      %v4087 = vadd.f32 %v689, %v4086
      %v4088 = vpop.f32.mrf.mxu0
      %v4089 = vpop.f32.mrf.mxu0
      %v4090 = vadd.f32 %v689, %v4089
      %v4091 = vpop.f32.mrf.mxu0
      %4092 = vmatprep.mubr.bf16.mxu0 0
      %4093 = vmatmul.mubr.bf16.gmra.mxu0 %v2465
      %v4094 = vpop.f32.mrf.mxu0
      %v4095 = vadd.f32 %v689, %v4094
      %v4096 = vpop.f32.mrf.mxu0
      %v4097 = vpop.f32.mrf.mxu0
      %v4098 = vadd.f32 %v689, %v4097
      %v4099 = vpop.f32.mrf.mxu0
      %4100 = vmatprep.mubr.bf16.mxu0 0
      %4101 = vmatmul.mubr.bf16.gmra.mxu0 %v2468
      %v4102 = vpop.f32.mrf.mxu0
      %v4103 = vadd.f32 %v689, %v4102
      %v4104 = vpop.f32.mrf.mxu0
      %v4105 = vpop.f32.mrf.mxu0
      %v4106 = vadd.f32 %v689, %v4105
      %v4107 = vpop.f32.mrf.mxu0
      %4108 = vmatprep.mubr.bf16.mxu0 0
      %4109 = vmatmul.mubr.bf16.gmra.mxu0 %v2471
      %v4110 = vpop.f32.mrf.mxu0
      %v4111 = vadd.f32 %v689, %v4110
      %v4112 = vpop.f32.mrf.mxu0
      %v4113 = vpop.f32.mrf.mxu0
      %v4114 = vadd.f32 %v689, %v4113
      %v4115 = vpop.f32.mrf.mxu0
      %4116 = vmatprep.mubr.bf16.mxu0 0
      %4117 = vmatmul.mubr.bf16.gmra.mxu0 %v2474
      %v4118 = vpop.f32.mrf.mxu0
      %v4119 = vadd.f32 %v689, %v4118
      %v4120 = vpop.f32.mrf.mxu0
      %v4121 = vpop.f32.mrf.mxu0
      %v4122 = vadd.f32 %v689, %v4121
      %v4123 = vpop.f32.mrf.mxu0
      %4124 = vmatprep.mubr.bf16.mxu0 0
      %4125 = vmatmul.mubr.bf16.gmra.mxu0 %v2477
      %v4126 = vpop.f32.mrf.mxu0
      %v4127 = vadd.f32 %v689, %v4126
      %v4128 = vpop.f32.mrf.mxu0
      %v4129 = vpop.f32.mrf.mxu0
      %v4130 = vadd.f32 %v689, %v4129
      %v4131 = vpop.f32.mrf.mxu0
      %4132 = vmatprep.mubr.bf16.mxu0 0
      %4133 = vmatmul.mubr.bf16.gmra.mxu0 %v2480
      %v4134 = vpop.f32.mrf.mxu0
      %v4135 = vadd.f32 %v689, %v4134
      %v4136 = vpop.f32.mrf.mxu0
      %v4137 = vpop.f32.mrf.mxu0
      %v4138 = vadd.f32 %v689, %v4137
      %v4139 = vpop.f32.mrf.mxu0
      %4140 = vmatprep.mubr.bf16.mxu0 0
      %4141 = vmatmul.mubr.bf16.gmra.mxu0 %v2483
      %v4142 = vpop.f32.mrf.mxu0
      %v4143 = vadd.f32 %v689, %v4142
      %v4144 = vpop.f32.mrf.mxu0
      %v4145 = vpop.f32.mrf.mxu0
      %v4146 = vadd.f32 %v689, %v4145
      %v4147 = vpop.f32.mrf.mxu0
      %4148 = vmatprep.mubr.bf16.mxu0 0
      %4149 = vmatmul.mubr.bf16.gmra.mxu0 %v2486
      %v4150 = vpop.f32.mrf.mxu0
      %v4151 = vadd.f32 %v689, %v4150
      %v4152 = vpop.f32.mrf.mxu0
      %v4153 = vpop.f32.mrf.mxu0
      %v4154 = vadd.f32 %v689, %v4153
      %v4155 = vpop.f32.mrf.mxu0
      %4156 = vmatprep.mubr.bf16.mxu0 0
      %4157 = vmatmul.mubr.bf16.gmra.mxu0 %v2489
      %v4158 = vpop.f32.mrf.mxu0
      %v4159 = vadd.f32 %v689, %v4158
      %v4160 = vpop.f32.mrf.mxu0
      %v4161 = vpop.f32.mrf.mxu0
      %v4162 = vadd.f32 %v689, %v4161
      %v4163 = vpop.f32.mrf.mxu0
      %4164 = vmatprep.mubr.bf16.mxu0 0
      %4165 = vmatmul.mubr.bf16.gmra.mxu0 %v2492
      %v4166 = vpop.f32.mrf.mxu0
      %v4167 = vadd.f32 %v689, %v4166
      %v4168 = vpop.f32.mrf.mxu0
      %v4169 = vpop.f32.mrf.mxu0
      %v4170 = vadd.f32 %v689, %v4169
      %v4171 = vpop.f32.mrf.mxu0
      %4172 = vmatprep.mubr.bf16.mxu0 0
      %4173 = vmatmul.mubr.bf16.gmra.mxu0 %v2495
      %v4174 = vpop.f32.mrf.mxu0
      %v4175 = vadd.f32 %v689, %v4174
      %v4176 = vpop.f32.mrf.mxu0
      %v4177 = vpop.f32.mrf.mxu0
      %v4178 = vadd.f32 %v689, %v4177
      %v4179 = vpop.f32.mrf.mxu0
      %4180 = vmatprep.mubr.bf16.mxu0 0
      %4181 = vmatmul.mubr.bf16.gmra.mxu0 %v2498
      %v4182 = vpop.f32.mrf.mxu0
      %v4183 = vadd.f32 %v689, %v4182
      %v4184 = vpop.f32.mrf.mxu0
      %v4185 = vpop.f32.mrf.mxu0
      %v4186 = vadd.f32 %v689, %v4185
      %v4187 = vpop.f32.mrf.mxu0
      %4188 = vmatprep.mubr.bf16.mxu0 0
      %4189 = vmatmul.mubr.bf16.gmra.mxu0 %v2501
      %v4190 = vpop.f32.mrf.mxu0
      %v4191 = vadd.f32 %v689, %v4190
      %v4192 = vpop.f32.mrf.mxu0
      %v4193 = vpop.f32.mrf.mxu0
      %v4194 = vadd.f32 %v689, %v4193
      %v4195 = vpop.f32.mrf.mxu0
      %4196 = vmatprep.mubr.bf16.mxu0 0
      %4197 = vmatmul.mubr.bf16.gmra.mxu0 %v2504
      %v4198 = vpop.f32.mrf.mxu0
      %v4199 = vadd.f32 %v689, %v4198
      %v4200 = vpop.f32.mrf.mxu0
      %v4201 = vpop.f32.mrf.mxu0
      %v4202 = vadd.f32 %v689, %v4201
      %v4203 = vpop.f32.mrf.mxu0
      %4204 = vmatprep.mubr.bf16.mxu0 0
      %4205 = vmatmul.mubr.bf16.gmra.mxu0 %v2507
      %v4206 = vpop.f32.mrf.mxu0
      %v4207 = vadd.f32 %v689, %v4206
      %v4208 = vpop.f32.mrf.mxu0
      %v4209 = vpop.f32.mrf.mxu0
      %v4210 = vadd.f32 %v689, %v4209
      %v4211 = vpop.f32.mrf.mxu0
      %4212 = vmatprep.mubr.bf16.mxu0 0
      %4213 = vmatmul.mubr.bf16.gmra.mxu0 %v2510
      %v4214 = vpop.f32.mrf.mxu0
      %v4215 = vadd.f32 %v689, %v4214
      %v4216 = vpop.f32.mrf.mxu0
      %v4217 = vpop.f32.mrf.mxu0
      %v4218 = vadd.f32 %v689, %v4217
      %v4219 = vpop.f32.mrf.mxu0
      %4220 = vmatprep.mubr.bf16.mxu0 0
      %4221 = vmatmul.mubr.bf16.gmra.mxu0 %v2513
      %v4222 = vpop.f32.mrf.mxu0
      %v4223 = vadd.f32 %v689, %v4222
      %v4224 = vpop.f32.mrf.mxu0
      %v4225 = vpop.f32.mrf.mxu0
      %v4226 = vadd.f32 %v689, %v4225
      %v4227 = vpop.f32.mrf.mxu0
      %4228 = vmatprep.mubr.bf16.mxu0 0
      %4229 = vmatmul.mubr.bf16.gmra.mxu0 %v2516
      %v4230 = vpop.f32.mrf.mxu0
      %v4231 = vadd.f32 %v689, %v4230
      %v4232 = vpop.f32.mrf.mxu0
      %v4233 = vpop.f32.mrf.mxu0
      %v4234 = vadd.f32 %v689, %v4233
      %v4235 = vpop.f32.mrf.mxu0
      %4236 = vmatprep.mubr.bf16.mxu0 0
      %4237 = vmatmul.mubr.bf16.gmra.mxu0 %v2519
      %v4238 = vpop.f32.mrf.mxu0
      %v4239 = vadd.f32 %v689, %v4238
      %v4240 = vpop.f32.mrf.mxu0
      %v4241 = vpop.f32.mrf.mxu0
      %v4242 = vadd.f32 %v689, %v4241
      %v4243 = vpop.f32.mrf.mxu0
      %4244 = vmatprep.mubr.bf16.mxu0 0
      %4245 = vmatmul.mubr.bf16.gmra.mxu0 %v2522
      %v4246 = vpop.f32.mrf.mxu0
      %v4247 = vadd.f32 %v689, %v4246
      %v4248 = vpop.f32.mrf.mxu0
      %v4249 = vpop.f32.mrf.mxu0
      %v4250 = vadd.f32 %v689, %v4249
      %v4251 = vpop.f32.mrf.mxu0
      %4252 = vmatprep.mubr.bf16.mxu0 0
      %4253 = vmatmul.mubr.bf16.gmra.mxu0 %v2525
      %v4254 = vpop.f32.mrf.mxu0
      %v4255 = vadd.f32 %v689, %v4254
      %v4256 = vpop.f32.mrf.mxu0
      %v4257 = vpop.f32.mrf.mxu0
      %v4258 = vadd.f32 %v689, %v4257
      %v4259 = vpop.f32.mrf.mxu0
      %4260 = vmatprep.mubr.bf16.mxu0 0
      %4261 = vmatmul.mubr.bf16.gmra.mxu0 %v2528
      %v4262 = vpop.f32.mrf.mxu0
      %v4263 = vadd.f32 %v689, %v4262
      %v4264 = vpop.f32.mrf.mxu0
      %v4265 = vpop.f32.mrf.mxu0
      %v4266 = vadd.f32 %v689, %v4265
      %v4267 = vpop.f32.mrf.mxu0
      %4268 = vmatprep.mubr.bf16.mxu0 0
      %4269 = vmatmul.mubr.bf16.gmra.mxu0 %v2531
      %v4270 = vpop.f32.mrf.mxu0
      %v4271 = vadd.f32 %v689, %v4270
      %v4272 = vpop.f32.mrf.mxu0
      %v4273 = vpop.f32.mrf.mxu0
      %v4274 = vadd.f32 %v689, %v4273
      %v4275 = vpop.f32.mrf.mxu0
      %4276 = vmatprep.mubr.bf16.mxu0 0
      %4277 = vmatmul.mubr.bf16.gmra.mxu0 %v2534
      %v4278 = vpop.f32.mrf.mxu0
      %v4279 = vadd.f32 %v689, %v4278
      %v4280 = vpop.f32.mrf.mxu0
      %v4281 = vpop.f32.mrf.mxu0
      %v4282 = vadd.f32 %v689, %v4281
      %v4283 = vpop.f32.mrf.mxu0
      %4284 = vmatprep.mubr.bf16.mxu0 0
      %4285 = vmatmul.mubr.bf16.gmra.mxu0 %v2537
      %v4286 = vpop.f32.mrf.mxu0
      %v4287 = vadd.f32 %v689, %v4286
      %v4288 = vpop.f32.mrf.mxu0
      %v4289 = vpop.f32.mrf.mxu0
      %v4290 = vadd.f32 %v689, %v4289
      %v4291 = vpop.f32.mrf.mxu0
      %4292 = vmatprep.mubr.bf16.mxu0 0
      %4293 = vmatmul.mubr.bf16.gmra.mxu0 %v2540
      %v4294 = vpop.f32.mrf.mxu0
      %v4295 = vadd.f32 %v689, %v4294
      %v4296 = vpop.f32.mrf.mxu0
      %v4297 = vpop.f32.mrf.mxu0
      %v4298 = vadd.f32 %v689, %v4297
      %v4299 = vpop.f32.mrf.mxu0
      %4300 = vmatprep.mubr.bf16.mxu0 0
      %4301 = vmatmul.mubr.bf16.gmra.mxu0 %v2543
      %v4302 = vpop.f32.mrf.mxu0
      %v4303 = vadd.f32 %v689, %v4302
      %v4304 = vpop.f32.mrf.mxu0
      %v4305 = vpop.f32.mrf.mxu0
      %v4306 = vadd.f32 %v689, %v4305
      %v4307 = vpop.f32.mrf.mxu0
      %4308 = vmatprep.mubr.bf16.mxu0 0
      %4309 = vmatmul.mubr.bf16.gmra.mxu0 %v2546
      %v4310 = vpop.f32.mrf.mxu0
      %v4311 = vadd.f32 %v689, %v4310
      %v4312 = vpop.f32.mrf.mxu0
      %v4313 = vpop.f32.mrf.mxu0
      %v4314 = vadd.f32 %v689, %v4313
      %v4315 = vpop.f32.mrf.mxu0
      %4316 = vmatprep.mubr.bf16.mxu0 0
      %4317 = vmatmul.mubr.bf16.gmra.mxu0 %v2549
      %v4318 = vpop.f32.mrf.mxu0
      %v4319 = vadd.f32 %v689, %v4318
      %v4320 = vpop.f32.mrf.mxu0
      %v4321 = vpop.f32.mrf.mxu0
      %v4322 = vadd.f32 %v689, %v4321
      %v4323 = vpop.f32.mrf.mxu0
      %4324 = vmatprep.mubr.bf16.mxu0 0
      %4325 = vmatmul.mubr.bf16.gmra.mxu0 %v2552
      %v4326 = vpop.f32.mrf.mxu0
      %v4327 = vadd.f32 %v689, %v4326
      %v4328 = vpop.f32.mrf.mxu0
      %v4329 = vpop.f32.mrf.mxu0
      %v4330 = vadd.f32 %v689, %v4329
      %v4331 = vpop.f32.mrf.mxu0
      %4332 = vmatprep.mubr.bf16.mxu0 0
      %4333 = vmatmul.mubr.bf16.gmra.mxu0 %v2555
      %v4334 = vpop.f32.mrf.mxu0
      %v4335 = vadd.f32 %v689, %v4334
      %v4336 = vpop.f32.mrf.mxu0
      %v4337 = vpop.f32.mrf.mxu0
      %v4338 = vadd.f32 %v689, %v4337
      %v4339 = vpop.f32.mrf.mxu0
      %4340 = vmatprep.mubr.bf16.mxu0 0
      %4341 = vmatmul.mubr.bf16.gmra.mxu0 %v2558
      %v4342 = vpop.f32.mrf.mxu0
      %v4343 = vadd.f32 %v689, %v4342
      %v4344 = vpop.f32.mrf.mxu0
      %v4345 = vpop.f32.mrf.mxu0
      %v4346 = vadd.f32 %v689, %v4345
      %v4347 = vpop.f32.mrf.mxu0
      %4348 = vmatprep.mubr.bf16.mxu0 0
      %4349 = vmatmul.mubr.bf16.gmra.mxu0 %v2561
      %v4350 = vpop.f32.mrf.mxu0
      %v4351 = vadd.f32 %v689, %v4350
      %v4352 = vpop.f32.mrf.mxu0
      %v4353 = vpop.f32.mrf.mxu0
      %v4354 = vadd.f32 %v689, %v4353
      %v4355 = vpop.f32.mrf.mxu0
      %4356 = vmatprep.mubr.bf16.mxu0 0
      %4357 = vmatmul.mubr.bf16.gmra.mxu0 %v2564
      %v4358 = vpop.f32.mrf.mxu0
      %v4359 = vadd.f32 %v689, %v4358
      %v4360 = vpop.f32.mrf.mxu0
      %v4361 = vpop.f32.mrf.mxu0
      %v4362 = vadd.f32 %v689, %v4361
      %v4363 = vpop.f32.mrf.mxu0
      %4364 = vmatprep.mubr.bf16.mxu0 0
      %4365 = vmatmul.mubr.bf16.gmra.mxu0 %v2567
      %v4366 = vpop.f32.mrf.mxu0
      %v4367 = vadd.f32 %v689, %v4366
      %v4368 = vpop.f32.mrf.mxu0
      %v4369 = vpop.f32.mrf.mxu0
      %v4370 = vadd.f32 %v689, %v4369
      %v4371 = vpop.f32.mrf.mxu0
      %4372 = vmatprep.mubr.bf16.mxu0 0
      %4373 = vmatmul.mubr.bf16.gmra.mxu0 %v2570
      %v4374 = vpop.f32.mrf.mxu0
      %v4375 = vadd.f32 %v689, %v4374
      %v4376 = vpop.f32.mrf.mxu0
      %v4377 = vpop.f32.mrf.mxu0
      %v4378 = vadd.f32 %v689, %v4377
      %v4379 = vpop.f32.mrf.mxu0
      %4380 = vmatprep.mubr.bf16.mxu0 0
      %4381 = vmatmul.mubr.bf16.gmra.mxu0 %v2573
      %v4382 = vpop.f32.mrf.mxu0
      %v4383 = vadd.f32 %v689, %v4382
      %v4384 = vpop.f32.mrf.mxu0
      %v4385 = vpop.f32.mrf.mxu0
      %v4386 = vadd.f32 %v689, %v4385
      %v4387 = vpop.f32.mrf.mxu0
      %4388 = vmatprep.mubr.bf16.mxu0 0
      %4389 = vmatmul.mubr.bf16.gmra.mxu0 %v2576
      %v4390 = vpop.f32.mrf.mxu0
      %v4391 = vadd.f32 %v689, %v4390
      %v4392 = vpop.f32.mrf.mxu0
      %v4393 = vpop.f32.mrf.mxu0
      %v4394 = vadd.f32 %v689, %v4393
      %v4395 = vpop.f32.mrf.mxu0
      %4396 = vmatprep.mubr.bf16.mxu0 0
      %4397 = vmatmul.mubr.bf16.gmra.mxu0 %v2579
      %v4398 = vpop.f32.mrf.mxu0
      %v4399 = vadd.f32 %v689, %v4398
      %v4400 = vpop.f32.mrf.mxu0
      %v4401 = vpop.f32.mrf.mxu0
      %v4402 = vadd.f32 %v689, %v4401
      %v4403 = vpop.f32.mrf.mxu0
      %4404 = vmatprep.mubr.bf16.mxu0 0
      %4405 = vmatmul.mubr.bf16.gmra.mxu0 %v2582
      %v4406 = vpop.f32.mrf.mxu0
      %v4407 = vadd.f32 %v689, %v4406
      %v4408 = vpop.f32.mrf.mxu0
      %v4409 = vpop.f32.mrf.mxu0
      %v4410 = vadd.f32 %v689, %v4409
      %v4411 = vpop.f32.mrf.mxu0
      %4412 = vmatprep.mubr.bf16.mxu0 0
      %4413 = vmatmul.mubr.bf16.gmra.mxu0 %v2585
      %v4414 = vpop.f32.mrf.mxu0
      %v4415 = vadd.f32 %v689, %v4414
      %v4416 = vpop.f32.mrf.mxu0
      %v4417 = vpop.f32.mrf.mxu0
      %v4418 = vadd.f32 %v689, %v4417
      %v4419 = vpop.f32.mrf.mxu0
      %4420 = vmatprep.mubr.bf16.mxu0 0
      %4421 = vmatmul.mubr.bf16.gmra.mxu0 %v2588
      %v4422 = vpop.f32.mrf.mxu0
      %v4423 = vadd.f32 %v689, %v4422
      %v4424 = vpop.f32.mrf.mxu0
      %v4425 = vpop.f32.mrf.mxu0
      %v4426 = vadd.f32 %v689, %v4425
      %v4427 = vpop.f32.mrf.mxu0
      %4428 = vmatprep.mubr.bf16.mxu0 0
      %4429 = vmatmul.mubr.bf16.gmra.mxu0 %v2591
      %v4430 = vpop.f32.mrf.mxu0
      %v4431 = vadd.f32 %v689, %v4430
      %v4432 = vpop.f32.mrf.mxu0
      %v4433 = vpop.f32.mrf.mxu0
      %v4434 = vadd.f32 %v689, %v4433
      %v4435 = vpop.f32.mrf.mxu0
      %4436 = vmatprep.mubr.bf16.mxu0 0
      %4437 = vmatmul.mubr.bf16.gmra.mxu0 %v2594
      %v4438 = vpop.f32.mrf.mxu0
      %v4439 = vadd.f32 %v689, %v4438
      %v4440 = vpop.f32.mrf.mxu0
      %v4441 = vpop.f32.mrf.mxu0
      %v4442 = vadd.f32 %v689, %v4441
      %v4443 = vpop.f32.mrf.mxu0
      %4444 = vmatprep.mubr.bf16.mxu0 0
      %4445 = vmatmul.mubr.bf16.gmra.mxu0 %v2597
      %v4446 = vpop.f32.mrf.mxu0
      %v4447 = vadd.f32 %v689, %v4446
      %v4448 = vpop.f32.mrf.mxu0
      %v4449 = vpop.f32.mrf.mxu0
      %v4450 = vadd.f32 %v689, %v4449
      %v4451 = vpop.f32.mrf.mxu0
      %4452 = vmatprep.mubr.bf16.mxu0 0
      %4453 = vmatmul.mubr.bf16.gmra.mxu0 %v2600
      %v4454 = vpop.f32.mrf.mxu0
      %v4455 = vadd.f32 %v689, %v4454
      %v4456 = vpop.f32.mrf.mxu0
      %v4457 = vpop.f32.mrf.mxu0
      %v4458 = vadd.f32 %v689, %v4457
      %v4459 = vpop.f32.mrf.mxu0
      %4460 = vmatprep.mubr.bf16.mxu0 0
      %4461 = vmatmul.mubr.bf16.gmra.mxu0 %v2603
      %v4462 = vpop.f32.mrf.mxu0
      %v4463 = vadd.f32 %v689, %v4462
      %v4464 = vpop.f32.mrf.mxu0
      %v4465 = vpop.f32.mrf.mxu0
      %v4466 = vadd.f32 %v689, %v4465
      %v4467 = vpop.f32.mrf.mxu0
      %4468 = vmatprep.mubr.bf16.mxu0 0
      %4469 = vmatmul.mubr.bf16.gmra.mxu0 %v2606
      %v4470 = vpop.f32.mrf.mxu0
      %v4471 = vadd.f32 %v689, %v4470
      %v4472 = vpop.f32.mrf.mxu0
      %v4473 = vpop.f32.mrf.mxu0
      %v4474 = vadd.f32 %v689, %v4473
      %v4475 = vpop.f32.mrf.mxu0
      %4476 = vmatprep.mubr.bf16.mxu0 0
      %4477 = vmatmul.mubr.bf16.gmra.mxu0 %v2609
      %v4478 = vpop.f32.mrf.mxu0
      %v4479 = vadd.f32 %v689, %v4478
      %v4480 = vpop.f32.mrf.mxu0
      %v4481 = vpop.f32.mrf.mxu0
      %v4482 = vadd.f32 %v689, %v4481
      %v4483 = vpop.f32.mrf.mxu0
      %4484 = vmatprep.mubr.bf16.mxu0 0
      %4485 = vmatmul.mubr.bf16.gmra.mxu0 %v2612
      %v4486 = vpop.f32.mrf.mxu0
      %v4487 = vadd.f32 %v689, %v4486
      %v4488 = vpop.f32.mrf.mxu0
      %v4489 = vpop.f32.mrf.mxu0
      %v4490 = vadd.f32 %v689, %v4489
      %v4491 = vpop.f32.mrf.mxu0
      %4492 = vmatprep.mubr.bf16.mxu0 0
      %4493 = vmatmul.mubr.bf16.gmra.mxu0 %v2615
      %v4494 = vpop.f32.mrf.mxu0
      %v4495 = vadd.f32 %v689, %v4494
      %v4496 = vpop.f32.mrf.mxu0
      %v4497 = vpop.f32.mrf.mxu0
      %v4498 = vadd.f32 %v689, %v4497
      %v4499 = vpop.f32.mrf.mxu0
      %4500 = vmatprep.mubr.bf16.mxu0 0
      %4501 = vmatmul.mubr.bf16.gmra.mxu0 %v2618
      %v4502 = vpop.f32.mrf.mxu0
      %v4503 = vadd.f32 %v689, %v4502
      %v4504 = vpop.f32.mrf.mxu0
      %v4505 = vpop.f32.mrf.mxu0
      %v4506 = vadd.f32 %v689, %v4505
      %v4507 = vpop.f32.mrf.mxu0
      %4508 = vmatprep.mubr.bf16.mxu0 0
      %4509 = vmatmul.mubr.bf16.gmra.mxu0 %v2621
      %v4510 = vpop.f32.mrf.mxu0
      %v4511 = vadd.f32 %v689, %v4510
      %v4512 = vpop.f32.mrf.mxu0
      %v4513 = vpop.f32.mrf.mxu0
      %v4514 = vadd.f32 %v689, %v4513
      %v4515 = vpop.f32.mrf.mxu0
      %4516 = vmatprep.mubr.bf16.mxu0 0
      %4517 = vmatmul.mubr.bf16.gmra.mxu0 %v2624
      %v4518 = vpop.f32.mrf.mxu0
      %v4519 = vadd.f32 %v689, %v4518
      %v4520 = vpop.f32.mrf.mxu0
      %v4521 = vpop.f32.mrf.mxu0
      %v4522 = vadd.f32 %v689, %v4521
      %v4523 = vpop.f32.mrf.mxu0
      %4524 = vmatprep.mubr.bf16.mxu0 0
      %4525 = vmatmul.mubr.bf16.gmra.mxu0 %v2627
      %v4526 = vpop.f32.mrf.mxu0
      %v4527 = vadd.f32 %v689, %v4526
      %v4528 = vpop.f32.mrf.mxu0
      %v4529 = vpop.f32.mrf.mxu0
      %v4530 = vadd.f32 %v689, %v4529
      %v4531 = vpop.f32.mrf.mxu0
      %4532 = vmatprep.mubr.bf16.mxu0 0
      %4533 = vmatmul.mubr.bf16.gmra.mxu0 %v2630
      %v4534 = vpop.f32.mrf.mxu0
      %v4535 = vadd.f32 %v689, %v4534
      %v4536 = vpop.f32.mrf.mxu0
      %v4537 = vpop.f32.mrf.mxu0
      %v4538 = vadd.f32 %v689, %v4537
      %v4539 = vpop.f32.mrf.mxu0
      %4540 = vmatprep.mubr.bf16.mxu0 0
      %4541 = vmatmul.mubr.bf16.gmra.mxu0 %v2633
      %v4542 = vpop.f32.mrf.mxu0
      %v4543 = vadd.f32 %v689, %v4542
      %v4544 = vpop.f32.mrf.mxu0
      %v4545 = vpop.f32.mrf.mxu0
      %v4546 = vadd.f32 %v689, %v4545
      %v4547 = vpop.f32.mrf.mxu0
      %4548 = vmatprep.mubr.bf16.mxu0 0
      %4549 = vmatmul.mubr.bf16.gmra.mxu0 %v2636
      %v4550 = vpop.f32.mrf.mxu0
      %v4551 = vadd.f32 %v689, %v4550
      %v4552 = vpop.f32.mrf.mxu0
      %v4553 = vpop.f32.mrf.mxu0
      %v4554 = vadd.f32 %v689, %v4553
      %v4555 = vpop.f32.mrf.mxu0
      %4556 = vmatprep.mubr.bf16.mxu0 0
      %4557 = vmatmul.mubr.bf16.gmra.mxu0 %v2639
      %v4558 = vpop.f32.mrf.mxu0
      %v4559 = vadd.f32 %v689, %v4558
      %v4560 = vpop.f32.mrf.mxu0
      %v4561 = vpop.f32.mrf.mxu0
      %v4562 = vadd.f32 %v689, %v4561
      %v4563 = vpop.f32.mrf.mxu0
      %4564 = vmatprep.mubr.bf16.mxu0 0
      %4565 = vmatmul.mubr.bf16.gmra.mxu0 %v2642
      %v4566 = vpop.f32.mrf.mxu0
      %v4567 = vadd.f32 %v689, %v4566
      %v4568 = vpop.f32.mrf.mxu0
      %v4569 = vpop.f32.mrf.mxu0
      %v4570 = vadd.f32 %v689, %v4569
      %v4571 = vpop.f32.mrf.mxu0
      %4572 = vmatprep.mubr.bf16.mxu0 0
      %4573 = vmatmul.mubr.bf16.gmra.mxu0 %v2645
      %v4574 = vpop.f32.mrf.mxu0
      %v4575 = vadd.f32 %v689, %v4574
      %v4576 = vpop.f32.mrf.mxu0
      %v4577 = vpop.f32.mrf.mxu0
      %v4578 = vadd.f32 %v689, %v4577
      %v4579 = vpop.f32.mrf.mxu0
      %4580 = vmatprep.mubr.bf16.mxu0 0
      %4581 = vmatmul.mubr.bf16.gmra.mxu0 %v2648
      %v4582 = vpop.f32.mrf.mxu0
      %v4583 = vadd.f32 %v689, %v4582
      %v4584 = vpop.f32.mrf.mxu0
      %v4585 = vpop.f32.mrf.mxu0
      %v4586 = vadd.f32 %v689, %v4585
      %v4587 = vpop.f32.mrf.mxu0
      %4588 = vmatprep.mubr.bf16.mxu0 0
      %4589 = vmatmul.mubr.bf16.gmra.mxu0 %v2651
      %v4590 = vpop.f32.mrf.mxu0
      %v4591 = vadd.f32 %v689, %v4590
      %v4592 = vpop.f32.mrf.mxu0
      %v4593 = vpop.f32.mrf.mxu0
      %v4594 = vadd.f32 %v689, %v4593
      %v4595 = vpop.f32.mrf.mxu0
      %4596 = vmatprep.mubr.bf16.mxu0 0
      %4597 = vmatmul.mubr.bf16.gmra.mxu0 %v2654
      %v4598 = vpop.f32.mrf.mxu0
      %v4599 = vadd.f32 %v689, %v4598
      %v4600 = vpop.f32.mrf.mxu0
      %v4601 = vpop.f32.mrf.mxu0
      %v4602 = vadd.f32 %v689, %v4601
      %v4603 = vpop.f32.mrf.mxu0
      %4604 = vmatprep.mubr.bf16.mxu0 0
      %4605 = vmatmul.mubr.bf16.gmra.mxu0 %v2657
      %v4606 = vpop.f32.mrf.mxu0
      %v4607 = vadd.f32 %v689, %v4606
      %v4608 = vpop.f32.mrf.mxu0
      %v4609 = vpop.f32.mrf.mxu0
      %v4610 = vadd.f32 %v689, %v4609
      %v4611 = vpop.f32.mrf.mxu0
      %4612 = vmatprep.mubr.bf16.mxu0 0
      %4613 = vmatmul.mubr.bf16.gmra.mxu0 %v2660
      %v4614 = vpop.f32.mrf.mxu0
      %v4615 = vadd.f32 %v689, %v4614
      %v4616 = vpop.f32.mrf.mxu0
      %v4617 = vpop.f32.mrf.mxu0
      %v4618 = vadd.f32 %v689, %v4617
      %v4619 = vpop.f32.mrf.mxu0
      %4620 = vmatprep.mubr.bf16.mxu0 0
      %4621 = vmatmul.mubr.bf16.gmra.mxu0 %v2663
      %v4622 = vpop.f32.mrf.mxu0
      %v4623 = vadd.f32 %v689, %v4622
      %v4624 = vpop.f32.mrf.mxu0
      %v4625 = vpop.f32.mrf.mxu0
      %v4626 = vadd.f32 %v689, %v4625
      %v4627 = vpop.f32.mrf.mxu0
      %4628 = vmatprep.mubr.bf16.mxu0 0
      %4629 = vmatmul.mubr.bf16.gmra.mxu0 %v2666
      %v4630 = vpop.f32.mrf.mxu0
      %v4631 = vadd.f32 %v689, %v4630
      %v4632 = vpop.f32.mrf.mxu0
      %v4633 = vpop.f32.mrf.mxu0
      %v4634 = vadd.f32 %v689, %v4633
      %v4635 = vpop.f32.mrf.mxu0
      %4636 = vmatprep.mubr.bf16.mxu0 0
      %4637 = vmatmul.mubr.bf16.gmra.mxu0 %v2669
      %v4638 = vpop.f32.mrf.mxu0
      %v4639 = vadd.f32 %v689, %v4638
      %v4640 = vpop.f32.mrf.mxu0
      %v4641 = vpop.f32.mrf.mxu0
      %v4642 = vadd.f32 %v689, %v4641
      %v4643 = vpop.f32.mrf.mxu0
      %4644 = vmatprep.mubr.bf16.mxu0 0
      %4645 = vmatmul.mubr.bf16.gmra.mxu0 %v2672
      %v4646 = vpop.f32.mrf.mxu0
      %v4647 = vadd.f32 %v689, %v4646
      %v4648 = vpop.f32.mrf.mxu0
      %v4649 = vpop.f32.mrf.mxu0
      %v4650 = vadd.f32 %v689, %v4649
      %v4651 = vpop.f32.mrf.mxu0
      %4652 = vmatprep.mubr.bf16.mxu0 0
      %4653 = vmatmul.mubr.bf16.gmra.mxu0 %v2675
      %v4654 = vpop.f32.mrf.mxu0
      %v4655 = vadd.f32 %v689, %v4654
      %v4656 = vpop.f32.mrf.mxu0
      %v4657 = vpop.f32.mrf.mxu0
      %v4658 = vadd.f32 %v689, %v4657
      %v4659 = vpop.f32.mrf.mxu0
      %4660 = vmatprep.mubr.bf16.mxu0 0
      %4661 = vmatmul.mubr.bf16.gmra.mxu0 %v2678
      %v4662 = vpop.f32.mrf.mxu0
      %v4663 = vadd.f32 %v689, %v4662
      %v4664 = vpop.f32.mrf.mxu0
      %v4665 = vpop.f32.mrf.mxu0
      %v4666 = vadd.f32 %v689, %v4665
      %v4667 = vpop.f32.mrf.mxu0
      %4668 = vmatprep.mubr.bf16.mxu0 0
      %4669 = vmatmul.mubr.bf16.gmra.mxu0 %v2681
      %v4670 = vpop.f32.mrf.mxu0
      %v4671 = vadd.f32 %v689, %v4670
      %v4672 = vpop.f32.mrf.mxu0
      %v4673 = vpop.f32.mrf.mxu0
      %v4674 = vadd.f32 %v689, %v4673
      %v4675 = vpop.f32.mrf.mxu0
      %4676 = vmatprep.mubr.bf16.mxu0 0
      %4677 = vmatmul.mubr.bf16.gmra.mxu0 %v2684
      %v4678 = vpop.f32.mrf.mxu0
      %v4679 = vadd.f32 %v689, %v4678
      %v4680 = vpop.f32.mrf.mxu0
      %v4681 = vpop.f32.mrf.mxu0
      %v4682 = vadd.f32 %v689, %v4681
      %v4683 = vpop.f32.mrf.mxu0
      %4684 = vmatprep.mubr.bf16.mxu0 0
      %4685 = vmatmul.mubr.bf16.gmra.mxu0 %v2687
      %v4686 = vpop.f32.mrf.mxu0
      %v4687 = vadd.f32 %v689, %v4686
      %v4688 = vpop.f32.mrf.mxu0
      %v4689 = vpop.f32.mrf.mxu0
      %v4690 = vadd.f32 %v689, %v4689
      %v4691 = vpop.f32.mrf.mxu0
      %4692 = vmatprep.mubr.bf16.mxu0 0
      %4693 = vmatmul.mubr.bf16.gmra.mxu0 %v2690
      %v4694 = vpop.f32.mrf.mxu0
      %v4695 = vadd.f32 %v689, %v4694
      %v4696 = vpop.f32.mrf.mxu0
      %v4697 = vpop.f32.mrf.mxu0
      %v4698 = vadd.f32 %v689, %v4697
      %v4699 = vpop.f32.mrf.mxu0
      %4700 = vmatprep.mubr.bf16.mxu0 0
      %4701 = vmatmul.mubr.bf16.gmra.mxu0 %v2693
      %v4702 = vpop.f32.mrf.mxu0
      %v4703 = vadd.f32 %v689, %v4702
      %v4704 = vpop.f32.mrf.mxu0
      %v4705 = vpop.f32.mrf.mxu0
      %v4706 = vadd.f32 %v689, %v4705
      %v4707 = vpop.f32.mrf.mxu0
      %4708 = vmatprep.mubr.bf16.mxu0 0
      %4709 = vmatmul.mubr.bf16.gmra.mxu0 %v2696
      %v4710 = vpop.f32.mrf.mxu0
      %v4711 = vadd.f32 %v689, %v4710
      %v4712 = vpop.f32.mrf.mxu0
      %v4713 = vpop.f32.mrf.mxu0
      %v4714 = vadd.f32 %v689, %v4713
      %v4715 = vpop.f32.mrf.mxu0
      %4716 = vmatprep.mubr.bf16.mxu0 0
      %4717 = vmatmul.mubr.bf16.gmra.mxu0 %v2699
      %v4718 = vpop.f32.mrf.mxu0
      %v4719 = vadd.f32 %v689, %v4718
      %v4720 = vpop.f32.mrf.mxu0
      %v4721 = vpop.f32.mrf.mxu0
      %v4722 = vadd.f32 %v689, %v4721
      %v4723 = vpop.f32.mrf.mxu0
      %4724 = vmatprep.mubr.bf16.mxu0 0
      %4725 = vmatmul.mubr.bf16.gmra.mxu0 %v2702
      %v4726 = vpop.f32.mrf.mxu0
      %v4727 = vadd.f32 %v689, %v4726
      %v4728 = vpop.f32.mrf.mxu0
      %v4729 = vpop.f32.mrf.mxu0
      %v4730 = vadd.f32 %v689, %v4729
      %v4731 = vpop.f32.mrf.mxu0
      %4732 = vmatprep.mubr.bf16.mxu0 0
      %4733 = vmatmul.mubr.bf16.gmra.mxu0 %v2705
      %v4734 = vpop.f32.mrf.mxu0
      %v4735 = vadd.f32 %v689, %v4734
      %v4736 = vpop.f32.mrf.mxu0
      %v4737 = vpop.f32.mrf.mxu0
      %v4738 = vadd.f32 %v689, %v4737
      %v4739 = vpop.f32.mrf.mxu0
      %4740 = vmatprep.mubr.bf16.mxu0 0
      %4741 = vmatmul.mubr.bf16.gmra.mxu0 %v2708
      %v4742 = vpop.f32.mrf.mxu0
      %v4743 = vadd.f32 %v689, %v4742
      %v4744 = vpop.f32.mrf.mxu0
      %v4745 = vpop.f32.mrf.mxu0
      %v4746 = vadd.f32 %v689, %v4745
      %v4747 = vpop.f32.mrf.mxu0
      %4748 = vmatprep.mubr.bf16.mxu0 0
      %4749 = vmatmul.mubr.bf16.gmra.mxu0 %v2711
      %v4750 = vpop.f32.mrf.mxu0
      %v4751 = vadd.f32 %v689, %v4750
      %v4752 = vpop.f32.mrf.mxu0
      %v4753 = vpop.f32.mrf.mxu0
      %v4754 = vadd.f32 %v689, %v4753
      %v4755 = vpop.f32.mrf.mxu0
      %4756 = vmatprep.mubr.bf16.mxu0 0
      %4757 = vmatmul.mubr.bf16.gmra.mxu0 %v2714
      %v4758 = vpop.f32.mrf.mxu0
      %v4759 = vadd.f32 %v689, %v4758
      %v4760 = vpop.f32.mrf.mxu0
      %v4761 = vpop.f32.mrf.mxu0
      %v4762 = vadd.f32 %v689, %v4761
      %v4763 = vpop.f32.mrf.mxu0
      %4764 = vmatprep.mubr.bf16.mxu0 0
      %4765 = vmatmul.mubr.bf16.gmra.mxu0 %v2717
      %v4766 = vpop.f32.mrf.mxu0
      %v4767 = vadd.f32 %v689, %v4766
      %v4768 = vpop.f32.mrf.mxu0
      %v4769 = vpop.f32.mrf.mxu0
      %v4770 = vadd.f32 %v689, %v4769
      %v4771 = vpop.f32.mrf.mxu0
      %4772 = vmatprep.mubr.bf16.mxu0 0
      %4773 = vmatmul.mubr.bf16.gmra.mxu0 %v2720
      %v4774 = vpop.f32.mrf.mxu0
      %v4775 = vadd.f32 %v689, %v4774
      %v4776 = vpop.f32.mrf.mxu0
      %v4777 = vpop.f32.mrf.mxu0
      %v4778 = vadd.f32 %v689, %v4777
      %v4779 = vpop.f32.mrf.mxu0
      %4780 = vmatprep.mubr.bf16.mxu0 0
      %4781 = vmatmul.mubr.bf16.gmra.mxu0 %v2723
      %v4782 = vpop.f32.mrf.mxu0
      %v4783 = vadd.f32 %v689, %v4782
      %v4784 = vpop.f32.mrf.mxu0
      %v4785 = vpop.f32.mrf.mxu0
      %v4786 = vpop.f32.mrf.mxu0
      %4787 = vdwg.mxu0
      %v4788 = vmax.f32 %v2767, 0.0
      %v4789 = vmax.f32 %v2770, 0.0
      %v4790 = vmax.f32 %v2775, 0.0
      %v4791 = vmax.f32 %v2778, 0.0
      %v4792 = vmax.f32 %v2783, 0.0
      %v4793 = vmax.f32 %v2786, 0.0
      %v4794 = vmax.f32 %v2791, 0.0
      %v4795 = vmax.f32 %v2794, 0.0
      %v4796 = vmax.f32 %v2799, 0.0
      %v4797 = vmax.f32 %v2802, 0.0
      %v4798 = vmax.f32 %v2807, 0.0
      %v4799 = vmax.f32 %v2810, 0.0
      %v4800 = vmax.f32 %v2815, 0.0
      %v4801 = vmax.f32 %v2818, 0.0
      %v4802 = vmax.f32 %v2823, 0.0
      %v4803 = vmax.f32 %v2826, 0.0
      %v4804 = vmax.f32 %v2831, 0.0
      %v4805 = vmax.f32 %v2834, 0.0
      %v4806 = vmax.f32 %v2839, 0.0
      %v4807 = vmax.f32 %v2842, 0.0
      %v4808 = vmax.f32 %v2847, 0.0
      %v4809 = vmax.f32 %v2850, 0.0
      %v4810 = vmax.f32 %v2855, 0.0
      %v4811 = vmax.f32 %v2858, 0.0
      %v4812 = vmax.f32 %v2863, 0.0
      %v4813 = vmax.f32 %v2866, 0.0
      %v4814 = vmax.f32 %v2871, 0.0
      %v4815 = vmax.f32 %v2874, 0.0
      %v4816 = vmax.f32 %v2879, 0.0
      %v4817 = vmax.f32 %v2882, 0.0
      %v4818 = vmax.f32 %v2887, 0.0
      %v4819 = vmax.f32 %v2890, 0.0
      %v4820 = vmax.f32 %v2895, 0.0
      %v4821 = vmax.f32 %v2898, 0.0
      %v4822 = vmax.f32 %v2903, 0.0
      %v4823 = vmax.f32 %v2906, 0.0
      %v4824 = vmax.f32 %v2911, 0.0
      %v4825 = vmax.f32 %v2914, 0.0
      %v4826 = vmax.f32 %v2919, 0.0
      %v4827 = vmax.f32 %v2922, 0.0
      %v4828 = vmax.f32 %v2927, 0.0
      %v4829 = vmax.f32 %v2930, 0.0
      %v4830 = vmax.f32 %v2935, 0.0
      %v4831 = vmax.f32 %v2938, 0.0
      %v4832 = vmax.f32 %v2943, 0.0
      %v4833 = vmax.f32 %v2946, 0.0
      %v4834 = vmax.f32 %v2951, 0.0
      %v4835 = vmax.f32 %v2954, 0.0
      %v4836 = vmax.f32 %v2959, 0.0
      %v4837 = vmax.f32 %v2962, 0.0
      %v4838 = vmax.f32 %v2967, 0.0
      %v4839 = vmax.f32 %v2970, 0.0
      %v4840 = vmax.f32 %v2975, 0.0
      %v4841 = vmax.f32 %v2978, 0.0
      %v4842 = vmax.f32 %v2983, 0.0
      %v4843 = vmax.f32 %v2986, 0.0
      %v4844 = vmax.f32 %v2991, 0.0
      %v4845 = vmax.f32 %v2994, 0.0
      %v4846 = vmax.f32 %v2999, 0.0
      %v4847 = vmax.f32 %v3002, 0.0
      %v4848 = vmax.f32 %v3007, 0.0
      %v4849 = vmax.f32 %v3010, 0.0
      %v4850 = vmax.f32 %v3015, 0.0
      %v4851 = vmax.f32 %v3018, 0.0
      %v4852 = vmax.f32 %v3023, 0.0
      %v4853 = vmax.f32 %v3026, 0.0
      %v4854 = vmax.f32 %v3031, 0.0
      %v4855 = vmax.f32 %v3034, 0.0
      %v4856 = vmax.f32 %v3039, 0.0
      %v4857 = vmax.f32 %v3042, 0.0
      %v4858 = vmax.f32 %v3047, 0.0
      %v4859 = vmax.f32 %v3050, 0.0
      %v4860 = vmax.f32 %v3055, 0.0
      %v4861 = vmax.f32 %v3058, 0.0
      %v4862 = vmax.f32 %v3063, 0.0
      %v4863 = vmax.f32 %v3066, 0.0
      %v4864 = vmax.f32 %v3071, 0.0
      %v4865 = vmax.f32 %v3074, 0.0
      %v4866 = vmax.f32 %v3079, 0.0
      %v4867 = vmax.f32 %v3082, 0.0
      %v4868 = vmax.f32 %v3087, 0.0
      %v4869 = vmax.f32 %v3090, 0.0
      %v4870 = vmax.f32 %v3095, 0.0
      %v4871 = vmax.f32 %v3098, 0.0
      %v4872 = vmax.f32 %v3103, 0.0
      %v4873 = vmax.f32 %v3106, 0.0
      %v4874 = vmax.f32 %v3111, 0.0
      %v4875 = vmax.f32 %v3114, 0.0
      %v4876 = vmax.f32 %v3119, 0.0
      %v4877 = vmax.f32 %v3122, 0.0
      %v4878 = vmax.f32 %v3127, 0.0
      %v4879 = vmax.f32 %v3130, 0.0
      %v4880 = vmax.f32 %v3135, 0.0
      %v4881 = vmax.f32 %v3138, 0.0
      %v4882 = vmax.f32 %v3143, 0.0
      %v4883 = vmax.f32 %v3146, 0.0
      %v4884 = vmax.f32 %v3151, 0.0
      %v4885 = vmax.f32 %v3154, 0.0
      %v4886 = vmax.f32 %v3159, 0.0
      %v4887 = vmax.f32 %v3162, 0.0
      %v4888 = vmax.f32 %v3167, 0.0
      %v4889 = vmax.f32 %v3170, 0.0
      %v4890 = vmax.f32 %v3175, 0.0
      %v4891 = vmax.f32 %v3178, 0.0
      %v4892 = vmax.f32 %v3183, 0.0
      %v4893 = vmax.f32 %v3186, 0.0
      %v4894 = vmax.f32 %v3191, 0.0
      %v4895 = vmax.f32 %v3194, 0.0
      %v4896 = vmax.f32 %v3199, 0.0
      %v4897 = vmax.f32 %v3202, 0.0
      %v4898 = vmax.f32 %v3207, 0.0
      %v4899 = vmax.f32 %v3210, 0.0
      %v4900 = vmax.f32 %v3215, 0.0
      %v4901 = vmax.f32 %v3218, 0.0
      %v4902 = vmax.f32 %v3223, 0.0
      %v4903 = vmax.f32 %v3226, 0.0
      %v4904 = vmax.f32 %v3231, 0.0
      %v4905 = vmax.f32 %v3234, 0.0
      %v4906 = vmax.f32 %v3239, 0.0
      %v4907 = vmax.f32 %v3242, 0.0
      %v4908 = vmax.f32 %v3247, 0.0
      %v4909 = vmax.f32 %v3250, 0.0
      %v4910 = vmax.f32 %v3255, 0.0
      %v4911 = vmax.f32 %v3258, 0.0
      %v4912 = vmax.f32 %v3263, 0.0
      %v4913 = vmax.f32 %v3266, 0.0
      %v4914 = vmax.f32 %v3271, 0.0
      %v4915 = vmax.f32 %v3274, 0.0
      %v4916 = vmax.f32 %v3279, 0.0
      %v4917 = vmax.f32 %v3282, 0.0
      %v4918 = vmax.f32 %v3287, 0.0
      %v4919 = vmax.f32 %v3290, 0.0
      %v4920 = vmax.f32 %v3295, 0.0
      %v4921 = vmax.f32 %v3298, 0.0
      %v4922 = vmax.f32 %v3303, 0.0
      %v4923 = vmax.f32 %v3306, 0.0
      %v4924 = vmax.f32 %v3311, 0.0
      %v4925 = vmax.f32 %v3314, 0.0
      %v4926 = vmax.f32 %v3319, 0.0
      %v4927 = vmax.f32 %v3322, 0.0
      %v4928 = vmax.f32 %v3327, 0.0
      %v4929 = vmax.f32 %v3330, 0.0
      %v4930 = vmax.f32 %v3335, 0.0
      %v4931 = vmax.f32 %v3338, 0.0
      %v4932 = vmax.f32 %v3343, 0.0
      %v4933 = vmax.f32 %v3346, 0.0
      %v4934 = vmax.f32 %v3351, 0.0
      %v4935 = vmax.f32 %v3354, 0.0
      %v4936 = vmax.f32 %v3359, 0.0
      %v4937 = vmax.f32 %v3362, 0.0
      %v4938 = vmax.f32 %v3367, 0.0
      %v4939 = vmax.f32 %v3370, 0.0
      %v4940 = vmax.f32 %v3375, 0.0
      %v4941 = vmax.f32 %v3378, 0.0
      %v4942 = vmax.f32 %v3383, 0.0
      %v4943 = vmax.f32 %v3386, 0.0
      %v4944 = vmax.f32 %v3391, 0.0
      %v4945 = vmax.f32 %v3394, 0.0
      %v4946 = vmax.f32 %v3399, 0.0
      %v4947 = vmax.f32 %v3402, 0.0
      %v4948 = vmax.f32 %v3407, 0.0
      %v4949 = vmax.f32 %v3410, 0.0
      %v4950 = vmax.f32 %v3415, 0.0
      %v4951 = vmax.f32 %v3418, 0.0
      %v4952 = vmax.f32 %v3423, 0.0
      %v4953 = vmax.f32 %v3426, 0.0
      %v4954 = vmax.f32 %v3431, 0.0
      %v4955 = vmax.f32 %v3434, 0.0
      %v4956 = vmax.f32 %v3439, 0.0
      %v4957 = vmax.f32 %v3442, 0.0
      %v4958 = vmax.f32 %v3447, 0.0
      %v4959 = vmax.f32 %v3450, 0.0
      %v4960 = vmax.f32 %v3455, 0.0
      %v4961 = vmax.f32 %v3458, 0.0
      %v4962 = vmax.f32 %v3463, 0.0
      %v4963 = vmax.f32 %v3466, 0.0
      %v4964 = vmax.f32 %v3471, 0.0
      %v4965 = vmax.f32 %v3474, 0.0
      %v4966 = vmax.f32 %v3479, 0.0
      %v4967 = vmax.f32 %v3482, 0.0
      %v4968 = vmax.f32 %v3487, 0.0
      %v4969 = vmax.f32 %v3490, 0.0
      %v4970 = vmax.f32 %v3495, 0.0
      %v4971 = vmax.f32 %v3498, 0.0
      %v4972 = vmax.f32 %v3503, 0.0
      %v4973 = vmax.f32 %v3506, 0.0
      %v4974 = vmax.f32 %v3511, 0.0
      %v4975 = vmax.f32 %v3514, 0.0
      %v4976 = vmax.f32 %v3519, 0.0
      %v4977 = vmax.f32 %v3522, 0.0
      %v4978 = vmax.f32 %v3527, 0.0
      %v4979 = vmax.f32 %v3530, 0.0
      %v4980 = vmax.f32 %v3535, 0.0
      %v4981 = vmax.f32 %v3538, 0.0
      %v4982 = vmax.f32 %v3543, 0.0
      %v4983 = vmax.f32 %v3546, 0.0
      %v4984 = vmax.f32 %v3551, 0.0
      %v4985 = vmax.f32 %v3554, 0.0
      %v4986 = vmax.f32 %v3559, 0.0
      %v4987 = vmax.f32 %v3562, 0.0
      %v4988 = vmax.f32 %v3567, 0.0
      %v4989 = vmax.f32 %v3570, 0.0
      %v4990 = vmax.f32 %v3575, 0.0
      %v4991 = vmax.f32 %v3578, 0.0
      %v4992 = vmax.f32 %v3583, 0.0
      %v4993 = vmax.f32 %v3586, 0.0
      %v4994 = vmax.f32 %v3591, 0.0
      %v4995 = vmax.f32 %v3594, 0.0
      %v4996 = vmax.f32 %v3599, 0.0
      %v4997 = vmax.f32 %v3602, 0.0
      %v4998 = vmax.f32 %v3607, 0.0
      %v4999 = vmax.f32 %v3610, 0.0
      %v5000 = vmax.f32 %v3615, 0.0
      %v5001 = vmax.f32 %v3618, 0.0
      %v5002 = vmax.f32 %v3623, 0.0
      %v5003 = vmax.f32 %v3626, 0.0
      %v5004 = vmax.f32 %v3631, 0.0
      %v5005 = vmax.f32 %v3634, 0.0
      %v5006 = vmax.f32 %v3639, 0.0
      %v5007 = vmax.f32 %v3642, 0.0
      %v5008 = vmax.f32 %v3647, 0.0
      %v5009 = vmax.f32 %v3650, 0.0
      %v5010 = vmax.f32 %v3655, 0.0
      %v5011 = vmax.f32 %v3658, 0.0
      %v5012 = vmax.f32 %v3663, 0.0
      %v5013 = vmax.f32 %v3666, 0.0
      %v5014 = vmax.f32 %v3671, 0.0
      %v5015 = vmax.f32 %v3674, 0.0
      %v5016 = vmax.f32 %v3679, 0.0
      %v5017 = vmax.f32 %v3682, 0.0
      %v5018 = vmax.f32 %v3687, 0.0
      %v5019 = vmax.f32 %v3690, 0.0
      %v5020 = vmax.f32 %v3695, 0.0
      %v5021 = vmax.f32 %v3698, 0.0
      %v5022 = vmax.f32 %v3703, 0.0
      %v5023 = vmax.f32 %v3706, 0.0
      %v5024 = vmax.f32 %v3711, 0.0
      %v5025 = vmax.f32 %v3714, 0.0
      %v5026 = vmax.f32 %v3719, 0.0
      %v5027 = vmax.f32 %v3722, 0.0
      %v5028 = vmax.f32 %v3727, 0.0
      %v5029 = vmax.f32 %v3730, 0.0
      %v5030 = vmax.f32 %v3735, 0.0
      %v5031 = vmax.f32 %v3738, 0.0
      %v5032 = vmax.f32 %v3743, 0.0
      %v5033 = vmax.f32 %v3746, 0.0
      %v5034 = vmax.f32 %v3751, 0.0
      %v5035 = vmax.f32 %v3754, 0.0
      %v5036 = vmax.f32 %v3759, 0.0
      %v5037 = vmax.f32 %v3762, 0.0
      %v5038 = vmax.f32 %v3767, 0.0
      %v5039 = vmax.f32 %v3770, 0.0
      %v5040 = vmax.f32 %v3775, 0.0
      %v5041 = vmax.f32 %v3778, 0.0
      %v5042 = vmax.f32 %v3783, 0.0
      %v5043 = vmax.f32 %v3786, 0.0
      %v5044 = vmax.f32 %v3791, 0.0
      %v5045 = vmax.f32 %v3794, 0.0
      %v5046 = vmax.f32 %v3799, 0.0
      %v5047 = vmax.f32 %v3802, 0.0
      %v5048 = vmax.f32 %v3807, 0.0
      %v5049 = vmax.f32 %v3810, 0.0
      %v5050 = vmax.f32 %v3815, 0.0
      %v5051 = vmax.f32 %v3818, 0.0
      %v5052 = vmax.f32 %v3823, 0.0
      %v5053 = vmax.f32 %v3826, 0.0
      %v5054 = vmax.f32 %v3831, 0.0
      %v5055 = vmax.f32 %v3834, 0.0
      %v5056 = vmax.f32 %v3839, 0.0
      %v5057 = vmax.f32 %v3842, 0.0
      %v5058 = vmax.f32 %v3847, 0.0
      %v5059 = vmax.f32 %v3850, 0.0
      %v5060 = vmax.f32 %v3855, 0.0
      %v5061 = vmax.f32 %v3858, 0.0
      %v5062 = vmax.f32 %v3863, 0.0
      %v5063 = vmax.f32 %v3866, 0.0
      %v5064 = vmax.f32 %v3871, 0.0
      %v5065 = vmax.f32 %v3874, 0.0
      %v5066 = vmax.f32 %v3879, 0.0
      %v5067 = vmax.f32 %v3882, 0.0
      %v5068 = vmax.f32 %v3887, 0.0
      %v5069 = vmax.f32 %v3890, 0.0
      %v5070 = vmax.f32 %v3895, 0.0
      %v5071 = vmax.f32 %v3898, 0.0
      %v5072 = vmax.f32 %v3903, 0.0
      %v5073 = vmax.f32 %v3906, 0.0
      %v5074 = vmax.f32 %v3911, 0.0
      %v5075 = vmax.f32 %v3914, 0.0
      %v5076 = vmax.f32 %v3919, 0.0
      %v5077 = vmax.f32 %v3922, 0.0
      %v5078 = vmax.f32 %v3927, 0.0
      %v5079 = vmax.f32 %v3930, 0.0
      %v5080 = vmax.f32 %v3935, 0.0
      %v5081 = vmax.f32 %v3938, 0.0
      %v5082 = vmax.f32 %v3943, 0.0
      %v5083 = vmax.f32 %v3946, 0.0
      %v5084 = vmax.f32 %v3951, 0.0
      %v5085 = vmax.f32 %v3954, 0.0
      %v5086 = vmax.f32 %v3959, 0.0
      %v5087 = vmax.f32 %v3962, 0.0
      %v5088 = vmax.f32 %v3967, 0.0
      %v5089 = vmax.f32 %v3970, 0.0
      %v5090 = vmax.f32 %v3975, 0.0
      %v5091 = vmax.f32 %v3978, 0.0
      %v5092 = vmax.f32 %v3983, 0.0
      %v5093 = vmax.f32 %v3986, 0.0
      %v5094 = vmax.f32 %v3991, 0.0
      %v5095 = vmax.f32 %v3994, 0.0
      %v5096 = vmax.f32 %v3999, 0.0
      %v5097 = vmax.f32 %v4002, 0.0
      %v5098 = vmax.f32 %v4007, 0.0
      %v5099 = vmax.f32 %v4010, 0.0
      %v5100 = vmax.f32 %v4015, 0.0
      %v5101 = vmax.f32 %v4018, 0.0
      %v5102 = vmax.f32 %v4023, 0.0
      %v5103 = vmax.f32 %v4026, 0.0
      %v5104 = vmax.f32 %v4031, 0.0
      %v5105 = vmax.f32 %v4034, 0.0
      %v5106 = vmax.f32 %v4039, 0.0
      %v5107 = vmax.f32 %v4042, 0.0
      %v5108 = vmax.f32 %v4047, 0.0
      %v5109 = vmax.f32 %v4050, 0.0
      %v5110 = vmax.f32 %v4055, 0.0
      %v5111 = vmax.f32 %v4058, 0.0
      %v5112 = vmax.f32 %v4063, 0.0
      %v5113 = vmax.f32 %v4066, 0.0
      %v5114 = vmax.f32 %v4071, 0.0
      %v5115 = vmax.f32 %v4074, 0.0
      %v5116 = vmax.f32 %v4079, 0.0
      %v5117 = vmax.f32 %v4082, 0.0
      %v5118 = vmax.f32 %v4087, 0.0
      %v5119 = vmax.f32 %v4090, 0.0
      %v5120 = vmax.f32 %v4095, 0.0
      %v5121 = vmax.f32 %v4098, 0.0
      %v5122 = vmax.f32 %v4103, 0.0
      %v5123 = vmax.f32 %v4106, 0.0
      %v5124 = vmax.f32 %v4111, 0.0
      %v5125 = vmax.f32 %v4114, 0.0
      %v5126 = vmax.f32 %v4119, 0.0
      %v5127 = vmax.f32 %v4122, 0.0
      %v5128 = vmax.f32 %v4127, 0.0
      %v5129 = vmax.f32 %v4130, 0.0
      %v5130 = vmax.f32 %v4135, 0.0
      %v5131 = vmax.f32 %v4138, 0.0
      %v5132 = vmax.f32 %v4143, 0.0
      %v5133 = vmax.f32 %v4146, 0.0
      %v5134 = vmax.f32 %v4151, 0.0
      %v5135 = vmax.f32 %v4154, 0.0
      %v5136 = vmax.f32 %v4159, 0.0
      %v5137 = vmax.f32 %v4162, 0.0
      %v5138 = vmax.f32 %v4167, 0.0
      %v5139 = vmax.f32 %v4170, 0.0
      %v5140 = vmax.f32 %v4175, 0.0
      %v5141 = vmax.f32 %v4178, 0.0
      %v5142 = vmax.f32 %v4183, 0.0
      %v5143 = vmax.f32 %v4186, 0.0
      %v5144 = vmax.f32 %v4191, 0.0
      %v5145 = vmax.f32 %v4194, 0.0
      %v5146 = vmax.f32 %v4199, 0.0
      %v5147 = vmax.f32 %v4202, 0.0
      %v5148 = vmax.f32 %v4207, 0.0
      %v5149 = vmax.f32 %v4210, 0.0
      %v5150 = vmax.f32 %v4215, 0.0
      %v5151 = vmax.f32 %v4218, 0.0
      %v5152 = vmax.f32 %v4223, 0.0
      %v5153 = vmax.f32 %v4226, 0.0
      %v5154 = vmax.f32 %v4231, 0.0
      %v5155 = vmax.f32 %v4234, 0.0
      %v5156 = vmax.f32 %v4239, 0.0
      %v5157 = vmax.f32 %v4242, 0.0
      %v5158 = vmax.f32 %v4247, 0.0
      %v5159 = vmax.f32 %v4250, 0.0
      %v5160 = vmax.f32 %v4255, 0.0
      %v5161 = vmax.f32 %v4258, 0.0
      %v5162 = vmax.f32 %v4263, 0.0
      %v5163 = vmax.f32 %v4266, 0.0
      %v5164 = vmax.f32 %v4271, 0.0
      %v5165 = vmax.f32 %v4274, 0.0
      %v5166 = vmax.f32 %v4279, 0.0
      %v5167 = vmax.f32 %v4282, 0.0
      %v5168 = vmax.f32 %v4287, 0.0
      %v5169 = vmax.f32 %v4290, 0.0
      %v5170 = vmax.f32 %v4295, 0.0
      %v5171 = vmax.f32 %v4298, 0.0
      %v5172 = vmax.f32 %v4303, 0.0
      %v5173 = vmax.f32 %v4306, 0.0
      %v5174 = vmax.f32 %v4311, 0.0
      %v5175 = vmax.f32 %v4314, 0.0
      %v5176 = vmax.f32 %v4319, 0.0
      %v5177 = vmax.f32 %v4322, 0.0
      %v5178 = vmax.f32 %v4327, 0.0
      %v5179 = vmax.f32 %v4330, 0.0
      %v5180 = vmax.f32 %v4335, 0.0
      %v5181 = vmax.f32 %v4338, 0.0
      %v5182 = vmax.f32 %v4343, 0.0
      %v5183 = vmax.f32 %v4346, 0.0
      %v5184 = vmax.f32 %v4351, 0.0
      %v5185 = vmax.f32 %v4354, 0.0
      %v5186 = vmax.f32 %v4359, 0.0
      %v5187 = vmax.f32 %v4362, 0.0
      %v5188 = vmax.f32 %v4367, 0.0
      %v5189 = vmax.f32 %v4370, 0.0
      %v5190 = vmax.f32 %v4375, 0.0
      %v5191 = vmax.f32 %v4378, 0.0
      %v5192 = vmax.f32 %v4383, 0.0
      %v5193 = vmax.f32 %v4386, 0.0
      %v5194 = vmax.f32 %v4391, 0.0
      %v5195 = vmax.f32 %v4394, 0.0
      %v5196 = vmax.f32 %v4399, 0.0
      %v5197 = vmax.f32 %v4402, 0.0
      %v5198 = vmax.f32 %v4407, 0.0
      %v5199 = vmax.f32 %v4410, 0.0
      %v5200 = vmax.f32 %v4415, 0.0
      %v5201 = vmax.f32 %v4418, 0.0
      %v5202 = vmax.f32 %v4423, 0.0
      %v5203 = vmax.f32 %v4426, 0.0
      %v5204 = vmax.f32 %v4431, 0.0
      %v5205 = vmax.f32 %v4434, 0.0
      %v5206 = vmax.f32 %v4439, 0.0
      %v5207 = vmax.f32 %v4442, 0.0
      %v5208 = vmax.f32 %v4447, 0.0
      %v5209 = vmax.f32 %v4450, 0.0
      %v5210 = vmax.f32 %v4455, 0.0
      %v5211 = vmax.f32 %v4458, 0.0
      %v5212 = vmax.f32 %v4463, 0.0
      %v5213 = vmax.f32 %v4466, 0.0
      %v5214 = vmax.f32 %v4471, 0.0
      %v5215 = vmax.f32 %v4474, 0.0
      %v5216 = vmax.f32 %v4479, 0.0
      %v5217 = vmax.f32 %v4482, 0.0
      %v5218 = vmax.f32 %v4487, 0.0
      %v5219 = vmax.f32 %v4490, 0.0
      %v5220 = vmax.f32 %v4495, 0.0
      %v5221 = vmax.f32 %v4498, 0.0
      %v5222 = vmax.f32 %v4503, 0.0
      %v5223 = vmax.f32 %v4506, 0.0
      %v5224 = vmax.f32 %v4511, 0.0
      %v5225 = vmax.f32 %v4514, 0.0
      %v5226 = vmax.f32 %v4519, 0.0
      %v5227 = vmax.f32 %v4522, 0.0
      %v5228 = vmax.f32 %v4527, 0.0
      %v5229 = vmax.f32 %v4530, 0.0
      %v5230 = vmax.f32 %v4535, 0.0
      %v5231 = vmax.f32 %v4538, 0.0
      %v5232 = vmax.f32 %v4543, 0.0
      %v5233 = vmax.f32 %v4546, 0.0
      %v5234 = vmax.f32 %v4551, 0.0
      %v5235 = vmax.f32 %v4554, 0.0
      %v5236 = vmax.f32 %v4559, 0.0
      %v5237 = vmax.f32 %v4562, 0.0
      %v5238 = vmax.f32 %v4567, 0.0
      %v5239 = vmax.f32 %v4570, 0.0
      %v5240 = vmax.f32 %v4575, 0.0
      %v5241 = vmax.f32 %v4578, 0.0
      %v5242 = vmax.f32 %v4583, 0.0
      %v5243 = vmax.f32 %v4586, 0.0
      %v5244 = vmax.f32 %v4591, 0.0
      %v5245 = vmax.f32 %v4594, 0.0
      %v5246 = vmax.f32 %v4599, 0.0
      %v5247 = vmax.f32 %v4602, 0.0
      %v5248 = vmax.f32 %v4607, 0.0
      %v5249 = vmax.f32 %v4610, 0.0
      %v5250 = vmax.f32 %v4615, 0.0
      %v5251 = vmax.f32 %v4618, 0.0
      %v5252 = vmax.f32 %v4623, 0.0
      %v5253 = vmax.f32 %v4626, 0.0
      %v5254 = vmax.f32 %v4631, 0.0
      %v5255 = vmax.f32 %v4634, 0.0
      %v5256 = vmax.f32 %v4639, 0.0
      %v5257 = vmax.f32 %v4642, 0.0
      %v5258 = vmax.f32 %v4647, 0.0
      %v5259 = vmax.f32 %v4650, 0.0
      %v5260 = vmax.f32 %v4655, 0.0
      %v5261 = vmax.f32 %v4658, 0.0
      %v5262 = vmax.f32 %v4663, 0.0
      %v5263 = vmax.f32 %v4666, 0.0
      %v5264 = vmax.f32 %v4671, 0.0
      %v5265 = vmax.f32 %v4674, 0.0
      %v5266 = vmax.f32 %v4679, 0.0
      %v5267 = vmax.f32 %v4682, 0.0
      %v5268 = vmax.f32 %v4687, 0.0
      %v5269 = vmax.f32 %v4690, 0.0
      %v5270 = vmax.f32 %v4695, 0.0
      %v5271 = vmax.f32 %v4698, 0.0
      %v5272 = vmax.f32 %v4703, 0.0
      %v5273 = vmax.f32 %v4706, 0.0
      %v5274 = vmax.f32 %v4711, 0.0
      %v5275 = vmax.f32 %v4714, 0.0
      %v5276 = vmax.f32 %v4719, 0.0
      %v5277 = vmax.f32 %v4722, 0.0
      %v5278 = vmax.f32 %v4727, 0.0
      %v5279 = vmax.f32 %v4730, 0.0
      %v5280 = vmax.f32 %v4735, 0.0
      %v5281 = vmax.f32 %v4738, 0.0
      %v5282 = vmax.f32 %v4743, 0.0
      %v5283 = vmax.f32 %v4746, 0.0
      %v5284 = vmax.f32 %v4751, 0.0
      %v5285 = vmax.f32 %v4754, 0.0
      %v5286 = vmax.f32 %v4759, 0.0
      %v5287 = vmax.f32 %v4762, 0.0
      %v5288 = vmax.f32 %v4767, 0.0
      %v5289 = vmax.f32 %v4770, 0.0
      %v5290 = vmax.f32 %v4775, 0.0
      %v5291 = vmax.f32 %v4778, 0.0
      %v5292 = vmax.f32 %v4783, 0.0
      %v5293 = vpack.c.bf16 %v4789, %v4788
      %v5294 = vpack.c.bf16 %v4791, %v4790
      %v5295 = vpack.c.bf16 %v4793, %v4792
      %v5296 = vpack.c.bf16 %v4795, %v4794
      %v5297 = vpack.c.bf16 %v4797, %v4796
      %v5298 = vpack.c.bf16 %v4799, %v4798
      %v5299 = vpack.c.bf16 %v4801, %v4800
      %v5300 = vpack.c.bf16 %v4803, %v4802
      %v5301 = vpack.c.bf16 %v4805, %v4804
      %v5302 = vpack.c.bf16 %v4807, %v4806
      %v5303 = vpack.c.bf16 %v4809, %v4808
      %v5304 = vpack.c.bf16 %v4811, %v4810
      %v5305 = vpack.c.bf16 %v4813, %v4812
      %v5306 = vpack.c.bf16 %v4815, %v4814
      %v5307 = vpack.c.bf16 %v4817, %v4816
      %v5308 = vpack.c.bf16 %v4819, %v4818
      %v5309 = vpack.c.bf16 %v4821, %v4820
      %v5310 = vpack.c.bf16 %v4823, %v4822
      %v5311 = vpack.c.bf16 %v4825, %v4824
      %v5312 = vpack.c.bf16 %v4827, %v4826
      %v5313 = vpack.c.bf16 %v4829, %v4828
      %v5314 = vpack.c.bf16 %v4831, %v4830
      %v5315 = vpack.c.bf16 %v4833, %v4832
      %v5316 = vpack.c.bf16 %v4835, %v4834
      %v5317 = vpack.c.bf16 %v4837, %v4836
      %v5318 = vpack.c.bf16 %v4839, %v4838
      %v5319 = vpack.c.bf16 %v4841, %v4840
      %v5320 = vpack.c.bf16 %v4843, %v4842
      %v5321 = vpack.c.bf16 %v4845, %v4844
      %v5322 = vpack.c.bf16 %v4847, %v4846
      %v5323 = vpack.c.bf16 %v4849, %v4848
      %v5324 = vpack.c.bf16 %v4851, %v4850
      %v5325 = vpack.c.bf16 %v4853, %v4852
      %v5326 = vpack.c.bf16 %v4855, %v4854
      %v5327 = vpack.c.bf16 %v4857, %v4856
      %v5328 = vpack.c.bf16 %v4859, %v4858
      %v5329 = vpack.c.bf16 %v4861, %v4860
      %v5330 = vpack.c.bf16 %v4863, %v4862
      %v5331 = vpack.c.bf16 %v4865, %v4864
      %v5332 = vpack.c.bf16 %v4867, %v4866
      %v5333 = vpack.c.bf16 %v4869, %v4868
      %v5334 = vpack.c.bf16 %v4871, %v4870
      %v5335 = vpack.c.bf16 %v4873, %v4872
      %v5336 = vpack.c.bf16 %v4875, %v4874
      %v5337 = vpack.c.bf16 %v4877, %v4876
      %v5338 = vpack.c.bf16 %v4879, %v4878
      %v5339 = vpack.c.bf16 %v4881, %v4880
      %v5340 = vpack.c.bf16 %v4883, %v4882
      %v5341 = vpack.c.bf16 %v4885, %v4884
      %v5342 = vpack.c.bf16 %v4887, %v4886
      %v5343 = vpack.c.bf16 %v4889, %v4888
      %v5344 = vpack.c.bf16 %v4891, %v4890
      %v5345 = vpack.c.bf16 %v4893, %v4892
      %v5346 = vpack.c.bf16 %v4895, %v4894
      %v5347 = vpack.c.bf16 %v4897, %v4896
      %v5348 = vpack.c.bf16 %v4899, %v4898
      %v5349 = vpack.c.bf16 %v4901, %v4900
      %v5350 = vpack.c.bf16 %v4903, %v4902
      %v5351 = vpack.c.bf16 %v4905, %v4904
      %v5352 = vpack.c.bf16 %v4907, %v4906
      %v5353 = vpack.c.bf16 %v4909, %v4908
      %v5354 = vpack.c.bf16 %v4911, %v4910
      %v5355 = vpack.c.bf16 %v4913, %v4912
      %v5356 = vpack.c.bf16 %v4915, %v4914
      %v5357 = vpack.c.bf16 %v4917, %v4916
      %v5358 = vpack.c.bf16 %v4919, %v4918
      %v5359 = vpack.c.bf16 %v4921, %v4920
      %v5360 = vpack.c.bf16 %v4923, %v4922
      %v5361 = vpack.c.bf16 %v4925, %v4924
      %v5362 = vpack.c.bf16 %v4927, %v4926
      %v5363 = vpack.c.bf16 %v4929, %v4928
      %v5364 = vpack.c.bf16 %v4931, %v4930
      %v5365 = vpack.c.bf16 %v4933, %v4932
      %v5366 = vpack.c.bf16 %v4935, %v4934
      %v5367 = vpack.c.bf16 %v4937, %v4936
      %v5368 = vpack.c.bf16 %v4939, %v4938
      %v5369 = vpack.c.bf16 %v4941, %v4940
      %v5370 = vpack.c.bf16 %v4943, %v4942
      %v5371 = vpack.c.bf16 %v4945, %v4944
      %v5372 = vpack.c.bf16 %v4947, %v4946
      %v5373 = vpack.c.bf16 %v4949, %v4948
      %v5374 = vpack.c.bf16 %v4951, %v4950
      %v5375 = vpack.c.bf16 %v4953, %v4952
      %v5376 = vpack.c.bf16 %v4955, %v4954
      %v5377 = vpack.c.bf16 %v4957, %v4956
      %v5378 = vpack.c.bf16 %v4959, %v4958
      %v5379 = vpack.c.bf16 %v4961, %v4960
      %v5380 = vpack.c.bf16 %v4963, %v4962
      %v5381 = vpack.c.bf16 %v4965, %v4964
      %v5382 = vpack.c.bf16 %v4967, %v4966
      %v5383 = vpack.c.bf16 %v4969, %v4968
      %v5384 = vpack.c.bf16 %v4971, %v4970
      %v5385 = vpack.c.bf16 %v4973, %v4972
      %v5386 = vpack.c.bf16 %v4975, %v4974
      %v5387 = vpack.c.bf16 %v4977, %v4976
      %v5388 = vpack.c.bf16 %v4979, %v4978
      %v5389 = vpack.c.bf16 %v4981, %v4980
      %v5390 = vpack.c.bf16 %v4983, %v4982
      %v5391 = vpack.c.bf16 %v4985, %v4984
      %v5392 = vpack.c.bf16 %v4987, %v4986
      %v5393 = vpack.c.bf16 %v4989, %v4988
      %v5394 = vpack.c.bf16 %v4991, %v4990
      %v5395 = vpack.c.bf16 %v4993, %v4992
      %v5396 = vpack.c.bf16 %v4995, %v4994
      %v5397 = vpack.c.bf16 %v4997, %v4996
      %v5398 = vpack.c.bf16 %v4999, %v4998
      %v5399 = vpack.c.bf16 %v5001, %v5000
      %v5400 = vpack.c.bf16 %v5003, %v5002
      %v5401 = vpack.c.bf16 %v5005, %v5004
      %v5402 = vpack.c.bf16 %v5007, %v5006
      %v5403 = vpack.c.bf16 %v5009, %v5008
      %v5404 = vpack.c.bf16 %v5011, %v5010
      %v5405 = vpack.c.bf16 %v5013, %v5012
      %v5406 = vpack.c.bf16 %v5015, %v5014
      %v5407 = vpack.c.bf16 %v5017, %v5016
      %v5408 = vpack.c.bf16 %v5019, %v5018
      %v5409 = vpack.c.bf16 %v5021, %v5020
      %v5410 = vpack.c.bf16 %v5023, %v5022
      %v5411 = vpack.c.bf16 %v5025, %v5024
      %v5412 = vpack.c.bf16 %v5027, %v5026
      %v5413 = vpack.c.bf16 %v5029, %v5028
      %v5414 = vpack.c.bf16 %v5031, %v5030
      %v5415 = vpack.c.bf16 %v5033, %v5032
      %v5416 = vpack.c.bf16 %v5035, %v5034
      %v5417 = vpack.c.bf16 %v5037, %v5036
      %v5418 = vpack.c.bf16 %v5039, %v5038
      %v5419 = vpack.c.bf16 %v5041, %v5040
      %v5420 = vpack.c.bf16 %v5043, %v5042
      %v5421 = vpack.c.bf16 %v5045, %v5044
      %v5422 = vpack.c.bf16 %v5047, %v5046
      %v5423 = vpack.c.bf16 %v5049, %v5048
      %v5424 = vpack.c.bf16 %v5051, %v5050
      %v5425 = vpack.c.bf16 %v5053, %v5052
      %v5426 = vpack.c.bf16 %v5055, %v5054
      %v5427 = vpack.c.bf16 %v5057, %v5056
      %v5428 = vpack.c.bf16 %v5059, %v5058
      %v5429 = vpack.c.bf16 %v5061, %v5060
      %v5430 = vpack.c.bf16 %v5063, %v5062
      %v5431 = vpack.c.bf16 %v5065, %v5064
      %v5432 = vpack.c.bf16 %v5067, %v5066
      %v5433 = vpack.c.bf16 %v5069, %v5068
      %v5434 = vpack.c.bf16 %v5071, %v5070
      %v5435 = vpack.c.bf16 %v5073, %v5072
      %v5436 = vpack.c.bf16 %v5075, %v5074
      %v5437 = vpack.c.bf16 %v5077, %v5076
      %v5438 = vpack.c.bf16 %v5079, %v5078
      %v5439 = vpack.c.bf16 %v5081, %v5080
      %v5440 = vpack.c.bf16 %v5083, %v5082
      %v5441 = vpack.c.bf16 %v5085, %v5084
      %v5442 = vpack.c.bf16 %v5087, %v5086
      %v5443 = vpack.c.bf16 %v5089, %v5088
      %v5444 = vpack.c.bf16 %v5091, %v5090
      %v5445 = vpack.c.bf16 %v5093, %v5092
      %v5446 = vpack.c.bf16 %v5095, %v5094
      %v5447 = vpack.c.bf16 %v5097, %v5096
      %v5448 = vpack.c.bf16 %v5099, %v5098
      %v5449 = vpack.c.bf16 %v5101, %v5100
      %v5450 = vpack.c.bf16 %v5103, %v5102
      %v5451 = vpack.c.bf16 %v5105, %v5104
      %v5452 = vpack.c.bf16 %v5107, %v5106
      %v5453 = vpack.c.bf16 %v5109, %v5108
      %v5454 = vpack.c.bf16 %v5111, %v5110
      %v5455 = vpack.c.bf16 %v5113, %v5112
      %v5456 = vpack.c.bf16 %v5115, %v5114
      %v5457 = vpack.c.bf16 %v5117, %v5116
      %v5458 = vpack.c.bf16 %v5119, %v5118
      %v5459 = vpack.c.bf16 %v5121, %v5120
      %v5460 = vpack.c.bf16 %v5123, %v5122
      %v5461 = vpack.c.bf16 %v5125, %v5124
      %v5462 = vpack.c.bf16 %v5127, %v5126
      %v5463 = vpack.c.bf16 %v5129, %v5128
      %v5464 = vpack.c.bf16 %v5131, %v5130
      %v5465 = vpack.c.bf16 %v5133, %v5132
      %v5466 = vpack.c.bf16 %v5135, %v5134
      %v5467 = vpack.c.bf16 %v5137, %v5136
      %v5468 = vpack.c.bf16 %v5139, %v5138
      %v5469 = vpack.c.bf16 %v5141, %v5140
      %v5470 = vpack.c.bf16 %v5143, %v5142
      %v5471 = vpack.c.bf16 %v5145, %v5144
      %v5472 = vpack.c.bf16 %v5147, %v5146
      %v5473 = vpack.c.bf16 %v5149, %v5148
      %v5474 = vpack.c.bf16 %v5151, %v5150
      %v5475 = vpack.c.bf16 %v5153, %v5152
      %v5476 = vpack.c.bf16 %v5155, %v5154
      %v5477 = vpack.c.bf16 %v5157, %v5156
      %v5478 = vpack.c.bf16 %v5159, %v5158
      %v5479 = vpack.c.bf16 %v5161, %v5160
      %v5480 = vpack.c.bf16 %v5163, %v5162
      %v5481 = vpack.c.bf16 %v5165, %v5164
      %v5482 = vpack.c.bf16 %v5167, %v5166
      %v5483 = vpack.c.bf16 %v5169, %v5168
      %v5484 = vpack.c.bf16 %v5171, %v5170
      %v5485 = vpack.c.bf16 %v5173, %v5172
      %v5486 = vpack.c.bf16 %v5175, %v5174
      %v5487 = vpack.c.bf16 %v5177, %v5176
      %v5488 = vpack.c.bf16 %v5179, %v5178
      %v5489 = vpack.c.bf16 %v5181, %v5180
      %v5490 = vpack.c.bf16 %v5183, %v5182
      %v5491 = vpack.c.bf16 %v5185, %v5184
      %v5492 = vpack.c.bf16 %v5187, %v5186
      %v5493 = vpack.c.bf16 %v5189, %v5188
      %v5494 = vpack.c.bf16 %v5191, %v5190
      %v5495 = vpack.c.bf16 %v5193, %v5192
      %v5496 = vpack.c.bf16 %v5195, %v5194
      %v5497 = vpack.c.bf16 %v5197, %v5196
      %v5498 = vpack.c.bf16 %v5199, %v5198
      %v5499 = vpack.c.bf16 %v5201, %v5200
      %v5500 = vpack.c.bf16 %v5203, %v5202
      %v5501 = vpack.c.bf16 %v5205, %v5204
      %v5502 = vpack.c.bf16 %v5207, %v5206
      %v5503 = vpack.c.bf16 %v5209, %v5208
      %v5504 = vpack.c.bf16 %v5211, %v5210
      %v5505 = vpack.c.bf16 %v5213, %v5212
      %v5506 = vpack.c.bf16 %v5215, %v5214
      %v5507 = vpack.c.bf16 %v5217, %v5216
      %v5508 = vpack.c.bf16 %v5219, %v5218
      %v5509 = vpack.c.bf16 %v5221, %v5220
      %v5510 = vpack.c.bf16 %v5223, %v5222
      %v5511 = vpack.c.bf16 %v5225, %v5224
      %v5512 = vpack.c.bf16 %v5227, %v5226
      %v5513 = vpack.c.bf16 %v5229, %v5228
      %v5514 = vpack.c.bf16 %v5231, %v5230
      %v5515 = vpack.c.bf16 %v5233, %v5232
      %v5516 = vpack.c.bf16 %v5235, %v5234
      %v5517 = vpack.c.bf16 %v5237, %v5236
      %v5518 = vpack.c.bf16 %v5239, %v5238
      %v5519 = vpack.c.bf16 %v5241, %v5240
      %v5520 = vpack.c.bf16 %v5243, %v5242
      %v5521 = vpack.c.bf16 %v5245, %v5244
      %v5522 = vpack.c.bf16 %v5247, %v5246
      %v5523 = vpack.c.bf16 %v5249, %v5248
      %v5524 = vpack.c.bf16 %v5251, %v5250
      %v5525 = vpack.c.bf16 %v5253, %v5252
      %v5526 = vpack.c.bf16 %v5255, %v5254
      %v5527 = vpack.c.bf16 %v5257, %v5256
      %v5528 = vpack.c.bf16 %v5259, %v5258
      %v5529 = vpack.c.bf16 %v5261, %v5260
      %v5530 = vpack.c.bf16 %v5263, %v5262
      %v5531 = vpack.c.bf16 %v5265, %v5264
      %v5532 = vpack.c.bf16 %v5267, %v5266
      %v5533 = vpack.c.bf16 %v5269, %v5268
      %v5534 = vpack.c.bf16 %v5271, %v5270
      %v5535 = vpack.c.bf16 %v5273, %v5272
      %v5536 = vpack.c.bf16 %v5275, %v5274
      %v5537 = vpack.c.bf16 %v5277, %v5276
      %v5538 = vpack.c.bf16 %v5279, %v5278
      %v5539 = vpack.c.bf16 %v5281, %v5280
      %v5540 = vpack.c.bf16 %v5283, %v5282
      %v5541 = vpack.c.bf16 %v5285, %v5284
      %v5542 = vpack.c.bf16 %v5287, %v5286
      %v5543 = vpack.c.bf16 %v5289, %v5288
      %v5544 = vpack.c.bf16 %v5291, %v5290
      %v5545 = vpack.c.bf16 %v5292, %v5292
      %v5799 = vunpack.c.l.b16 %v5293
      %v5800 = vunpack.c.h.b16 %v5293
      %v5801 = vunpack.c.l.b16 %v5294
      %v5802 = vunpack.c.h.b16 %v5294
      %v5803 = vunpack.c.l.b16 %v5295
      %v5804 = vunpack.c.h.b16 %v5295
      %v5805 = vunpack.c.l.b16 %v5296
      %v5806 = vunpack.c.h.b16 %v5296
      %v5807 = vunpack.c.l.b16 %v5297
      %v5808 = vunpack.c.h.b16 %v5297
      %v5809 = vunpack.c.l.b16 %v5298
      %v5810 = vunpack.c.h.b16 %v5298
      %v5811 = vunpack.c.l.b16 %v5299
      %v5812 = vunpack.c.h.b16 %v5299
      %v5813 = vunpack.c.l.b16 %v5300
      %v5814 = vunpack.c.h.b16 %v5300
      %v5815 = vunpack.c.l.b16 %v5301
      %v5816 = vunpack.c.h.b16 %v5301
      %v5817 = vunpack.c.l.b16 %v5302
      %v5818 = vunpack.c.h.b16 %v5302
      %v5819 = vunpack.c.l.b16 %v5303
      %v5820 = vunpack.c.h.b16 %v5303
      %v5821 = vunpack.c.l.b16 %v5304
      %v5822 = vunpack.c.h.b16 %v5304
      %v5823 = vunpack.c.l.b16 %v5305
      %v5824 = vunpack.c.h.b16 %v5305
      %v5825 = vunpack.c.l.b16 %v5306
      %v5826 = vunpack.c.h.b16 %v5306
      %v5827 = vunpack.c.l.b16 %v5307
      %v5828 = vunpack.c.h.b16 %v5307
      %v5829 = vunpack.c.l.b16 %v5308
      %v5830 = vunpack.c.h.b16 %v5308
      %v5831 = vunpack.c.l.b16 %v5309
      %v5832 = vunpack.c.h.b16 %v5309
      %v5833 = vunpack.c.l.b16 %v5310
      %v5834 = vunpack.c.h.b16 %v5310
      %v5835 = vunpack.c.l.b16 %v5311
      %v5836 = vunpack.c.h.b16 %v5311
      %v5837 = vunpack.c.l.b16 %v5312
      %v5838 = vunpack.c.h.b16 %v5312
      %v5839 = vunpack.c.l.b16 %v5313
      %v5840 = vunpack.c.h.b16 %v5313
      %v5841 = vunpack.c.l.b16 %v5314
      %v5842 = vunpack.c.h.b16 %v5314
      %v5843 = vunpack.c.l.b16 %v5315
      %v5844 = vunpack.c.h.b16 %v5315
      %v5845 = vunpack.c.l.b16 %v5316
      %v5846 = vunpack.c.h.b16 %v5316
      %v5847 = vunpack.c.l.b16 %v5317
      %v5848 = vunpack.c.h.b16 %v5317
      %v5849 = vunpack.c.l.b16 %v5318
      %v5850 = vunpack.c.h.b16 %v5318
      %v5851 = vunpack.c.l.b16 %v5319
      %v5852 = vunpack.c.h.b16 %v5319
      %v5853 = vunpack.c.l.b16 %v5320
      %v5854 = vunpack.c.h.b16 %v5320
      %v5855 = vunpack.c.l.b16 %v5321
      %v5856 = vunpack.c.h.b16 %v5321
      %v5857 = vunpack.c.l.b16 %v5322
      %v5858 = vunpack.c.h.b16 %v5322
      %v5859 = vunpack.c.l.b16 %v5323
      %v5860 = vunpack.c.h.b16 %v5323
      %v5861 = vunpack.c.l.b16 %v5324
      %v5862 = vunpack.c.h.b16 %v5324
      %v5863 = vunpack.c.l.b16 %v5325
      %v5864 = vunpack.c.h.b16 %v5325
      %v5865 = vunpack.c.l.b16 %v5326
      %v5866 = vunpack.c.h.b16 %v5326
      %v5867 = vunpack.c.l.b16 %v5327
      %v5868 = vunpack.c.h.b16 %v5327
      %v5869 = vunpack.c.l.b16 %v5328
      %v5870 = vunpack.c.h.b16 %v5328
      %v5871 = vunpack.c.l.b16 %v5329
      %v5872 = vunpack.c.h.b16 %v5329
      %v5873 = vunpack.c.l.b16 %v5330
      %v5874 = vunpack.c.h.b16 %v5330
      %v5875 = vunpack.c.l.b16 %v5331
      %v5876 = vunpack.c.h.b16 %v5331
      %v5877 = vunpack.c.l.b16 %v5332
      %v5878 = vunpack.c.h.b16 %v5332
      %v5879 = vunpack.c.l.b16 %v5333
      %v5880 = vunpack.c.h.b16 %v5333
      %v5881 = vunpack.c.l.b16 %v5334
      %v5882 = vunpack.c.h.b16 %v5334
      %v5883 = vunpack.c.l.b16 %v5335
      %v5884 = vunpack.c.h.b16 %v5335
      %v5885 = vunpack.c.l.b16 %v5336
      %v5886 = vunpack.c.h.b16 %v5336
      %v5887 = vunpack.c.l.b16 %v5337
      %v5888 = vunpack.c.h.b16 %v5337
      %v5889 = vunpack.c.l.b16 %v5338
      %v5890 = vunpack.c.h.b16 %v5338
      %v5891 = vunpack.c.l.b16 %v5339
      %v5892 = vunpack.c.h.b16 %v5339
      %v5893 = vunpack.c.l.b16 %v5340
      %v5894 = vunpack.c.h.b16 %v5340
      %v5895 = vunpack.c.l.b16 %v5341
      %v5896 = vunpack.c.h.b16 %v5341
      %v5897 = vunpack.c.l.b16 %v5342
      %v5898 = vunpack.c.h.b16 %v5342
      %v5899 = vunpack.c.l.b16 %v5343
      %v5900 = vunpack.c.h.b16 %v5343
      %v5901 = vunpack.c.l.b16 %v5344
      %v5902 = vunpack.c.h.b16 %v5344
      %v5903 = vunpack.c.l.b16 %v5345
      %v5904 = vunpack.c.h.b16 %v5345
      %v5905 = vunpack.c.l.b16 %v5346
      %v5906 = vunpack.c.h.b16 %v5346
      %v5907 = vunpack.c.l.b16 %v5347
      %v5908 = vunpack.c.h.b16 %v5347
      %v5909 = vunpack.c.l.b16 %v5348
      %v5910 = vunpack.c.h.b16 %v5348
      %v5911 = vunpack.c.l.b16 %v5349
      %v5912 = vunpack.c.h.b16 %v5349
      %v5913 = vunpack.c.l.b16 %v5350
      %v5914 = vunpack.c.h.b16 %v5350
      %v5915 = vunpack.c.l.b16 %v5351
      %v5916 = vunpack.c.h.b16 %v5351
      %v5917 = vunpack.c.l.b16 %v5352
      %v5918 = vunpack.c.h.b16 %v5352
      %v5919 = vunpack.c.l.b16 %v5353
      %v5920 = vunpack.c.h.b16 %v5353
      %v5921 = vunpack.c.l.b16 %v5354
      %v5922 = vunpack.c.h.b16 %v5354
      %v5923 = vunpack.c.l.b16 %v5355
      %v5924 = vunpack.c.h.b16 %v5355
      %v5925 = vunpack.c.l.b16 %v5356
      %v5926 = vunpack.c.h.b16 %v5356
      %v5927 = vunpack.c.l.b16 %v5357
      %v5928 = vunpack.c.h.b16 %v5357
      %v5929 = vunpack.c.l.b16 %v5358
      %v5930 = vunpack.c.h.b16 %v5358
      %v5931 = vunpack.c.l.b16 %v5359
      %v5932 = vunpack.c.h.b16 %v5359
      %v5933 = vunpack.c.l.b16 %v5360
      %v5934 = vunpack.c.h.b16 %v5360
      %v5935 = vunpack.c.l.b16 %v5361
      %v5936 = vunpack.c.h.b16 %v5361
      %v5937 = vunpack.c.l.b16 %v5362
      %v5938 = vunpack.c.h.b16 %v5362
      %v5939 = vunpack.c.l.b16 %v5363
      %v5940 = vunpack.c.h.b16 %v5363
      %v5941 = vunpack.c.l.b16 %v5364
      %v5942 = vunpack.c.h.b16 %v5364
      %v5943 = vunpack.c.l.b16 %v5365
      %v5944 = vunpack.c.h.b16 %v5365
      %v5945 = vunpack.c.l.b16 %v5366
      %v5946 = vunpack.c.h.b16 %v5366
      %v5947 = vunpack.c.l.b16 %v5367
      %v5948 = vunpack.c.h.b16 %v5367
      %v5949 = vunpack.c.l.b16 %v5368
      %v5950 = vunpack.c.h.b16 %v5368
      %v5951 = vunpack.c.l.b16 %v5369
      %v5952 = vunpack.c.h.b16 %v5369
      %v5953 = vunpack.c.l.b16 %v5370
      %v5954 = vunpack.c.h.b16 %v5370
      %v5955 = vunpack.c.l.b16 %v5371
      %v5956 = vunpack.c.h.b16 %v5371
      %v5957 = vunpack.c.l.b16 %v5372
      %v5958 = vunpack.c.h.b16 %v5372
      %v5959 = vunpack.c.l.b16 %v5373
      %v5960 = vunpack.c.h.b16 %v5373
      %v5961 = vunpack.c.l.b16 %v5374
      %v5962 = vunpack.c.h.b16 %v5374
      %v5963 = vunpack.c.l.b16 %v5375
      %v5964 = vunpack.c.h.b16 %v5375
      %v5965 = vunpack.c.l.b16 %v5376
      %v5966 = vunpack.c.h.b16 %v5376
      %v5967 = vunpack.c.l.b16 %v5377
      %v5968 = vunpack.c.h.b16 %v5377
      %v5969 = vunpack.c.l.b16 %v5378
      %v5970 = vunpack.c.h.b16 %v5378
      %v5971 = vunpack.c.l.b16 %v5379
      %v5972 = vunpack.c.h.b16 %v5379
      %v5973 = vunpack.c.l.b16 %v5380
      %v5974 = vunpack.c.h.b16 %v5380
      %v5975 = vunpack.c.l.b16 %v5381
      %v5976 = vunpack.c.h.b16 %v5381
      %v5977 = vunpack.c.l.b16 %v5382
      %v5978 = vunpack.c.h.b16 %v5382
      %v5979 = vunpack.c.l.b16 %v5383
      %v5980 = vunpack.c.h.b16 %v5383
      %v5981 = vunpack.c.l.b16 %v5384
      %v5982 = vunpack.c.h.b16 %v5384
      %v5983 = vunpack.c.l.b16 %v5385
      %v5984 = vunpack.c.h.b16 %v5385
      %v5985 = vunpack.c.l.b16 %v5386
      %v5986 = vunpack.c.h.b16 %v5386
      %v5987 = vunpack.c.l.b16 %v5387
      %v5988 = vunpack.c.h.b16 %v5387
      %v5989 = vunpack.c.l.b16 %v5388
      %v5990 = vunpack.c.h.b16 %v5388
      %v5991 = vunpack.c.l.b16 %v5389
      %v5992 = vunpack.c.h.b16 %v5389
      %v5993 = vunpack.c.l.b16 %v5390
      %v5994 = vunpack.c.h.b16 %v5390
      %v5995 = vunpack.c.l.b16 %v5391
      %v5996 = vunpack.c.h.b16 %v5391
      %v5997 = vunpack.c.l.b16 %v5392
      %v5998 = vunpack.c.h.b16 %v5392
      %v5999 = vunpack.c.l.b16 %v5393
      %v6000 = vunpack.c.h.b16 %v5393
      %v6001 = vunpack.c.l.b16 %v5394
      %v6002 = vunpack.c.h.b16 %v5394
      %v6003 = vunpack.c.l.b16 %v5395
      %v6004 = vunpack.c.h.b16 %v5395
      %v6005 = vunpack.c.l.b16 %v5396
      %v6006 = vunpack.c.h.b16 %v5396
      %v6007 = vunpack.c.l.b16 %v5397
      %v6008 = vunpack.c.h.b16 %v5397
      %v6009 = vunpack.c.l.b16 %v5398
      %v6010 = vunpack.c.h.b16 %v5398
      %v6011 = vunpack.c.l.b16 %v5399
      %v6012 = vunpack.c.h.b16 %v5399
      %v6013 = vunpack.c.l.b16 %v5400
      %v6014 = vunpack.c.h.b16 %v5400
      %v6015 = vunpack.c.l.b16 %v5401
      %v6016 = vunpack.c.h.b16 %v5401
      %v6017 = vunpack.c.l.b16 %v5402
      %v6018 = vunpack.c.h.b16 %v5402
      %v6019 = vunpack.c.l.b16 %v5403
      %v6020 = vunpack.c.h.b16 %v5403
      %v6021 = vunpack.c.l.b16 %v5404
      %v6022 = vunpack.c.h.b16 %v5404
      %v6023 = vunpack.c.l.b16 %v5405
      %v6024 = vunpack.c.h.b16 %v5405
      %v6025 = vunpack.c.l.b16 %v5406
      %v6026 = vunpack.c.h.b16 %v5406
      %v6027 = vunpack.c.l.b16 %v5407
      %v6028 = vunpack.c.h.b16 %v5407
      %v6029 = vunpack.c.l.b16 %v5408
      %v6030 = vunpack.c.h.b16 %v5408
      %v6031 = vunpack.c.l.b16 %v5409
      %v6032 = vunpack.c.h.b16 %v5409
      %v6033 = vunpack.c.l.b16 %v5410
      %v6034 = vunpack.c.h.b16 %v5410
      %v6035 = vunpack.c.l.b16 %v5411
      %v6036 = vunpack.c.h.b16 %v5411
      %v6037 = vunpack.c.l.b16 %v5412
      %v6038 = vunpack.c.h.b16 %v5412
      %v6039 = vunpack.c.l.b16 %v5413
      %v6040 = vunpack.c.h.b16 %v5413
      %v6041 = vunpack.c.l.b16 %v5414
      %v6042 = vunpack.c.h.b16 %v5414
      %v6043 = vunpack.c.l.b16 %v5415
      %v6044 = vunpack.c.h.b16 %v5415
      %v6045 = vunpack.c.l.b16 %v5416
      %v6046 = vunpack.c.h.b16 %v5416
      %v6047 = vunpack.c.l.b16 %v5417
      %v6048 = vunpack.c.h.b16 %v5417
      %v6049 = vunpack.c.l.b16 %v5418
      %v6050 = vunpack.c.h.b16 %v5418
      %v6051 = vunpack.c.l.b16 %v5419
      %v6052 = vunpack.c.h.b16 %v5419
      %v6053 = vunpack.c.l.b16 %v5420
      %v6054 = vunpack.c.h.b16 %v5420
      %v6055 = vunpack.c.l.b16 %v5421
      %v6056 = vunpack.c.h.b16 %v5421
      %v6057 = vunpack.c.l.b16 %v5422
      %v6058 = vunpack.c.h.b16 %v5422
      %v6059 = vunpack.c.l.b16 %v5423
      %v6060 = vunpack.c.h.b16 %v5423
      %v6061 = vunpack.c.l.b16 %v5424
      %v6062 = vunpack.c.h.b16 %v5424
      %v6063 = vunpack.c.l.b16 %v5425
      %v6064 = vunpack.c.h.b16 %v5425
      %v6065 = vunpack.c.l.b16 %v5426
      %v6066 = vunpack.c.h.b16 %v5426
      %v6067 = vunpack.c.l.b16 %v5427
      %v6068 = vunpack.c.h.b16 %v5427
      %v6069 = vunpack.c.l.b16 %v5428
      %v6070 = vunpack.c.h.b16 %v5428
      %v6071 = vunpack.c.l.b16 %v5429
      %v6072 = vunpack.c.h.b16 %v5429
      %v6073 = vunpack.c.l.b16 %v5430
      %v6074 = vunpack.c.h.b16 %v5430
      %v6075 = vunpack.c.l.b16 %v5431
      %v6076 = vunpack.c.h.b16 %v5431
      %v6077 = vunpack.c.l.b16 %v5432
      %v6078 = vunpack.c.h.b16 %v5432
      %v6079 = vunpack.c.l.b16 %v5433
      %v6080 = vunpack.c.h.b16 %v5433
      %v6081 = vunpack.c.l.b16 %v5434
      %v6082 = vunpack.c.h.b16 %v5434
      %v6083 = vunpack.c.l.b16 %v5435
      %v6084 = vunpack.c.h.b16 %v5435
      %v6085 = vunpack.c.l.b16 %v5436
      %v6086 = vunpack.c.h.b16 %v5436
      %v6087 = vunpack.c.l.b16 %v5437
      %v6088 = vunpack.c.h.b16 %v5437
      %v6089 = vunpack.c.l.b16 %v5438
      %v6090 = vunpack.c.h.b16 %v5438
      %v6091 = vunpack.c.l.b16 %v5439
      %v6092 = vunpack.c.h.b16 %v5439
      %v6093 = vunpack.c.l.b16 %v5440
      %v6094 = vunpack.c.h.b16 %v5440
      %v6095 = vunpack.c.l.b16 %v5441
      %v6096 = vunpack.c.h.b16 %v5441
      %v6097 = vunpack.c.l.b16 %v5442
      %v6098 = vunpack.c.h.b16 %v5442
      %v6099 = vunpack.c.l.b16 %v5443
      %v6100 = vunpack.c.h.b16 %v5443
      %v6101 = vunpack.c.l.b16 %v5444
      %v6102 = vunpack.c.h.b16 %v5444
      %v6103 = vunpack.c.l.b16 %v5445
      %v6104 = vunpack.c.h.b16 %v5445
      %v6105 = vunpack.c.l.b16 %v5446
      %v6106 = vunpack.c.h.b16 %v5446
      %v6107 = vunpack.c.l.b16 %v5447
      %v6108 = vunpack.c.h.b16 %v5447
      %v6109 = vunpack.c.l.b16 %v5448
      %v6110 = vunpack.c.h.b16 %v5448
      %v6111 = vunpack.c.l.b16 %v5449
      %v6112 = vunpack.c.h.b16 %v5449
      %v6113 = vunpack.c.l.b16 %v5450
      %v6114 = vunpack.c.h.b16 %v5450
      %v6115 = vunpack.c.l.b16 %v5451
      %v6116 = vunpack.c.h.b16 %v5451
      %v6117 = vunpack.c.l.b16 %v5452
      %v6118 = vunpack.c.h.b16 %v5452
      %v6119 = vunpack.c.l.b16 %v5453
      %v6120 = vunpack.c.h.b16 %v5453
      %v6121 = vunpack.c.l.b16 %v5454
      %v6122 = vunpack.c.h.b16 %v5454
      %v6123 = vunpack.c.l.b16 %v5455
      %v6124 = vunpack.c.h.b16 %v5455
      %v6125 = vunpack.c.l.b16 %v5456
      %v6126 = vunpack.c.h.b16 %v5456
      %v6127 = vunpack.c.l.b16 %v5457
      %v6128 = vunpack.c.h.b16 %v5457
      %v6129 = vunpack.c.l.b16 %v5458
      %v6130 = vunpack.c.h.b16 %v5458
      %v6131 = vunpack.c.l.b16 %v5459
      %v6132 = vunpack.c.h.b16 %v5459
      %v6133 = vunpack.c.l.b16 %v5460
      %v6134 = vunpack.c.h.b16 %v5460
      %v6135 = vunpack.c.l.b16 %v5461
      %v6136 = vunpack.c.h.b16 %v5461
      %v6137 = vunpack.c.l.b16 %v5462
      %v6138 = vunpack.c.h.b16 %v5462
      %v6139 = vunpack.c.l.b16 %v5463
      %v6140 = vunpack.c.h.b16 %v5463
      %v6141 = vunpack.c.l.b16 %v5464
      %v6142 = vunpack.c.h.b16 %v5464
      %v6143 = vunpack.c.l.b16 %v5465
      %v6144 = vunpack.c.h.b16 %v5465
      %v6145 = vunpack.c.l.b16 %v5466
      %v6146 = vunpack.c.h.b16 %v5466
      %v6147 = vunpack.c.l.b16 %v5467
      %v6148 = vunpack.c.h.b16 %v5467
      %v6149 = vunpack.c.l.b16 %v5468
      %v6150 = vunpack.c.h.b16 %v5468
      %v6151 = vunpack.c.l.b16 %v5469
      %v6152 = vunpack.c.h.b16 %v5469
      %v6153 = vunpack.c.l.b16 %v5470
      %v6154 = vunpack.c.h.b16 %v5470
      %v6155 = vunpack.c.l.b16 %v5471
      %v6156 = vunpack.c.h.b16 %v5471
      %v6157 = vunpack.c.l.b16 %v5472
      %v6158 = vunpack.c.h.b16 %v5472
      %v6159 = vunpack.c.l.b16 %v5473
      %v6160 = vunpack.c.h.b16 %v5473
      %v6161 = vunpack.c.l.b16 %v5474
      %v6162 = vunpack.c.h.b16 %v5474
      %v6163 = vunpack.c.l.b16 %v5475
      %v6164 = vunpack.c.h.b16 %v5475
      %v6165 = vunpack.c.l.b16 %v5476
      %v6166 = vunpack.c.h.b16 %v5476
      %v6167 = vunpack.c.l.b16 %v5477
      %v6168 = vunpack.c.h.b16 %v5477
      %v6169 = vunpack.c.l.b16 %v5478
      %v6170 = vunpack.c.h.b16 %v5478
      %v6171 = vunpack.c.l.b16 %v5479
      %v6172 = vunpack.c.h.b16 %v5479
      %v6173 = vunpack.c.l.b16 %v5480
      %v6174 = vunpack.c.h.b16 %v5480
      %v6175 = vunpack.c.l.b16 %v5481
      %v6176 = vunpack.c.h.b16 %v5481
      %v6177 = vunpack.c.l.b16 %v5482
      %v6178 = vunpack.c.h.b16 %v5482
      %v6179 = vunpack.c.l.b16 %v5483
      %v6180 = vunpack.c.h.b16 %v5483
      %v6181 = vunpack.c.l.b16 %v5484
      %v6182 = vunpack.c.h.b16 %v5484
      %v6183 = vunpack.c.l.b16 %v5485
      %v6184 = vunpack.c.h.b16 %v5485
      %v6185 = vunpack.c.l.b16 %v5486
      %v6186 = vunpack.c.h.b16 %v5486
      %v6187 = vunpack.c.l.b16 %v5487
      %v6188 = vunpack.c.h.b16 %v5487
      %v6189 = vunpack.c.l.b16 %v5488
      %v6190 = vunpack.c.h.b16 %v5488
      %v6191 = vunpack.c.l.b16 %v5489
      %v6192 = vunpack.c.h.b16 %v5489
      %v6193 = vunpack.c.l.b16 %v5490
      %v6194 = vunpack.c.h.b16 %v5490
      %v6195 = vunpack.c.l.b16 %v5491
      %v6196 = vunpack.c.h.b16 %v5491
      %v6197 = vunpack.c.l.b16 %v5492
      %v6198 = vunpack.c.h.b16 %v5492
      %v6199 = vunpack.c.l.b16 %v5493
      %v6200 = vunpack.c.h.b16 %v5493
      %v6201 = vunpack.c.l.b16 %v5494
      %v6202 = vunpack.c.h.b16 %v5494
      %v6203 = vunpack.c.l.b16 %v5495
      %v6204 = vunpack.c.h.b16 %v5495
      %v6205 = vunpack.c.l.b16 %v5496
      %v6206 = vunpack.c.h.b16 %v5496
      %v6207 = vunpack.c.l.b16 %v5497
      %v6208 = vunpack.c.h.b16 %v5497
      %v6209 = vunpack.c.l.b16 %v5498
      %v6210 = vunpack.c.h.b16 %v5498
      %v6211 = vunpack.c.l.b16 %v5499
      %v6212 = vunpack.c.h.b16 %v5499
      %v6213 = vunpack.c.l.b16 %v5500
      %v6214 = vunpack.c.h.b16 %v5500
      %v6215 = vunpack.c.l.b16 %v5501
      %v6216 = vunpack.c.h.b16 %v5501
      %v6217 = vunpack.c.l.b16 %v5502
      %v6218 = vunpack.c.h.b16 %v5502
      %v6219 = vunpack.c.l.b16 %v5503
      %v6220 = vunpack.c.h.b16 %v5503
      %v6221 = vunpack.c.l.b16 %v5504
      %v6222 = vunpack.c.h.b16 %v5504
      %v6223 = vunpack.c.l.b16 %v5505
      %v6224 = vunpack.c.h.b16 %v5505
      %v6225 = vunpack.c.l.b16 %v5506
      %v6226 = vunpack.c.h.b16 %v5506
      %v6227 = vunpack.c.l.b16 %v5507
      %v6228 = vunpack.c.h.b16 %v5507
      %v6229 = vunpack.c.l.b16 %v5508
      %v6230 = vunpack.c.h.b16 %v5508
      %v6231 = vunpack.c.l.b16 %v5509
      %v6232 = vunpack.c.h.b16 %v5509
      %v6233 = vunpack.c.l.b16 %v5510
      %v6234 = vunpack.c.h.b16 %v5510
      %v6235 = vunpack.c.l.b16 %v5511
      %v6236 = vunpack.c.h.b16 %v5511
      %v6237 = vunpack.c.l.b16 %v5512
      %v6238 = vunpack.c.h.b16 %v5512
      %v6239 = vunpack.c.l.b16 %v5513
      %v6240 = vunpack.c.h.b16 %v5513
      %v6241 = vunpack.c.l.b16 %v5514
      %v6242 = vunpack.c.h.b16 %v5514
      %v6243 = vunpack.c.l.b16 %v5515
      %v6244 = vunpack.c.h.b16 %v5515
      %v6245 = vunpack.c.l.b16 %v5516
      %v6246 = vunpack.c.h.b16 %v5516
      %v6247 = vunpack.c.l.b16 %v5517
      %v6248 = vunpack.c.h.b16 %v5517
      %v6249 = vunpack.c.l.b16 %v5518
      %v6250 = vunpack.c.h.b16 %v5518
      %v6251 = vunpack.c.l.b16 %v5519
      %v6252 = vunpack.c.h.b16 %v5519
      %v6253 = vunpack.c.l.b16 %v5520
      %v6254 = vunpack.c.h.b16 %v5520
      %v6255 = vunpack.c.l.b16 %v5521
      %v6256 = vunpack.c.h.b16 %v5521
      %v6257 = vunpack.c.l.b16 %v5522
      %v6258 = vunpack.c.h.b16 %v5522
      %v6259 = vunpack.c.l.b16 %v5523
      %v6260 = vunpack.c.h.b16 %v5523
      %v6261 = vunpack.c.l.b16 %v5524
      %v6262 = vunpack.c.h.b16 %v5524
      %v6263 = vunpack.c.l.b16 %v5525
      %v6264 = vunpack.c.h.b16 %v5525
      %v6265 = vunpack.c.l.b16 %v5526
      %v6266 = vunpack.c.h.b16 %v5526
      %v6267 = vunpack.c.l.b16 %v5527
      %v6268 = vunpack.c.h.b16 %v5527
      %v6269 = vunpack.c.l.b16 %v5528
      %v6270 = vunpack.c.h.b16 %v5528
      %v6271 = vunpack.c.l.b16 %v5529
      %v6272 = vunpack.c.h.b16 %v5529
      %v6273 = vunpack.c.l.b16 %v5530
      %v6274 = vunpack.c.h.b16 %v5530
      %v6275 = vunpack.c.l.b16 %v5531
      %v6276 = vunpack.c.h.b16 %v5531
      %v6277 = vunpack.c.l.b16 %v5532
      %v6278 = vunpack.c.h.b16 %v5532
      %v6279 = vunpack.c.l.b16 %v5533
      %v6280 = vunpack.c.h.b16 %v5533
      %v6281 = vunpack.c.l.b16 %v5534
      %v6282 = vunpack.c.h.b16 %v5534
      %v6283 = vunpack.c.l.b16 %v5535
      %v6284 = vunpack.c.h.b16 %v5535
      %v6285 = vunpack.c.l.b16 %v5536
      %v6286 = vunpack.c.h.b16 %v5536
      %v6287 = vunpack.c.l.b16 %v5537
      %v6288 = vunpack.c.h.b16 %v5537
      %v6289 = vunpack.c.l.b16 %v5538
      %v6290 = vunpack.c.h.b16 %v5538
      %v6291 = vunpack.c.l.b16 %v5539
      %v6292 = vunpack.c.h.b16 %v5539
      %v6293 = vunpack.c.l.b16 %v5540
      %v6294 = vunpack.c.h.b16 %v5540
      %v6295 = vunpack.c.l.b16 %v5541
      %v6296 = vunpack.c.h.b16 %v5541
      %v6297 = vunpack.c.l.b16 %v5542
      %v6298 = vunpack.c.h.b16 %v5542
      %v6299 = vunpack.c.l.b16 %v5543
      %v6300 = vunpack.c.h.b16 %v5543
      %v6301 = vunpack.c.l.b16 %v5544
      %v6302 = vunpack.c.h.b16 %v5544
      %v6303 = vunpack.c.l.b16 %v5545
      %v6304 = vpack.c.b16 %v5799, %v5799
      %v6305 = vpack.c.b16 %v5800, %v5800
      %v6306 = vpack.c.b16 %v5801, %v5801
      %v6307 = vpack.c.b16 %v5802, %v5802
      %v6308 = vpack.c.b16 %v5803, %v5803
      %v6309 = vpack.c.b16 %v5804, %v5804
      %v6310 = vpack.c.b16 %v5805, %v5805
      %v6311 = vpack.c.b16 %v5806, %v5806
      %v6312 = vpack.c.b16 %v5807, %v5807
      %v6313 = vpack.c.b16 %v5808, %v5808
      %v6314 = vpack.c.b16 %v5809, %v5809
      %v6315 = vpack.c.b16 %v5810, %v5810
      %v6316 = vpack.c.b16 %v5811, %v5811
      %v6317 = vpack.c.b16 %v5812, %v5812
      %v6318 = vpack.c.b16 %v5813, %v5813
      %v6319 = vpack.c.b16 %v5814, %v5814
      %v6320 = vpack.c.b16 %v5815, %v5815
      %v6321 = vpack.c.b16 %v5816, %v5816
      %v6322 = vpack.c.b16 %v5817, %v5817
      %v6323 = vpack.c.b16 %v5818, %v5818
      %v6324 = vpack.c.b16 %v5819, %v5819
      %v6325 = vpack.c.b16 %v5820, %v5820
      %v6326 = vpack.c.b16 %v5821, %v5821
      %v6327 = vpack.c.b16 %v5822, %v5822
      %v6328 = vpack.c.b16 %v5823, %v5823
      %v6329 = vpack.c.b16 %v5824, %v5824
      %v6330 = vpack.c.b16 %v5825, %v5825
      %v6331 = vpack.c.b16 %v5826, %v5826
      %v6332 = vpack.c.b16 %v5827, %v5827
      %v6333 = vpack.c.b16 %v5828, %v5828
      %v6334 = vpack.c.b16 %v5829, %v5829
      %v6335 = vpack.c.b16 %v5830, %v5830
      %v6336 = vpack.c.b16 %v5831, %v5831
      %v6337 = vpack.c.b16 %v5832, %v5832
      %v6338 = vpack.c.b16 %v5833, %v5833
      %v6339 = vpack.c.b16 %v5834, %v5834
      %v6340 = vpack.c.b16 %v5835, %v5835
      %v6341 = vpack.c.b16 %v5836, %v5836
      %v6342 = vpack.c.b16 %v5837, %v5837
      %v6343 = vpack.c.b16 %v5838, %v5838
      %v6344 = vpack.c.b16 %v5839, %v5839
      %v6345 = vpack.c.b16 %v5840, %v5840
      %v6346 = vpack.c.b16 %v5841, %v5841
      %v6347 = vpack.c.b16 %v5842, %v5842
      %v6348 = vpack.c.b16 %v5843, %v5843
      %v6349 = vpack.c.b16 %v5844, %v5844
      %v6350 = vpack.c.b16 %v5845, %v5845
      %v6351 = vpack.c.b16 %v5846, %v5846
      %v6352 = vpack.c.b16 %v5847, %v5847
      %v6353 = vpack.c.b16 %v5848, %v5848
      %v6354 = vpack.c.b16 %v5849, %v5849
      %v6355 = vpack.c.b16 %v5850, %v5850
      %v6356 = vpack.c.b16 %v5851, %v5851
      %v6357 = vpack.c.b16 %v5852, %v5852
      %v6358 = vpack.c.b16 %v5853, %v5853
      %v6359 = vpack.c.b16 %v5854, %v5854
      %v6360 = vpack.c.b16 %v5855, %v5855
      %v6361 = vpack.c.b16 %v5856, %v5856
      %v6362 = vpack.c.b16 %v5857, %v5857
      %v6363 = vpack.c.b16 %v5858, %v5858
      %v6364 = vpack.c.b16 %v5859, %v5859
      %v6365 = vpack.c.b16 %v5860, %v5860
      %v6366 = vpack.c.b16 %v5861, %v5861
      %v6367 = vpack.c.b16 %v5862, %v5862
      %v6368 = vpack.c.b16 %v5863, %v5863
      %v6369 = vpack.c.b16 %v5864, %v5864
      %v6370 = vpack.c.b16 %v5865, %v5865
      %v6371 = vpack.c.b16 %v5866, %v5866
      %v6372 = vpack.c.b16 %v5867, %v5867
      %v6373 = vpack.c.b16 %v5868, %v5868
      %v6374 = vpack.c.b16 %v5869, %v5869
      %v6375 = vpack.c.b16 %v5870, %v5870
      %v6376 = vpack.c.b16 %v5871, %v5871
      %v6377 = vpack.c.b16 %v5872, %v5872
      %v6378 = vpack.c.b16 %v5873, %v5873
      %v6379 = vpack.c.b16 %v5874, %v5874
      %v6380 = vpack.c.b16 %v5875, %v5875
      %v6381 = vpack.c.b16 %v5876, %v5876
      %v6382 = vpack.c.b16 %v5877, %v5877
      %v6383 = vpack.c.b16 %v5878, %v5878
      %v6384 = vpack.c.b16 %v5879, %v5879
      %v6385 = vpack.c.b16 %v5880, %v5880
      %v6386 = vpack.c.b16 %v5881, %v5881
      %v6387 = vpack.c.b16 %v5882, %v5882
      %v6388 = vpack.c.b16 %v5883, %v5883
      %v6389 = vpack.c.b16 %v5884, %v5884
      %v6390 = vpack.c.b16 %v5885, %v5885
      %v6391 = vpack.c.b16 %v5886, %v5886
      %v6392 = vpack.c.b16 %v5887, %v5887
      %v6393 = vpack.c.b16 %v5888, %v5888
      %v6394 = vpack.c.b16 %v5889, %v5889
      %v6395 = vpack.c.b16 %v5890, %v5890
      %v6396 = vpack.c.b16 %v5891, %v5891
      %v6397 = vpack.c.b16 %v5892, %v5892
      %v6398 = vpack.c.b16 %v5893, %v5893
      %v6399 = vpack.c.b16 %v5894, %v5894
      %v6400 = vpack.c.b16 %v5895, %v5895
      %v6401 = vpack.c.b16 %v5896, %v5896
      %v6402 = vpack.c.b16 %v5897, %v5897
      %v6403 = vpack.c.b16 %v5898, %v5898
      %v6404 = vpack.c.b16 %v5899, %v5899
      %v6405 = vpack.c.b16 %v5900, %v5900
      %v6406 = vpack.c.b16 %v5901, %v5901
      %v6407 = vpack.c.b16 %v5902, %v5902
      %v6408 = vpack.c.b16 %v5903, %v5903
      %v6409 = vpack.c.b16 %v5904, %v5904
      %v6410 = vpack.c.b16 %v5905, %v5905
      %v6411 = vpack.c.b16 %v5906, %v5906
      %v6412 = vpack.c.b16 %v5907, %v5907
      %v6413 = vpack.c.b16 %v5908, %v5908
      %v6414 = vpack.c.b16 %v5909, %v5909
      %v6415 = vpack.c.b16 %v5910, %v5910
      %v6416 = vpack.c.b16 %v5911, %v5911
      %v6417 = vpack.c.b16 %v5912, %v5912
      %v6418 = vpack.c.b16 %v5913, %v5913
      %v6419 = vpack.c.b16 %v5914, %v5914
      %v6420 = vpack.c.b16 %v5915, %v5915
      %v6421 = vpack.c.b16 %v5916, %v5916
      %v6422 = vpack.c.b16 %v5917, %v5917
      %v6423 = vpack.c.b16 %v5918, %v5918
      %v6424 = vpack.c.b16 %v5919, %v5919
      %v6425 = vpack.c.b16 %v5920, %v5920
      %v6426 = vpack.c.b16 %v5921, %v5921
      %v6427 = vpack.c.b16 %v5922, %v5922
      %v6428 = vpack.c.b16 %v5923, %v5923
      %v6429 = vpack.c.b16 %v5924, %v5924
      %v6430 = vpack.c.b16 %v5925, %v5925
      %v6431 = vpack.c.b16 %v5926, %v5926
      %v6432 = vpack.c.b16 %v5927, %v5927
      %v6433 = vpack.c.b16 %v5928, %v5928
      %v6434 = vpack.c.b16 %v5929, %v5929
      %v6435 = vpack.c.b16 %v5930, %v5930
      %v6436 = vpack.c.b16 %v5931, %v5931
      %v6437 = vpack.c.b16 %v5932, %v5932
      %v6438 = vpack.c.b16 %v5933, %v5933
      %v6439 = vpack.c.b16 %v5934, %v5934
      %v6440 = vpack.c.b16 %v5935, %v5935
      %v6441 = vpack.c.b16 %v5936, %v5936
      %v6442 = vpack.c.b16 %v5937, %v5937
      %v6443 = vpack.c.b16 %v5938, %v5938
      %v6444 = vpack.c.b16 %v5939, %v5939
      %v6445 = vpack.c.b16 %v5940, %v5940
      %v6446 = vpack.c.b16 %v5941, %v5941
      %v6447 = vpack.c.b16 %v5942, %v5942
      %v6448 = vpack.c.b16 %v5943, %v5943
      %v6449 = vpack.c.b16 %v5944, %v5944
      %v6450 = vpack.c.b16 %v5945, %v5945
      %v6451 = vpack.c.b16 %v5946, %v5946
      %v6452 = vpack.c.b16 %v5947, %v5947
      %v6453 = vpack.c.b16 %v5948, %v5948
      %v6454 = vpack.c.b16 %v5949, %v5949
      %v6455 = vpack.c.b16 %v5950, %v5950
      %v6456 = vpack.c.b16 %v5951, %v5951
      %v6457 = vpack.c.b16 %v5952, %v5952
      %v6458 = vpack.c.b16 %v5953, %v5953
      %v6459 = vpack.c.b16 %v5954, %v5954
      %v6460 = vpack.c.b16 %v5955, %v5955
      %v6461 = vpack.c.b16 %v5956, %v5956
      %v6462 = vpack.c.b16 %v5957, %v5957
      %v6463 = vpack.c.b16 %v5958, %v5958
      %v6464 = vpack.c.b16 %v5959, %v5959
      %v6465 = vpack.c.b16 %v5960, %v5960
      %v6466 = vpack.c.b16 %v5961, %v5961
      %v6467 = vpack.c.b16 %v5962, %v5962
      %v6468 = vpack.c.b16 %v5963, %v5963
      %v6469 = vpack.c.b16 %v5964, %v5964
      %v6470 = vpack.c.b16 %v5965, %v5965
      %v6471 = vpack.c.b16 %v5966, %v5966
      %v6472 = vpack.c.b16 %v5967, %v5967
      %v6473 = vpack.c.b16 %v5968, %v5968
      %v6474 = vpack.c.b16 %v5969, %v5969
      %v6475 = vpack.c.b16 %v5970, %v5970
      %v6476 = vpack.c.b16 %v5971, %v5971
      %v6477 = vpack.c.b16 %v5972, %v5972
      %v6478 = vpack.c.b16 %v5973, %v5973
      %v6479 = vpack.c.b16 %v5974, %v5974
      %v6480 = vpack.c.b16 %v5975, %v5975
      %v6481 = vpack.c.b16 %v5976, %v5976
      %v6482 = vpack.c.b16 %v5977, %v5977
      %v6483 = vpack.c.b16 %v5978, %v5978
      %v6484 = vpack.c.b16 %v5979, %v5979
      %v6485 = vpack.c.b16 %v5980, %v5980
      %v6486 = vpack.c.b16 %v5981, %v5981
      %v6487 = vpack.c.b16 %v5982, %v5982
      %v6488 = vpack.c.b16 %v5983, %v5983
      %v6489 = vpack.c.b16 %v5984, %v5984
      %v6490 = vpack.c.b16 %v5985, %v5985
      %v6491 = vpack.c.b16 %v5986, %v5986
      %v6492 = vpack.c.b16 %v5987, %v5987
      %v6493 = vpack.c.b16 %v5988, %v5988
      %v6494 = vpack.c.b16 %v5989, %v5989
      %v6495 = vpack.c.b16 %v5990, %v5990
      %v6496 = vpack.c.b16 %v5991, %v5991
      %v6497 = vpack.c.b16 %v5992, %v5992
      %v6498 = vpack.c.b16 %v5993, %v5993
      %v6499 = vpack.c.b16 %v5994, %v5994
      %v6500 = vpack.c.b16 %v5995, %v5995
      %v6501 = vpack.c.b16 %v5996, %v5996
      %v6502 = vpack.c.b16 %v5997, %v5997
      %v6503 = vpack.c.b16 %v5998, %v5998
      %v6504 = vpack.c.b16 %v5999, %v5999
      %v6505 = vpack.c.b16 %v6000, %v6000
      %v6506 = vpack.c.b16 %v6001, %v6001
      %v6507 = vpack.c.b16 %v6002, %v6002
      %v6508 = vpack.c.b16 %v6003, %v6003
      %v6509 = vpack.c.b16 %v6004, %v6004
      %v6510 = vpack.c.b16 %v6005, %v6005
      %v6511 = vpack.c.b16 %v6006, %v6006
      %v6512 = vpack.c.b16 %v6007, %v6007
      %v6513 = vpack.c.b16 %v6008, %v6008
      %v6514 = vpack.c.b16 %v6009, %v6009
      %v6515 = vpack.c.b16 %v6010, %v6010
      %v6516 = vpack.c.b16 %v6011, %v6011
      %v6517 = vpack.c.b16 %v6012, %v6012
      %v6518 = vpack.c.b16 %v6013, %v6013
      %v6519 = vpack.c.b16 %v6014, %v6014
      %v6520 = vpack.c.b16 %v6015, %v6015
      %v6521 = vpack.c.b16 %v6016, %v6016
      %v6522 = vpack.c.b16 %v6017, %v6017
      %v6523 = vpack.c.b16 %v6018, %v6018
      %v6524 = vpack.c.b16 %v6019, %v6019
      %v6525 = vpack.c.b16 %v6020, %v6020
      %v6526 = vpack.c.b16 %v6021, %v6021
      %v6527 = vpack.c.b16 %v6022, %v6022
      %v6528 = vpack.c.b16 %v6023, %v6023
      %v6529 = vpack.c.b16 %v6024, %v6024
      %v6530 = vpack.c.b16 %v6025, %v6025
      %v6531 = vpack.c.b16 %v6026, %v6026
      %v6532 = vpack.c.b16 %v6027, %v6027
      %v6533 = vpack.c.b16 %v6028, %v6028
      %v6534 = vpack.c.b16 %v6029, %v6029
      %v6535 = vpack.c.b16 %v6030, %v6030
      %v6536 = vpack.c.b16 %v6031, %v6031
      %v6537 = vpack.c.b16 %v6032, %v6032
      %v6538 = vpack.c.b16 %v6033, %v6033
      %v6539 = vpack.c.b16 %v6034, %v6034
      %v6540 = vpack.c.b16 %v6035, %v6035
      %v6541 = vpack.c.b16 %v6036, %v6036
      %v6542 = vpack.c.b16 %v6037, %v6037
      %v6543 = vpack.c.b16 %v6038, %v6038
      %v6544 = vpack.c.b16 %v6039, %v6039
      %v6545 = vpack.c.b16 %v6040, %v6040
      %v6546 = vpack.c.b16 %v6041, %v6041
      %v6547 = vpack.c.b16 %v6042, %v6042
      %v6548 = vpack.c.b16 %v6043, %v6043
      %v6549 = vpack.c.b16 %v6044, %v6044
      %v6550 = vpack.c.b16 %v6045, %v6045
      %v6551 = vpack.c.b16 %v6046, %v6046
      %v6552 = vpack.c.b16 %v6047, %v6047
      %v6553 = vpack.c.b16 %v6048, %v6048
      %v6554 = vpack.c.b16 %v6049, %v6049
      %v6555 = vpack.c.b16 %v6050, %v6050
      %v6556 = vpack.c.b16 %v6051, %v6051
      %v6557 = vpack.c.b16 %v6052, %v6052
      %v6558 = vpack.c.b16 %v6053, %v6053
      %v6559 = vpack.c.b16 %v6054, %v6054
      %v6560 = vpack.c.b16 %v6055, %v6055
      %v6561 = vpack.c.b16 %v6056, %v6056
      %v6562 = vpack.c.b16 %v6057, %v6057
      %v6563 = vpack.c.b16 %v6058, %v6058
      %v6564 = vpack.c.b16 %v6059, %v6059
      %v6565 = vpack.c.b16 %v6060, %v6060
      %v6566 = vpack.c.b16 %v6061, %v6061
      %v6567 = vpack.c.b16 %v6062, %v6062
      %v6568 = vpack.c.b16 %v6063, %v6063
      %v6569 = vpack.c.b16 %v6064, %v6064
      %v6570 = vpack.c.b16 %v6065, %v6065
      %v6571 = vpack.c.b16 %v6066, %v6066
      %v6572 = vpack.c.b16 %v6067, %v6067
      %v6573 = vpack.c.b16 %v6068, %v6068
      %v6574 = vpack.c.b16 %v6069, %v6069
      %v6575 = vpack.c.b16 %v6070, %v6070
      %v6576 = vpack.c.b16 %v6071, %v6071
      %v6577 = vpack.c.b16 %v6072, %v6072
      %v6578 = vpack.c.b16 %v6073, %v6073
      %v6579 = vpack.c.b16 %v6074, %v6074
      %v6580 = vpack.c.b16 %v6075, %v6075
      %v6581 = vpack.c.b16 %v6076, %v6076
      %v6582 = vpack.c.b16 %v6077, %v6077
      %v6583 = vpack.c.b16 %v6078, %v6078
      %v6584 = vpack.c.b16 %v6079, %v6079
      %v6585 = vpack.c.b16 %v6080, %v6080
      %v6586 = vpack.c.b16 %v6081, %v6081
      %v6587 = vpack.c.b16 %v6082, %v6082
      %v6588 = vpack.c.b16 %v6083, %v6083
      %v6589 = vpack.c.b16 %v6084, %v6084
      %v6590 = vpack.c.b16 %v6085, %v6085
      %v6591 = vpack.c.b16 %v6086, %v6086
      %v6592 = vpack.c.b16 %v6087, %v6087
      %v6593 = vpack.c.b16 %v6088, %v6088
      %v6594 = vpack.c.b16 %v6089, %v6089
      %v6595 = vpack.c.b16 %v6090, %v6090
      %v6596 = vpack.c.b16 %v6091, %v6091
      %v6597 = vpack.c.b16 %v6092, %v6092
      %v6598 = vpack.c.b16 %v6093, %v6093
      %v6599 = vpack.c.b16 %v6094, %v6094
      %v6600 = vpack.c.b16 %v6095, %v6095
      %v6601 = vpack.c.b16 %v6096, %v6096
      %v6602 = vpack.c.b16 %v6097, %v6097
      %v6603 = vpack.c.b16 %v6098, %v6098
      %v6604 = vpack.c.b16 %v6099, %v6099
      %v6605 = vpack.c.b16 %v6100, %v6100
      %v6606 = vpack.c.b16 %v6101, %v6101
      %v6607 = vpack.c.b16 %v6102, %v6102
      %v6608 = vpack.c.b16 %v6103, %v6103
      %v6609 = vpack.c.b16 %v6104, %v6104
      %v6610 = vpack.c.b16 %v6105, %v6105
      %v6611 = vpack.c.b16 %v6106, %v6106
      %v6612 = vpack.c.b16 %v6107, %v6107
      %v6613 = vpack.c.b16 %v6108, %v6108
      %v6614 = vpack.c.b16 %v6109, %v6109
      %v6615 = vpack.c.b16 %v6110, %v6110
      %v6616 = vpack.c.b16 %v6111, %v6111
      %v6617 = vpack.c.b16 %v6112, %v6112
      %v6618 = vpack.c.b16 %v6113, %v6113
      %v6619 = vpack.c.b16 %v6114, %v6114
      %v6620 = vpack.c.b16 %v6115, %v6115
      %v6621 = vpack.c.b16 %v6116, %v6116
      %v6622 = vpack.c.b16 %v6117, %v6117
      %v6623 = vpack.c.b16 %v6118, %v6118
      %v6624 = vpack.c.b16 %v6119, %v6119
      %v6625 = vpack.c.b16 %v6120, %v6120
      %v6626 = vpack.c.b16 %v6121, %v6121
      %v6627 = vpack.c.b16 %v6122, %v6122
      %v6628 = vpack.c.b16 %v6123, %v6123
      %v6629 = vpack.c.b16 %v6124, %v6124
      %v6630 = vpack.c.b16 %v6125, %v6125
      %v6631 = vpack.c.b16 %v6126, %v6126
      %v6632 = vpack.c.b16 %v6127, %v6127
      %v6633 = vpack.c.b16 %v6128, %v6128
      %v6634 = vpack.c.b16 %v6129, %v6129
      %v6635 = vpack.c.b16 %v6130, %v6130
      %v6636 = vpack.c.b16 %v6131, %v6131
      %v6637 = vpack.c.b16 %v6132, %v6132
      %v6638 = vpack.c.b16 %v6133, %v6133
      %v6639 = vpack.c.b16 %v6134, %v6134
      %v6640 = vpack.c.b16 %v6135, %v6135
      %v6641 = vpack.c.b16 %v6136, %v6136
      %v6642 = vpack.c.b16 %v6137, %v6137
      %v6643 = vpack.c.b16 %v6138, %v6138
      %v6644 = vpack.c.b16 %v6139, %v6139
      %v6645 = vpack.c.b16 %v6140, %v6140
      %v6646 = vpack.c.b16 %v6141, %v6141
      %v6647 = vpack.c.b16 %v6142, %v6142
      %v6648 = vpack.c.b16 %v6143, %v6143
      %v6649 = vpack.c.b16 %v6144, %v6144
      %v6650 = vpack.c.b16 %v6145, %v6145
      %v6651 = vpack.c.b16 %v6146, %v6146
      %v6652 = vpack.c.b16 %v6147, %v6147
      %v6653 = vpack.c.b16 %v6148, %v6148
      %v6654 = vpack.c.b16 %v6149, %v6149
      %v6655 = vpack.c.b16 %v6150, %v6150
      %v6656 = vpack.c.b16 %v6151, %v6151
      %v6657 = vpack.c.b16 %v6152, %v6152
      %v6658 = vpack.c.b16 %v6153, %v6153
      %v6659 = vpack.c.b16 %v6154, %v6154
      %v6660 = vpack.c.b16 %v6155, %v6155
      %v6661 = vpack.c.b16 %v6156, %v6156
      %v6662 = vpack.c.b16 %v6157, %v6157
      %v6663 = vpack.c.b16 %v6158, %v6158
      %v6664 = vpack.c.b16 %v6159, %v6159
      %v6665 = vpack.c.b16 %v6160, %v6160
      %v6666 = vpack.c.b16 %v6161, %v6161
      %v6667 = vpack.c.b16 %v6162, %v6162
      %v6668 = vpack.c.b16 %v6163, %v6163
      %v6669 = vpack.c.b16 %v6164, %v6164
      %v6670 = vpack.c.b16 %v6165, %v6165
      %v6671 = vpack.c.b16 %v6166, %v6166
      %v6672 = vpack.c.b16 %v6167, %v6167
      %v6673 = vpack.c.b16 %v6168, %v6168
      %v6674 = vpack.c.b16 %v6169, %v6169
      %v6675 = vpack.c.b16 %v6170, %v6170
      %v6676 = vpack.c.b16 %v6171, %v6171
      %v6677 = vpack.c.b16 %v6172, %v6172
      %v6678 = vpack.c.b16 %v6173, %v6173
      %v6679 = vpack.c.b16 %v6174, %v6174
      %v6680 = vpack.c.b16 %v6175, %v6175
      %v6681 = vpack.c.b16 %v6176, %v6176
      %v6682 = vpack.c.b16 %v6177, %v6177
      %v6683 = vpack.c.b16 %v6178, %v6178
      %v6684 = vpack.c.b16 %v6179, %v6179
      %v6685 = vpack.c.b16 %v6180, %v6180
      %v6686 = vpack.c.b16 %v6181, %v6181
      %v6687 = vpack.c.b16 %v6182, %v6182
      %v6688 = vpack.c.b16 %v6183, %v6183
      %v6689 = vpack.c.b16 %v6184, %v6184
      %v6690 = vpack.c.b16 %v6185, %v6185
      %v6691 = vpack.c.b16 %v6186, %v6186
      %v6692 = vpack.c.b16 %v6187, %v6187
      %v6693 = vpack.c.b16 %v6188, %v6188
      %v6694 = vpack.c.b16 %v6189, %v6189
      %v6695 = vpack.c.b16 %v6190, %v6190
      %v6696 = vpack.c.b16 %v6191, %v6191
      %v6697 = vpack.c.b16 %v6192, %v6192
      %v6698 = vpack.c.b16 %v6193, %v6193
      %v6699 = vpack.c.b16 %v6194, %v6194
      %v6700 = vpack.c.b16 %v6195, %v6195
      %v6701 = vpack.c.b16 %v6196, %v6196
      %v6702 = vpack.c.b16 %v6197, %v6197
      %v6703 = vpack.c.b16 %v6198, %v6198
      %v6704 = vpack.c.b16 %v6199, %v6199
      %v6705 = vpack.c.b16 %v6200, %v6200
      %v6706 = vpack.c.b16 %v6201, %v6201
      %v6707 = vpack.c.b16 %v6202, %v6202
      %v6708 = vpack.c.b16 %v6203, %v6203
      %v6709 = vpack.c.b16 %v6204, %v6204
      %v6710 = vpack.c.b16 %v6205, %v6205
      %v6711 = vpack.c.b16 %v6206, %v6206
      %v6712 = vpack.c.b16 %v6207, %v6207
      %v6713 = vpack.c.b16 %v6208, %v6208
      %v6714 = vpack.c.b16 %v6209, %v6209
      %v6715 = vpack.c.b16 %v6210, %v6210
      %v6716 = vpack.c.b16 %v6211, %v6211
      %v6717 = vpack.c.b16 %v6212, %v6212
      %v6718 = vpack.c.b16 %v6213, %v6213
      %v6719 = vpack.c.b16 %v6214, %v6214
      %v6720 = vpack.c.b16 %v6215, %v6215
      %v6721 = vpack.c.b16 %v6216, %v6216
      %v6722 = vpack.c.b16 %v6217, %v6217
      %v6723 = vpack.c.b16 %v6218, %v6218
      %v6724 = vpack.c.b16 %v6219, %v6219
      %v6725 = vpack.c.b16 %v6220, %v6220
      %v6726 = vpack.c.b16 %v6221, %v6221
      %v6727 = vpack.c.b16 %v6222, %v6222
      %v6728 = vpack.c.b16 %v6223, %v6223
      %v6729 = vpack.c.b16 %v6224, %v6224
      %v6730 = vpack.c.b16 %v6225, %v6225
      %v6731 = vpack.c.b16 %v6226, %v6226
      %v6732 = vpack.c.b16 %v6227, %v6227
      %v6733 = vpack.c.b16 %v6228, %v6228
      %v6734 = vpack.c.b16 %v6229, %v6229
      %v6735 = vpack.c.b16 %v6230, %v6230
      %v6736 = vpack.c.b16 %v6231, %v6231
      %v6737 = vpack.c.b16 %v6232, %v6232
      %v6738 = vpack.c.b16 %v6233, %v6233
      %v6739 = vpack.c.b16 %v6234, %v6234
      %v6740 = vpack.c.b16 %v6235, %v6235
      %v6741 = vpack.c.b16 %v6236, %v6236
      %v6742 = vpack.c.b16 %v6237, %v6237
      %v6743 = vpack.c.b16 %v6238, %v6238
      %v6744 = vpack.c.b16 %v6239, %v6239
      %v6745 = vpack.c.b16 %v6240, %v6240
      %v6746 = vpack.c.b16 %v6241, %v6241
      %v6747 = vpack.c.b16 %v6242, %v6242
      %v6748 = vpack.c.b16 %v6243, %v6243
      %v6749 = vpack.c.b16 %v6244, %v6244
      %v6750 = vpack.c.b16 %v6245, %v6245
      %v6751 = vpack.c.b16 %v6246, %v6246
      %v6752 = vpack.c.b16 %v6247, %v6247
      %v6753 = vpack.c.b16 %v6248, %v6248
      %v6754 = vpack.c.b16 %v6249, %v6249
      %v6755 = vpack.c.b16 %v6250, %v6250
      %v6756 = vpack.c.b16 %v6251, %v6251
      %v6757 = vpack.c.b16 %v6252, %v6252
      %v6758 = vpack.c.b16 %v6253, %v6253
      %v6759 = vpack.c.b16 %v6254, %v6254
      %v6760 = vpack.c.b16 %v6255, %v6255
      %v6761 = vpack.c.b16 %v6256, %v6256
      %v6762 = vpack.c.b16 %v6257, %v6257
      %v6763 = vpack.c.b16 %v6258, %v6258
      %v6764 = vpack.c.b16 %v6259, %v6259
      %v6765 = vpack.c.b16 %v6260, %v6260
      %v6766 = vpack.c.b16 %v6261, %v6261
      %v6767 = vpack.c.b16 %v6262, %v6262
      %v6768 = vpack.c.b16 %v6263, %v6263
      %v6769 = vpack.c.b16 %v6264, %v6264
      %v6770 = vpack.c.b16 %v6265, %v6265
      %v6771 = vpack.c.b16 %v6266, %v6266
      %v6772 = vpack.c.b16 %v6267, %v6267
      %v6773 = vpack.c.b16 %v6268, %v6268
      %v6774 = vpack.c.b16 %v6269, %v6269
      %v6775 = vpack.c.b16 %v6270, %v6270
      %v6776 = vpack.c.b16 %v6271, %v6271
      %v6777 = vpack.c.b16 %v6272, %v6272
      %v6778 = vpack.c.b16 %v6273, %v6273
      %v6779 = vpack.c.b16 %v6274, %v6274
      %v6780 = vpack.c.b16 %v6275, %v6275
      %v6781 = vpack.c.b16 %v6276, %v6276
      %v6782 = vpack.c.b16 %v6277, %v6277
      %v6783 = vpack.c.b16 %v6278, %v6278
      %v6784 = vpack.c.b16 %v6279, %v6279
      %v6785 = vpack.c.b16 %v6280, %v6280
      %v6786 = vpack.c.b16 %v6281, %v6281
      %v6787 = vpack.c.b16 %v6282, %v6282
      %v6788 = vpack.c.b16 %v6283, %v6283
      %v6789 = vpack.c.b16 %v6284, %v6284
      %v6790 = vpack.c.b16 %v6285, %v6285
      %v6791 = vpack.c.b16 %v6286, %v6286
      %v6792 = vpack.c.b16 %v6287, %v6287
      %v6793 = vpack.c.b16 %v6288, %v6288
      %v6794 = vpack.c.b16 %v6289, %v6289
      %v6795 = vpack.c.b16 %v6290, %v6290
      %v6796 = vpack.c.b16 %v6291, %v6291
      %v6797 = vpack.c.b16 %v6292, %v6292
      %v6798 = vpack.c.b16 %v6293, %v6293
      %v6799 = vpack.c.b16 %v6294, %v6294
      %v6800 = vpack.c.b16 %v6295, %v6295
      %v6801 = vpack.c.b16 %v6296, %v6296
      %v6802 = vpack.c.b16 %v6297, %v6297
      %v6803 = vpack.c.b16 %v6298, %v6298
      %v6804 = vpack.c.b16 %v6299, %v6299
      %v6805 = vpack.c.b16 %v6300, %v6300
      %v6806 = vpack.c.b16 %v6301, %v6301
      %v6807 = vpack.c.b16 %v6302, %v6302
      %v6808 = vpack.c.b16 %v6303, %v6303
      %vm7314 = vcmask 257024
      %7315 = vst.msk [vmem:[%s172] sm:$0xf] %vm7314, %v6304
      %7316 = vst.msk [vmem:[%s172 + $0x4] sm:$0xf] %vm7314, %v6305
      %7317 = vst.msk [vmem:[%s172 + $0x8] sm:$0xf] %vm7314, %v6306
      %7318 = vst.msk [vmem:[%s172 + $0xc] sm:$0xf] %vm7314, %v6307
      %7319 = vst.msk [vmem:[%s172 + $0x10] sm:$0xf] %vm7314, %v6308
      %7320 = vst.msk [vmem:[%s172 + $0x14] sm:$0xf] %vm7314, %v6309
      %7321 = vst.msk [vmem:[%s172 + $0x18] sm:$0xf] %vm7314, %v6310
      %7322 = vst.msk [vmem:[%s172 + $0x1c] sm:$0xf] %vm7314, %v6311
      %7323 = vst.msk [vmem:[%s172 + $0x20] sm:$0xf] %vm7314, %v6312
      %7324 = vst.msk [vmem:[%s172 + $0x24] sm:$0xf] %vm7314, %v6313
      %7325 = vst.msk [vmem:[%s172 + $0x28] sm:$0xf] %vm7314, %v6314
      %7326 = vst.msk [vmem:[%s172 + $0x2c] sm:$0xf] %vm7314, %v6315
      %7327 = vst.msk [vmem:[%s172 + $0x30] sm:$0xf] %vm7314, %v6316
      %7328 = vst.msk [vmem:[%s172 + $0x34] sm:$0xf] %vm7314, %v6317
      %7329 = vst.msk [vmem:[%s172 + $0x38] sm:$0xf] %vm7314, %v6318
      %7330 = vst.msk [vmem:[%s172 + $0x3c] sm:$0xf] %vm7314, %v6319
      %7331 = vst.msk [vmem:[%s172 + $0x40] sm:$0xf] %vm7314, %v6320
      %7332 = vst.msk [vmem:[%s172 + $0x44] sm:$0xf] %vm7314, %v6321
      %7333 = vst.msk [vmem:[%s172 + $0x48] sm:$0xf] %vm7314, %v6322
      %7334 = vst.msk [vmem:[%s172 + $0x4c] sm:$0xf] %vm7314, %v6323
      %7335 = vst.msk [vmem:[%s172 + $0x50] sm:$0xf] %vm7314, %v6324
      %7336 = vst.msk [vmem:[%s172 + $0x54] sm:$0xf] %vm7314, %v6325
      %7337 = vst.msk [vmem:[%s172 + $0x58] sm:$0xf] %vm7314, %v6326
      %7338 = vst.msk [vmem:[%s172 + $0x5c] sm:$0xf] %vm7314, %v6327
      %7339 = vst.msk [vmem:[%s172 + $0x60] sm:$0xf] %vm7314, %v6328
      %7340 = vst.msk [vmem:[%s172 + $0x64] sm:$0xf] %vm7314, %v6329
      %7341 = vst.msk [vmem:[%s172 + $0x68] sm:$0xf] %vm7314, %v6330
      %7342 = vst.msk [vmem:[%s172 + $0x6c] sm:$0xf] %vm7314, %v6331
      %7343 = vst.msk [vmem:[%s172 + $0x70] sm:$0xf] %vm7314, %v6332
      %7344 = vst.msk [vmem:[%s172 + $0x74] sm:$0xf] %vm7314, %v6333
      %7345 = vst.msk [vmem:[%s172 + $0x78] sm:$0xf] %vm7314, %v6334
      %7346 = vst.msk [vmem:[%s172 + $0x7c] sm:$0xf] %vm7314, %v6335
      %7347 = vst.msk [vmem:[%s172 + $0x80] sm:$0xf] %vm7314, %v6336
      %7348 = vst.msk [vmem:[%s172 + $0x84] sm:$0xf] %vm7314, %v6337
      %7349 = vst.msk [vmem:[%s172 + $0x88] sm:$0xf] %vm7314, %v6338
      %7350 = vst.msk [vmem:[%s172 + $0x8c] sm:$0xf] %vm7314, %v6339
      %7351 = vst.msk [vmem:[%s172 + $0x90] sm:$0xf] %vm7314, %v6340
      %7352 = vst.msk [vmem:[%s172 + $0x94] sm:$0xf] %vm7314, %v6341
      %7353 = vst.msk [vmem:[%s172 + $0x98] sm:$0xf] %vm7314, %v6342
      %7354 = vst.msk [vmem:[%s172 + $0x9c] sm:$0xf] %vm7314, %v6343
      %7355 = vst.msk [vmem:[%s172 + $0xa0] sm:$0xf] %vm7314, %v6344
      %7356 = vst.msk [vmem:[%s172 + $0xa4] sm:$0xf] %vm7314, %v6345
      %7357 = vst.msk [vmem:[%s172 + $0xa8] sm:$0xf] %vm7314, %v6346
      %7358 = vst.msk [vmem:[%s172 + $0xac] sm:$0xf] %vm7314, %v6347
      %7359 = vst.msk [vmem:[%s172 + $0xb0] sm:$0xf] %vm7314, %v6348
      %7360 = vst.msk [vmem:[%s172 + $0xb4] sm:$0xf] %vm7314, %v6349
      %7361 = vst.msk [vmem:[%s172 + $0xb8] sm:$0xf] %vm7314, %v6350
      %7362 = vst.msk [vmem:[%s172 + $0xbc] sm:$0xf] %vm7314, %v6351
      %7363 = vst.msk [vmem:[%s172 + $0xc0] sm:$0xf] %vm7314, %v6352
      %7364 = vst.msk [vmem:[%s172 + $0xc4] sm:$0xf] %vm7314, %v6353
      %7365 = vst.msk [vmem:[%s172 + $0xc8] sm:$0xf] %vm7314, %v6354
      %7366 = vst.msk [vmem:[%s172 + $0xcc] sm:$0xf] %vm7314, %v6355
      %7367 = vst.msk [vmem:[%s172 + $0xd0] sm:$0xf] %vm7314, %v6356
      %7368 = vst.msk [vmem:[%s172 + $0xd4] sm:$0xf] %vm7314, %v6357
      %7369 = vst.msk [vmem:[%s172 + $0xd8] sm:$0xf] %vm7314, %v6358
      %7370 = vst.msk [vmem:[%s172 + $0xdc] sm:$0xf] %vm7314, %v6359
      %7371 = vst.msk [vmem:[%s172 + $0xe0] sm:$0xf] %vm7314, %v6360
      %7372 = vst.msk [vmem:[%s172 + $0xe4] sm:$0xf] %vm7314, %v6361
      %7373 = vst.msk [vmem:[%s172 + $0xe8] sm:$0xf] %vm7314, %v6362
      %7374 = vst.msk [vmem:[%s172 + $0xec] sm:$0xf] %vm7314, %v6363
      %7375 = vst.msk [vmem:[%s172 + $0xf0] sm:$0xf] %vm7314, %v6364
      %7376 = vst.msk [vmem:[%s172 + $0xf4] sm:$0xf] %vm7314, %v6365
      %7377 = vst.msk [vmem:[%s172 + $0xf8] sm:$0xf] %vm7314, %v6366
      %7378 = vst.msk [vmem:[%s172 + $0xfc] sm:$0xf] %vm7314, %v6367
      %7379 = vst.msk [vmem:[%s172 + $0x100] sm:$0xf] %vm7314, %v6368
      %7380 = vst.msk [vmem:[%s172 + $0x104] sm:$0xf] %vm7314, %v6369
      %7381 = vst.msk [vmem:[%s172 + $0x108] sm:$0xf] %vm7314, %v6370
      %7382 = vst.msk [vmem:[%s172 + $0x10c] sm:$0xf] %vm7314, %v6371
      %7383 = vst.msk [vmem:[%s172 + $0x110] sm:$0xf] %vm7314, %v6372
      %7384 = vst.msk [vmem:[%s172 + $0x114] sm:$0xf] %vm7314, %v6373
      %7385 = vst.msk [vmem:[%s172 + $0x118] sm:$0xf] %vm7314, %v6374
      %7386 = vst.msk [vmem:[%s172 + $0x11c] sm:$0xf] %vm7314, %v6375
      %7387 = vst.msk [vmem:[%s172 + $0x120] sm:$0xf] %vm7314, %v6376
      %7388 = vst.msk [vmem:[%s172 + $0x124] sm:$0xf] %vm7314, %v6377
      %7389 = vst.msk [vmem:[%s172 + $0x128] sm:$0xf] %vm7314, %v6378
      %7390 = vst.msk [vmem:[%s172 + $0x12c] sm:$0xf] %vm7314, %v6379
      %7391 = vst.msk [vmem:[%s172 + $0x130] sm:$0xf] %vm7314, %v6380
      %7392 = vst.msk [vmem:[%s172 + $0x134] sm:$0xf] %vm7314, %v6381
      %7393 = vst.msk [vmem:[%s172 + $0x138] sm:$0xf] %vm7314, %v6382
      %7394 = vst.msk [vmem:[%s172 + $0x13c] sm:$0xf] %vm7314, %v6383
      %7395 = vst.msk [vmem:[%s172 + $0x140] sm:$0xf] %vm7314, %v6384
      %7396 = vst.msk [vmem:[%s172 + $0x144] sm:$0xf] %vm7314, %v6385
      %7397 = vst.msk [vmem:[%s172 + $0x148] sm:$0xf] %vm7314, %v6386
      %7398 = vst.msk [vmem:[%s172 + $0x14c] sm:$0xf] %vm7314, %v6387
      %7399 = vst.msk [vmem:[%s172 + $0x150] sm:$0xf] %vm7314, %v6388
      %7400 = vst.msk [vmem:[%s172 + $0x154] sm:$0xf] %vm7314, %v6389
      %7401 = vst.msk [vmem:[%s172 + $0x158] sm:$0xf] %vm7314, %v6390
      %7402 = vst.msk [vmem:[%s172 + $0x15c] sm:$0xf] %vm7314, %v6391
      %7403 = vst.msk [vmem:[%s172 + $0x160] sm:$0xf] %vm7314, %v6392
      %7404 = vst.msk [vmem:[%s172 + $0x164] sm:$0xf] %vm7314, %v6393
      %7405 = vst.msk [vmem:[%s172 + $0x168] sm:$0xf] %vm7314, %v6394
      %7406 = vst.msk [vmem:[%s172 + $0x16c] sm:$0xf] %vm7314, %v6395
      %7407 = vst.msk [vmem:[%s172 + $0x170] sm:$0xf] %vm7314, %v6396
      %7408 = vst.msk [vmem:[%s172 + $0x174] sm:$0xf] %vm7314, %v6397
      %7409 = vst.msk [vmem:[%s172 + $0x178] sm:$0xf] %vm7314, %v6398
      %7410 = vst.msk [vmem:[%s172 + $0x17c] sm:$0xf] %vm7314, %v6399
      %7411 = vst.msk [vmem:[%s172 + $0x180] sm:$0xf] %vm7314, %v6400
      %7412 = vst.msk [vmem:[%s172 + $0x184] sm:$0xf] %vm7314, %v6401
      %7413 = vst.msk [vmem:[%s172 + $0x188] sm:$0xf] %vm7314, %v6402
      %7414 = vst.msk [vmem:[%s172 + $0x18c] sm:$0xf] %vm7314, %v6403
      %7415 = vst.msk [vmem:[%s172 + $0x190] sm:$0xf] %vm7314, %v6404
      %7416 = vst.msk [vmem:[%s172 + $0x194] sm:$0xf] %vm7314, %v6405
      %7417 = vst.msk [vmem:[%s172 + $0x198] sm:$0xf] %vm7314, %v6406
      %7418 = vst.msk [vmem:[%s172 + $0x19c] sm:$0xf] %vm7314, %v6407
      %7419 = vst.msk [vmem:[%s172 + $0x1a0] sm:$0xf] %vm7314, %v6408
      %7420 = vst.msk [vmem:[%s172 + $0x1a4] sm:$0xf] %vm7314, %v6409
      %7421 = vst.msk [vmem:[%s172 + $0x1a8] sm:$0xf] %vm7314, %v6410
      %7422 = vst.msk [vmem:[%s172 + $0x1ac] sm:$0xf] %vm7314, %v6411
      %7423 = vst.msk [vmem:[%s172 + $0x1b0] sm:$0xf] %vm7314, %v6412
      %7424 = vst.msk [vmem:[%s172 + $0x1b4] sm:$0xf] %vm7314, %v6413
      %7425 = vst.msk [vmem:[%s172 + $0x1b8] sm:$0xf] %vm7314, %v6414
      %7426 = vst.msk [vmem:[%s172 + $0x1bc] sm:$0xf] %vm7314, %v6415
      %7427 = vst.msk [vmem:[%s172 + $0x1c0] sm:$0xf] %vm7314, %v6416
      %7428 = vst.msk [vmem:[%s172 + $0x1c4] sm:$0xf] %vm7314, %v6417
      %7429 = vst.msk [vmem:[%s172 + $0x1c8] sm:$0xf] %vm7314, %v6418
      %7430 = vst.msk [vmem:[%s172 + $0x1cc] sm:$0xf] %vm7314, %v6419
      %7431 = vst.msk [vmem:[%s172 + $0x1d0] sm:$0xf] %vm7314, %v6420
      %7432 = vst.msk [vmem:[%s172 + $0x1d4] sm:$0xf] %vm7314, %v6421
      %7433 = vst.msk [vmem:[%s172 + $0x1d8] sm:$0xf] %vm7314, %v6422
      %7434 = vst.msk [vmem:[%s172 + $0x1dc] sm:$0xf] %vm7314, %v6423
      %7435 = vst.msk [vmem:[%s172 + $0x1e0] sm:$0xf] %vm7314, %v6424
      %7436 = vst.msk [vmem:[%s172 + $0x1e4] sm:$0xf] %vm7314, %v6425
      %7437 = vst.msk [vmem:[%s172 + $0x1e8] sm:$0xf] %vm7314, %v6426
      %7438 = vst.msk [vmem:[%s172 + $0x1ec] sm:$0xf] %vm7314, %v6427
      %7439 = vst.msk [vmem:[%s172 + $0x1f0] sm:$0xf] %vm7314, %v6428
      %7440 = vst.msk [vmem:[%s172 + $0x1f4] sm:$0xf] %vm7314, %v6429
      %7441 = vst.msk [vmem:[%s172 + $0x1f8] sm:$0xf] %vm7314, %v6430
      %7442 = vst.msk [vmem:[%s172 + $0x1fc] sm:$0xf] %vm7314, %v6431
      %7443 = vst.msk [vmem:[%s172 + $0x200] sm:$0xf] %vm7314, %v6432
      %7444 = vst.msk [vmem:[%s172 + $0x204] sm:$0xf] %vm7314, %v6433
      %7445 = vst.msk [vmem:[%s172 + $0x208] sm:$0xf] %vm7314, %v6434
      %7446 = vst.msk [vmem:[%s172 + $0x20c] sm:$0xf] %vm7314, %v6435
      %7447 = vst.msk [vmem:[%s172 + $0x210] sm:$0xf] %vm7314, %v6436
      %7448 = vst.msk [vmem:[%s172 + $0x214] sm:$0xf] %vm7314, %v6437
      %7449 = vst.msk [vmem:[%s172 + $0x218] sm:$0xf] %vm7314, %v6438
      %7450 = vst.msk [vmem:[%s172 + $0x21c] sm:$0xf] %vm7314, %v6439
      %7451 = vst.msk [vmem:[%s172 + $0x220] sm:$0xf] %vm7314, %v6440
      %7452 = vst.msk [vmem:[%s172 + $0x224] sm:$0xf] %vm7314, %v6441
      %7453 = vst.msk [vmem:[%s172 + $0x228] sm:$0xf] %vm7314, %v6442
      %7454 = vst.msk [vmem:[%s172 + $0x22c] sm:$0xf] %vm7314, %v6443
      %7455 = vst.msk [vmem:[%s172 + $0x230] sm:$0xf] %vm7314, %v6444
      %7456 = vst.msk [vmem:[%s172 + $0x234] sm:$0xf] %vm7314, %v6445
      %7457 = vst.msk [vmem:[%s172 + $0x238] sm:$0xf] %vm7314, %v6446
      %7458 = vst.msk [vmem:[%s172 + $0x23c] sm:$0xf] %vm7314, %v6447
      %7459 = vst.msk [vmem:[%s172 + $0x240] sm:$0xf] %vm7314, %v6448
      %7460 = vst.msk [vmem:[%s172 + $0x244] sm:$0xf] %vm7314, %v6449
      %7461 = vst.msk [vmem:[%s172 + $0x248] sm:$0xf] %vm7314, %v6450
      %7462 = vst.msk [vmem:[%s172 + $0x24c] sm:$0xf] %vm7314, %v6451
      %7463 = vst.msk [vmem:[%s172 + $0x250] sm:$0xf] %vm7314, %v6452
      %7464 = vst.msk [vmem:[%s172 + $0x254] sm:$0xf] %vm7314, %v6453
      %7465 = vst.msk [vmem:[%s172 + $0x258] sm:$0xf] %vm7314, %v6454
      %7466 = vst.msk [vmem:[%s172 + $0x25c] sm:$0xf] %vm7314, %v6455
      %7467 = vst.msk [vmem:[%s172 + $0x260] sm:$0xf] %vm7314, %v6456
      %7468 = vst.msk [vmem:[%s172 + $0x264] sm:$0xf] %vm7314, %v6457
      %7469 = vst.msk [vmem:[%s172 + $0x268] sm:$0xf] %vm7314, %v6458
      %7470 = vst.msk [vmem:[%s172 + $0x26c] sm:$0xf] %vm7314, %v6459
      %7471 = vst.msk [vmem:[%s172 + $0x270] sm:$0xf] %vm7314, %v6460
      %7472 = vst.msk [vmem:[%s172 + $0x274] sm:$0xf] %vm7314, %v6461
      %7473 = vst.msk [vmem:[%s172 + $0x278] sm:$0xf] %vm7314, %v6462
      %7474 = vst.msk [vmem:[%s172 + $0x27c] sm:$0xf] %vm7314, %v6463
      %7475 = vst.msk [vmem:[%s172 + $0x280] sm:$0xf] %vm7314, %v6464
      %7476 = vst.msk [vmem:[%s172 + $0x284] sm:$0xf] %vm7314, %v6465
      %7477 = vst.msk [vmem:[%s172 + $0x288] sm:$0xf] %vm7314, %v6466
      %7478 = vst.msk [vmem:[%s172 + $0x28c] sm:$0xf] %vm7314, %v6467
      %7479 = vst.msk [vmem:[%s172 + $0x290] sm:$0xf] %vm7314, %v6468
      %7480 = vst.msk [vmem:[%s172 + $0x294] sm:$0xf] %vm7314, %v6469
      %7481 = vst.msk [vmem:[%s172 + $0x298] sm:$0xf] %vm7314, %v6470
      %7482 = vst.msk [vmem:[%s172 + $0x29c] sm:$0xf] %vm7314, %v6471
      %7483 = vst.msk [vmem:[%s172 + $0x2a0] sm:$0xf] %vm7314, %v6472
      %7484 = vst.msk [vmem:[%s172 + $0x2a4] sm:$0xf] %vm7314, %v6473
      %7485 = vst.msk [vmem:[%s172 + $0x2a8] sm:$0xf] %vm7314, %v6474
      %7486 = vst.msk [vmem:[%s172 + $0x2ac] sm:$0xf] %vm7314, %v6475
      %7487 = vst.msk [vmem:[%s172 + $0x2b0] sm:$0xf] %vm7314, %v6476
      %7488 = vst.msk [vmem:[%s172 + $0x2b4] sm:$0xf] %vm7314, %v6477
      %7489 = vst.msk [vmem:[%s172 + $0x2b8] sm:$0xf] %vm7314, %v6478
      %7490 = vst.msk [vmem:[%s172 + $0x2bc] sm:$0xf] %vm7314, %v6479
      %7491 = vst.msk [vmem:[%s172 + $0x2c0] sm:$0xf] %vm7314, %v6480
      %7492 = vst.msk [vmem:[%s172 + $0x2c4] sm:$0xf] %vm7314, %v6481
      %7493 = vst.msk [vmem:[%s172 + $0x2c8] sm:$0xf] %vm7314, %v6482
      %7494 = vst.msk [vmem:[%s172 + $0x2cc] sm:$0xf] %vm7314, %v6483
      %7495 = vst.msk [vmem:[%s172 + $0x2d0] sm:$0xf] %vm7314, %v6484
      %7496 = vst.msk [vmem:[%s172 + $0x2d4] sm:$0xf] %vm7314, %v6485
      %7497 = vst.msk [vmem:[%s172 + $0x2d8] sm:$0xf] %vm7314, %v6486
      %7498 = vst.msk [vmem:[%s172 + $0x2dc] sm:$0xf] %vm7314, %v6487
      %7499 = vst.msk [vmem:[%s172 + $0x2e0] sm:$0xf] %vm7314, %v6488
      %7500 = vst.msk [vmem:[%s172 + $0x2e4] sm:$0xf] %vm7314, %v6489
      %7501 = vst.msk [vmem:[%s172 + $0x2e8] sm:$0xf] %vm7314, %v6490
      %7502 = vst.msk [vmem:[%s172 + $0x2ec] sm:$0xf] %vm7314, %v6491
      %7503 = vst.msk [vmem:[%s172 + $0x2f0] sm:$0xf] %vm7314, %v6492
      %7504 = vst.msk [vmem:[%s172 + $0x2f4] sm:$0xf] %vm7314, %v6493
      %7505 = vst.msk [vmem:[%s172 + $0x2f8] sm:$0xf] %vm7314, %v6494
      %7506 = vst.msk [vmem:[%s172 + $0x2fc] sm:$0xf] %vm7314, %v6495
      %7507 = vst.msk [vmem:[%s172 + $0x300] sm:$0xf] %vm7314, %v6496
      %7508 = vst.msk [vmem:[%s172 + $0x304] sm:$0xf] %vm7314, %v6497
      %7509 = vst.msk [vmem:[%s172 + $0x308] sm:$0xf] %vm7314, %v6498
      %7510 = vst.msk [vmem:[%s172 + $0x30c] sm:$0xf] %vm7314, %v6499
      %7511 = vst.msk [vmem:[%s172 + $0x310] sm:$0xf] %vm7314, %v6500
      %7512 = vst.msk [vmem:[%s172 + $0x314] sm:$0xf] %vm7314, %v6501
      %7513 = vst.msk [vmem:[%s172 + $0x318] sm:$0xf] %vm7314, %v6502
      %7514 = vst.msk [vmem:[%s172 + $0x31c] sm:$0xf] %vm7314, %v6503
      %7515 = vst.msk [vmem:[%s172 + $0x320] sm:$0xf] %vm7314, %v6504
      %7516 = vst.msk [vmem:[%s172 + $0x324] sm:$0xf] %vm7314, %v6505
      %7517 = vst.msk [vmem:[%s172 + $0x328] sm:$0xf] %vm7314, %v6506
      %7518 = vst.msk [vmem:[%s172 + $0x32c] sm:$0xf] %vm7314, %v6507
      %7519 = vst.msk [vmem:[%s172 + $0x330] sm:$0xf] %vm7314, %v6508
      %7520 = vst.msk [vmem:[%s172 + $0x334] sm:$0xf] %vm7314, %v6509
      %7521 = vst.msk [vmem:[%s172 + $0x338] sm:$0xf] %vm7314, %v6510
      %7522 = vst.msk [vmem:[%s172 + $0x33c] sm:$0xf] %vm7314, %v6511
      %7523 = vst.msk [vmem:[%s172 + $0x340] sm:$0xf] %vm7314, %v6512
      %7524 = vst.msk [vmem:[%s172 + $0x344] sm:$0xf] %vm7314, %v6513
      %7525 = vst.msk [vmem:[%s172 + $0x348] sm:$0xf] %vm7314, %v6514
      %7526 = vst.msk [vmem:[%s172 + $0x34c] sm:$0xf] %vm7314, %v6515
      %7527 = vst.msk [vmem:[%s172 + $0x350] sm:$0xf] %vm7314, %v6516
      %7528 = vst.msk [vmem:[%s172 + $0x354] sm:$0xf] %vm7314, %v6517
      %7529 = vst.msk [vmem:[%s172 + $0x358] sm:$0xf] %vm7314, %v6518
      %7530 = vst.msk [vmem:[%s172 + $0x35c] sm:$0xf] %vm7314, %v6519
      %7531 = vst.msk [vmem:[%s172 + $0x360] sm:$0xf] %vm7314, %v6520
      %7532 = vst.msk [vmem:[%s172 + $0x364] sm:$0xf] %vm7314, %v6521
      %7533 = vst.msk [vmem:[%s172 + $0x368] sm:$0xf] %vm7314, %v6522
      %7534 = vst.msk [vmem:[%s172 + $0x36c] sm:$0xf] %vm7314, %v6523
      %7535 = vst.msk [vmem:[%s172 + $0x370] sm:$0xf] %vm7314, %v6524
      %7536 = vst.msk [vmem:[%s172 + $0x374] sm:$0xf] %vm7314, %v6525
      %7537 = vst.msk [vmem:[%s172 + $0x378] sm:$0xf] %vm7314, %v6526
      %7538 = vst.msk [vmem:[%s172 + $0x37c] sm:$0xf] %vm7314, %v6527
      %7539 = vst.msk [vmem:[%s172 + $0x380] sm:$0xf] %vm7314, %v6528
      %7540 = vst.msk [vmem:[%s172 + $0x384] sm:$0xf] %vm7314, %v6529
      %7541 = vst.msk [vmem:[%s172 + $0x388] sm:$0xf] %vm7314, %v6530
      %7542 = vst.msk [vmem:[%s172 + $0x38c] sm:$0xf] %vm7314, %v6531
      %7543 = vst.msk [vmem:[%s172 + $0x390] sm:$0xf] %vm7314, %v6532
      %7544 = vst.msk [vmem:[%s172 + $0x394] sm:$0xf] %vm7314, %v6533
      %7545 = vst.msk [vmem:[%s172 + $0x398] sm:$0xf] %vm7314, %v6534
      %7546 = vst.msk [vmem:[%s172 + $0x39c] sm:$0xf] %vm7314, %v6535
      %7547 = vst.msk [vmem:[%s172 + $0x3a0] sm:$0xf] %vm7314, %v6536
      %7548 = vst.msk [vmem:[%s172 + $0x3a4] sm:$0xf] %vm7314, %v6537
      %7549 = vst.msk [vmem:[%s172 + $0x3a8] sm:$0xf] %vm7314, %v6538
      %7550 = vst.msk [vmem:[%s172 + $0x3ac] sm:$0xf] %vm7314, %v6539
      %7551 = vst.msk [vmem:[%s172 + $0x3b0] sm:$0xf] %vm7314, %v6540
      %7552 = vst.msk [vmem:[%s172 + $0x3b4] sm:$0xf] %vm7314, %v6541
      %7553 = vst.msk [vmem:[%s172 + $0x3b8] sm:$0xf] %vm7314, %v6542
      %7554 = vst.msk [vmem:[%s172 + $0x3bc] sm:$0xf] %vm7314, %v6543
      %7555 = vst.msk [vmem:[%s172 + $0x3c0] sm:$0xf] %vm7314, %v6544
      %7556 = vst.msk [vmem:[%s172 + $0x3c4] sm:$0xf] %vm7314, %v6545
      %7557 = vst.msk [vmem:[%s172 + $0x3c8] sm:$0xf] %vm7314, %v6546
      %7558 = vst.msk [vmem:[%s172 + $0x3cc] sm:$0xf] %vm7314, %v6547
      %7559 = vst.msk [vmem:[%s172 + $0x3d0] sm:$0xf] %vm7314, %v6548
      %7560 = vst.msk [vmem:[%s172 + $0x3d4] sm:$0xf] %vm7314, %v6549
      %7561 = vst.msk [vmem:[%s172 + $0x3d8] sm:$0xf] %vm7314, %v6550
      %7562 = vst.msk [vmem:[%s172 + $0x3dc] sm:$0xf] %vm7314, %v6551
      %7563 = vst.msk [vmem:[%s172 + $0x3e0] sm:$0xf] %vm7314, %v6552
      %7564 = vst.msk [vmem:[%s172 + $0x3e4] sm:$0xf] %vm7314, %v6553
      %7565 = vst.msk [vmem:[%s172 + $0x3e8] sm:$0xf] %vm7314, %v6554
      %7566 = vst.msk [vmem:[%s172 + $0x3ec] sm:$0xf] %vm7314, %v6555
      %7567 = vst.msk [vmem:[%s172 + $0x3f0] sm:$0xf] %vm7314, %v6556
      %7568 = vst.msk [vmem:[%s172 + $0x3f4] sm:$0xf] %vm7314, %v6557
      %7569 = vst.msk [vmem:[%s172 + $0x3f8] sm:$0xf] %vm7314, %v6558
      %7570 = vst.msk [vmem:[%s172 + $0x3fc] sm:$0xf] %vm7314, %v6559
      %7571 = vst.msk [vmem:[%s172 + $0x400] sm:$0xf] %vm7314, %v6560
      %7572 = vst.msk [vmem:[%s172 + $0x404] sm:$0xf] %vm7314, %v6561
      %7573 = vst.msk [vmem:[%s172 + $0x408] sm:$0xf] %vm7314, %v6562
      %7574 = vst.msk [vmem:[%s172 + $0x40c] sm:$0xf] %vm7314, %v6563
      %7575 = vst.msk [vmem:[%s172 + $0x410] sm:$0xf] %vm7314, %v6564
      %7576 = vst.msk [vmem:[%s172 + $0x414] sm:$0xf] %vm7314, %v6565
      %7577 = vst.msk [vmem:[%s172 + $0x418] sm:$0xf] %vm7314, %v6566
      %7578 = vst.msk [vmem:[%s172 + $0x41c] sm:$0xf] %vm7314, %v6567
      %7579 = vst.msk [vmem:[%s172 + $0x420] sm:$0xf] %vm7314, %v6568
      %7580 = vst.msk [vmem:[%s172 + $0x424] sm:$0xf] %vm7314, %v6569
      %7581 = vst.msk [vmem:[%s172 + $0x428] sm:$0xf] %vm7314, %v6570
      %7582 = vst.msk [vmem:[%s172 + $0x42c] sm:$0xf] %vm7314, %v6571
      %7583 = vst.msk [vmem:[%s172 + $0x430] sm:$0xf] %vm7314, %v6572
      %7584 = vst.msk [vmem:[%s172 + $0x434] sm:$0xf] %vm7314, %v6573
      %7585 = vst.msk [vmem:[%s172 + $0x438] sm:$0xf] %vm7314, %v6574
      %7586 = vst.msk [vmem:[%s172 + $0x43c] sm:$0xf] %vm7314, %v6575
      %7587 = vst.msk [vmem:[%s172 + $0x440] sm:$0xf] %vm7314, %v6576
      %7588 = vst.msk [vmem:[%s172 + $0x444] sm:$0xf] %vm7314, %v6577
      %7589 = vst.msk [vmem:[%s172 + $0x448] sm:$0xf] %vm7314, %v6578
      %7590 = vst.msk [vmem:[%s172 + $0x44c] sm:$0xf] %vm7314, %v6579
      %7591 = vst.msk [vmem:[%s172 + $0x450] sm:$0xf] %vm7314, %v6580
      %7592 = vst.msk [vmem:[%s172 + $0x454] sm:$0xf] %vm7314, %v6581
      %7593 = vst.msk [vmem:[%s172 + $0x458] sm:$0xf] %vm7314, %v6582
      %7594 = vst.msk [vmem:[%s172 + $0x45c] sm:$0xf] %vm7314, %v6583
      %7595 = vst.msk [vmem:[%s172 + $0x460] sm:$0xf] %vm7314, %v6584
      %7596 = vst.msk [vmem:[%s172 + $0x464] sm:$0xf] %vm7314, %v6585
      %7597 = vst.msk [vmem:[%s172 + $0x468] sm:$0xf] %vm7314, %v6586
      %7598 = vst.msk [vmem:[%s172 + $0x46c] sm:$0xf] %vm7314, %v6587
      %7599 = vst.msk [vmem:[%s172 + $0x470] sm:$0xf] %vm7314, %v6588
      %7600 = vst.msk [vmem:[%s172 + $0x474] sm:$0xf] %vm7314, %v6589
      %7601 = vst.msk [vmem:[%s172 + $0x478] sm:$0xf] %vm7314, %v6590
      %7602 = vst.msk [vmem:[%s172 + $0x47c] sm:$0xf] %vm7314, %v6591
      %7603 = vst.msk [vmem:[%s172 + $0x480] sm:$0xf] %vm7314, %v6592
      %7604 = vst.msk [vmem:[%s172 + $0x484] sm:$0xf] %vm7314, %v6593
      %7605 = vst.msk [vmem:[%s172 + $0x488] sm:$0xf] %vm7314, %v6594
      %7606 = vst.msk [vmem:[%s172 + $0x48c] sm:$0xf] %vm7314, %v6595
      %7607 = vst.msk [vmem:[%s172 + $0x490] sm:$0xf] %vm7314, %v6596
      %7608 = vst.msk [vmem:[%s172 + $0x494] sm:$0xf] %vm7314, %v6597
      %7609 = vst.msk [vmem:[%s172 + $0x498] sm:$0xf] %vm7314, %v6598
      %7610 = vst.msk [vmem:[%s172 + $0x49c] sm:$0xf] %vm7314, %v6599
      %7611 = vst.msk [vmem:[%s172 + $0x4a0] sm:$0xf] %vm7314, %v6600
      %7612 = vst.msk [vmem:[%s172 + $0x4a4] sm:$0xf] %vm7314, %v6601
      %7613 = vst.msk [vmem:[%s172 + $0x4a8] sm:$0xf] %vm7314, %v6602
      %7614 = vst.msk [vmem:[%s172 + $0x4ac] sm:$0xf] %vm7314, %v6603
      %7615 = vst.msk [vmem:[%s172 + $0x4b0] sm:$0xf] %vm7314, %v6604
      %7616 = vst.msk [vmem:[%s172 + $0x4b4] sm:$0xf] %vm7314, %v6605
      %7617 = vst.msk [vmem:[%s172 + $0x4b8] sm:$0xf] %vm7314, %v6606
      %7618 = vst.msk [vmem:[%s172 + $0x4bc] sm:$0xf] %vm7314, %v6607
      %7619 = vst.msk [vmem:[%s172 + $0x4c0] sm:$0xf] %vm7314, %v6608
      %7620 = vst.msk [vmem:[%s172 + $0x4c4] sm:$0xf] %vm7314, %v6609
      %7621 = vst.msk [vmem:[%s172 + $0x4c8] sm:$0xf] %vm7314, %v6610
      %7622 = vst.msk [vmem:[%s172 + $0x4cc] sm:$0xf] %vm7314, %v6611
      %7623 = vst.msk [vmem:[%s172 + $0x4d0] sm:$0xf] %vm7314, %v6612
      %7624 = vst.msk [vmem:[%s172 + $0x4d4] sm:$0xf] %vm7314, %v6613
      %7625 = vst.msk [vmem:[%s172 + $0x4d8] sm:$0xf] %vm7314, %v6614
      %7626 = vst.msk [vmem:[%s172 + $0x4dc] sm:$0xf] %vm7314, %v6615
      %7627 = vst.msk [vmem:[%s172 + $0x4e0] sm:$0xf] %vm7314, %v6616
      %7628 = vst.msk [vmem:[%s172 + $0x4e4] sm:$0xf] %vm7314, %v6617
      %7629 = vst.msk [vmem:[%s172 + $0x4e8] sm:$0xf] %vm7314, %v6618
      %7630 = vst.msk [vmem:[%s172 + $0x4ec] sm:$0xf] %vm7314, %v6619
      %7631 = vst.msk [vmem:[%s172 + $0x4f0] sm:$0xf] %vm7314, %v6620
      %7632 = vst.msk [vmem:[%s172 + $0x4f4] sm:$0xf] %vm7314, %v6621
      %7633 = vst.msk [vmem:[%s172 + $0x4f8] sm:$0xf] %vm7314, %v6622
      %7634 = vst.msk [vmem:[%s172 + $0x4fc] sm:$0xf] %vm7314, %v6623
      %7635 = vst.msk [vmem:[%s172 + $0x500] sm:$0xf] %vm7314, %v6624
      %7636 = vst.msk [vmem:[%s172 + $0x504] sm:$0xf] %vm7314, %v6625
      %7637 = vst.msk [vmem:[%s172 + $0x508] sm:$0xf] %vm7314, %v6626
      %7638 = vst.msk [vmem:[%s172 + $0x50c] sm:$0xf] %vm7314, %v6627
      %7639 = vst.msk [vmem:[%s172 + $0x510] sm:$0xf] %vm7314, %v6628
      %7640 = vst.msk [vmem:[%s172 + $0x514] sm:$0xf] %vm7314, %v6629
      %7641 = vst.msk [vmem:[%s172 + $0x518] sm:$0xf] %vm7314, %v6630
      %7642 = vst.msk [vmem:[%s172 + $0x51c] sm:$0xf] %vm7314, %v6631
      %7643 = vst.msk [vmem:[%s172 + $0x520] sm:$0xf] %vm7314, %v6632
      %7644 = vst.msk [vmem:[%s172 + $0x524] sm:$0xf] %vm7314, %v6633
      %7645 = vst.msk [vmem:[%s172 + $0x528] sm:$0xf] %vm7314, %v6634
      %7646 = vst.msk [vmem:[%s172 + $0x52c] sm:$0xf] %vm7314, %v6635
      %7647 = vst.msk [vmem:[%s172 + $0x530] sm:$0xf] %vm7314, %v6636
      %7648 = vst.msk [vmem:[%s172 + $0x534] sm:$0xf] %vm7314, %v6637
      %7649 = vst.msk [vmem:[%s172 + $0x538] sm:$0xf] %vm7314, %v6638
      %7650 = vst.msk [vmem:[%s172 + $0x53c] sm:$0xf] %vm7314, %v6639
      %7651 = vst.msk [vmem:[%s172 + $0x540] sm:$0xf] %vm7314, %v6640
      %7652 = vst.msk [vmem:[%s172 + $0x544] sm:$0xf] %vm7314, %v6641
      %7653 = vst.msk [vmem:[%s172 + $0x548] sm:$0xf] %vm7314, %v6642
      %7654 = vst.msk [vmem:[%s172 + $0x54c] sm:$0xf] %vm7314, %v6643
      %7655 = vst.msk [vmem:[%s172 + $0x550] sm:$0xf] %vm7314, %v6644
      %7656 = vst.msk [vmem:[%s172 + $0x554] sm:$0xf] %vm7314, %v6645
      %7657 = vst.msk [vmem:[%s172 + $0x558] sm:$0xf] %vm7314, %v6646
      %7658 = vst.msk [vmem:[%s172 + $0x55c] sm:$0xf] %vm7314, %v6647
      %7659 = vst.msk [vmem:[%s172 + $0x560] sm:$0xf] %vm7314, %v6648
      %7660 = vst.msk [vmem:[%s172 + $0x564] sm:$0xf] %vm7314, %v6649
      %7661 = vst.msk [vmem:[%s172 + $0x568] sm:$0xf] %vm7314, %v6650
      %7662 = vst.msk [vmem:[%s172 + $0x56c] sm:$0xf] %vm7314, %v6651
      %7663 = vst.msk [vmem:[%s172 + $0x570] sm:$0xf] %vm7314, %v6652
      %7664 = vst.msk [vmem:[%s172 + $0x574] sm:$0xf] %vm7314, %v6653
      %7665 = vst.msk [vmem:[%s172 + $0x578] sm:$0xf] %vm7314, %v6654
      %7666 = vst.msk [vmem:[%s172 + $0x57c] sm:$0xf] %vm7314, %v6655
      %7667 = vst.msk [vmem:[%s172 + $0x580] sm:$0xf] %vm7314, %v6656
      %7668 = vst.msk [vmem:[%s172 + $0x584] sm:$0xf] %vm7314, %v6657
      %7669 = vst.msk [vmem:[%s172 + $0x588] sm:$0xf] %vm7314, %v6658
      %7670 = vst.msk [vmem:[%s172 + $0x58c] sm:$0xf] %vm7314, %v6659
      %7671 = vst.msk [vmem:[%s172 + $0x590] sm:$0xf] %vm7314, %v6660
      %7672 = vst.msk [vmem:[%s172 + $0x594] sm:$0xf] %vm7314, %v6661
      %7673 = vst.msk [vmem:[%s172 + $0x598] sm:$0xf] %vm7314, %v6662
      %7674 = vst.msk [vmem:[%s172 + $0x59c] sm:$0xf] %vm7314, %v6663
      %7675 = vst.msk [vmem:[%s172 + $0x5a0] sm:$0xf] %vm7314, %v6664
      %7676 = vst.msk [vmem:[%s172 + $0x5a4] sm:$0xf] %vm7314, %v6665
      %7677 = vst.msk [vmem:[%s172 + $0x5a8] sm:$0xf] %vm7314, %v6666
      %7678 = vst.msk [vmem:[%s172 + $0x5ac] sm:$0xf] %vm7314, %v6667
      %7679 = vst.msk [vmem:[%s172 + $0x5b0] sm:$0xf] %vm7314, %v6668
      %7680 = vst.msk [vmem:[%s172 + $0x5b4] sm:$0xf] %vm7314, %v6669
      %7681 = vst.msk [vmem:[%s172 + $0x5b8] sm:$0xf] %vm7314, %v6670
      %7682 = vst.msk [vmem:[%s172 + $0x5bc] sm:$0xf] %vm7314, %v6671
      %7683 = vst.msk [vmem:[%s172 + $0x5c0] sm:$0xf] %vm7314, %v6672
      %7684 = vst.msk [vmem:[%s172 + $0x5c4] sm:$0xf] %vm7314, %v6673
      %7685 = vst.msk [vmem:[%s172 + $0x5c8] sm:$0xf] %vm7314, %v6674
      %7686 = vst.msk [vmem:[%s172 + $0x5cc] sm:$0xf] %vm7314, %v6675
      %7687 = vst.msk [vmem:[%s172 + $0x5d0] sm:$0xf] %vm7314, %v6676
      %7688 = vst.msk [vmem:[%s172 + $0x5d4] sm:$0xf] %vm7314, %v6677
      %7689 = vst.msk [vmem:[%s172 + $0x5d8] sm:$0xf] %vm7314, %v6678
      %7690 = vst.msk [vmem:[%s172 + $0x5dc] sm:$0xf] %vm7314, %v6679
      %7691 = vst.msk [vmem:[%s172 + $0x5e0] sm:$0xf] %vm7314, %v6680
      %7692 = vst.msk [vmem:[%s172 + $0x5e4] sm:$0xf] %vm7314, %v6681
      %7693 = vst.msk [vmem:[%s172 + $0x5e8] sm:$0xf] %vm7314, %v6682
      %7694 = vst.msk [vmem:[%s172 + $0x5ec] sm:$0xf] %vm7314, %v6683
      %7695 = vst.msk [vmem:[%s172 + $0x5f0] sm:$0xf] %vm7314, %v6684
      %7696 = vst.msk [vmem:[%s172 + $0x5f4] sm:$0xf] %vm7314, %v6685
      %7697 = vst.msk [vmem:[%s172 + $0x5f8] sm:$0xf] %vm7314, %v6686
      %7698 = vst.msk [vmem:[%s172 + $0x5fc] sm:$0xf] %vm7314, %v6687
      %7699 = vst.msk [vmem:[%s172 + $0x600] sm:$0xf] %vm7314, %v6688
      %7700 = vst.msk [vmem:[%s172 + $0x604] sm:$0xf] %vm7314, %v6689
      %7701 = vst.msk [vmem:[%s172 + $0x608] sm:$0xf] %vm7314, %v6690
      %7702 = vst.msk [vmem:[%s172 + $0x60c] sm:$0xf] %vm7314, %v6691
      %7703 = vst.msk [vmem:[%s172 + $0x610] sm:$0xf] %vm7314, %v6692
      %7704 = vst.msk [vmem:[%s172 + $0x614] sm:$0xf] %vm7314, %v6693
      %7705 = vst.msk [vmem:[%s172 + $0x618] sm:$0xf] %vm7314, %v6694
      %7706 = vst.msk [vmem:[%s172 + $0x61c] sm:$0xf] %vm7314, %v6695
      %7707 = vst.msk [vmem:[%s172 + $0x620] sm:$0xf] %vm7314, %v6696
      %7708 = vst.msk [vmem:[%s172 + $0x624] sm:$0xf] %vm7314, %v6697
      %7709 = vst.msk [vmem:[%s172 + $0x628] sm:$0xf] %vm7314, %v6698
      %7710 = vst.msk [vmem:[%s172 + $0x62c] sm:$0xf] %vm7314, %v6699
      %7711 = vst.msk [vmem:[%s172 + $0x630] sm:$0xf] %vm7314, %v6700
      %7712 = vst.msk [vmem:[%s172 + $0x634] sm:$0xf] %vm7314, %v6701
      %7713 = vst.msk [vmem:[%s172 + $0x638] sm:$0xf] %vm7314, %v6702
      %7714 = vst.msk [vmem:[%s172 + $0x63c] sm:$0xf] %vm7314, %v6703
      %7715 = vst.msk [vmem:[%s172 + $0x640] sm:$0xf] %vm7314, %v6704
      %7716 = vst.msk [vmem:[%s172 + $0x644] sm:$0xf] %vm7314, %v6705
      %7717 = vst.msk [vmem:[%s172 + $0x648] sm:$0xf] %vm7314, %v6706
      %7718 = vst.msk [vmem:[%s172 + $0x64c] sm:$0xf] %vm7314, %v6707
      %7719 = vst.msk [vmem:[%s172 + $0x650] sm:$0xf] %vm7314, %v6708
      %7720 = vst.msk [vmem:[%s172 + $0x654] sm:$0xf] %vm7314, %v6709
      %7721 = vst.msk [vmem:[%s172 + $0x658] sm:$0xf] %vm7314, %v6710
      %7722 = vst.msk [vmem:[%s172 + $0x65c] sm:$0xf] %vm7314, %v6711
      %7723 = vst.msk [vmem:[%s172 + $0x660] sm:$0xf] %vm7314, %v6712
      %7724 = vst.msk [vmem:[%s172 + $0x664] sm:$0xf] %vm7314, %v6713
      %7725 = vst.msk [vmem:[%s172 + $0x668] sm:$0xf] %vm7314, %v6714
      %7726 = vst.msk [vmem:[%s172 + $0x66c] sm:$0xf] %vm7314, %v6715
      %7727 = vst.msk [vmem:[%s172 + $0x670] sm:$0xf] %vm7314, %v6716
      %7728 = vst.msk [vmem:[%s172 + $0x674] sm:$0xf] %vm7314, %v6717
      %7729 = vst.msk [vmem:[%s172 + $0x678] sm:$0xf] %vm7314, %v6718
      %7730 = vst.msk [vmem:[%s172 + $0x67c] sm:$0xf] %vm7314, %v6719
      %7731 = vst.msk [vmem:[%s172 + $0x680] sm:$0xf] %vm7314, %v6720
      %7732 = vst.msk [vmem:[%s172 + $0x684] sm:$0xf] %vm7314, %v6721
      %7733 = vst.msk [vmem:[%s172 + $0x688] sm:$0xf] %vm7314, %v6722
      %7734 = vst.msk [vmem:[%s172 + $0x68c] sm:$0xf] %vm7314, %v6723
      %7735 = vst.msk [vmem:[%s172 + $0x690] sm:$0xf] %vm7314, %v6724
      %7736 = vst.msk [vmem:[%s172 + $0x694] sm:$0xf] %vm7314, %v6725
      %7737 = vst.msk [vmem:[%s172 + $0x698] sm:$0xf] %vm7314, %v6726
      %7738 = vst.msk [vmem:[%s172 + $0x69c] sm:$0xf] %vm7314, %v6727
      %7739 = vst.msk [vmem:[%s172 + $0x6a0] sm:$0xf] %vm7314, %v6728
      %7740 = vst.msk [vmem:[%s172 + $0x6a4] sm:$0xf] %vm7314, %v6729
      %7741 = vst.msk [vmem:[%s172 + $0x6a8] sm:$0xf] %vm7314, %v6730
      %7742 = vst.msk [vmem:[%s172 + $0x6ac] sm:$0xf] %vm7314, %v6731
      %7743 = vst.msk [vmem:[%s172 + $0x6b0] sm:$0xf] %vm7314, %v6732
      %7744 = vst.msk [vmem:[%s172 + $0x6b4] sm:$0xf] %vm7314, %v6733
      %7745 = vst.msk [vmem:[%s172 + $0x6b8] sm:$0xf] %vm7314, %v6734
      %7746 = vst.msk [vmem:[%s172 + $0x6bc] sm:$0xf] %vm7314, %v6735
      %7747 = vst.msk [vmem:[%s172 + $0x6c0] sm:$0xf] %vm7314, %v6736
      %7748 = vst.msk [vmem:[%s172 + $0x6c4] sm:$0xf] %vm7314, %v6737
      %7749 = vst.msk [vmem:[%s172 + $0x6c8] sm:$0xf] %vm7314, %v6738
      %7750 = vst.msk [vmem:[%s172 + $0x6cc] sm:$0xf] %vm7314, %v6739
      %7751 = vst.msk [vmem:[%s172 + $0x6d0] sm:$0xf] %vm7314, %v6740
      %7752 = vst.msk [vmem:[%s172 + $0x6d4] sm:$0xf] %vm7314, %v6741
      %7753 = vst.msk [vmem:[%s172 + $0x6d8] sm:$0xf] %vm7314, %v6742
      %7754 = vst.msk [vmem:[%s172 + $0x6dc] sm:$0xf] %vm7314, %v6743
      %7755 = vst.msk [vmem:[%s172 + $0x6e0] sm:$0xf] %vm7314, %v6744
      %7756 = vst.msk [vmem:[%s172 + $0x6e4] sm:$0xf] %vm7314, %v6745
      %7757 = vst.msk [vmem:[%s172 + $0x6e8] sm:$0xf] %vm7314, %v6746
      %7758 = vst.msk [vmem:[%s172 + $0x6ec] sm:$0xf] %vm7314, %v6747
      %7759 = vst.msk [vmem:[%s172 + $0x6f0] sm:$0xf] %vm7314, %v6748
      %7760 = vst.msk [vmem:[%s172 + $0x6f4] sm:$0xf] %vm7314, %v6749
      %7761 = vst.msk [vmem:[%s172 + $0x6f8] sm:$0xf] %vm7314, %v6750
      %7762 = vst.msk [vmem:[%s172 + $0x6fc] sm:$0xf] %vm7314, %v6751
      %7763 = vst.msk [vmem:[%s172 + $0x700] sm:$0xf] %vm7314, %v6752
      %7764 = vst.msk [vmem:[%s172 + $0x704] sm:$0xf] %vm7314, %v6753
      %7765 = vst.msk [vmem:[%s172 + $0x708] sm:$0xf] %vm7314, %v6754
      %7766 = vst.msk [vmem:[%s172 + $0x70c] sm:$0xf] %vm7314, %v6755
      %7767 = vst.msk [vmem:[%s172 + $0x710] sm:$0xf] %vm7314, %v6756
      %7768 = vst.msk [vmem:[%s172 + $0x714] sm:$0xf] %vm7314, %v6757
      %7769 = vst.msk [vmem:[%s172 + $0x718] sm:$0xf] %vm7314, %v6758
      %7770 = vst.msk [vmem:[%s172 + $0x71c] sm:$0xf] %vm7314, %v6759
      %7771 = vst.msk [vmem:[%s172 + $0x720] sm:$0xf] %vm7314, %v6760
      %7772 = vst.msk [vmem:[%s172 + $0x724] sm:$0xf] %vm7314, %v6761
      %7773 = vst.msk [vmem:[%s172 + $0x728] sm:$0xf] %vm7314, %v6762
      %7774 = vst.msk [vmem:[%s172 + $0x72c] sm:$0xf] %vm7314, %v6763
      %7775 = vst.msk [vmem:[%s172 + $0x730] sm:$0xf] %vm7314, %v6764
      %7776 = vst.msk [vmem:[%s172 + $0x734] sm:$0xf] %vm7314, %v6765
      %7777 = vst.msk [vmem:[%s172 + $0x738] sm:$0xf] %vm7314, %v6766
      %7778 = vst.msk [vmem:[%s172 + $0x73c] sm:$0xf] %vm7314, %v6767
      %7779 = vst.msk [vmem:[%s172 + $0x740] sm:$0xf] %vm7314, %v6768
      %7780 = vst.msk [vmem:[%s172 + $0x744] sm:$0xf] %vm7314, %v6769
      %7781 = vst.msk [vmem:[%s172 + $0x748] sm:$0xf] %vm7314, %v6770
      %7782 = vst.msk [vmem:[%s172 + $0x74c] sm:$0xf] %vm7314, %v6771
      %7783 = vst.msk [vmem:[%s172 + $0x750] sm:$0xf] %vm7314, %v6772
      %7784 = vst.msk [vmem:[%s172 + $0x754] sm:$0xf] %vm7314, %v6773
      %7785 = vst.msk [vmem:[%s172 + $0x758] sm:$0xf] %vm7314, %v6774
      %7786 = vst.msk [vmem:[%s172 + $0x75c] sm:$0xf] %vm7314, %v6775
      %7787 = vst.msk [vmem:[%s172 + $0x760] sm:$0xf] %vm7314, %v6776
      %7788 = vst.msk [vmem:[%s172 + $0x764] sm:$0xf] %vm7314, %v6777
      %7789 = vst.msk [vmem:[%s172 + $0x768] sm:$0xf] %vm7314, %v6778
      %7790 = vst.msk [vmem:[%s172 + $0x76c] sm:$0xf] %vm7314, %v6779
      %7791 = vst.msk [vmem:[%s172 + $0x770] sm:$0xf] %vm7314, %v6780
      %7792 = vst.msk [vmem:[%s172 + $0x774] sm:$0xf] %vm7314, %v6781
      %7793 = vst.msk [vmem:[%s172 + $0x778] sm:$0xf] %vm7314, %v6782
      %7794 = vst.msk [vmem:[%s172 + $0x77c] sm:$0xf] %vm7314, %v6783
      %7795 = vst.msk [vmem:[%s172 + $0x780] sm:$0xf] %vm7314, %v6784
      %7796 = vst.msk [vmem:[%s172 + $0x784] sm:$0xf] %vm7314, %v6785
      %7797 = vst.msk [vmem:[%s172 + $0x788] sm:$0xf] %vm7314, %v6786
      %7798 = vst.msk [vmem:[%s172 + $0x78c] sm:$0xf] %vm7314, %v6787
      %7799 = vst.msk [vmem:[%s172 + $0x790] sm:$0xf] %vm7314, %v6788
      %7800 = vst.msk [vmem:[%s172 + $0x794] sm:$0xf] %vm7314, %v6789
      %7801 = vst.msk [vmem:[%s172 + $0x798] sm:$0xf] %vm7314, %v6790
      %7802 = vst.msk [vmem:[%s172 + $0x79c] sm:$0xf] %vm7314, %v6791
      %7803 = vst.msk [vmem:[%s172 + $0x7a0] sm:$0xf] %vm7314, %v6792
      %7804 = vst.msk [vmem:[%s172 + $0x7a4] sm:$0xf] %vm7314, %v6793
      %7805 = vst.msk [vmem:[%s172 + $0x7a8] sm:$0xf] %vm7314, %v6794
      %7806 = vst.msk [vmem:[%s172 + $0x7ac] sm:$0xf] %vm7314, %v6795
      %7807 = vst.msk [vmem:[%s172 + $0x7b0] sm:$0xf] %vm7314, %v6796
      %7808 = vst.msk [vmem:[%s172 + $0x7b4] sm:$0xf] %vm7314, %v6797
      %7809 = vst.msk [vmem:[%s172 + $0x7b8] sm:$0xf] %vm7314, %v6798
      %7810 = vst.msk [vmem:[%s172 + $0x7bc] sm:$0xf] %vm7314, %v6799
      %7811 = vst.msk [vmem:[%s172 + $0x7c0] sm:$0xf] %vm7314, %v6800
      %7812 = vst.msk [vmem:[%s172 + $0x7c4] sm:$0xf] %vm7314, %v6801
      %7813 = vst.msk [vmem:[%s172 + $0x7c8] sm:$0xf] %vm7314, %v6802
      %7814 = vst.msk [vmem:[%s172 + $0x7cc] sm:$0xf] %vm7314, %v6803
      %7815 = vst.msk [vmem:[%s172 + $0x7d0] sm:$0xf] %vm7314, %v6804
      %7816 = vst.msk [vmem:[%s172 + $0x7d4] sm:$0xf] %vm7314, %v6805
      %7817 = vst.msk [vmem:[%s172 + $0x7d8] sm:$0xf] %vm7314, %v6806
      %7818 = vst.msk [vmem:[%s172 + $0x7dc] sm:$0xf] %vm7314, %v6807
      %7819 = vst.msk [vmem:[%s172 + $0x7e0] sm:$0xf] %vm7314, %v6808
      %s7820 = smul.u32 505, %s14
      %p7821 = scmp.lt.s32.totalorder %s7820, 5554
      %s7822 = scalar_select %p7821, %s7820, 5554
      %s7823 = smul.addr %s7822, 4
      %s7824 = scalar_lea.vmem %s3, %s7823
      // Predicated region
      $region33: #{tpu_custom_call.1} parent=31 // pred_check
        %p7825 = pneg %p100
      $region34: #{tpu_custom_call.1} parent=31 // pred_check_branch
        %7827 = sbr.rel (%p7825) target = $region36
      $region35: #{tpu_custom_call.1} parent=31 // pred_region
        %s7828 = smul.u32 505, %s14
      $region36: #{tpu_custom_call.1} parent=31 // pred_fallthru
        _
    $region32: #{tpu_custom_call.1} parent=5 // pred_fallthru
      _
    %p7829 = scmp.le.s32.totalorder 2, %s9
    // Predicated region
    $region37: #{tpu_custom_call.1} parent=5 // pred_check
      %p7830 = pneg %p7829
    $region38: #{tpu_custom_call.1} parent=5 // pred_check_branch
      %7832 = sbr.rel (%p7830) target = $region40
    $region39: #{tpu_custom_call.1} parent=5 // pred_region
      %s7833 = ssub.s32 %s9, 2
      // Predicated region
      $region41: #{tpu_custom_call.1} parent=39 // pred_check
        %p7834 = pneg %p106
      $region42: #{tpu_custom_call.1} parent=39 // pred_check_branch
        %7836 = sbr.rel (%p7834) target = $region44
      $region43: #{tpu_custom_call.1} parent=39 // pred_region
        %s7837 = smul.u32 505, %s15
        %p7838 = scmp.lt.s32.totalorder %s7837, 5554
        %s7839 = scalar_select %p7838, %s7837, 5554
        %s7840 = smul.addr %s7839, 4
        %s7841 = scalar_lea.vmem %s3, %s7840
      $region44: #{tpu_custom_call.1} parent=39 // pred_fallthru
        _
    $region40: #{tpu_custom_call.1} parent=5 // pred_fallthru
      _
  $region6: #{tpu_custom_call.1} parent=0 // loop_footer
    %s13 = sadd.s32 1, %s9
  $region7: #{tpu_custom_call.1} parent=0 // loop_footer_branch
    %8 = sbr.rel target = $region3
  $region8: #{tpu_custom_call.1} parent=0 // loop_exit
    _

</llo_original>
